<compile_context>
chip_gen: v7x
topology: tpu7x:2x2x1
jax: 0.10.0
libtpu: 0.0.40
codegen_flags: <defaults>
</compile_context>

<pallas_src>
import functools

import jax
import jax.numpy as jnp
from jax.experimental import pallas as pl
from jax.experimental.pallas import tpu as pltpu

INITRANGE = 0.04


def _build_schedule(arch, num_nodes, use_avg_leaf):
    """Static schedule derived from arch: predecessor groups, activations, leaves."""
    arch = tuple(int(a) for a in arch)
    preds = [arch[2 * i] for i in range(num_nodes)]
    acts = {i + 1: arch[2 * i + 1] for i in range(num_nodes)}

    # Group nodes by predecessor state.  Processing groups in ascending predecessor
    # order is topologically valid: the node that produces state p has pred < p.
    groups_dict = {}
    for i in range(num_nodes):
        groups_dict.setdefault(preds[i], []).append(i + 1)
    groups = tuple((p, tuple(nodes)) for p, nodes in sorted(groups_dict.items()))

    concat = set(range(1, num_nodes + 1))
    for p in preds:
        concat.discard(p)
    if use_avg_leaf:
        leaf_idxs = sorted(concat)
    else:
        leaf_idxs = list(range(num_nodes + 1))[-num_nodes:]
    return groups, acts, frozenset(leaf_idxs), 1.0 / float(len(leaf_idxs))


def _make_nao_cell_kernel(groups, acts, leaf_set, inv_n_leaf, nhid, tb,
                          handle_hidden_mode):
    """Builds a kernel that processes `tb` timesteps per grid iteration.

    The recurrent hidden state is carried across grid steps in a VMEM scratch
    buffer (the single grid axis is sequential / "arbitrary") and carried in
    registers within a block.
    """
    n_groups = len(groups)

    def kernel(*refs):
        x_ref, h0_ref, w0x_ref, w0h_ref = refs[0:4]
        ws_refs = refs[4:4 + n_groups]
        out_ref = refs[4 + n_groups]
        h_state = refs[5 + n_groups]

        # Initialize the carried hidden state from hidden[0] on the first block.
        @pl.when(pl.program_id(0) == 0)
        def _():
            h_state[...] = h0_ref[0].astype(jnp.float32)

        wdt = w0x_ref.dtype   # MXU input dtype follows the weights (f32 or bf16)

        h_prev = h_state[...]                                       # (B, nhid) f32

        # Static unrolled loop over the Tb timesteps held in this block.
        for tt in range(tb):
            # ----- _compute_init_state -----
            #   [x, h] @ W0  ==  x @ W0[:ninp] + h @ W0[ninp:]   (no lane concat)
            ch0 = (jnp.dot(x_ref[tt].astype(wdt), w0x_ref[...],
                           preferred_element_type=jnp.float32)
                   + jnp.dot(h_prev.astype(wdt), w0h_ref[...],
                             preferred_element_type=jnp.float32))   # (B, 2*nhid)
            c0 = jax.nn.sigmoid(ch0[:, :nhid])
            hc0 = jnp.tanh(ch0[:, nhid:])
            s0 = h_prev + c0 * (hc0 - h_prev)

            # ----- intermediate nodes, grouped by predecessor (static arch) -----
            states = {0: s0}
            acc = s0 if 0 in leaf_set else None

            for gi in range(n_groups):
                pred, nodes = groups[gi]
                s_prev = states[pred]
                # One fused matmul for every node reading state `pred`.
                ch_all = jnp.dot(s_prev.astype(wdt), ws_refs[gi][...],
                                 preferred_element_type=jnp.float32)
                for k, node in enumerate(nodes):
                    base = 2 * nhid * k
                    c = jax.nn.sigmoid(ch_all[:, base:base + nhid])
                    hraw = ch_all[:, base + nhid:base + 2 * nhid]
                    act = acts[node]
                    if act == 0:
                        hraw = jnp.tanh(hraw)
                    elif act == 1:
                        hraw = jnp.maximum(hraw, 0.0)
                    elif act == 2:
                        hraw = jax.nn.sigmoid(hraw)
                    elif act == 3:
                        pass  # identity
                    else:
                        raise NotImplementedError(f"bad activation id {act}")
                    s = s_prev + c * (hraw - s_prev)
                    states[node] = s
                    if node in leaf_set:
                        acc = s if acc is None else acc + s

            out = acc * inv_n_leaf
            if handle_hidden_mode == 'ACTIVATION':
                out = jnp.tanh(out)

            h_prev = out
            out_ref[tt] = out.astype(out_ref.dtype)

        # Persist the carried hidden state for the next grid step.
        h_state[...] = h_prev

    return kernel


def nao_cell_forward(inputs, hidden, W0, Ws, arch, *,
                     use_avg_leaf=False, handle_hidden_mode='None', tb=None):
    """Pallas implementation of NAOCell.forward (eval mode).

    inputs: (T, B, ninp)   hidden: (1, B, nhid)
    W0: (ninp + nhid, 2*nhid)   Ws: (num_nodes, nhid, 2*nhid)
    Returns (hiddens (T, B, nhid), last_hidden (1, B, nhid)).
    """
    T, B, ninp = inputs.shape
    num_nodes, nhid, two_nhid = Ws.shape
    assert two_nhid == 2 * nhid
    assert W0.shape == (ninp + nhid, 2 * nhid)
    assert hidden.shape == (1, B, nhid)
    assert len(arch) == 2 * num_nodes

    if tb is None:
        tb = T                      # default: whole sequence in one kernel invocation
    assert T % tb == 0, "T must be divisible by the timestep block size"

    # Row-wise split of W0 so the kernel never concatenates along the lane dim.
    W0x, W0h = W0[:ninp], W0[ninp:]

    # Static schedule + per-group fused weight matrices (concat along output lanes).
    groups, acts, leaf_set, inv_n_leaf = _build_schedule(arch, num_nodes, use_avg_leaf)
    group_ws = [jnp.concatenate([Ws[n - 1] for n in nodes], axis=-1)
                for (_, nodes) in groups]           # each: (nhid, 2*nhid*len(nodes))

    kernel = _make_nao_cell_kernel(groups, acts, leaf_set, inv_n_leaf, nhid, tb,
                                   handle_hidden_mode)

    in_specs = [
        pl.BlockSpec((tb, B, ninp), lambda t: (t, 0, 0)),            # x block
        pl.BlockSpec((1, B, nhid), lambda t: (0, 0, 0)),             # hidden[0]
        pl.BlockSpec((ninp, 2 * nhid), lambda t: (0, 0)),            # W0[:ninp]
        pl.BlockSpec((nhid, 2 * nhid), lambda t: (0, 0)),            # W0[ninp:]
    ] + [
        pl.BlockSpec((nhid, 2 * nhid * len(nodes)), lambda t: (0, 0))  # grouped Ws
        for (_, nodes) in groups
    ]

    hiddens = pl.pallas_call(
        kernel,
        out_shape=jax.ShapeDtypeStruct((T, B, nhid), inputs.dtype),
        grid_spec=pltpu.PrefetchScalarGridSpec(
            num_scalar_prefetch=0,
            grid=(T // tb,),
            in_specs=in_specs,
            out_specs=pl.BlockSpec((tb, B, nhid), lambda t: (t, 0, 0)),
            scratch_shapes=[pltpu.VMEM((B, nhid), jnp.float32)],     # carried h
        ),
        compiler_params=pltpu.CompilerParams(
            dimension_semantics=("arbitrary",)),                     # recurrence
    )(inputs, hidden, W0x, W0h, *group_ws)

    return hiddens, hiddens[-1][None]


# ---------------- pure-JAX reference (mirrors the PyTorch code) ----------------
def nao_cell_reference(inputs, hidden, W0, Ws, arch, *,
                       use_avg_leaf=False, handle_hidden_mode='None'):
    T, B, ninp = inputs.shape
    num_nodes, nhid, _ = Ws.shape
    h = hidden[0].astype(jnp.float32)

    def one_step(x, h_prev):
        xh = jnp.concatenate([x, h_prev], axis=-1)
        ch = xh @ W0
        c0 = jax.nn.sigmoid(ch[:, :nhid])
        h0 = jnp.tanh(ch[:, nhid:])
        s0 = h_prev + c0 * (h0 - h_prev)
        states = [s0]
        concat = set(range(1, num_nodes + 1))
        for i in range(num_nodes):
            pred, act = arch[2 * i], arch[2 * i + 1]
            s_prev = states[pred]
            ch_i = s_prev @ Ws[i]
            c = jax.nn.sigmoid(ch_i[:, :nhid])
            hh = ch_i[:, nhid:]
            hh = [jnp.tanh, lambda v: jnp.maximum(v, 0.0),
                  jax.nn.sigmoid, lambda v: v][act](hh)
            states.append(s_prev + c * (hh - s_prev))
            concat.discard(pred)
        idxs = sorted(concat) if use_avg_leaf else list(range(num_nodes + 1))[-num_nodes:]
        out = jnp.mean(jnp.stack([states[i] for i in idxs], -1), -1)
        if handle_hidden_mode == 'ACTIVATION':
            out = jnp.tanh(out)
        return out

    outs = []
    for t in range(T):
        h = one_step(inputs[t].astype(jnp.float32), h)
        outs.append(h)
    hiddens = jnp.stack(outs).astype(inputs.dtype)
    return hiddens, hiddens[-1][None]


if __name__ == "__main__":
    # Small shapes consistent with the module's forward.
    T, B, ninp, nhid = 8, 8, 32, 32
    num_nodes = 8
    # arch[2i] = predecessor node index (<= i), arch[2i+1] = activation id in [0,3]
    arch = [0, 0, 0, 1, 1, 2, 1, 3, 2, 0, 3, 1, 4, 2, 5, 3]

    key = jax.random.PRNGKey(0)
    k1, k2, k3, k4 = jax.random.split(key, 4)
    inputs = jax.random.normal(k1, (T, B, ninp), dtype=jnp.float32)
    hidden = jax.random.normal(k2, (1, B, nhid), dtype=jnp.float32)
    W0 = jax.random.uniform(k3, (ninp + nhid, 2 * nhid),
                            minval=-INITRANGE, maxval=INITRANGE, dtype=jnp.float32)
    Ws = jax.random.uniform(k4, (num_nodes, nhid, 2 * nhid),
                            minval=-INITRANGE, maxval=INITRANGE, dtype=jnp.float32)

    run = jax.jit(functools.partial(nao_cell_forward, arch=arch))
    hiddens, h_last = run(inputs, hidden, W0, Ws)
    jax.block_until_ready((hiddens, h_last))

    # Correctness check against the pure-JAX reference of the PyTorch module.
    ref_hiddens, ref_last = nao_cell_reference(inputs, hidden, W0, Ws, arch)
    assert hiddens.shape == (T, B, nhid) and h_last.shape == (1, B, nhid)
    assert jnp.allclose(hiddens, ref_hiddens, atol=1e-5, rtol=1e-5)
    assert jnp.allclose(h_last, ref_last, atol=1e-5, rtol=1e-5)

    print("KERNEL_OK")
</pallas_src>

<mosaic_0001>
module attributes {stable_mosaic.version = 11 : i64} {
  func.func @kernel(%arg0: i32, %arg1: memref<8x8x32xf32, #tpu.memory_space<vmem>>, %arg2: memref<1x8x32xf32, #tpu.memory_space<vmem>>, %arg3: memref<32x64xf32, #tpu.memory_space<vmem>>, %arg4: memref<32x64xf32, #tpu.memory_space<vmem>>, %arg5: memref<32x128xf32, #tpu.memory_space<vmem>>, %arg6: memref<32x128xf32, #tpu.memory_space<vmem>>, %arg7: memref<32x64xf32, #tpu.memory_space<vmem>>, %arg8: memref<32x64xf32, #tpu.memory_space<vmem>>, %arg9: memref<32x64xf32, #tpu.memory_space<vmem>>, %arg10: memref<32x64xf32, #tpu.memory_space<vmem>>, %arg11: memref<8x8x32xf32, #tpu.memory_space<vmem>>, %arg12: memref<8x32xf32, #tpu.memory_space<vmem>>) attributes {dimension_semantics = [#tpu.dimension_semantics<arbitrary>], iteration_bounds = array<i64: 1>, scalar_prefetch = 0 : i64, scratch_operands = 1 : i64, tpu.core_type = #tpu.core_type<tc>, window_params = [{transform_indices = @transform_0, window_bounds = array<i64: 8, 8, 32>}, {pipeline_mode = #tpu.pipeline_mode<synchronous>, transform_indices = @transform_1, window_bounds = array<i64: 1, 8, 32>}, {pipeline_mode = #tpu.pipeline_mode<synchronous>, transform_indices = @transform_2, window_bounds = array<i64: 32, 64>}, {pipeline_mode = #tpu.pipeline_mode<synchronous>, transform_indices = @transform_3, window_bounds = array<i64: 32, 64>}, {pipeline_mode = #tpu.pipeline_mode<synchronous>, transform_indices = @transform_4, window_bounds = array<i64: 32, 128>}, {pipeline_mode = #tpu.pipeline_mode<synchronous>, transform_indices = @transform_5, window_bounds = array<i64: 32, 128>}, {pipeline_mode = #tpu.pipeline_mode<synchronous>, transform_indices = @transform_6, window_bounds = array<i64: 32, 64>}, {pipeline_mode = #tpu.pipeline_mode<synchronous>, transform_indices = @transform_7, window_bounds = array<i64: 32, 64>}, {pipeline_mode = #tpu.pipeline_mode<synchronous>, transform_indices = @transform_8, window_bounds = array<i64: 32, 64>}, {pipeline_mode = #tpu.pipeline_mode<synchronous>, transform_indices = @transform_9, window_bounds = array<i64: 32, 64>}, {transform_indices = @transform_10, window_bounds = array<i64: 8, 8, 32>}]} {
    %c0_i32 = arith.constant 0 : i32
    %0 = arith.cmpi eq, %arg0, %c0_i32 : i32
    %1 = arith.extui %0 : i1 to i32
    %c0_i32_0 = arith.constant 0 : i32
    %2 = arith.cmpi ne, %1, %c0_i32_0 : i32
    scf.if %2 {
      %c0_348 = arith.constant 0 : index
      %c0_349 = arith.constant 0 : index
      %c0_350 = arith.constant 0 : index
      %1109 = vector.load %arg2[%c0_348, %c0_349, %c0_350] : memref<1x8x32xf32, #tpu.memory_space<vmem>>, vector<1x8x32xf32>
      %1110 = vector.shape_cast %1109 : vector<1x8x32xf32> to vector<8x32xf32>
      %c0_351 = arith.constant 0 : index
      %c0_352 = arith.constant 0 : index
      %1111 = vector.load %arg12[%c0_351, %c0_352] : memref<8x32xf32, #tpu.memory_space<vmem>>, vector<8x32xf32>
      tpu.vector_store %arg12[%c0_351, %c0_352], %1110 {strides = array<i32>} : memref<8x32xf32, #tpu.memory_space<vmem>>, vector<8x32xf32>,
    } else {
    }
    %c0 = arith.constant 0 : index
    %c0_1 = arith.constant 0 : index
    %3 = vector.load %arg12[%c0, %c0_1] : memref<8x32xf32, #tpu.memory_space<vmem>>, vector<8x32xf32>
    %c0_2 = arith.constant 0 : index
    %c0_3 = arith.constant 0 : index
    %c0_4 = arith.constant 0 : index
    %4 = vector.load %arg1[%c0_2, %c0_3, %c0_4] : memref<8x8x32xf32, #tpu.memory_space<vmem>>, vector<1x8x32xf32>
    %5 = vector.shape_cast %4 : vector<1x8x32xf32> to vector<8x32xf32>
    %c0_5 = arith.constant 0 : index
    %c0_6 = arith.constant 0 : index
    %6 = vector.load %arg3[%c0_5, %c0_6] : memref<32x64xf32, #tpu.memory_space<vmem>>, vector<32x64xf32>
    %cst = arith.constant dense<0.000000e+00> : vector<8x64xf32>
    %7 = tpu.matmul %5, %6, %cst {dimension_numbers = #tpu.dot_dimension_numbers<[1], [0], [0], [1], [0, 0, 1, 1], [], []>} : vector<8x32xf32>, vector<32x64xf32>, vector<8x64xf32> -> vector<8x64xf32>
    %c0_7 = arith.constant 0 : index
    %c0_8 = arith.constant 0 : index
    %8 = vector.load %arg4[%c0_7, %c0_8] : memref<32x64xf32, #tpu.memory_space<vmem>>, vector<32x64xf32>
    %cst_9 = arith.constant dense<0.000000e+00> : vector<8x64xf32>
    %9 = tpu.matmul %3, %8, %cst_9 {dimension_numbers = #tpu.dot_dimension_numbers<[1], [0], [0], [1], [0, 0, 1, 1], [], []>} : vector<8x32xf32>, vector<32x64xf32>, vector<8x64xf32> -> vector<8x64xf32>
    %10 = arith.addf %7, %9 : vector<8x64xf32>
    %11 = vector.extract_strided_slice %10 {offsets = [0, 0], sizes = [8, 32], strides = [1, 1]} : vector<8x64xf32> to vector<8x32xf32>
    %12 = arith.negf %11 : vector<8x32xf32>
    %13 = math.exp %12 : vector<8x32xf32>
    %cst_10 = arith.constant 1.000000e+00 : f32
    %14 = vector.broadcast %cst_10 : f32 to vector<8x32xf32>
    %15 = arith.addf %14, %13 : vector<8x32xf32>
    %16 = arith.divf %14, %15 : vector<8x32xf32>
    %17 = vector.extract_strided_slice %10 {offsets = [0, 32], sizes = [8, 32], strides = [1, 1]} : vector<8x64xf32> to vector<8x32xf32>
    %18 = math.tanh %17 : vector<8x32xf32>
    %19 = arith.subf %18, %3 : vector<8x32xf32>
    %20 = arith.mulf %16, %19 : vector<8x32xf32>
    %21 = arith.addf %3, %20 : vector<8x32xf32>
    %c0_11 = arith.constant 0 : index
    %c0_12 = arith.constant 0 : index
    %22 = vector.load %arg5[%c0_11, %c0_12] : memref<32x128xf32, #tpu.memory_space<vmem>>, vector<32x128xf32>
    %cst_13 = arith.constant dense<0.000000e+00> : vector<8x128xf32>
    %23 = tpu.matmul %21, %22, %cst_13 {dimension_numbers = #tpu.dot_dimension_numbers<[1], [0], [0], [1], [0, 0, 1, 1], [], []>} : vector<8x32xf32>, vector<32x128xf32>, vector<8x128xf32> -> vector<8x128xf32>
    %24 = vector.extract_strided_slice %23 {offsets = [0, 0], sizes = [8, 32], strides = [1, 1]} : vector<8x128xf32> to vector<8x32xf32>
    %25 = arith.negf %24 : vector<8x32xf32>
    %26 = math.exp %25 : vector<8x32xf32>
    %cst_14 = arith.constant 1.000000e+00 : f32
    %27 = vector.broadcast %cst_14 : f32 to vector<8x32xf32>
    %28 = arith.addf %27, %26 : vector<8x32xf32>
    %29 = arith.divf %27, %28 : vector<8x32xf32>
    %30 = vector.extract_strided_slice %23 {offsets = [0, 32], sizes = [8, 32], strides = [1, 1]} : vector<8x128xf32> to vector<8x32xf32>
    %31 = math.tanh %30 : vector<8x32xf32>
    %32 = arith.subf %31, %21 : vector<8x32xf32>
    %33 = arith.mulf %29, %32 : vector<8x32xf32>
    %34 = arith.addf %21, %33 : vector<8x32xf32>
    %35 = vector.extract_strided_slice %23 {offsets = [0, 64], sizes = [8, 32], strides = [1, 1]} : vector<8x128xf32> to vector<8x32xf32>
    %36 = arith.negf %35 : vector<8x32xf32>
    %37 = math.exp %36 : vector<8x32xf32>
    %cst_15 = arith.constant 1.000000e+00 : f32
    %38 = vector.broadcast %cst_15 : f32 to vector<8x32xf32>
    %39 = arith.addf %38, %37 : vector<8x32xf32>
    %40 = arith.divf %38, %39 : vector<8x32xf32>
    %41 = vector.extract_strided_slice %23 {offsets = [0, 96], sizes = [8, 32], strides = [1, 1]} : vector<8x128xf32> to vector<8x32xf32>
    %cst_16 = arith.constant 0.000000e+00 : f32
    %42 = vector.broadcast %cst_16 : f32 to vector<8x32xf32>
    %43 = arith.maximumf %41, %42 : vector<8x32xf32>
    %44 = arith.subf %43, %21 : vector<8x32xf32>
    %45 = arith.mulf %40, %44 : vector<8x32xf32>
    %46 = arith.addf %21, %45 : vector<8x32xf32>
    %47 = arith.addf %34, %46 : vector<8x32xf32>
    %c0_17 = arith.constant 0 : index
    %c0_18 = arith.constant 0 : index
    %48 = vector.load %arg6[%c0_17, %c0_18] : memref<32x128xf32, #tpu.memory_space<vmem>>, vector<32x128xf32>
    %cst_19 = arith.constant dense<0.000000e+00> : vector<8x128xf32>
    %49 = tpu.matmul %34, %48, %cst_19 {dimension_numbers = #tpu.dot_dimension_numbers<[1], [0], [0], [1], [0, 0, 1, 1], [], []>} : vector<8x32xf32>, vector<32x128xf32>, vector<8x128xf32> -> vector<8x128xf32>
    %50 = vector.extract_strided_slice %49 {offsets = [0, 0], sizes = [8, 32], strides = [1, 1]} : vector<8x128xf32> to vector<8x32xf32>
    %51 = arith.negf %50 : vector<8x32xf32>
    %52 = math.exp %51 : vector<8x32xf32>
    %cst_20 = arith.constant 1.000000e+00 : f32
    %53 = vector.broadcast %cst_20 : f32 to vector<8x32xf32>
    %54 = arith.addf %53, %52 : vector<8x32xf32>
    %55 = arith.divf %53, %54 : vector<8x32xf32>
    %56 = vector.extract_strided_slice %49 {offsets = [0, 32], sizes = [8, 32], strides = [1, 1]} : vector<8x128xf32> to vector<8x32xf32>
    %57 = arith.negf %56 : vector<8x32xf32>
    %58 = math.exp %57 : vector<8x32xf32>
    %cst_21 = arith.constant 1.000000e+00 : f32
    %59 = vector.broadcast %cst_21 : f32 to vector<8x32xf32>
    %60 = arith.addf %59, %58 : vector<8x32xf32>
    %61 = arith.divf %59, %60 : vector<8x32xf32>
    %62 = arith.subf %61, %34 : vector<8x32xf32>
    %63 = arith.mulf %55, %62 : vector<8x32xf32>
    %64 = arith.addf %34, %63 : vector<8x32xf32>
    %65 = arith.addf %47, %64 : vector<8x32xf32>
    %66 = vector.extract_strided_slice %49 {offsets = [0, 64], sizes = [8, 32], strides = [1, 1]} : vector<8x128xf32> to vector<8x32xf32>
    %67 = arith.negf %66 : vector<8x32xf32>
    %68 = math.exp %67 : vector<8x32xf32>
    %cst_22 = arith.constant 1.000000e+00 : f32
    %69 = vector.broadcast %cst_22 : f32 to vector<8x32xf32>
    %70 = arith.addf %69, %68 : vector<8x32xf32>
    %71 = arith.divf %69, %70 : vector<8x32xf32>
    %72 = vector.extract_strided_slice %49 {offsets = [0, 96], sizes = [8, 32], strides = [1, 1]} : vector<8x128xf32> to vector<8x32xf32>
    %73 = arith.subf %72, %34 : vector<8x32xf32>
    %74 = arith.mulf %71, %73 : vector<8x32xf32>
    %75 = arith.addf %34, %74 : vector<8x32xf32>
    %76 = arith.addf %65, %75 : vector<8x32xf32>
    %c0_23 = arith.constant 0 : index
    %c0_24 = arith.constant 0 : index
    %77 = vector.load %arg7[%c0_23, %c0_24] : memref<32x64xf32, #tpu.memory_space<vmem>>, vector<32x64xf32>
    %cst_25 = arith.constant dense<0.000000e+00> : vector<8x64xf32>
    %78 = tpu.matmul %46, %77, %cst_25 {dimension_numbers = #tpu.dot_dimension_numbers<[1], [0], [0], [1], [0, 0, 1, 1], [], []>} : vector<8x32xf32>, vector<32x64xf32>, vector<8x64xf32> -> vector<8x64xf32>
    %79 = vector.extract_strided_slice %78 {offsets = [0, 0], sizes = [8, 32], strides = [1, 1]} : vector<8x64xf32> to vector<8x32xf32>
    %80 = arith.negf %79 : vector<8x32xf32>
    %81 = math.exp %80 : vector<8x32xf32>
    %cst_26 = arith.constant 1.000000e+00 : f32
    %82 = vector.broadcast %cst_26 : f32 to vector<8x32xf32>
    %83 = arith.addf %82, %81 : vector<8x32xf32>
    %84 = arith.divf %82, %83 : vector<8x32xf32>
    %85 = vector.extract_strided_slice %78 {offsets = [0, 32], sizes = [8, 32], strides = [1, 1]} : vector<8x64xf32> to vector<8x32xf32>
    %86 = math.tanh %85 : vector<8x32xf32>
    %87 = arith.subf %86, %46 : vector<8x32xf32>
    %88 = arith.mulf %84, %87 : vector<8x32xf32>
    %89 = arith.addf %46, %88 : vector<8x32xf32>
    %90 = arith.addf %76, %89 : vector<8x32xf32>
    %c0_27 = arith.constant 0 : index
    %c0_28 = arith.constant 0 : index
    %91 = vector.load %arg8[%c0_27, %c0_28] : memref<32x64xf32, #tpu.memory_space<vmem>>, vector<32x64xf32>
    %cst_29 = arith.constant dense<0.000000e+00> : vector<8x64xf32>
    %92 = tpu.matmul %64, %91, %cst_29 {dimension_numbers = #tpu.dot_dimension_numbers<[1], [0], [0], [1], [0, 0, 1, 1], [], []>} : vector<8x32xf32>, vector<32x64xf32>, vector<8x64xf32> -> vector<8x64xf32>
    %93 = vector.extract_strided_slice %92 {offsets = [0, 0], sizes = [8, 32], strides = [1, 1]} : vector<8x64xf32> to vector<8x32xf32>
    %94 = arith.negf %93 : vector<8x32xf32>
    %95 = math.exp %94 : vector<8x32xf32>
    %cst_30 = arith.constant 1.000000e+00 : f32
    %96 = vector.broadcast %cst_30 : f32 to vector<8x32xf32>
    %97 = arith.addf %96, %95 : vector<8x32xf32>
    %98 = arith.divf %96, %97 : vector<8x32xf32>
    %99 = vector.extract_strided_slice %92 {offsets = [0, 32], sizes = [8, 32], strides = [1, 1]} : vector<8x64xf32> to vector<8x32xf32>
    %cst_31 = arith.constant 0.000000e+00 : f32
    %100 = vector.broadcast %cst_31 : f32 to vector<8x32xf32>
    %101 = arith.maximumf %99, %100 : vector<8x32xf32>
    %102 = arith.subf %101, %64 : vector<8x32xf32>
    %103 = arith.mulf %98, %102 : vector<8x32xf32>
    %104 = arith.addf %64, %103 : vector<8x32xf32>
    %105 = arith.addf %90, %104 : vector<8x32xf32>
    %c0_32 = arith.constant 0 : index
    %c0_33 = arith.constant 0 : index
    %106 = vector.load %arg9[%c0_32, %c0_33] : memref<32x64xf32, #tpu.memory_space<vmem>>, vector<32x64xf32>
    %cst_34 = arith.constant dense<0.000000e+00> : vector<8x64xf32>
    %107 = tpu.matmul %75, %106, %cst_34 {dimension_numbers = #tpu.dot_dimension_numbers<[1], [0], [0], [1], [0, 0, 1, 1], [], []>} : vector<8x32xf32>, vector<32x64xf32>, vector<8x64xf32> -> vector<8x64xf32>
    %108 = vector.extract_strided_slice %107 {offsets = [0, 0], sizes = [8, 32], strides = [1, 1]} : vector<8x64xf32> to vector<8x32xf32>
    %109 = arith.negf %108 : vector<8x32xf32>
    %110 = math.exp %109 : vector<8x32xf32>
    %cst_35 = arith.constant 1.000000e+00 : f32
    %111 = vector.broadcast %cst_35 : f32 to vector<8x32xf32>
    %112 = arith.addf %111, %110 : vector<8x32xf32>
    %113 = arith.divf %111, %112 : vector<8x32xf32>
    %114 = vector.extract_strided_slice %107 {offsets = [0, 32], sizes = [8, 32], strides = [1, 1]} : vector<8x64xf32> to vector<8x32xf32>
    %115 = arith.negf %114 : vector<8x32xf32>
    %116 = math.exp %115 : vector<8x32xf32>
    %cst_36 = arith.constant 1.000000e+00 : f32
    %117 = vector.broadcast %cst_36 : f32 to vector<8x32xf32>
    %118 = arith.addf %117, %116 : vector<8x32xf32>
    %119 = arith.divf %117, %118 : vector<8x32xf32>
    %120 = arith.subf %119, %75 : vector<8x32xf32>
    %121 = arith.mulf %113, %120 : vector<8x32xf32>
    %122 = arith.addf %75, %121 : vector<8x32xf32>
    %123 = arith.addf %105, %122 : vector<8x32xf32>
    %c0_37 = arith.constant 0 : index
    %c0_38 = arith.constant 0 : index
    %124 = vector.load %arg10[%c0_37, %c0_38] : memref<32x64xf32, #tpu.memory_space<vmem>>, vector<32x64xf32>
    %cst_39 = arith.constant dense<0.000000e+00> : vector<8x64xf32>
    %125 = tpu.matmul %89, %124, %cst_39 {dimension_numbers = #tpu.dot_dimension_numbers<[1], [0], [0], [1], [0, 0, 1, 1], [], []>} : vector<8x32xf32>, vector<32x64xf32>, vector<8x64xf32> -> vector<8x64xf32>
    %126 = vector.extract_strided_slice %125 {offsets = [0, 0], sizes = [8, 32], strides = [1, 1]} : vector<8x64xf32> to vector<8x32xf32>
    %127 = arith.negf %126 : vector<8x32xf32>
    %128 = math.exp %127 : vector<8x32xf32>
    %cst_40 = arith.constant 1.000000e+00 : f32
    %129 = vector.broadcast %cst_40 : f32 to vector<8x32xf32>
    %130 = arith.addf %129, %128 : vector<8x32xf32>
    %131 = arith.divf %129, %130 : vector<8x32xf32>
    %132 = vector.extract_strided_slice %125 {offsets = [0, 32], sizes = [8, 32], strides = [1, 1]} : vector<8x64xf32> to vector<8x32xf32>
    %133 = arith.subf %132, %89 : vector<8x32xf32>
    %134 = arith.mulf %131, %133 : vector<8x32xf32>
    %135 = arith.addf %89, %134 : vector<8x32xf32>
    %136 = arith.addf %123, %135 : vector<8x32xf32>
    %cst_41 = arith.constant 1.250000e-01 : f32
    %137 = vector.broadcast %cst_41 : f32 to vector<8x32xf32>
    %138 = arith.mulf %136, %137 : vector<8x32xf32>
    %c0_42 = arith.constant 0 : index
    %c0_43 = arith.constant 0 : index
    %c0_44 = arith.constant 0 : index
    %139 = vector.load %arg11[%c0_42, %c0_43, %c0_44] : memref<8x8x32xf32, #tpu.memory_space<vmem>>, vector<1x8x32xf32>
    %140 = vector.shape_cast %139 : vector<1x8x32xf32> to vector<8x32xf32>
    %141 = vector.shape_cast %138 : vector<8x32xf32> to vector<1x8x32xf32>
    tpu.vector_store %arg11[%c0_42, %c0_43, %c0_44], %141 {strides = array<i32>} : memref<8x8x32xf32, #tpu.memory_space<vmem>>, vector<1x8x32xf32>,
    %c1 = arith.constant 1 : index
    %c0_45 = arith.constant 0 : index
    %c0_46 = arith.constant 0 : index
    %142 = vector.load %arg1[%c1, %c0_45, %c0_46] : memref<8x8x32xf32, #tpu.memory_space<vmem>>, vector<1x8x32xf32>
    %143 = vector.shape_cast %142 : vector<1x8x32xf32> to vector<8x32xf32>
    %c0_47 = arith.constant 0 : index
    %c0_48 = arith.constant 0 : index
    %144 = vector.load %arg3[%c0_47, %c0_48] : memref<32x64xf32, #tpu.memory_space<vmem>>, vector<32x64xf32>
    %cst_49 = arith.constant dense<0.000000e+00> : vector<8x64xf32>
    %145 = tpu.matmul %143, %144, %cst_49 {dimension_numbers = #tpu.dot_dimension_numbers<[1], [0], [0], [1], [0, 0, 1, 1], [], []>} : vector<8x32xf32>, vector<32x64xf32>, vector<8x64xf32> -> vector<8x64xf32>
    %c0_50 = arith.constant 0 : index
    %c0_51 = arith.constant 0 : index
    %146 = vector.load %arg4[%c0_50, %c0_51] : memref<32x64xf32, #tpu.memory_space<vmem>>, vector<32x64xf32>
    %cst_52 = arith.constant dense<0.000000e+00> : vector<8x64xf32>
    %147 = tpu.matmul %138, %146, %cst_52 {dimension_numbers = #tpu.dot_dimension_numbers<[1], [0], [0], [1], [0, 0, 1, 1], [], []>} : vector<8x32xf32>, vector<32x64xf32>, vector<8x64xf32> -> vector<8x64xf32>
    %148 = arith.addf %145, %147 : vector<8x64xf32>
    %149 = vector.extract_strided_slice %148 {offsets = [0, 0], sizes = [8, 32], strides = [1, 1]} : vector<8x64xf32> to vector<8x32xf32>
    %150 = arith.negf %149 : vector<8x32xf32>
    %151 = math.exp %150 : vector<8x32xf32>
    %cst_53 = arith.constant 1.000000e+00 : f32
    %152 = vector.broadcast %cst_53 : f32 to vector<8x32xf32>
    %153 = arith.addf %152, %151 : vector<8x32xf32>
    %154 = arith.divf %152, %153 : vector<8x32xf32>
    %155 = vector.extract_strided_slice %148 {offsets = [0, 32], sizes = [8, 32], strides = [1, 1]} : vector<8x64xf32> to vector<8x32xf32>
    %156 = math.tanh %155 : vector<8x32xf32>
    %157 = arith.subf %156, %138 : vector<8x32xf32>
    %158 = arith.mulf %154, %157 : vector<8x32xf32>
    %159 = arith.addf %138, %158 : vector<8x32xf32>
    %c0_54 = arith.constant 0 : index
    %c0_55 = arith.constant 0 : index
    %160 = vector.load %arg5[%c0_54, %c0_55] : memref<32x128xf32, #tpu.memory_space<vmem>>, vector<32x128xf32>
    %cst_56 = arith.constant dense<0.000000e+00> : vector<8x128xf32>
    %161 = tpu.matmul %159, %160, %cst_56 {dimension_numbers = #tpu.dot_dimension_numbers<[1], [0], [0], [1], [0, 0, 1, 1], [], []>} : vector<8x32xf32>, vector<32x128xf32>, vector<8x128xf32> -> vector<8x128xf32>
    %162 = vector.extract_strided_slice %161 {offsets = [0, 0], sizes = [8, 32], strides = [1, 1]} : vector<8x128xf32> to vector<8x32xf32>
    %163 = arith.negf %162 : vector<8x32xf32>
    %164 = math.exp %163 : vector<8x32xf32>
    %cst_57 = arith.constant 1.000000e+00 : f32
    %165 = vector.broadcast %cst_57 : f32 to vector<8x32xf32>
    %166 = arith.addf %165, %164 : vector<8x32xf32>
    %167 = arith.divf %165, %166 : vector<8x32xf32>
    %168 = vector.extract_strided_slice %161 {offsets = [0, 32], sizes = [8, 32], strides = [1, 1]} : vector<8x128xf32> to vector<8x32xf32>
    %169 = math.tanh %168 : vector<8x32xf32>
    %170 = arith.subf %169, %159 : vector<8x32xf32>
    %171 = arith.mulf %167, %170 : vector<8x32xf32>
    %172 = arith.addf %159, %171 : vector<8x32xf32>
    %173 = vector.extract_strided_slice %161 {offsets = [0, 64], sizes = [8, 32], strides = [1, 1]} : vector<8x128xf32> to vector<8x32xf32>
    %174 = arith.negf %173 : vector<8x32xf32>
    %175 = math.exp %174 : vector<8x32xf32>
    %cst_58 = arith.constant 1.000000e+00 : f32
    %176 = vector.broadcast %cst_58 : f32 to vector<8x32xf32>
    %177 = arith.addf %176, %175 : vector<8x32xf32>
    %178 = arith.divf %176, %177 : vector<8x32xf32>
    %179 = vector.extract_strided_slice %161 {offsets = [0, 96], sizes = [8, 32], strides = [1, 1]} : vector<8x128xf32> to vector<8x32xf32>
    %cst_59 = arith.constant 0.000000e+00 : f32
    %180 = vector.broadcast %cst_59 : f32 to vector<8x32xf32>
    %181 = arith.maximumf %179, %180 : vector<8x32xf32>
    %182 = arith.subf %181, %159 : vector<8x32xf32>
    %183 = arith.mulf %178, %182 : vector<8x32xf32>
    %184 = arith.addf %159, %183 : vector<8x32xf32>
    %185 = arith.addf %172, %184 : vector<8x32xf32>
    %c0_60 = arith.constant 0 : index
    %c0_61 = arith.constant 0 : index
    %186 = vector.load %arg6[%c0_60, %c0_61] : memref<32x128xf32, #tpu.memory_space<vmem>>, vector<32x128xf32>
    %cst_62 = arith.constant dense<0.000000e+00> : vector<8x128xf32>
    %187 = tpu.matmul %172, %186, %cst_62 {dimension_numbers = #tpu.dot_dimension_numbers<[1], [0], [0], [1], [0, 0, 1, 1], [], []>} : vector<8x32xf32>, vector<32x128xf32>, vector<8x128xf32> -> vector<8x128xf32>
    %188 = vector.extract_strided_slice %187 {offsets = [0, 0], sizes = [8, 32], strides = [1, 1]} : vector<8x128xf32> to vector<8x32xf32>
    %189 = arith.negf %188 : vector<8x32xf32>
    %190 = math.exp %189 : vector<8x32xf32>
    %cst_63 = arith.constant 1.000000e+00 : f32
    %191 = vector.broadcast %cst_63 : f32 to vector<8x32xf32>
    %192 = arith.addf %191, %190 : vector<8x32xf32>
    %193 = arith.divf %191, %192 : vector<8x32xf32>
    %194 = vector.extract_strided_slice %187 {offsets = [0, 32], sizes = [8, 32], strides = [1, 1]} : vector<8x128xf32> to vector<8x32xf32>
    %195 = arith.negf %194 : vector<8x32xf32>
    %196 = math.exp %195 : vector<8x32xf32>
    %cst_64 = arith.constant 1.000000e+00 : f32
    %197 = vector.broadcast %cst_64 : f32 to vector<8x32xf32>
    %198 = arith.addf %197, %196 : vector<8x32xf32>
    %199 = arith.divf %197, %198 : vector<8x32xf32>
    %200 = arith.subf %199, %172 : vector<8x32xf32>
    %201 = arith.mulf %193, %200 : vector<8x32xf32>
    %202 = arith.addf %172, %201 : vector<8x32xf32>
    %203 = arith.addf %185, %202 : vector<8x32xf32>
    %204 = vector.extract_strided_slice %187 {offsets = [0, 64], sizes = [8, 32], strides = [1, 1]} : vector<8x128xf32> to vector<8x32xf32>
    %205 = arith.negf %204 : vector<8x32xf32>
    %206 = math.exp %205 : vector<8x32xf32>
    %cst_65 = arith.constant 1.000000e+00 : f32
    %207 = vector.broadcast %cst_65 : f32 to vector<8x32xf32>
    %208 = arith.addf %207, %206 : vector<8x32xf32>
    %209 = arith.divf %207, %208 : vector<8x32xf32>
    %210 = vector.extract_strided_slice %187 {offsets = [0, 96], sizes = [8, 32], strides = [1, 1]} : vector<8x128xf32> to vector<8x32xf32>
    %211 = arith.subf %210, %172 : vector<8x32xf32>
    %212 = arith.mulf %209, %211 : vector<8x32xf32>
    %213 = arith.addf %172, %212 : vector<8x32xf32>
    %214 = arith.addf %203, %213 : vector<8x32xf32>
    %c0_66 = arith.constant 0 : index
    %c0_67 = arith.constant 0 : index
    %215 = vector.load %arg7[%c0_66, %c0_67] : memref<32x64xf32, #tpu.memory_space<vmem>>, vector<32x64xf32>
    %cst_68 = arith.constant dense<0.000000e+00> : vector<8x64xf32>
    %216 = tpu.matmul %184, %215, %cst_68 {dimension_numbers = #tpu.dot_dimension_numbers<[1], [0], [0], [1], [0, 0, 1, 1], [], []>} : vector<8x32xf32>, vector<32x64xf32>, vector<8x64xf32> -> vector<8x64xf32>
    %217 = vector.extract_strided_slice %216 {offsets = [0, 0], sizes = [8, 32], strides = [1, 1]} : vector<8x64xf32> to vector<8x32xf32>
    %218 = arith.negf %217 : vector<8x32xf32>
    %219 = math.exp %218 : vector<8x32xf32>
    %cst_69 = arith.constant 1.000000e+00 : f32
    %220 = vector.broadcast %cst_69 : f32 to vector<8x32xf32>
    %221 = arith.addf %220, %219 : vector<8x32xf32>
    %222 = arith.divf %220, %221 : vector<8x32xf32>
    %223 = vector.extract_strided_slice %216 {offsets = [0, 32], sizes = [8, 32], strides = [1, 1]} : vector<8x64xf32> to vector<8x32xf32>
    %224 = math.tanh %223 : vector<8x32xf32>
    %225 = arith.subf %224, %184 : vector<8x32xf32>
    %226 = arith.mulf %222, %225 : vector<8x32xf32>
    %227 = arith.addf %184, %226 : vector<8x32xf32>
    %228 = arith.addf %214, %227 : vector<8x32xf32>
    %c0_70 = arith.constant 0 : index
    %c0_71 = arith.constant 0 : index
    %229 = vector.load %arg8[%c0_70, %c0_71] : memref<32x64xf32, #tpu.memory_space<vmem>>, vector<32x64xf32>
    %cst_72 = arith.constant dense<0.000000e+00> : vector<8x64xf32>
    %230 = tpu.matmul %202, %229, %cst_72 {dimension_numbers = #tpu.dot_dimension_numbers<[1], [0], [0], [1], [0, 0, 1, 1], [], []>} : vector<8x32xf32>, vector<32x64xf32>, vector<8x64xf32> -> vector<8x64xf32>
    %231 = vector.extract_strided_slice %230 {offsets = [0, 0], sizes = [8, 32], strides = [1, 1]} : vector<8x64xf32> to vector<8x32xf32>
    %232 = arith.negf %231 : vector<8x32xf32>
    %233 = math.exp %232 : vector<8x32xf32>
    %cst_73 = arith.constant 1.000000e+00 : f32
    %234 = vector.broadcast %cst_73 : f32 to vector<8x32xf32>
    %235 = arith.addf %234, %233 : vector<8x32xf32>
    %236 = arith.divf %234, %235 : vector<8x32xf32>
    %237 = vector.extract_strided_slice %230 {offsets = [0, 32], sizes = [8, 32], strides = [1, 1]} : vector<8x64xf32> to vector<8x32xf32>
    %cst_74 = arith.constant 0.000000e+00 : f32
    %238 = vector.broadcast %cst_74 : f32 to vector<8x32xf32>
    %239 = arith.maximumf %237, %238 : vector<8x32xf32>
    %240 = arith.subf %239, %202 : vector<8x32xf32>
    %241 = arith.mulf %236, %240 : vector<8x32xf32>
    %242 = arith.addf %202, %241 : vector<8x32xf32>
    %243 = arith.addf %228, %242 : vector<8x32xf32>
    %c0_75 = arith.constant 0 : index
    %c0_76 = arith.constant 0 : index
    %244 = vector.load %arg9[%c0_75, %c0_76] : memref<32x64xf32, #tpu.memory_space<vmem>>, vector<32x64xf32>
    %cst_77 = arith.constant dense<0.000000e+00> : vector<8x64xf32>
    %245 = tpu.matmul %213, %244, %cst_77 {dimension_numbers = #tpu.dot_dimension_numbers<[1], [0], [0], [1], [0, 0, 1, 1], [], []>} : vector<8x32xf32>, vector<32x64xf32>, vector<8x64xf32> -> vector<8x64xf32>
    %246 = vector.extract_strided_slice %245 {offsets = [0, 0], sizes = [8, 32], strides = [1, 1]} : vector<8x64xf32> to vector<8x32xf32>
    %247 = arith.negf %246 : vector<8x32xf32>
    %248 = math.exp %247 : vector<8x32xf32>
    %cst_78 = arith.constant 1.000000e+00 : f32
    %249 = vector.broadcast %cst_78 : f32 to vector<8x32xf32>
    %250 = arith.addf %249, %248 : vector<8x32xf32>
    %251 = arith.divf %249, %250 : vector<8x32xf32>
    %252 = vector.extract_strided_slice %245 {offsets = [0, 32], sizes = [8, 32], strides = [1, 1]} : vector<8x64xf32> to vector<8x32xf32>
    %253 = arith.negf %252 : vector<8x32xf32>
    %254 = math.exp %253 : vector<8x32xf32>
    %cst_79 = arith.constant 1.000000e+00 : f32
    %255 = vector.broadcast %cst_79 : f32 to vector<8x32xf32>
    %256 = arith.addf %255, %254 : vector<8x32xf32>
    %257 = arith.divf %255, %256 : vector<8x32xf32>
    %258 = arith.subf %257, %213 : vector<8x32xf32>
    %259 = arith.mulf %251, %258 : vector<8x32xf32>
    %260 = arith.addf %213, %259 : vector<8x32xf32>
    %261 = arith.addf %243, %260 : vector<8x32xf32>
    %c0_80 = arith.constant 0 : index
    %c0_81 = arith.constant 0 : index
    %262 = vector.load %arg10[%c0_80, %c0_81] : memref<32x64xf32, #tpu.memory_space<vmem>>, vector<32x64xf32>
    %cst_82 = arith.constant dense<0.000000e+00> : vector<8x64xf32>
    %263 = tpu.matmul %227, %262, %cst_82 {dimension_numbers = #tpu.dot_dimension_numbers<[1], [0], [0], [1], [0, 0, 1, 1], [], []>} : vector<8x32xf32>, vector<32x64xf32>, vector<8x64xf32> -> vector<8x64xf32>
    %264 = vector.extract_strided_slice %263 {offsets = [0, 0], sizes = [8, 32], strides = [1, 1]} : vector<8x64xf32> to vector<8x32xf32>
    %265 = arith.negf %264 : vector<8x32xf32>
    %266 = math.exp %265 : vector<8x32xf32>
    %cst_83 = arith.constant 1.000000e+00 : f32
    %267 = vector.broadcast %cst_83 : f32 to vector<8x32xf32>
    %268 = arith.addf %267, %266 : vector<8x32xf32>
    %269 = arith.divf %267, %268 : vector<8x32xf32>
    %270 = vector.extract_strided_slice %263 {offsets = [0, 32], sizes = [8, 32], strides = [1, 1]} : vector<8x64xf32> to vector<8x32xf32>
    %271 = arith.subf %270, %227 : vector<8x32xf32>
    %272 = arith.mulf %269, %271 : vector<8x32xf32>
    %273 = arith.addf %227, %272 : vector<8x32xf32>
    %274 = arith.addf %261, %273 : vector<8x32xf32>
    %cst_84 = arith.constant 1.250000e-01 : f32
    %275 = vector.broadcast %cst_84 : f32 to vector<8x32xf32>
    %276 = arith.mulf %274, %275 : vector<8x32xf32>
    %c1_85 = arith.constant 1 : index
    %c0_86 = arith.constant 0 : index
    %c0_87 = arith.constant 0 : index
    %277 = vector.load %arg11[%c1_85, %c0_86, %c0_87] : memref<8x8x32xf32, #tpu.memory_space<vmem>>, vector<1x8x32xf32>
    %278 = vector.shape_cast %277 : vector<1x8x32xf32> to vector<8x32xf32>
    %279 = vector.shape_cast %276 : vector<8x32xf32> to vector<1x8x32xf32>
    tpu.vector_store %arg11[%c1_85, %c0_86, %c0_87], %279 {strides = array<i32>} : memref<8x8x32xf32, #tpu.memory_space<vmem>>, vector<1x8x32xf32>,
    %c2 = arith.constant 2 : index
    %c0_88 = arith.constant 0 : index
    %c0_89 = arith.constant 0 : index
    %280 = vector.load %arg1[%c2, %c0_88, %c0_89] : memref<8x8x32xf32, #tpu.memory_space<vmem>>, vector<1x8x32xf32>
    %281 = vector.shape_cast %280 : vector<1x8x32xf32> to vector<8x32xf32>
    %c0_90 = arith.constant 0 : index
    %c0_91 = arith.constant 0 : index
    %282 = vector.load %arg3[%c0_90, %c0_91] : memref<32x64xf32, #tpu.memory_space<vmem>>, vector<32x64xf32>
    %cst_92 = arith.constant dense<0.000000e+00> : vector<8x64xf32>
    %283 = tpu.matmul %281, %282, %cst_92 {dimension_numbers = #tpu.dot_dimension_numbers<[1], [0], [0], [1], [0, 0, 1, 1], [], []>} : vector<8x32xf32>, vector<32x64xf32>, vector<8x64xf32> -> vector<8x64xf32>
    %c0_93 = arith.constant 0 : index
    %c0_94 = arith.constant 0 : index
    %284 = vector.load %arg4[%c0_93, %c0_94] : memref<32x64xf32, #tpu.memory_space<vmem>>, vector<32x64xf32>
    %cst_95 = arith.constant dense<0.000000e+00> : vector<8x64xf32>
    %285 = tpu.matmul %276, %284, %cst_95 {dimension_numbers = #tpu.dot_dimension_numbers<[1], [0], [0], [1], [0, 0, 1, 1], [], []>} : vector<8x32xf32>, vector<32x64xf32>, vector<8x64xf32> -> vector<8x64xf32>
    %286 = arith.addf %283, %285 : vector<8x64xf32>
    %287 = vector.extract_strided_slice %286 {offsets = [0, 0], sizes = [8, 32], strides = [1, 1]} : vector<8x64xf32> to vector<8x32xf32>
    %288 = arith.negf %287 : vector<8x32xf32>
    %289 = math.exp %288 : vector<8x32xf32>
    %cst_96 = arith.constant 1.000000e+00 : f32
    %290 = vector.broadcast %cst_96 : f32 to vector<8x32xf32>
    %291 = arith.addf %290, %289 : vector<8x32xf32>
    %292 = arith.divf %290, %291 : vector<8x32xf32>
    %293 = vector.extract_strided_slice %286 {offsets = [0, 32], sizes = [8, 32], strides = [1, 1]} : vector<8x64xf32> to vector<8x32xf32>
    %294 = math.tanh %293 : vector<8x32xf32>
    %295 = arith.subf %294, %276 : vector<8x32xf32>
    %296 = arith.mulf %292, %295 : vector<8x32xf32>
    %297 = arith.addf %276, %296 : vector<8x32xf32>
    %c0_97 = arith.constant 0 : index
    %c0_98 = arith.constant 0 : index
    %298 = vector.load %arg5[%c0_97, %c0_98] : memref<32x128xf32, #tpu.memory_space<vmem>>, vector<32x128xf32>
    %cst_99 = arith.constant dense<0.000000e+00> : vector<8x128xf32>
    %299 = tpu.matmul %297, %298, %cst_99 {dimension_numbers = #tpu.dot_dimension_numbers<[1], [0], [0], [1], [0, 0, 1, 1], [], []>} : vector<8x32xf32>, vector<32x128xf32>, vector<8x128xf32> -> vector<8x128xf32>
    %300 = vector.extract_strided_slice %299 {offsets = [0, 0], sizes = [8, 32], strides = [1, 1]} : vector<8x128xf32> to vector<8x32xf32>
    %301 = arith.negf %300 : vector<8x32xf32>
    %302 = math.exp %301 : vector<8x32xf32>
    %cst_100 = arith.constant 1.000000e+00 : f32
    %303 = vector.broadcast %cst_100 : f32 to vector<8x32xf32>
    %304 = arith.addf %303, %302 : vector<8x32xf32>
    %305 = arith.divf %303, %304 : vector<8x32xf32>
    %306 = vector.extract_strided_slice %299 {offsets = [0, 32], sizes = [8, 32], strides = [1, 1]} : vector<8x128xf32> to vector<8x32xf32>
    %307 = math.tanh %306 : vector<8x32xf32>
    %308 = arith.subf %307, %297 : vector<8x32xf32>
    %309 = arith.mulf %305, %308 : vector<8x32xf32>
    %310 = arith.addf %297, %309 : vector<8x32xf32>
    %311 = vector.extract_strided_slice %299 {offsets = [0, 64], sizes = [8, 32], strides = [1, 1]} : vector<8x128xf32> to vector<8x32xf32>
    %312 = arith.negf %311 : vector<8x32xf32>
    %313 = math.exp %312 : vector<8x32xf32>
    %cst_101 = arith.constant 1.000000e+00 : f32
    %314 = vector.broadcast %cst_101 : f32 to vector<8x32xf32>
    %315 = arith.addf %314, %313 : vector<8x32xf32>
    %316 = arith.divf %314, %315 : vector<8x32xf32>
    %317 = vector.extract_strided_slice %299 {offsets = [0, 96], sizes = [8, 32], strides = [1, 1]} : vector<8x128xf32> to vector<8x32xf32>
    %cst_102 = arith.constant 0.000000e+00 : f32
    %318 = vector.broadcast %cst_102 : f32 to vector<8x32xf32>
    %319 = arith.maximumf %317, %318 : vector<8x32xf32>
    %320 = arith.subf %319, %297 : vector<8x32xf32>
    %321 = arith.mulf %316, %320 : vector<8x32xf32>
    %322 = arith.addf %297, %321 : vector<8x32xf32>
    %323 = arith.addf %310, %322 : vector<8x32xf32>
    %c0_103 = arith.constant 0 : index
    %c0_104 = arith.constant 0 : index
    %324 = vector.load %arg6[%c0_103, %c0_104] : memref<32x128xf32, #tpu.memory_space<vmem>>, vector<32x128xf32>
    %cst_105 = arith.constant dense<0.000000e+00> : vector<8x128xf32>
    %325 = tpu.matmul %310, %324, %cst_105 {dimension_numbers = #tpu.dot_dimension_numbers<[1], [0], [0], [1], [0, 0, 1, 1], [], []>} : vector<8x32xf32>, vector<32x128xf32>, vector<8x128xf32> -> vector<8x128xf32>
    %326 = vector.extract_strided_slice %325 {offsets = [0, 0], sizes = [8, 32], strides = [1, 1]} : vector<8x128xf32> to vector<8x32xf32>
    %327 = arith.negf %326 : vector<8x32xf32>
    %328 = math.exp %327 : vector<8x32xf32>
    %cst_106 = arith.constant 1.000000e+00 : f32
    %329 = vector.broadcast %cst_106 : f32 to vector<8x32xf32>
    %330 = arith.addf %329, %328 : vector<8x32xf32>
    %331 = arith.divf %329, %330 : vector<8x32xf32>
    %332 = vector.extract_strided_slice %325 {offsets = [0, 32], sizes = [8, 32], strides = [1, 1]} : vector<8x128xf32> to vector<8x32xf32>
    %333 = arith.negf %332 : vector<8x32xf32>
    %334 = math.exp %333 : vector<8x32xf32>
    %cst_107 = arith.constant 1.000000e+00 : f32
    %335 = vector.broadcast %cst_107 : f32 to vector<8x32xf32>
    %336 = arith.addf %335, %334 : vector<8x32xf32>
    %337 = arith.divf %335, %336 : vector<8x32xf32>
    %338 = arith.subf %337, %310 : vector<8x32xf32>
    %339 = arith.mulf %331, %338 : vector<8x32xf32>
    %340 = arith.addf %310, %339 : vector<8x32xf32>
    %341 = arith.addf %323, %340 : vector<8x32xf32>
    %342 = vector.extract_strided_slice %325 {offsets = [0, 64], sizes = [8, 32], strides = [1, 1]} : vector<8x128xf32> to vector<8x32xf32>
    %343 = arith.negf %342 : vector<8x32xf32>
    %344 = math.exp %343 : vector<8x32xf32>
    %cst_108 = arith.constant 1.000000e+00 : f32
    %345 = vector.broadcast %cst_108 : f32 to vector<8x32xf32>
    %346 = arith.addf %345, %344 : vector<8x32xf32>
    %347 = arith.divf %345, %346 : vector<8x32xf32>
    %348 = vector.extract_strided_slice %325 {offsets = [0, 96], sizes = [8, 32], strides = [1, 1]} : vector<8x128xf32> to vector<8x32xf32>
    %349 = arith.subf %348, %310 : vector<8x32xf32>
    %350 = arith.mulf %347, %349 : vector<8x32xf32>
    %351 = arith.addf %310, %350 : vector<8x32xf32>
    %352 = arith.addf %341, %351 : vector<8x32xf32>
    %c0_109 = arith.constant 0 : index
    %c0_110 = arith.constant 0 : index
    %353 = vector.load %arg7[%c0_109, %c0_110] : memref<32x64xf32, #tpu.memory_space<vmem>>, vector<32x64xf32>
    %cst_111 = arith.constant dense<0.000000e+00> : vector<8x64xf32>
    %354 = tpu.matmul %322, %353, %cst_111 {dimension_numbers = #tpu.dot_dimension_numbers<[1], [0], [0], [1], [0, 0, 1, 1], [], []>} : vector<8x32xf32>, vector<32x64xf32>, vector<8x64xf32> -> vector<8x64xf32>
    %355 = vector.extract_strided_slice %354 {offsets = [0, 0], sizes = [8, 32], strides = [1, 1]} : vector<8x64xf32> to vector<8x32xf32>
    %356 = arith.negf %355 : vector<8x32xf32>
    %357 = math.exp %356 : vector<8x32xf32>
    %cst_112 = arith.constant 1.000000e+00 : f32
    %358 = vector.broadcast %cst_112 : f32 to vector<8x32xf32>
    %359 = arith.addf %358, %357 : vector<8x32xf32>
    %360 = arith.divf %358, %359 : vector<8x32xf32>
    %361 = vector.extract_strided_slice %354 {offsets = [0, 32], sizes = [8, 32], strides = [1, 1]} : vector<8x64xf32> to vector<8x32xf32>
    %362 = math.tanh %361 : vector<8x32xf32>
    %363 = arith.subf %362, %322 : vector<8x32xf32>
    %364 = arith.mulf %360, %363 : vector<8x32xf32>
    %365 = arith.addf %322, %364 : vector<8x32xf32>
    %366 = arith.addf %352, %365 : vector<8x32xf32>
    %c0_113 = arith.constant 0 : index
    %c0_114 = arith.constant 0 : index
    %367 = vector.load %arg8[%c0_113, %c0_114] : memref<32x64xf32, #tpu.memory_space<vmem>>, vector<32x64xf32>
    %cst_115 = arith.constant dense<0.000000e+00> : vector<8x64xf32>
    %368 = tpu.matmul %340, %367, %cst_115 {dimension_numbers = #tpu.dot_dimension_numbers<[1], [0], [0], [1], [0, 0, 1, 1], [], []>} : vector<8x32xf32>, vector<32x64xf32>, vector<8x64xf32> -> vector<8x64xf32>
    %369 = vector.extract_strided_slice %368 {offsets = [0, 0], sizes = [8, 32], strides = [1, 1]} : vector<8x64xf32> to vector<8x32xf32>
    %370 = arith.negf %369 : vector<8x32xf32>
    %371 = math.exp %370 : vector<8x32xf32>
    %cst_116 = arith.constant 1.000000e+00 : f32
    %372 = vector.broadcast %cst_116 : f32 to vector<8x32xf32>
    %373 = arith.addf %372, %371 : vector<8x32xf32>
    %374 = arith.divf %372, %373 : vector<8x32xf32>
    %375 = vector.extract_strided_slice %368 {offsets = [0, 32], sizes = [8, 32], strides = [1, 1]} : vector<8x64xf32> to vector<8x32xf32>
    %cst_117 = arith.constant 0.000000e+00 : f32
    %376 = vector.broadcast %cst_117 : f32 to vector<8x32xf32>
    %377 = arith.maximumf %375, %376 : vector<8x32xf32>
    %378 = arith.subf %377, %340 : vector<8x32xf32>
    %379 = arith.mulf %374, %378 : vector<8x32xf32>
    %380 = arith.addf %340, %379 : vector<8x32xf32>
    %381 = arith.addf %366, %380 : vector<8x32xf32>
    %c0_118 = arith.constant 0 : index
    %c0_119 = arith.constant 0 : index
    %382 = vector.load %arg9[%c0_118, %c0_119] : memref<32x64xf32, #tpu.memory_space<vmem>>, vector<32x64xf32>
    %cst_120 = arith.constant dense<0.000000e+00> : vector<8x64xf32>
    %383 = tpu.matmul %351, %382, %cst_120 {dimension_numbers = #tpu.dot_dimension_numbers<[1], [0], [0], [1], [0, 0, 1, 1], [], []>} : vector<8x32xf32>, vector<32x64xf32>, vector<8x64xf32> -> vector<8x64xf32>
    %384 = vector.extract_strided_slice %383 {offsets = [0, 0], sizes = [8, 32], strides = [1, 1]} : vector<8x64xf32> to vector<8x32xf32>
    %385 = arith.negf %384 : vector<8x32xf32>
    %386 = math.exp %385 : vector<8x32xf32>
    %cst_121 = arith.constant 1.000000e+00 : f32
    %387 = vector.broadcast %cst_121 : f32 to vector<8x32xf32>
    %388 = arith.addf %387, %386 : vector<8x32xf32>
    %389 = arith.divf %387, %388 : vector<8x32xf32>
    %390 = vector.extract_strided_slice %383 {offsets = [0, 32], sizes = [8, 32], strides = [1, 1]} : vector<8x64xf32> to vector<8x32xf32>
    %391 = arith.negf %390 : vector<8x32xf32>
    %392 = math.exp %391 : vector<8x32xf32>
    %cst_122 = arith.constant 1.000000e+00 : f32
    %393 = vector.broadcast %cst_122 : f32 to vector<8x32xf32>
    %394 = arith.addf %393, %392 : vector<8x32xf32>
    %395 = arith.divf %393, %394 : vector<8x32xf32>
    %396 = arith.subf %395, %351 : vector<8x32xf32>
    %397 = arith.mulf %389, %396 : vector<8x32xf32>
    %398 = arith.addf %351, %397 : vector<8x32xf32>
    %399 = arith.addf %381, %398 : vector<8x32xf32>
    %c0_123 = arith.constant 0 : index
    %c0_124 = arith.constant 0 : index
    %400 = vector.load %arg10[%c0_123, %c0_124] : memref<32x64xf32, #tpu.memory_space<vmem>>, vector<32x64xf32>
    %cst_125 = arith.constant dense<0.000000e+00> : vector<8x64xf32>
    %401 = tpu.matmul %365, %400, %cst_125 {dimension_numbers = #tpu.dot_dimension_numbers<[1], [0], [0], [1], [0, 0, 1, 1], [], []>} : vector<8x32xf32>, vector<32x64xf32>, vector<8x64xf32> -> vector<8x64xf32>
    %402 = vector.extract_strided_slice %401 {offsets = [0, 0], sizes = [8, 32], strides = [1, 1]} : vector<8x64xf32> to vector<8x32xf32>
    %403 = arith.negf %402 : vector<8x32xf32>
    %404 = math.exp %403 : vector<8x32xf32>
    %cst_126 = arith.constant 1.000000e+00 : f32
    %405 = vector.broadcast %cst_126 : f32 to vector<8x32xf32>
    %406 = arith.addf %405, %404 : vector<8x32xf32>
    %407 = arith.divf %405, %406 : vector<8x32xf32>
    %408 = vector.extract_strided_slice %401 {offsets = [0, 32], sizes = [8, 32], strides = [1, 1]} : vector<8x64xf32> to vector<8x32xf32>
    %409 = arith.subf %408, %365 : vector<8x32xf32>
    %410 = arith.mulf %407, %409 : vector<8x32xf32>
    %411 = arith.addf %365, %410 : vector<8x32xf32>
    %412 = arith.addf %399, %411 : vector<8x32xf32>
    %cst_127 = arith.constant 1.250000e-01 : f32
    %413 = vector.broadcast %cst_127 : f32 to vector<8x32xf32>
    %414 = arith.mulf %412, %413 : vector<8x32xf32>
    %c2_128 = arith.constant 2 : index
    %c0_129 = arith.constant 0 : index
    %c0_130 = arith.constant 0 : index
    %415 = vector.load %arg11[%c2_128, %c0_129, %c0_130] : memref<8x8x32xf32, #tpu.memory_space<vmem>>, vector<1x8x32xf32>
    %416 = vector.shape_cast %415 : vector<1x8x32xf32> to vector<8x32xf32>
    %417 = vector.shape_cast %414 : vector<8x32xf32> to vector<1x8x32xf32>
    tpu.vector_store %arg11[%c2_128, %c0_129, %c0_130], %417 {strides = array<i32>} : memref<8x8x32xf32, #tpu.memory_space<vmem>>, vector<1x8x32xf32>,
    %c3 = arith.constant 3 : index
    %c0_131 = arith.constant 0 : index
    %c0_132 = arith.constant 0 : index
    %418 = vector.load %arg1[%c3, %c0_131, %c0_132] : memref<8x8x32xf32, #tpu.memory_space<vmem>>, vector<1x8x32xf32>
    %419 = vector.shape_cast %418 : vector<1x8x32xf32> to vector<8x32xf32>
    %c0_133 = arith.constant 0 : index
    %c0_134 = arith.constant 0 : index
    %420 = vector.load %arg3[%c0_133, %c0_134] : memref<32x64xf32, #tpu.memory_space<vmem>>, vector<32x64xf32>
    %cst_135 = arith.constant dense<0.000000e+00> : vector<8x64xf32>
    %421 = tpu.matmul %419, %420, %cst_135 {dimension_numbers = #tpu.dot_dimension_numbers<[1], [0], [0], [1], [0, 0, 1, 1], [], []>} : vector<8x32xf32>, vector<32x64xf32>, vector<8x64xf32> -> vector<8x64xf32>
    %c0_136 = arith.constant 0 : index
    %c0_137 = arith.constant 0 : index
    %422 = vector.load %arg4[%c0_136, %c0_137] : memref<32x64xf32, #tpu.memory_space<vmem>>, vector<32x64xf32>
    %cst_138 = arith.constant dense<0.000000e+00> : vector<8x64xf32>
    %423 = tpu.matmul %414, %422, %cst_138 {dimension_numbers = #tpu.dot_dimension_numbers<[1], [0], [0], [1], [0, 0, 1, 1], [], []>} : vector<8x32xf32>, vector<32x64xf32>, vector<8x64xf32> -> vector<8x64xf32>
    %424 = arith.addf %421, %423 : vector<8x64xf32>
    %425 = vector.extract_strided_slice %424 {offsets = [0, 0], sizes = [8, 32], strides = [1, 1]} : vector<8x64xf32> to vector<8x32xf32>
    %426 = arith.negf %425 : vector<8x32xf32>
    %427 = math.exp %426 : vector<8x32xf32>
    %cst_139 = arith.constant 1.000000e+00 : f32
    %428 = vector.broadcast %cst_139 : f32 to vector<8x32xf32>
    %429 = arith.addf %428, %427 : vector<8x32xf32>
    %430 = arith.divf %428, %429 : vector<8x32xf32>
    %431 = vector.extract_strided_slice %424 {offsets = [0, 32], sizes = [8, 32], strides = [1, 1]} : vector<8x64xf32> to vector<8x32xf32>
    %432 = math.tanh %431 : vector<8x32xf32>
    %433 = arith.subf %432, %414 : vector<8x32xf32>
    %434 = arith.mulf %430, %433 : vector<8x32xf32>
    %435 = arith.addf %414, %434 : vector<8x32xf32>
    %c0_140 = arith.constant 0 : index
    %c0_141 = arith.constant 0 : index
    %436 = vector.load %arg5[%c0_140, %c0_141] : memref<32x128xf32, #tpu.memory_space<vmem>>, vector<32x128xf32>
    %cst_142 = arith.constant dense<0.000000e+00> : vector<8x128xf32>
    %437 = tpu.matmul %435, %436, %cst_142 {dimension_numbers = #tpu.dot_dimension_numbers<[1], [0], [0], [1], [0, 0, 1, 1], [], []>} : vector<8x32xf32>, vector<32x128xf32>, vector<8x128xf32> -> vector<8x128xf32>
    %438 = vector.extract_strided_slice %437 {offsets = [0, 0], sizes = [8, 32], strides = [1, 1]} : vector<8x128xf32> to vector<8x32xf32>
    %439 = arith.negf %438 : vector<8x32xf32>
    %440 = math.exp %439 : vector<8x32xf32>
    %cst_143 = arith.constant 1.000000e+00 : f32
    %441 = vector.broadcast %cst_143 : f32 to vector<8x32xf32>
    %442 = arith.addf %441, %440 : vector<8x32xf32>
    %443 = arith.divf %441, %442 : vector<8x32xf32>
    %444 = vector.extract_strided_slice %437 {offsets = [0, 32], sizes = [8, 32], strides = [1, 1]} : vector<8x128xf32> to vector<8x32xf32>
    %445 = math.tanh %444 : vector<8x32xf32>
    %446 = arith.subf %445, %435 : vector<8x32xf32>
    %447 = arith.mulf %443, %446 : vector<8x32xf32>
    %448 = arith.addf %435, %447 : vector<8x32xf32>
    %449 = vector.extract_strided_slice %437 {offsets = [0, 64], sizes = [8, 32], strides = [1, 1]} : vector<8x128xf32> to vector<8x32xf32>
    %450 = arith.negf %449 : vector<8x32xf32>
    %451 = math.exp %450 : vector<8x32xf32>
    %cst_144 = arith.constant 1.000000e+00 : f32
    %452 = vector.broadcast %cst_144 : f32 to vector<8x32xf32>
    %453 = arith.addf %452, %451 : vector<8x32xf32>
    %454 = arith.divf %452, %453 : vector<8x32xf32>
    %455 = vector.extract_strided_slice %437 {offsets = [0, 96], sizes = [8, 32], strides = [1, 1]} : vector<8x128xf32> to vector<8x32xf32>
    %cst_145 = arith.constant 0.000000e+00 : f32
    %456 = vector.broadcast %cst_145 : f32 to vector<8x32xf32>
    %457 = arith.maximumf %455, %456 : vector<8x32xf32>
    %458 = arith.subf %457, %435 : vector<8x32xf32>
    %459 = arith.mulf %454, %458 : vector<8x32xf32>
    %460 = arith.addf %435, %459 : vector<8x32xf32>
    %461 = arith.addf %448, %460 : vector<8x32xf32>
    %c0_146 = arith.constant 0 : index
    %c0_147 = arith.constant 0 : index
    %462 = vector.load %arg6[%c0_146, %c0_147] : memref<32x128xf32, #tpu.memory_space<vmem>>, vector<32x128xf32>
    %cst_148 = arith.constant dense<0.000000e+00> : vector<8x128xf32>
    %463 = tpu.matmul %448, %462, %cst_148 {dimension_numbers = #tpu.dot_dimension_numbers<[1], [0], [0], [1], [0, 0, 1, 1], [], []>} : vector<8x32xf32>, vector<32x128xf32>, vector<8x128xf32> -> vector<8x128xf32>
    %464 = vector.extract_strided_slice %463 {offsets = [0, 0], sizes = [8, 32], strides = [1, 1]} : vector<8x128xf32> to vector<8x32xf32>
    %465 = arith.negf %464 : vector<8x32xf32>
    %466 = math.exp %465 : vector<8x32xf32>
    %cst_149 = arith.constant 1.000000e+00 : f32
    %467 = vector.broadcast %cst_149 : f32 to vector<8x32xf32>
    %468 = arith.addf %467, %466 : vector<8x32xf32>
    %469 = arith.divf %467, %468 : vector<8x32xf32>
    %470 = vector.extract_strided_slice %463 {offsets = [0, 32], sizes = [8, 32], strides = [1, 1]} : vector<8x128xf32> to vector<8x32xf32>
    %471 = arith.negf %470 : vector<8x32xf32>
    %472 = math.exp %471 : vector<8x32xf32>
    %cst_150 = arith.constant 1.000000e+00 : f32
    %473 = vector.broadcast %cst_150 : f32 to vector<8x32xf32>
    %474 = arith.addf %473, %472 : vector<8x32xf32>
    %475 = arith.divf %473, %474 : vector<8x32xf32>
    %476 = arith.subf %475, %448 : vector<8x32xf32>
    %477 = arith.mulf %469, %476 : vector<8x32xf32>
    %478 = arith.addf %448, %477 : vector<8x32xf32>
    %479 = arith.addf %461, %478 : vector<8x32xf32>
    %480 = vector.extract_strided_slice %463 {offsets = [0, 64], sizes = [8, 32], strides = [1, 1]} : vector<8x128xf32> to vector<8x32xf32>
    %481 = arith.negf %480 : vector<8x32xf32>
    %482 = math.exp %481 : vector<8x32xf32>
    %cst_151 = arith.constant 1.000000e+00 : f32
    %483 = vector.broadcast %cst_151 : f32 to vector<8x32xf32>
    %484 = arith.addf %483, %482 : vector<8x32xf32>
    %485 = arith.divf %483, %484 : vector<8x32xf32>
    %486 = vector.extract_strided_slice %463 {offsets = [0, 96], sizes = [8, 32], strides = [1, 1]} : vector<8x128xf32> to vector<8x32xf32>
    %487 = arith.subf %486, %448 : vector<8x32xf32>
    %488 = arith.mulf %485, %487 : vector<8x32xf32>
    %489 = arith.addf %448, %488 : vector<8x32xf32>
    %490 = arith.addf %479, %489 : vector<8x32xf32>
    %c0_152 = arith.constant 0 : index
    %c0_153 = arith.constant 0 : index
    %491 = vector.load %arg7[%c0_152, %c0_153] : memref<32x64xf32, #tpu.memory_space<vmem>>, vector<32x64xf32>
    %cst_154 = arith.constant dense<0.000000e+00> : vector<8x64xf32>
    %492 = tpu.matmul %460, %491, %cst_154 {dimension_numbers = #tpu.dot_dimension_numbers<[1], [0], [0], [1], [0, 0, 1, 1], [], []>} : vector<8x32xf32>, vector<32x64xf32>, vector<8x64xf32> -> vector<8x64xf32>
    %493 = vector.extract_strided_slice %492 {offsets = [0, 0], sizes = [8, 32], strides = [1, 1]} : vector<8x64xf32> to vector<8x32xf32>
    %494 = arith.negf %493 : vector<8x32xf32>
    %495 = math.exp %494 : vector<8x32xf32>
    %cst_155 = arith.constant 1.000000e+00 : f32
    %496 = vector.broadcast %cst_155 : f32 to vector<8x32xf32>
    %497 = arith.addf %496, %495 : vector<8x32xf32>
    %498 = arith.divf %496, %497 : vector<8x32xf32>
    %499 = vector.extract_strided_slice %492 {offsets = [0, 32], sizes = [8, 32], strides = [1, 1]} : vector<8x64xf32> to vector<8x32xf32>
    %500 = math.tanh %499 : vector<8x32xf32>
    %501 = arith.subf %500, %460 : vector<8x32xf32>
    %502 = arith.mulf %498, %501 : vector<8x32xf32>
    %503 = arith.addf %460, %502 : vector<8x32xf32>
    %504 = arith.addf %490, %503 : vector<8x32xf32>
    %c0_156 = arith.constant 0 : index
    %c0_157 = arith.constant 0 : index
    %505 = vector.load %arg8[%c0_156, %c0_157] : memref<32x64xf32, #tpu.memory_space<vmem>>, vector<32x64xf32>
    %cst_158 = arith.constant dense<0.000000e+00> : vector<8x64xf32>
    %506 = tpu.matmul %478, %505, %cst_158 {dimension_numbers = #tpu.dot_dimension_numbers<[1], [0], [0], [1], [0, 0, 1, 1], [], []>} : vector<8x32xf32>, vector<32x64xf32>, vector<8x64xf32> -> vector<8x64xf32>
    %507 = vector.extract_strided_slice %506 {offsets = [0, 0], sizes = [8, 32], strides = [1, 1]} : vector<8x64xf32> to vector<8x32xf32>
    %508 = arith.negf %507 : vector<8x32xf32>
    %509 = math.exp %508 : vector<8x32xf32>
    %cst_159 = arith.constant 1.000000e+00 : f32
    %510 = vector.broadcast %cst_159 : f32 to vector<8x32xf32>
    %511 = arith.addf %510, %509 : vector<8x32xf32>
    %512 = arith.divf %510, %511 : vector<8x32xf32>
    %513 = vector.extract_strided_slice %506 {offsets = [0, 32], sizes = [8, 32], strides = [1, 1]} : vector<8x64xf32> to vector<8x32xf32>
    %cst_160 = arith.constant 0.000000e+00 : f32
    %514 = vector.broadcast %cst_160 : f32 to vector<8x32xf32>
    %515 = arith.maximumf %513, %514 : vector<8x32xf32>
    %516 = arith.subf %515, %478 : vector<8x32xf32>
    %517 = arith.mulf %512, %516 : vector<8x32xf32>
    %518 = arith.addf %478, %517 : vector<8x32xf32>
    %519 = arith.addf %504, %518 : vector<8x32xf32>
    %c0_161 = arith.constant 0 : index
    %c0_162 = arith.constant 0 : index
    %520 = vector.load %arg9[%c0_161, %c0_162] : memref<32x64xf32, #tpu.memory_space<vmem>>, vector<32x64xf32>
    %cst_163 = arith.constant dense<0.000000e+00> : vector<8x64xf32>
    %521 = tpu.matmul %489, %520, %cst_163 {dimension_numbers = #tpu.dot_dimension_numbers<[1], [0], [0], [1], [0, 0, 1, 1], [], []>} : vector<8x32xf32>, vector<32x64xf32>, vector<8x64xf32> -> vector<8x64xf32>
    %522 = vector.extract_strided_slice %521 {offsets = [0, 0], sizes = [8, 32], strides = [1, 1]} : vector<8x64xf32> to vector<8x32xf32>
    %523 = arith.negf %522 : vector<8x32xf32>
    %524 = math.exp %523 : vector<8x32xf32>
    %cst_164 = arith.constant 1.000000e+00 : f32
    %525 = vector.broadcast %cst_164 : f32 to vector<8x32xf32>
    %526 = arith.addf %525, %524 : vector<8x32xf32>
    %527 = arith.divf %525, %526 : vector<8x32xf32>
    %528 = vector.extract_strided_slice %521 {offsets = [0, 32], sizes = [8, 32], strides = [1, 1]} : vector<8x64xf32> to vector<8x32xf32>
    %529 = arith.negf %528 : vector<8x32xf32>
    %530 = math.exp %529 : vector<8x32xf32>
    %cst_165 = arith.constant 1.000000e+00 : f32
    %531 = vector.broadcast %cst_165 : f32 to vector<8x32xf32>
    %532 = arith.addf %531, %530 : vector<8x32xf32>
    %533 = arith.divf %531, %532 : vector<8x32xf32>
    %534 = arith.subf %533, %489 : vector<8x32xf32>
    %535 = arith.mulf %527, %534 : vector<8x32xf32>
    %536 = arith.addf %489, %535 : vector<8x32xf32>
    %537 = arith.addf %519, %536 : vector<8x32xf32>
    %c0_166 = arith.constant 0 : index
    %c0_167 = arith.constant 0 : index
    %538 = vector.load %arg10[%c0_166, %c0_167] : memref<32x64xf32, #tpu.memory_space<vmem>>, vector<32x64xf32>
    %cst_168 = arith.constant dense<0.000000e+00> : vector<8x64xf32>
    %539 = tpu.matmul %503, %538, %cst_168 {dimension_numbers = #tpu.dot_dimension_numbers<[1], [0], [0], [1], [0, 0, 1, 1], [], []>} : vector<8x32xf32>, vector<32x64xf32>, vector<8x64xf32> -> vector<8x64xf32>
    %540 = vector.extract_strided_slice %539 {offsets = [0, 0], sizes = [8, 32], strides = [1, 1]} : vector<8x64xf32> to vector<8x32xf32>
    %541 = arith.negf %540 : vector<8x32xf32>
    %542 = math.exp %541 : vector<8x32xf32>
    %cst_169 = arith.constant 1.000000e+00 : f32
    %543 = vector.broadcast %cst_169 : f32 to vector<8x32xf32>
    %544 = arith.addf %543, %542 : vector<8x32xf32>
    %545 = arith.divf %543, %544 : vector<8x32xf32>
    %546 = vector.extract_strided_slice %539 {offsets = [0, 32], sizes = [8, 32], strides = [1, 1]} : vector<8x64xf32> to vector<8x32xf32>
    %547 = arith.subf %546, %503 : vector<8x32xf32>
    %548 = arith.mulf %545, %547 : vector<8x32xf32>
    %549 = arith.addf %503, %548 : vector<8x32xf32>
    %550 = arith.addf %537, %549 : vector<8x32xf32>
    %cst_170 = arith.constant 1.250000e-01 : f32
    %551 = vector.broadcast %cst_170 : f32 to vector<8x32xf32>
    %552 = arith.mulf %550, %551 : vector<8x32xf32>
    %c3_171 = arith.constant 3 : index
    %c0_172 = arith.constant 0 : index
    %c0_173 = arith.constant 0 : index
    %553 = vector.load %arg11[%c3_171, %c0_172, %c0_173] : memref<8x8x32xf32, #tpu.memory_space<vmem>>, vector<1x8x32xf32>
    %554 = vector.shape_cast %553 : vector<1x8x32xf32> to vector<8x32xf32>
    %555 = vector.shape_cast %552 : vector<8x32xf32> to vector<1x8x32xf32>
    tpu.vector_store %arg11[%c3_171, %c0_172, %c0_173], %555 {strides = array<i32>} : memref<8x8x32xf32, #tpu.memory_space<vmem>>, vector<1x8x32xf32>,
    %c4 = arith.constant 4 : index
    %c0_174 = arith.constant 0 : index
    %c0_175 = arith.constant 0 : index
    %556 = vector.load %arg1[%c4, %c0_174, %c0_175] : memref<8x8x32xf32, #tpu.memory_space<vmem>>, vector<1x8x32xf32>
    %557 = vector.shape_cast %556 : vector<1x8x32xf32> to vector<8x32xf32>
    %c0_176 = arith.constant 0 : index
    %c0_177 = arith.constant 0 : index
    %558 = vector.load %arg3[%c0_176, %c0_177] : memref<32x64xf32, #tpu.memory_space<vmem>>, vector<32x64xf32>
    %cst_178 = arith.constant dense<0.000000e+00> : vector<8x64xf32>
    %559 = tpu.matmul %557, %558, %cst_178 {dimension_numbers = #tpu.dot_dimension_numbers<[1], [0], [0], [1], [0, 0, 1, 1], [], []>} : vector<8x32xf32>, vector<32x64xf32>, vector<8x64xf32> -> vector<8x64xf32>
    %c0_179 = arith.constant 0 : index
    %c0_180 = arith.constant 0 : index
    %560 = vector.load %arg4[%c0_179, %c0_180] : memref<32x64xf32, #tpu.memory_space<vmem>>, vector<32x64xf32>
    %cst_181 = arith.constant dense<0.000000e+00> : vector<8x64xf32>
    %561 = tpu.matmul %552, %560, %cst_181 {dimension_numbers = #tpu.dot_dimension_numbers<[1], [0], [0], [1], [0, 0, 1, 1], [], []>} : vector<8x32xf32>, vector<32x64xf32>, vector<8x64xf32> -> vector<8x64xf32>
    %562 = arith.addf %559, %561 : vector<8x64xf32>
    %563 = vector.extract_strided_slice %562 {offsets = [0, 0], sizes = [8, 32], strides = [1, 1]} : vector<8x64xf32> to vector<8x32xf32>
    %564 = arith.negf %563 : vector<8x32xf32>
    %565 = math.exp %564 : vector<8x32xf32>
    %cst_182 = arith.constant 1.000000e+00 : f32
    %566 = vector.broadcast %cst_182 : f32 to vector<8x32xf32>
    %567 = arith.addf %566, %565 : vector<8x32xf32>
    %568 = arith.divf %566, %567 : vector<8x32xf32>
    %569 = vector.extract_strided_slice %562 {offsets = [0, 32], sizes = [8, 32], strides = [1, 1]} : vector<8x64xf32> to vector<8x32xf32>
    %570 = math.tanh %569 : vector<8x32xf32>
    %571 = arith.subf %570, %552 : vector<8x32xf32>
    %572 = arith.mulf %568, %571 : vector<8x32xf32>
    %573 = arith.addf %552, %572 : vector<8x32xf32>
    %c0_183 = arith.constant 0 : index
    %c0_184 = arith.constant 0 : index
    %574 = vector.load %arg5[%c0_183, %c0_184] : memref<32x128xf32, #tpu.memory_space<vmem>>, vector<32x128xf32>
    %cst_185 = arith.constant dense<0.000000e+00> : vector<8x128xf32>
    %575 = tpu.matmul %573, %574, %cst_185 {dimension_numbers = #tpu.dot_dimension_numbers<[1], [0], [0], [1], [0, 0, 1, 1], [], []>} : vector<8x32xf32>, vector<32x128xf32>, vector<8x128xf32> -> vector<8x128xf32>
    %576 = vector.extract_strided_slice %575 {offsets = [0, 0], sizes = [8, 32], strides = [1, 1]} : vector<8x128xf32> to vector<8x32xf32>
    %577 = arith.negf %576 : vector<8x32xf32>
    %578 = math.exp %577 : vector<8x32xf32>
    %cst_186 = arith.constant 1.000000e+00 : f32
    %579 = vector.broadcast %cst_186 : f32 to vector<8x32xf32>
    %580 = arith.addf %579, %578 : vector<8x32xf32>
    %581 = arith.divf %579, %580 : vector<8x32xf32>
    %582 = vector.extract_strided_slice %575 {offsets = [0, 32], sizes = [8, 32], strides = [1, 1]} : vector<8x128xf32> to vector<8x32xf32>
    %583 = math.tanh %582 : vector<8x32xf32>
    %584 = arith.subf %583, %573 : vector<8x32xf32>
    %585 = arith.mulf %581, %584 : vector<8x32xf32>
    %586 = arith.addf %573, %585 : vector<8x32xf32>
    %587 = vector.extract_strided_slice %575 {offsets = [0, 64], sizes = [8, 32], strides = [1, 1]} : vector<8x128xf32> to vector<8x32xf32>
    %588 = arith.negf %587 : vector<8x32xf32>
    %589 = math.exp %588 : vector<8x32xf32>
    %cst_187 = arith.constant 1.000000e+00 : f32
    %590 = vector.broadcast %cst_187 : f32 to vector<8x32xf32>
    %591 = arith.addf %590, %589 : vector<8x32xf32>
    %592 = arith.divf %590, %591 : vector<8x32xf32>
    %593 = vector.extract_strided_slice %575 {offsets = [0, 96], sizes = [8, 32], strides = [1, 1]} : vector<8x128xf32> to vector<8x32xf32>
    %cst_188 = arith.constant 0.000000e+00 : f32
    %594 = vector.broadcast %cst_188 : f32 to vector<8x32xf32>
    %595 = arith.maximumf %593, %594 : vector<8x32xf32>
    %596 = arith.subf %595, %573 : vector<8x32xf32>
    %597 = arith.mulf %592, %596 : vector<8x32xf32>
    %598 = arith.addf %573, %597 : vector<8x32xf32>
    %599 = arith.addf %586, %598 : vector<8x32xf32>
    %c0_189 = arith.constant 0 : index
    %c0_190 = arith.constant 0 : index
    %600 = vector.load %arg6[%c0_189, %c0_190] : memref<32x128xf32, #tpu.memory_space<vmem>>, vector<32x128xf32>
    %cst_191 = arith.constant dense<0.000000e+00> : vector<8x128xf32>
    %601 = tpu.matmul %586, %600, %cst_191 {dimension_numbers = #tpu.dot_dimension_numbers<[1], [0], [0], [1], [0, 0, 1, 1], [], []>} : vector<8x32xf32>, vector<32x128xf32>, vector<8x128xf32> -> vector<8x128xf32>
    %602 = vector.extract_strided_slice %601 {offsets = [0, 0], sizes = [8, 32], strides = [1, 1]} : vector<8x128xf32> to vector<8x32xf32>
    %603 = arith.negf %602 : vector<8x32xf32>
    %604 = math.exp %603 : vector<8x32xf32>
    %cst_192 = arith.constant 1.000000e+00 : f32
    %605 = vector.broadcast %cst_192 : f32 to vector<8x32xf32>
    %606 = arith.addf %605, %604 : vector<8x32xf32>
    %607 = arith.divf %605, %606 : vector<8x32xf32>
    %608 = vector.extract_strided_slice %601 {offsets = [0, 32], sizes = [8, 32], strides = [1, 1]} : vector<8x128xf32> to vector<8x32xf32>
    %609 = arith.negf %608 : vector<8x32xf32>
    %610 = math.exp %609 : vector<8x32xf32>
    %cst_193 = arith.constant 1.000000e+00 : f32
    %611 = vector.broadcast %cst_193 : f32 to vector<8x32xf32>
    %612 = arith.addf %611, %610 : vector<8x32xf32>
    %613 = arith.divf %611, %612 : vector<8x32xf32>
    %614 = arith.subf %613, %586 : vector<8x32xf32>
    %615 = arith.mulf %607, %614 : vector<8x32xf32>
    %616 = arith.addf %586, %615 : vector<8x32xf32>
    %617 = arith.addf %599, %616 : vector<8x32xf32>
    %618 = vector.extract_strided_slice %601 {offsets = [0, 64], sizes = [8, 32], strides = [1, 1]} : vector<8x128xf32> to vector<8x32xf32>
    %619 = arith.negf %618 : vector<8x32xf32>
    %620 = math.exp %619 : vector<8x32xf32>
    %cst_194 = arith.constant 1.000000e+00 : f32
    %621 = vector.broadcast %cst_194 : f32 to vector<8x32xf32>
    %622 = arith.addf %621, %620 : vector<8x32xf32>
    %623 = arith.divf %621, %622 : vector<8x32xf32>
    %624 = vector.extract_strided_slice %601 {offsets = [0, 96], sizes = [8, 32], strides = [1, 1]} : vector<8x128xf32> to vector<8x32xf32>
    %625 = arith.subf %624, %586 : vector<8x32xf32>
    %626 = arith.mulf %623, %625 : vector<8x32xf32>
    %627 = arith.addf %586, %626 : vector<8x32xf32>
    %628 = arith.addf %617, %627 : vector<8x32xf32>
    %c0_195 = arith.constant 0 : index
    %c0_196 = arith.constant 0 : index
    %629 = vector.load %arg7[%c0_195, %c0_196] : memref<32x64xf32, #tpu.memory_space<vmem>>, vector<32x64xf32>
    %cst_197 = arith.constant dense<0.000000e+00> : vector<8x64xf32>
    %630 = tpu.matmul %598, %629, %cst_197 {dimension_numbers = #tpu.dot_dimension_numbers<[1], [0], [0], [1], [0, 0, 1, 1], [], []>} : vector<8x32xf32>, vector<32x64xf32>, vector<8x64xf32> -> vector<8x64xf32>
    %631 = vector.extract_strided_slice %630 {offsets = [0, 0], sizes = [8, 32], strides = [1, 1]} : vector<8x64xf32> to vector<8x32xf32>
    %632 = arith.negf %631 : vector<8x32xf32>
    %633 = math.exp %632 : vector<8x32xf32>
    %cst_198 = arith.constant 1.000000e+00 : f32
    %634 = vector.broadcast %cst_198 : f32 to vector<8x32xf32>
    %635 = arith.addf %634, %633 : vector<8x32xf32>
    %636 = arith.divf %634, %635 : vector<8x32xf32>
    %637 = vector.extract_strided_slice %630 {offsets = [0, 32], sizes = [8, 32], strides = [1, 1]} : vector<8x64xf32> to vector<8x32xf32>
    %638 = math.tanh %637 : vector<8x32xf32>
    %639 = arith.subf %638, %598 : vector<8x32xf32>
    %640 = arith.mulf %636, %639 : vector<8x32xf32>
    %641 = arith.addf %598, %640 : vector<8x32xf32>
    %642 = arith.addf %628, %641 : vector<8x32xf32>
    %c0_199 = arith.constant 0 : index
    %c0_200 = arith.constant 0 : index
    %643 = vector.load %arg8[%c0_199, %c0_200] : memref<32x64xf32, #tpu.memory_space<vmem>>, vector<32x64xf32>
    %cst_201 = arith.constant dense<0.000000e+00> : vector<8x64xf32>
    %644 = tpu.matmul %616, %643, %cst_201 {dimension_numbers = #tpu.dot_dimension_numbers<[1], [0], [0], [1], [0, 0, 1, 1], [], []>} : vector<8x32xf32>, vector<32x64xf32>, vector<8x64xf32> -> vector<8x64xf32>
    %645 = vector.extract_strided_slice %644 {offsets = [0, 0], sizes = [8, 32], strides = [1, 1]} : vector<8x64xf32> to vector<8x32xf32>
    %646 = arith.negf %645 : vector<8x32xf32>
    %647 = math.exp %646 : vector<8x32xf32>
    %cst_202 = arith.constant 1.000000e+00 : f32
    %648 = vector.broadcast %cst_202 : f32 to vector<8x32xf32>
    %649 = arith.addf %648, %647 : vector<8x32xf32>
    %650 = arith.divf %648, %649 : vector<8x32xf32>
    %651 = vector.extract_strided_slice %644 {offsets = [0, 32], sizes = [8, 32], strides = [1, 1]} : vector<8x64xf32> to vector<8x32xf32>
    %cst_203 = arith.constant 0.000000e+00 : f32
    %652 = vector.broadcast %cst_203 : f32 to vector<8x32xf32>
    %653 = arith.maximumf %651, %652 : vector<8x32xf32>
    %654 = arith.subf %653, %616 : vector<8x32xf32>
    %655 = arith.mulf %650, %654 : vector<8x32xf32>
    %656 = arith.addf %616, %655 : vector<8x32xf32>
    %657 = arith.addf %642, %656 : vector<8x32xf32>
    %c0_204 = arith.constant 0 : index
    %c0_205 = arith.constant 0 : index
    %658 = vector.load %arg9[%c0_204, %c0_205] : memref<32x64xf32, #tpu.memory_space<vmem>>, vector<32x64xf32>
    %cst_206 = arith.constant dense<0.000000e+00> : vector<8x64xf32>
    %659 = tpu.matmul %627, %658, %cst_206 {dimension_numbers = #tpu.dot_dimension_numbers<[1], [0], [0], [1], [0, 0, 1, 1], [], []>} : vector<8x32xf32>, vector<32x64xf32>, vector<8x64xf32> -> vector<8x64xf32>
    %660 = vector.extract_strided_slice %659 {offsets = [0, 0], sizes = [8, 32], strides = [1, 1]} : vector<8x64xf32> to vector<8x32xf32>
    %661 = arith.negf %660 : vector<8x32xf32>
    %662 = math.exp %661 : vector<8x32xf32>
    %cst_207 = arith.constant 1.000000e+00 : f32
    %663 = vector.broadcast %cst_207 : f32 to vector<8x32xf32>
    %664 = arith.addf %663, %662 : vector<8x32xf32>
    %665 = arith.divf %663, %664 : vector<8x32xf32>
    %666 = vector.extract_strided_slice %659 {offsets = [0, 32], sizes = [8, 32], strides = [1, 1]} : vector<8x64xf32> to vector<8x32xf32>
    %667 = arith.negf %666 : vector<8x32xf32>
    %668 = math.exp %667 : vector<8x32xf32>
    %cst_208 = arith.constant 1.000000e+00 : f32
    %669 = vector.broadcast %cst_208 : f32 to vector<8x32xf32>
    %670 = arith.addf %669, %668 : vector<8x32xf32>
    %671 = arith.divf %669, %670 : vector<8x32xf32>
    %672 = arith.subf %671, %627 : vector<8x32xf32>
    %673 = arith.mulf %665, %672 : vector<8x32xf32>
    %674 = arith.addf %627, %673 : vector<8x32xf32>
    %675 = arith.addf %657, %674 : vector<8x32xf32>
    %c0_209 = arith.constant 0 : index
    %c0_210 = arith.constant 0 : index
    %676 = vector.load %arg10[%c0_209, %c0_210] : memref<32x64xf32, #tpu.memory_space<vmem>>, vector<32x64xf32>
    %cst_211 = arith.constant dense<0.000000e+00> : vector<8x64xf32>
    %677 = tpu.matmul %641, %676, %cst_211 {dimension_numbers = #tpu.dot_dimension_numbers<[1], [0], [0], [1], [0, 0, 1, 1], [], []>} : vector<8x32xf32>, vector<32x64xf32>, vector<8x64xf32> -> vector<8x64xf32>
    %678 = vector.extract_strided_slice %677 {offsets = [0, 0], sizes = [8, 32], strides = [1, 1]} : vector<8x64xf32> to vector<8x32xf32>
    %679 = arith.negf %678 : vector<8x32xf32>
    %680 = math.exp %679 : vector<8x32xf32>
    %cst_212 = arith.constant 1.000000e+00 : f32
    %681 = vector.broadcast %cst_212 : f32 to vector<8x32xf32>
    %682 = arith.addf %681, %680 : vector<8x32xf32>
    %683 = arith.divf %681, %682 : vector<8x32xf32>
    %684 = vector.extract_strided_slice %677 {offsets = [0, 32], sizes = [8, 32], strides = [1, 1]} : vector<8x64xf32> to vector<8x32xf32>
    %685 = arith.subf %684, %641 : vector<8x32xf32>
    %686 = arith.mulf %683, %685 : vector<8x32xf32>
    %687 = arith.addf %641, %686 : vector<8x32xf32>
    %688 = arith.addf %675, %687 : vector<8x32xf32>
    %cst_213 = arith.constant 1.250000e-01 : f32
    %689 = vector.broadcast %cst_213 : f32 to vector<8x32xf32>
    %690 = arith.mulf %688, %689 : vector<8x32xf32>
    %c4_214 = arith.constant 4 : index
    %c0_215 = arith.constant 0 : index
    %c0_216 = arith.constant 0 : index
    %691 = vector.load %arg11[%c4_214, %c0_215, %c0_216] : memref<8x8x32xf32, #tpu.memory_space<vmem>>, vector<1x8x32xf32>
    %692 = vector.shape_cast %691 : vector<1x8x32xf32> to vector<8x32xf32>
    %693 = vector.shape_cast %690 : vector<8x32xf32> to vector<1x8x32xf32>
    tpu.vector_store %arg11[%c4_214, %c0_215, %c0_216], %693 {strides = array<i32>} : memref<8x8x32xf32, #tpu.memory_space<vmem>>, vector<1x8x32xf32>,
    %c5 = arith.constant 5 : index
    %c0_217 = arith.constant 0 : index
    %c0_218 = arith.constant 0 : index
    %694 = vector.load %arg1[%c5, %c0_217, %c0_218] : memref<8x8x32xf32, #tpu.memory_space<vmem>>, vector<1x8x32xf32>
    %695 = vector.shape_cast %694 : vector<1x8x32xf32> to vector<8x32xf32>
    %c0_219 = arith.constant 0 : index
    %c0_220 = arith.constant 0 : index
    %696 = vector.load %arg3[%c0_219, %c0_220] : memref<32x64xf32, #tpu.memory_space<vmem>>, vector<32x64xf32>
    %cst_221 = arith.constant dense<0.000000e+00> : vector<8x64xf32>
    %697 = tpu.matmul %695, %696, %cst_221 {dimension_numbers = #tpu.dot_dimension_numbers<[1], [0], [0], [1], [0, 0, 1, 1], [], []>} : vector<8x32xf32>, vector<32x64xf32>, vector<8x64xf32> -> vector<8x64xf32>
    %c0_222 = arith.constant 0 : index
    %c0_223 = arith.constant 0 : index
    %698 = vector.load %arg4[%c0_222, %c0_223] : memref<32x64xf32, #tpu.memory_space<vmem>>, vector<32x64xf32>
    %cst_224 = arith.constant dense<0.000000e+00> : vector<8x64xf32>
    %699 = tpu.matmul %690, %698, %cst_224 {dimension_numbers = #tpu.dot_dimension_numbers<[1], [0], [0], [1], [0, 0, 1, 1], [], []>} : vector<8x32xf32>, vector<32x64xf32>, vector<8x64xf32> -> vector<8x64xf32>
    %700 = arith.addf %697, %699 : vector<8x64xf32>
    %701 = vector.extract_strided_slice %700 {offsets = [0, 0], sizes = [8, 32], strides = [1, 1]} : vector<8x64xf32> to vector<8x32xf32>
    %702 = arith.negf %701 : vector<8x32xf32>
    %703 = math.exp %702 : vector<8x32xf32>
    %cst_225 = arith.constant 1.000000e+00 : f32
    %704 = vector.broadcast %cst_225 : f32 to vector<8x32xf32>
    %705 = arith.addf %704, %703 : vector<8x32xf32>
    %706 = arith.divf %704, %705 : vector<8x32xf32>
    %707 = vector.extract_strided_slice %700 {offsets = [0, 32], sizes = [8, 32], strides = [1, 1]} : vector<8x64xf32> to vector<8x32xf32>
    %708 = math.tanh %707 : vector<8x32xf32>
    %709 = arith.subf %708, %690 : vector<8x32xf32>
    %710 = arith.mulf %706, %709 : vector<8x32xf32>
    %711 = arith.addf %690, %710 : vector<8x32xf32>
    %c0_226 = arith.constant 0 : index
    %c0_227 = arith.constant 0 : index
    %712 = vector.load %arg5[%c0_226, %c0_227] : memref<32x128xf32, #tpu.memory_space<vmem>>, vector<32x128xf32>
    %cst_228 = arith.constant dense<0.000000e+00> : vector<8x128xf32>
    %713 = tpu.matmul %711, %712, %cst_228 {dimension_numbers = #tpu.dot_dimension_numbers<[1], [0], [0], [1], [0, 0, 1, 1], [], []>} : vector<8x32xf32>, vector<32x128xf32>, vector<8x128xf32> -> vector<8x128xf32>
    %714 = vector.extract_strided_slice %713 {offsets = [0, 0], sizes = [8, 32], strides = [1, 1]} : vector<8x128xf32> to vector<8x32xf32>
    %715 = arith.negf %714 : vector<8x32xf32>
    %716 = math.exp %715 : vector<8x32xf32>
    %cst_229 = arith.constant 1.000000e+00 : f32
    %717 = vector.broadcast %cst_229 : f32 to vector<8x32xf32>
    %718 = arith.addf %717, %716 : vector<8x32xf32>
    %719 = arith.divf %717, %718 : vector<8x32xf32>
    %720 = vector.extract_strided_slice %713 {offsets = [0, 32], sizes = [8, 32], strides = [1, 1]} : vector<8x128xf32> to vector<8x32xf32>
    %721 = math.tanh %720 : vector<8x32xf32>
    %722 = arith.subf %721, %711 : vector<8x32xf32>
    %723 = arith.mulf %719, %722 : vector<8x32xf32>
    %724 = arith.addf %711, %723 : vector<8x32xf32>
    %725 = vector.extract_strided_slice %713 {offsets = [0, 64], sizes = [8, 32], strides = [1, 1]} : vector<8x128xf32> to vector<8x32xf32>
    %726 = arith.negf %725 : vector<8x32xf32>
    %727 = math.exp %726 : vector<8x32xf32>
    %cst_230 = arith.constant 1.000000e+00 : f32
    %728 = vector.broadcast %cst_230 : f32 to vector<8x32xf32>
    %729 = arith.addf %728, %727 : vector<8x32xf32>
    %730 = arith.divf %728, %729 : vector<8x32xf32>
    %731 = vector.extract_strided_slice %713 {offsets = [0, 96], sizes = [8, 32], strides = [1, 1]} : vector<8x128xf32> to vector<8x32xf32>
    %cst_231 = arith.constant 0.000000e+00 : f32
    %732 = vector.broadcast %cst_231 : f32 to vector<8x32xf32>
    %733 = arith.maximumf %731, %732 : vector<8x32xf32>
    %734 = arith.subf %733, %711 : vector<8x32xf32>
    %735 = arith.mulf %730, %734 : vector<8x32xf32>
    %736 = arith.addf %711, %735 : vector<8x32xf32>
    %737 = arith.addf %724, %736 : vector<8x32xf32>
    %c0_232 = arith.constant 0 : index
    %c0_233 = arith.constant 0 : index
    %738 = vector.load %arg6[%c0_232, %c0_233] : memref<32x128xf32, #tpu.memory_space<vmem>>, vector<32x128xf32>
    %cst_234 = arith.constant dense<0.000000e+00> : vector<8x128xf32>
    %739 = tpu.matmul %724, %738, %cst_234 {dimension_numbers = #tpu.dot_dimension_numbers<[1], [0], [0], [1], [0, 0, 1, 1], [], []>} : vector<8x32xf32>, vector<32x128xf32>, vector<8x128xf32> -> vector<8x128xf32>
    %740 = vector.extract_strided_slice %739 {offsets = [0, 0], sizes = [8, 32], strides = [1, 1]} : vector<8x128xf32> to vector<8x32xf32>
    %741 = arith.negf %740 : vector<8x32xf32>
    %742 = math.exp %741 : vector<8x32xf32>
    %cst_235 = arith.constant 1.000000e+00 : f32
    %743 = vector.broadcast %cst_235 : f32 to vector<8x32xf32>
    %744 = arith.addf %743, %742 : vector<8x32xf32>
    %745 = arith.divf %743, %744 : vector<8x32xf32>
    %746 = vector.extract_strided_slice %739 {offsets = [0, 32], sizes = [8, 32], strides = [1, 1]} : vector<8x128xf32> to vector<8x32xf32>
    %747 = arith.negf %746 : vector<8x32xf32>
    %748 = math.exp %747 : vector<8x32xf32>
    %cst_236 = arith.constant 1.000000e+00 : f32
    %749 = vector.broadcast %cst_236 : f32 to vector<8x32xf32>
    %750 = arith.addf %749, %748 : vector<8x32xf32>
    %751 = arith.divf %749, %750 : vector<8x32xf32>
    %752 = arith.subf %751, %724 : vector<8x32xf32>
    %753 = arith.mulf %745, %752 : vector<8x32xf32>
    %754 = arith.addf %724, %753 : vector<8x32xf32>
    %755 = arith.addf %737, %754 : vector<8x32xf32>
    %756 = vector.extract_strided_slice %739 {offsets = [0, 64], sizes = [8, 32], strides = [1, 1]} : vector<8x128xf32> to vector<8x32xf32>
    %757 = arith.negf %756 : vector<8x32xf32>
    %758 = math.exp %757 : vector<8x32xf32>
    %cst_237 = arith.constant 1.000000e+00 : f32
    %759 = vector.broadcast %cst_237 : f32 to vector<8x32xf32>
    %760 = arith.addf %759, %758 : vector<8x32xf32>
    %761 = arith.divf %759, %760 : vector<8x32xf32>
    %762 = vector.extract_strided_slice %739 {offsets = [0, 96], sizes = [8, 32], strides = [1, 1]} : vector<8x128xf32> to vector<8x32xf32>
    %763 = arith.subf %762, %724 : vector<8x32xf32>
    %764 = arith.mulf %761, %763 : vector<8x32xf32>
    %765 = arith.addf %724, %764 : vector<8x32xf32>
    %766 = arith.addf %755, %765 : vector<8x32xf32>
    %c0_238 = arith.constant 0 : index
    %c0_239 = arith.constant 0 : index
    %767 = vector.load %arg7[%c0_238, %c0_239] : memref<32x64xf32, #tpu.memory_space<vmem>>, vector<32x64xf32>
    %cst_240 = arith.constant dense<0.000000e+00> : vector<8x64xf32>
    %768 = tpu.matmul %736, %767, %cst_240 {dimension_numbers = #tpu.dot_dimension_numbers<[1], [0], [0], [1], [0, 0, 1, 1], [], []>} : vector<8x32xf32>, vector<32x64xf32>, vector<8x64xf32> -> vector<8x64xf32>
    %769 = vector.extract_strided_slice %768 {offsets = [0, 0], sizes = [8, 32], strides = [1, 1]} : vector<8x64xf32> to vector<8x32xf32>
    %770 = arith.negf %769 : vector<8x32xf32>
    %771 = math.exp %770 : vector<8x32xf32>
    %cst_241 = arith.constant 1.000000e+00 : f32
    %772 = vector.broadcast %cst_241 : f32 to vector<8x32xf32>
    %773 = arith.addf %772, %771 : vector<8x32xf32>
    %774 = arith.divf %772, %773 : vector<8x32xf32>
    %775 = vector.extract_strided_slice %768 {offsets = [0, 32], sizes = [8, 32], strides = [1, 1]} : vector<8x64xf32> to vector<8x32xf32>
    %776 = math.tanh %775 : vector<8x32xf32>
    %777 = arith.subf %776, %736 : vector<8x32xf32>
    %778 = arith.mulf %774, %777 : vector<8x32xf32>
    %779 = arith.addf %736, %778 : vector<8x32xf32>
    %780 = arith.addf %766, %779 : vector<8x32xf32>
    %c0_242 = arith.constant 0 : index
    %c0_243 = arith.constant 0 : index
    %781 = vector.load %arg8[%c0_242, %c0_243] : memref<32x64xf32, #tpu.memory_space<vmem>>, vector<32x64xf32>
    %cst_244 = arith.constant dense<0.000000e+00> : vector<8x64xf32>
    %782 = tpu.matmul %754, %781, %cst_244 {dimension_numbers = #tpu.dot_dimension_numbers<[1], [0], [0], [1], [0, 0, 1, 1], [], []>} : vector<8x32xf32>, vector<32x64xf32>, vector<8x64xf32> -> vector<8x64xf32>
    %783 = vector.extract_strided_slice %782 {offsets = [0, 0], sizes = [8, 32], strides = [1, 1]} : vector<8x64xf32> to vector<8x32xf32>
    %784 = arith.negf %783 : vector<8x32xf32>
    %785 = math.exp %784 : vector<8x32xf32>
    %cst_245 = arith.constant 1.000000e+00 : f32
    %786 = vector.broadcast %cst_245 : f32 to vector<8x32xf32>
    %787 = arith.addf %786, %785 : vector<8x32xf32>
    %788 = arith.divf %786, %787 : vector<8x32xf32>
    %789 = vector.extract_strided_slice %782 {offsets = [0, 32], sizes = [8, 32], strides = [1, 1]} : vector<8x64xf32> to vector<8x32xf32>
    %cst_246 = arith.constant 0.000000e+00 : f32
    %790 = vector.broadcast %cst_246 : f32 to vector<8x32xf32>
    %791 = arith.maximumf %789, %790 : vector<8x32xf32>
    %792 = arith.subf %791, %754 : vector<8x32xf32>
    %793 = arith.mulf %788, %792 : vector<8x32xf32>
    %794 = arith.addf %754, %793 : vector<8x32xf32>
    %795 = arith.addf %780, %794 : vector<8x32xf32>
    %c0_247 = arith.constant 0 : index
    %c0_248 = arith.constant 0 : index
    %796 = vector.load %arg9[%c0_247, %c0_248] : memref<32x64xf32, #tpu.memory_space<vmem>>, vector<32x64xf32>
    %cst_249 = arith.constant dense<0.000000e+00> : vector<8x64xf32>
    %797 = tpu.matmul %765, %796, %cst_249 {dimension_numbers = #tpu.dot_dimension_numbers<[1], [0], [0], [1], [0, 0, 1, 1], [], []>} : vector<8x32xf32>, vector<32x64xf32>, vector<8x64xf32> -> vector<8x64xf32>
    %798 = vector.extract_strided_slice %797 {offsets = [0, 0], sizes = [8, 32], strides = [1, 1]} : vector<8x64xf32> to vector<8x32xf32>
    %799 = arith.negf %798 : vector<8x32xf32>
    %800 = math.exp %799 : vector<8x32xf32>
    %cst_250 = arith.constant 1.000000e+00 : f32
    %801 = vector.broadcast %cst_250 : f32 to vector<8x32xf32>
    %802 = arith.addf %801, %800 : vector<8x32xf32>
    %803 = arith.divf %801, %802 : vector<8x32xf32>
    %804 = vector.extract_strided_slice %797 {offsets = [0, 32], sizes = [8, 32], strides = [1, 1]} : vector<8x64xf32> to vector<8x32xf32>
    %805 = arith.negf %804 : vector<8x32xf32>
    %806 = math.exp %805 : vector<8x32xf32>
    %cst_251 = arith.constant 1.000000e+00 : f32
    %807 = vector.broadcast %cst_251 : f32 to vector<8x32xf32>
    %808 = arith.addf %807, %806 : vector<8x32xf32>
    %809 = arith.divf %807, %808 : vector<8x32xf32>
    %810 = arith.subf %809, %765 : vector<8x32xf32>
    %811 = arith.mulf %803, %810 : vector<8x32xf32>
    %812 = arith.addf %765, %811 : vector<8x32xf32>
    %813 = arith.addf %795, %812 : vector<8x32xf32>
    %c0_252 = arith.constant 0 : index
    %c0_253 = arith.constant 0 : index
    %814 = vector.load %arg10[%c0_252, %c0_253] : memref<32x64xf32, #tpu.memory_space<vmem>>, vector<32x64xf32>
    %cst_254 = arith.constant dense<0.000000e+00> : vector<8x64xf32>
    %815 = tpu.matmul %779, %814, %cst_254 {dimension_numbers = #tpu.dot_dimension_numbers<[1], [0], [0], [1], [0, 0, 1, 1], [], []>} : vector<8x32xf32>, vector<32x64xf32>, vector<8x64xf32> -> vector<8x64xf32>
    %816 = vector.extract_strided_slice %815 {offsets = [0, 0], sizes = [8, 32], strides = [1, 1]} : vector<8x64xf32> to vector<8x32xf32>
    %817 = arith.negf %816 : vector<8x32xf32>
    %818 = math.exp %817 : vector<8x32xf32>
    %cst_255 = arith.constant 1.000000e+00 : f32
    %819 = vector.broadcast %cst_255 : f32 to vector<8x32xf32>
    %820 = arith.addf %819, %818 : vector<8x32xf32>
    %821 = arith.divf %819, %820 : vector<8x32xf32>
    %822 = vector.extract_strided_slice %815 {offsets = [0, 32], sizes = [8, 32], strides = [1, 1]} : vector<8x64xf32> to vector<8x32xf32>
    %823 = arith.subf %822, %779 : vector<8x32xf32>
    %824 = arith.mulf %821, %823 : vector<8x32xf32>
    %825 = arith.addf %779, %824 : vector<8x32xf32>
    %826 = arith.addf %813, %825 : vector<8x32xf32>
    %cst_256 = arith.constant 1.250000e-01 : f32
    %827 = vector.broadcast %cst_256 : f32 to vector<8x32xf32>
    %828 = arith.mulf %826, %827 : vector<8x32xf32>
    %c5_257 = arith.constant 5 : index
    %c0_258 = arith.constant 0 : index
    %c0_259 = arith.constant 0 : index
    %829 = vector.load %arg11[%c5_257, %c0_258, %c0_259] : memref<8x8x32xf32, #tpu.memory_space<vmem>>, vector<1x8x32xf32>
    %830 = vector.shape_cast %829 : vector<1x8x32xf32> to vector<8x32xf32>
    %831 = vector.shape_cast %828 : vector<8x32xf32> to vector<1x8x32xf32>
    tpu.vector_store %arg11[%c5_257, %c0_258, %c0_259], %831 {strides = array<i32>} : memref<8x8x32xf32, #tpu.memory_space<vmem>>, vector<1x8x32xf32>,
    %c6 = arith.constant 6 : index
    %c0_260 = arith.constant 0 : index
    %c0_261 = arith.constant 0 : index
    %832 = vector.load %arg1[%c6, %c0_260, %c0_261] : memref<8x8x32xf32, #tpu.memory_space<vmem>>, vector<1x8x32xf32>
    %833 = vector.shape_cast %832 : vector<1x8x32xf32> to vector<8x32xf32>
    %c0_262 = arith.constant 0 : index
    %c0_263 = arith.constant 0 : index
    %834 = vector.load %arg3[%c0_262, %c0_263] : memref<32x64xf32, #tpu.memory_space<vmem>>, vector<32x64xf32>
    %cst_264 = arith.constant dense<0.000000e+00> : vector<8x64xf32>
    %835 = tpu.matmul %833, %834, %cst_264 {dimension_numbers = #tpu.dot_dimension_numbers<[1], [0], [0], [1], [0, 0, 1, 1], [], []>} : vector<8x32xf32>, vector<32x64xf32>, vector<8x64xf32> -> vector<8x64xf32>
    %c0_265 = arith.constant 0 : index
    %c0_266 = arith.constant 0 : index
    %836 = vector.load %arg4[%c0_265, %c0_266] : memref<32x64xf32, #tpu.memory_space<vmem>>, vector<32x64xf32>
    %cst_267 = arith.constant dense<0.000000e+00> : vector<8x64xf32>
    %837 = tpu.matmul %828, %836, %cst_267 {dimension_numbers = #tpu.dot_dimension_numbers<[1], [0], [0], [1], [0, 0, 1, 1], [], []>} : vector<8x32xf32>, vector<32x64xf32>, vector<8x64xf32> -> vector<8x64xf32>
    %838 = arith.addf %835, %837 : vector<8x64xf32>
    %839 = vector.extract_strided_slice %838 {offsets = [0, 0], sizes = [8, 32], strides = [1, 1]} : vector<8x64xf32> to vector<8x32xf32>
    %840 = arith.negf %839 : vector<8x32xf32>
    %841 = math.exp %840 : vector<8x32xf32>
    %cst_268 = arith.constant 1.000000e+00 : f32
    %842 = vector.broadcast %cst_268 : f32 to vector<8x32xf32>
    %843 = arith.addf %842, %841 : vector<8x32xf32>
    %844 = arith.divf %842, %843 : vector<8x32xf32>
    %845 = vector.extract_strided_slice %838 {offsets = [0, 32], sizes = [8, 32], strides = [1, 1]} : vector<8x64xf32> to vector<8x32xf32>
    %846 = math.tanh %845 : vector<8x32xf32>
    %847 = arith.subf %846, %828 : vector<8x32xf32>
    %848 = arith.mulf %844, %847 : vector<8x32xf32>
    %849 = arith.addf %828, %848 : vector<8x32xf32>
    %c0_269 = arith.constant 0 : index
    %c0_270 = arith.constant 0 : index
    %850 = vector.load %arg5[%c0_269, %c0_270] : memref<32x128xf32, #tpu.memory_space<vmem>>, vector<32x128xf32>
    %cst_271 = arith.constant dense<0.000000e+00> : vector<8x128xf32>
    %851 = tpu.matmul %849, %850, %cst_271 {dimension_numbers = #tpu.dot_dimension_numbers<[1], [0], [0], [1], [0, 0, 1, 1], [], []>} : vector<8x32xf32>, vector<32x128xf32>, vector<8x128xf32> -> vector<8x128xf32>
    %852 = vector.extract_strided_slice %851 {offsets = [0, 0], sizes = [8, 32], strides = [1, 1]} : vector<8x128xf32> to vector<8x32xf32>
    %853 = arith.negf %852 : vector<8x32xf32>
    %854 = math.exp %853 : vector<8x32xf32>
    %cst_272 = arith.constant 1.000000e+00 : f32
    %855 = vector.broadcast %cst_272 : f32 to vector<8x32xf32>
    %856 = arith.addf %855, %854 : vector<8x32xf32>
    %857 = arith.divf %855, %856 : vector<8x32xf32>
    %858 = vector.extract_strided_slice %851 {offsets = [0, 32], sizes = [8, 32], strides = [1, 1]} : vector<8x128xf32> to vector<8x32xf32>
    %859 = math.tanh %858 : vector<8x32xf32>
    %860 = arith.subf %859, %849 : vector<8x32xf32>
    %861 = arith.mulf %857, %860 : vector<8x32xf32>
    %862 = arith.addf %849, %861 : vector<8x32xf32>
    %863 = vector.extract_strided_slice %851 {offsets = [0, 64], sizes = [8, 32], strides = [1, 1]} : vector<8x128xf32> to vector<8x32xf32>
    %864 = arith.negf %863 : vector<8x32xf32>
    %865 = math.exp %864 : vector<8x32xf32>
    %cst_273 = arith.constant 1.000000e+00 : f32
    %866 = vector.broadcast %cst_273 : f32 to vector<8x32xf32>
    %867 = arith.addf %866, %865 : vector<8x32xf32>
    %868 = arith.divf %866, %867 : vector<8x32xf32>
    %869 = vector.extract_strided_slice %851 {offsets = [0, 96], sizes = [8, 32], strides = [1, 1]} : vector<8x128xf32> to vector<8x32xf32>
    %cst_274 = arith.constant 0.000000e+00 : f32
    %870 = vector.broadcast %cst_274 : f32 to vector<8x32xf32>
    %871 = arith.maximumf %869, %870 : vector<8x32xf32>
    %872 = arith.subf %871, %849 : vector<8x32xf32>
    %873 = arith.mulf %868, %872 : vector<8x32xf32>
    %874 = arith.addf %849, %873 : vector<8x32xf32>
    %875 = arith.addf %862, %874 : vector<8x32xf32>
    %c0_275 = arith.constant 0 : index
    %c0_276 = arith.constant 0 : index
    %876 = vector.load %arg6[%c0_275, %c0_276] : memref<32x128xf32, #tpu.memory_space<vmem>>, vector<32x128xf32>
    %cst_277 = arith.constant dense<0.000000e+00> : vector<8x128xf32>
    %877 = tpu.matmul %862, %876, %cst_277 {dimension_numbers = #tpu.dot_dimension_numbers<[1], [0], [0], [1], [0, 0, 1, 1], [], []>} : vector<8x32xf32>, vector<32x128xf32>, vector<8x128xf32> -> vector<8x128xf32>
    %878 = vector.extract_strided_slice %877 {offsets = [0, 0], sizes = [8, 32], strides = [1, 1]} : vector<8x128xf32> to vector<8x32xf32>
    %879 = arith.negf %878 : vector<8x32xf32>
    %880 = math.exp %879 : vector<8x32xf32>
    %cst_278 = arith.constant 1.000000e+00 : f32
    %881 = vector.broadcast %cst_278 : f32 to vector<8x32xf32>
    %882 = arith.addf %881, %880 : vector<8x32xf32>
    %883 = arith.divf %881, %882 : vector<8x32xf32>
    %884 = vector.extract_strided_slice %877 {offsets = [0, 32], sizes = [8, 32], strides = [1, 1]} : vector<8x128xf32> to vector<8x32xf32>
    %885 = arith.negf %884 : vector<8x32xf32>
    %886 = math.exp %885 : vector<8x32xf32>
    %cst_279 = arith.constant 1.000000e+00 : f32
    %887 = vector.broadcast %cst_279 : f32 to vector<8x32xf32>
    %888 = arith.addf %887, %886 : vector<8x32xf32>
    %889 = arith.divf %887, %888 : vector<8x32xf32>
    %890 = arith.subf %889, %862 : vector<8x32xf32>
    %891 = arith.mulf %883, %890 : vector<8x32xf32>
    %892 = arith.addf %862, %891 : vector<8x32xf32>
    %893 = arith.addf %875, %892 : vector<8x32xf32>
    %894 = vector.extract_strided_slice %877 {offsets = [0, 64], sizes = [8, 32], strides = [1, 1]} : vector<8x128xf32> to vector<8x32xf32>
    %895 = arith.negf %894 : vector<8x32xf32>
    %896 = math.exp %895 : vector<8x32xf32>
    %cst_280 = arith.constant 1.000000e+00 : f32
    %897 = vector.broadcast %cst_280 : f32 to vector<8x32xf32>
    %898 = arith.addf %897, %896 : vector<8x32xf32>
    %899 = arith.divf %897, %898 : vector<8x32xf32>
    %900 = vector.extract_strided_slice %877 {offsets = [0, 96], sizes = [8, 32], strides = [1, 1]} : vector<8x128xf32> to vector<8x32xf32>
    %901 = arith.subf %900, %862 : vector<8x32xf32>
    %902 = arith.mulf %899, %901 : vector<8x32xf32>
    %903 = arith.addf %862, %902 : vector<8x32xf32>
    %904 = arith.addf %893, %903 : vector<8x32xf32>
    %c0_281 = arith.constant 0 : index
    %c0_282 = arith.constant 0 : index
    %905 = vector.load %arg7[%c0_281, %c0_282] : memref<32x64xf32, #tpu.memory_space<vmem>>, vector<32x64xf32>
    %cst_283 = arith.constant dense<0.000000e+00> : vector<8x64xf32>
    %906 = tpu.matmul %874, %905, %cst_283 {dimension_numbers = #tpu.dot_dimension_numbers<[1], [0], [0], [1], [0, 0, 1, 1], [], []>} : vector<8x32xf32>, vector<32x64xf32>, vector<8x64xf32> -> vector<8x64xf32>
    %907 = vector.extract_strided_slice %906 {offsets = [0, 0], sizes = [8, 32], strides = [1, 1]} : vector<8x64xf32> to vector<8x32xf32>
    %908 = arith.negf %907 : vector<8x32xf32>
    %909 = math.exp %908 : vector<8x32xf32>
    %cst_284 = arith.constant 1.000000e+00 : f32
    %910 = vector.broadcast %cst_284 : f32 to vector<8x32xf32>
    %911 = arith.addf %910, %909 : vector<8x32xf32>
    %912 = arith.divf %910, %911 : vector<8x32xf32>
    %913 = vector.extract_strided_slice %906 {offsets = [0, 32], sizes = [8, 32], strides = [1, 1]} : vector<8x64xf32> to vector<8x32xf32>
    %914 = math.tanh %913 : vector<8x32xf32>
    %915 = arith.subf %914, %874 : vector<8x32xf32>
    %916 = arith.mulf %912, %915 : vector<8x32xf32>
    %917 = arith.addf %874, %916 : vector<8x32xf32>
    %918 = arith.addf %904, %917 : vector<8x32xf32>
    %c0_285 = arith.constant 0 : index
    %c0_286 = arith.constant 0 : index
    %919 = vector.load %arg8[%c0_285, %c0_286] : memref<32x64xf32, #tpu.memory_space<vmem>>, vector<32x64xf32>
    %cst_287 = arith.constant dense<0.000000e+00> : vector<8x64xf32>
    %920 = tpu.matmul %892, %919, %cst_287 {dimension_numbers = #tpu.dot_dimension_numbers<[1], [0], [0], [1], [0, 0, 1, 1], [], []>} : vector<8x32xf32>, vector<32x64xf32>, vector<8x64xf32> -> vector<8x64xf32>
    %921 = vector.extract_strided_slice %920 {offsets = [0, 0], sizes = [8, 32], strides = [1, 1]} : vector<8x64xf32> to vector<8x32xf32>
    %922 = arith.negf %921 : vector<8x32xf32>
    %923 = math.exp %922 : vector<8x32xf32>
    %cst_288 = arith.constant 1.000000e+00 : f32
    %924 = vector.broadcast %cst_288 : f32 to vector<8x32xf32>
    %925 = arith.addf %924, %923 : vector<8x32xf32>
    %926 = arith.divf %924, %925 : vector<8x32xf32>
    %927 = vector.extract_strided_slice %920 {offsets = [0, 32], sizes = [8, 32], strides = [1, 1]} : vector<8x64xf32> to vector<8x32xf32>
    %cst_289 = arith.constant 0.000000e+00 : f32
    %928 = vector.broadcast %cst_289 : f32 to vector<8x32xf32>
    %929 = arith.maximumf %927, %928 : vector<8x32xf32>
    %930 = arith.subf %929, %892 : vector<8x32xf32>
    %931 = arith.mulf %926, %930 : vector<8x32xf32>
    %932 = arith.addf %892, %931 : vector<8x32xf32>
    %933 = arith.addf %918, %932 : vector<8x32xf32>
    %c0_290 = arith.constant 0 : index
    %c0_291 = arith.constant 0 : index
    %934 = vector.load %arg9[%c0_290, %c0_291] : memref<32x64xf32, #tpu.memory_space<vmem>>, vector<32x64xf32>
    %cst_292 = arith.constant dense<0.000000e+00> : vector<8x64xf32>
    %935 = tpu.matmul %903, %934, %cst_292 {dimension_numbers = #tpu.dot_dimension_numbers<[1], [0], [0], [1], [0, 0, 1, 1], [], []>} : vector<8x32xf32>, vector<32x64xf32>, vector<8x64xf32> -> vector<8x64xf32>
    %936 = vector.extract_strided_slice %935 {offsets = [0, 0], sizes = [8, 32], strides = [1, 1]} : vector<8x64xf32> to vector<8x32xf32>
    %937 = arith.negf %936 : vector<8x32xf32>
    %938 = math.exp %937 : vector<8x32xf32>
    %cst_293 = arith.constant 1.000000e+00 : f32
    %939 = vector.broadcast %cst_293 : f32 to vector<8x32xf32>
    %940 = arith.addf %939, %938 : vector<8x32xf32>
    %941 = arith.divf %939, %940 : vector<8x32xf32>
    %942 = vector.extract_strided_slice %935 {offsets = [0, 32], sizes = [8, 32], strides = [1, 1]} : vector<8x64xf32> to vector<8x32xf32>
    %943 = arith.negf %942 : vector<8x32xf32>
    %944 = math.exp %943 : vector<8x32xf32>
    %cst_294 = arith.constant 1.000000e+00 : f32
    %945 = vector.broadcast %cst_294 : f32 to vector<8x32xf32>
    %946 = arith.addf %945, %944 : vector<8x32xf32>
    %947 = arith.divf %945, %946 : vector<8x32xf32>
    %948 = arith.subf %947, %903 : vector<8x32xf32>
    %949 = arith.mulf %941, %948 : vector<8x32xf32>
    %950 = arith.addf %903, %949 : vector<8x32xf32>
    %951 = arith.addf %933, %950 : vector<8x32xf32>
    %c0_295 = arith.constant 0 : index
    %c0_296 = arith.constant 0 : index
    %952 = vector.load %arg10[%c0_295, %c0_296] : memref<32x64xf32, #tpu.memory_space<vmem>>, vector<32x64xf32>
    %cst_297 = arith.constant dense<0.000000e+00> : vector<8x64xf32>
    %953 = tpu.matmul %917, %952, %cst_297 {dimension_numbers = #tpu.dot_dimension_numbers<[1], [0], [0], [1], [0, 0, 1, 1], [], []>} : vector<8x32xf32>, vector<32x64xf32>, vector<8x64xf32> -> vector<8x64xf32>
    %954 = vector.extract_strided_slice %953 {offsets = [0, 0], sizes = [8, 32], strides = [1, 1]} : vector<8x64xf32> to vector<8x32xf32>
    %955 = arith.negf %954 : vector<8x32xf32>
    %956 = math.exp %955 : vector<8x32xf32>
    %cst_298 = arith.constant 1.000000e+00 : f32
    %957 = vector.broadcast %cst_298 : f32 to vector<8x32xf32>
    %958 = arith.addf %957, %956 : vector<8x32xf32>
    %959 = arith.divf %957, %958 : vector<8x32xf32>
    %960 = vector.extract_strided_slice %953 {offsets = [0, 32], sizes = [8, 32], strides = [1, 1]} : vector<8x64xf32> to vector<8x32xf32>
    %961 = arith.subf %960, %917 : vector<8x32xf32>
    %962 = arith.mulf %959, %961 : vector<8x32xf32>
    %963 = arith.addf %917, %962 : vector<8x32xf32>
    %964 = arith.addf %951, %963 : vector<8x32xf32>
    %cst_299 = arith.constant 1.250000e-01 : f32
    %965 = vector.broadcast %cst_299 : f32 to vector<8x32xf32>
    %966 = arith.mulf %964, %965 : vector<8x32xf32>
    %c6_300 = arith.constant 6 : index
    %c0_301 = arith.constant 0 : index
    %c0_302 = arith.constant 0 : index
    %967 = vector.load %arg11[%c6_300, %c0_301, %c0_302] : memref<8x8x32xf32, #tpu.memory_space<vmem>>, vector<1x8x32xf32>
    %968 = vector.shape_cast %967 : vector<1x8x32xf32> to vector<8x32xf32>
    %969 = vector.shape_cast %966 : vector<8x32xf32> to vector<1x8x32xf32>
    tpu.vector_store %arg11[%c6_300, %c0_301, %c0_302], %969 {strides = array<i32>} : memref<8x8x32xf32, #tpu.memory_space<vmem>>, vector<1x8x32xf32>,
    %c7 = arith.constant 7 : index
    %c0_303 = arith.constant 0 : index
    %c0_304 = arith.constant 0 : index
    %970 = vector.load %arg1[%c7, %c0_303, %c0_304] : memref<8x8x32xf32, #tpu.memory_space<vmem>>, vector<1x8x32xf32>
    %971 = vector.shape_cast %970 : vector<1x8x32xf32> to vector<8x32xf32>
    %c0_305 = arith.constant 0 : index
    %c0_306 = arith.constant 0 : index
    %972 = vector.load %arg3[%c0_305, %c0_306] : memref<32x64xf32, #tpu.memory_space<vmem>>, vector<32x64xf32>
    %cst_307 = arith.constant dense<0.000000e+00> : vector<8x64xf32>
    %973 = tpu.matmul %971, %972, %cst_307 {dimension_numbers = #tpu.dot_dimension_numbers<[1], [0], [0], [1], [0, 0, 1, 1], [], []>} : vector<8x32xf32>, vector<32x64xf32>, vector<8x64xf32> -> vector<8x64xf32>
    %c0_308 = arith.constant 0 : index
    %c0_309 = arith.constant 0 : index
    %974 = vector.load %arg4[%c0_308, %c0_309] : memref<32x64xf32, #tpu.memory_space<vmem>>, vector<32x64xf32>
    %cst_310 = arith.constant dense<0.000000e+00> : vector<8x64xf32>
    %975 = tpu.matmul %966, %974, %cst_310 {dimension_numbers = #tpu.dot_dimension_numbers<[1], [0], [0], [1], [0, 0, 1, 1], [], []>} : vector<8x32xf32>, vector<32x64xf32>, vector<8x64xf32> -> vector<8x64xf32>
    %976 = arith.addf %973, %975 : vector<8x64xf32>
    %977 = vector.extract_strided_slice %976 {offsets = [0, 0], sizes = [8, 32], strides = [1, 1]} : vector<8x64xf32> to vector<8x32xf32>
    %978 = arith.negf %977 : vector<8x32xf32>
    %979 = math.exp %978 : vector<8x32xf32>
    %cst_311 = arith.constant 1.000000e+00 : f32
    %980 = vector.broadcast %cst_311 : f32 to vector<8x32xf32>
    %981 = arith.addf %980, %979 : vector<8x32xf32>
    %982 = arith.divf %980, %981 : vector<8x32xf32>
    %983 = vector.extract_strided_slice %976 {offsets = [0, 32], sizes = [8, 32], strides = [1, 1]} : vector<8x64xf32> to vector<8x32xf32>
    %984 = math.tanh %983 : vector<8x32xf32>
    %985 = arith.subf %984, %966 : vector<8x32xf32>
    %986 = arith.mulf %982, %985 : vector<8x32xf32>
    %987 = arith.addf %966, %986 : vector<8x32xf32>
    %c0_312 = arith.constant 0 : index
    %c0_313 = arith.constant 0 : index
    %988 = vector.load %arg5[%c0_312, %c0_313] : memref<32x128xf32, #tpu.memory_space<vmem>>, vector<32x128xf32>
    %cst_314 = arith.constant dense<0.000000e+00> : vector<8x128xf32>
    %989 = tpu.matmul %987, %988, %cst_314 {dimension_numbers = #tpu.dot_dimension_numbers<[1], [0], [0], [1], [0, 0, 1, 1], [], []>} : vector<8x32xf32>, vector<32x128xf32>, vector<8x128xf32> -> vector<8x128xf32>
    %990 = vector.extract_strided_slice %989 {offsets = [0, 0], sizes = [8, 32], strides = [1, 1]} : vector<8x128xf32> to vector<8x32xf32>
    %991 = arith.negf %990 : vector<8x32xf32>
    %992 = math.exp %991 : vector<8x32xf32>
    %cst_315 = arith.constant 1.000000e+00 : f32
    %993 = vector.broadcast %cst_315 : f32 to vector<8x32xf32>
    %994 = arith.addf %993, %992 : vector<8x32xf32>
    %995 = arith.divf %993, %994 : vector<8x32xf32>
    %996 = vector.extract_strided_slice %989 {offsets = [0, 32], sizes = [8, 32], strides = [1, 1]} : vector<8x128xf32> to vector<8x32xf32>
    %997 = math.tanh %996 : vector<8x32xf32>
    %998 = arith.subf %997, %987 : vector<8x32xf32>
    %999 = arith.mulf %995, %998 : vector<8x32xf32>
    %1000 = arith.addf %987, %999 : vector<8x32xf32>
    %1001 = vector.extract_strided_slice %989 {offsets = [0, 64], sizes = [8, 32], strides = [1, 1]} : vector<8x128xf32> to vector<8x32xf32>
    %1002 = arith.negf %1001 : vector<8x32xf32>
    %1003 = math.exp %1002 : vector<8x32xf32>
    %cst_316 = arith.constant 1.000000e+00 : f32
    %1004 = vector.broadcast %cst_316 : f32 to vector<8x32xf32>
    %1005 = arith.addf %1004, %1003 : vector<8x32xf32>
    %1006 = arith.divf %1004, %1005 : vector<8x32xf32>
    %1007 = vector.extract_strided_slice %989 {offsets = [0, 96], sizes = [8, 32], strides = [1, 1]} : vector<8x128xf32> to vector<8x32xf32>
    %cst_317 = arith.constant 0.000000e+00 : f32
    %1008 = vector.broadcast %cst_317 : f32 to vector<8x32xf32>
    %1009 = arith.maximumf %1007, %1008 : vector<8x32xf32>
    %1010 = arith.subf %1009, %987 : vector<8x32xf32>
    %1011 = arith.mulf %1006, %1010 : vector<8x32xf32>
    %1012 = arith.addf %987, %1011 : vector<8x32xf32>
    %1013 = arith.addf %1000, %1012 : vector<8x32xf32>
    %c0_318 = arith.constant 0 : index
    %c0_319 = arith.constant 0 : index
    %1014 = vector.load %arg6[%c0_318, %c0_319] : memref<32x128xf32, #tpu.memory_space<vmem>>, vector<32x128xf32>
    %cst_320 = arith.constant dense<0.000000e+00> : vector<8x128xf32>
    %1015 = tpu.matmul %1000, %1014, %cst_320 {dimension_numbers = #tpu.dot_dimension_numbers<[1], [0], [0], [1], [0, 0, 1, 1], [], []>} : vector<8x32xf32>, vector<32x128xf32>, vector<8x128xf32> -> vector<8x128xf32>
    %1016 = vector.extract_strided_slice %1015 {offsets = [0, 0], sizes = [8, 32], strides = [1, 1]} : vector<8x128xf32> to vector<8x32xf32>
    %1017 = arith.negf %1016 : vector<8x32xf32>
    %1018 = math.exp %1017 : vector<8x32xf32>
    %cst_321 = arith.constant 1.000000e+00 : f32
    %1019 = vector.broadcast %cst_321 : f32 to vector<8x32xf32>
    %1020 = arith.addf %1019, %1018 : vector<8x32xf32>
    %1021 = arith.divf %1019, %1020 : vector<8x32xf32>
    %1022 = vector.extract_strided_slice %1015 {offsets = [0, 32], sizes = [8, 32], strides = [1, 1]} : vector<8x128xf32> to vector<8x32xf32>
    %1023 = arith.negf %1022 : vector<8x32xf32>
    %1024 = math.exp %1023 : vector<8x32xf32>
    %cst_322 = arith.constant 1.000000e+00 : f32
    %1025 = vector.broadcast %cst_322 : f32 to vector<8x32xf32>
    %1026 = arith.addf %1025, %1024 : vector<8x32xf32>
    %1027 = arith.divf %1025, %1026 : vector<8x32xf32>
    %1028 = arith.subf %1027, %1000 : vector<8x32xf32>
    %1029 = arith.mulf %1021, %1028 : vector<8x32xf32>
    %1030 = arith.addf %1000, %1029 : vector<8x32xf32>
    %1031 = arith.addf %1013, %1030 : vector<8x32xf32>
    %1032 = vector.extract_strided_slice %1015 {offsets = [0, 64], sizes = [8, 32], strides = [1, 1]} : vector<8x128xf32> to vector<8x32xf32>
    %1033 = arith.negf %1032 : vector<8x32xf32>
    %1034 = math.exp %1033 : vector<8x32xf32>
    %cst_323 = arith.constant 1.000000e+00 : f32
    %1035 = vector.broadcast %cst_323 : f32 to vector<8x32xf32>
    %1036 = arith.addf %1035, %1034 : vector<8x32xf32>
    %1037 = arith.divf %1035, %1036 : vector<8x32xf32>
    %1038 = vector.extract_strided_slice %1015 {offsets = [0, 96], sizes = [8, 32], strides = [1, 1]} : vector<8x128xf32> to vector<8x32xf32>
    %1039 = arith.subf %1038, %1000 : vector<8x32xf32>
    %1040 = arith.mulf %1037, %1039 : vector<8x32xf32>
    %1041 = arith.addf %1000, %1040 : vector<8x32xf32>
    %1042 = arith.addf %1031, %1041 : vector<8x32xf32>
    %c0_324 = arith.constant 0 : index
    %c0_325 = arith.constant 0 : index
    %1043 = vector.load %arg7[%c0_324, %c0_325] : memref<32x64xf32, #tpu.memory_space<vmem>>, vector<32x64xf32>
    %cst_326 = arith.constant dense<0.000000e+00> : vector<8x64xf32>
    %1044 = tpu.matmul %1012, %1043, %cst_326 {dimension_numbers = #tpu.dot_dimension_numbers<[1], [0], [0], [1], [0, 0, 1, 1], [], []>} : vector<8x32xf32>, vector<32x64xf32>, vector<8x64xf32> -> vector<8x64xf32>
    %1045 = vector.extract_strided_slice %1044 {offsets = [0, 0], sizes = [8, 32], strides = [1, 1]} : vector<8x64xf32> to vector<8x32xf32>
    %1046 = arith.negf %1045 : vector<8x32xf32>
    %1047 = math.exp %1046 : vector<8x32xf32>
    %cst_327 = arith.constant 1.000000e+00 : f32
    %1048 = vector.broadcast %cst_327 : f32 to vector<8x32xf32>
    %1049 = arith.addf %1048, %1047 : vector<8x32xf32>
    %1050 = arith.divf %1048, %1049 : vector<8x32xf32>
    %1051 = vector.extract_strided_slice %1044 {offsets = [0, 32], sizes = [8, 32], strides = [1, 1]} : vector<8x64xf32> to vector<8x32xf32>
    %1052 = math.tanh %1051 : vector<8x32xf32>
    %1053 = arith.subf %1052, %1012 : vector<8x32xf32>
    %1054 = arith.mulf %1050, %1053 : vector<8x32xf32>
    %1055 = arith.addf %1012, %1054 : vector<8x32xf32>
    %1056 = arith.addf %1042, %1055 : vector<8x32xf32>
    %c0_328 = arith.constant 0 : index
    %c0_329 = arith.constant 0 : index
    %1057 = vector.load %arg8[%c0_328, %c0_329] : memref<32x64xf32, #tpu.memory_space<vmem>>, vector<32x64xf32>
    %cst_330 = arith.constant dense<0.000000e+00> : vector<8x64xf32>
    %1058 = tpu.matmul %1030, %1057, %cst_330 {dimension_numbers = #tpu.dot_dimension_numbers<[1], [0], [0], [1], [0, 0, 1, 1], [], []>} : vector<8x32xf32>, vector<32x64xf32>, vector<8x64xf32> -> vector<8x64xf32>
    %1059 = vector.extract_strided_slice %1058 {offsets = [0, 0], sizes = [8, 32], strides = [1, 1]} : vector<8x64xf32> to vector<8x32xf32>
    %1060 = arith.negf %1059 : vector<8x32xf32>
    %1061 = math.exp %1060 : vector<8x32xf32>
    %cst_331 = arith.constant 1.000000e+00 : f32
    %1062 = vector.broadcast %cst_331 : f32 to vector<8x32xf32>
    %1063 = arith.addf %1062, %1061 : vector<8x32xf32>
    %1064 = arith.divf %1062, %1063 : vector<8x32xf32>
    %1065 = vector.extract_strided_slice %1058 {offsets = [0, 32], sizes = [8, 32], strides = [1, 1]} : vector<8x64xf32> to vector<8x32xf32>
    %cst_332 = arith.constant 0.000000e+00 : f32
    %1066 = vector.broadcast %cst_332 : f32 to vector<8x32xf32>
    %1067 = arith.maximumf %1065, %1066 : vector<8x32xf32>
    %1068 = arith.subf %1067, %1030 : vector<8x32xf32>
    %1069 = arith.mulf %1064, %1068 : vector<8x32xf32>
    %1070 = arith.addf %1030, %1069 : vector<8x32xf32>
    %1071 = arith.addf %1056, %1070 : vector<8x32xf32>
    %c0_333 = arith.constant 0 : index
    %c0_334 = arith.constant 0 : index
    %1072 = vector.load %arg9[%c0_333, %c0_334] : memref<32x64xf32, #tpu.memory_space<vmem>>, vector<32x64xf32>
    %cst_335 = arith.constant dense<0.000000e+00> : vector<8x64xf32>
    %1073 = tpu.matmul %1041, %1072, %cst_335 {dimension_numbers = #tpu.dot_dimension_numbers<[1], [0], [0], [1], [0, 0, 1, 1], [], []>} : vector<8x32xf32>, vector<32x64xf32>, vector<8x64xf32> -> vector<8x64xf32>
    %1074 = vector.extract_strided_slice %1073 {offsets = [0, 0], sizes = [8, 32], strides = [1, 1]} : vector<8x64xf32> to vector<8x32xf32>
    %1075 = arith.negf %1074 : vector<8x32xf32>
    %1076 = math.exp %1075 : vector<8x32xf32>
    %cst_336 = arith.constant 1.000000e+00 : f32
    %1077 = vector.broadcast %cst_336 : f32 to vector<8x32xf32>
    %1078 = arith.addf %1077, %1076 : vector<8x32xf32>
    %1079 = arith.divf %1077, %1078 : vector<8x32xf32>
    %1080 = vector.extract_strided_slice %1073 {offsets = [0, 32], sizes = [8, 32], strides = [1, 1]} : vector<8x64xf32> to vector<8x32xf32>
    %1081 = arith.negf %1080 : vector<8x32xf32>
    %1082 = math.exp %1081 : vector<8x32xf32>
    %cst_337 = arith.constant 1.000000e+00 : f32
    %1083 = vector.broadcast %cst_337 : f32 to vector<8x32xf32>
    %1084 = arith.addf %1083, %1082 : vector<8x32xf32>
    %1085 = arith.divf %1083, %1084 : vector<8x32xf32>
    %1086 = arith.subf %1085, %1041 : vector<8x32xf32>
    %1087 = arith.mulf %1079, %1086 : vector<8x32xf32>
    %1088 = arith.addf %1041, %1087 : vector<8x32xf32>
    %1089 = arith.addf %1071, %1088 : vector<8x32xf32>
    %c0_338 = arith.constant 0 : index
    %c0_339 = arith.constant 0 : index
    %1090 = vector.load %arg10[%c0_338, %c0_339] : memref<32x64xf32, #tpu.memory_space<vmem>>, vector<32x64xf32>
    %cst_340 = arith.constant dense<0.000000e+00> : vector<8x64xf32>
    %1091 = tpu.matmul %1055, %1090, %cst_340 {dimension_numbers = #tpu.dot_dimension_numbers<[1], [0], [0], [1], [0, 0, 1, 1], [], []>} : vector<8x32xf32>, vector<32x64xf32>, vector<8x64xf32> -> vector<8x64xf32>
    %1092 = vector.extract_strided_slice %1091 {offsets = [0, 0], sizes = [8, 32], strides = [1, 1]} : vector<8x64xf32> to vector<8x32xf32>
    %1093 = arith.negf %1092 : vector<8x32xf32>
    %1094 = math.exp %1093 : vector<8x32xf32>
    %cst_341 = arith.constant 1.000000e+00 : f32
    %1095 = vector.broadcast %cst_341 : f32 to vector<8x32xf32>
    %1096 = arith.addf %1095, %1094 : vector<8x32xf32>
    %1097 = arith.divf %1095, %1096 : vector<8x32xf32>
    %1098 = vector.extract_strided_slice %1091 {offsets = [0, 32], sizes = [8, 32], strides = [1, 1]} : vector<8x64xf32> to vector<8x32xf32>
    %1099 = arith.subf %1098, %1055 : vector<8x32xf32>
    %1100 = arith.mulf %1097, %1099 : vector<8x32xf32>
    %1101 = arith.addf %1055, %1100 : vector<8x32xf32>
    %1102 = arith.addf %1089, %1101 : vector<8x32xf32>
    %cst_342 = arith.constant 1.250000e-01 : f32
    %1103 = vector.broadcast %cst_342 : f32 to vector<8x32xf32>
    %1104 = arith.mulf %1102, %1103 : vector<8x32xf32>
    %c7_343 = arith.constant 7 : index
    %c0_344 = arith.constant 0 : index
    %c0_345 = arith.constant 0 : index
    %1105 = vector.load %arg11[%c7_343, %c0_344, %c0_345] : memref<8x8x32xf32, #tpu.memory_space<vmem>>, vector<1x8x32xf32>
    %1106 = vector.shape_cast %1105 : vector<1x8x32xf32> to vector<8x32xf32>
    %1107 = vector.shape_cast %1104 : vector<8x32xf32> to vector<1x8x32xf32>
    tpu.vector_store %arg11[%c7_343, %c0_344, %c0_345], %1107 {strides = array<i32>} : memref<8x8x32xf32, #tpu.memory_space<vmem>>, vector<1x8x32xf32>,
    %c0_346 = arith.constant 0 : index
    %c0_347 = arith.constant 0 : index
    %1108 = vector.load %arg12[%c0_346, %c0_347] : memref<8x32xf32, #tpu.memory_space<vmem>>, vector<8x32xf32>
    tpu.vector_store %arg12[%c0_346, %c0_347], %1104 {strides = array<i32>} : memref<8x32xf32, #tpu.memory_space<vmem>>, vector<8x32xf32>,
    return
  }
  func.func @transform_0(%arg0: i32) -> (i32, i32, i32) {
    %c0_i32 = arith.constant 0 : i32
    %c0_i32_0 = arith.constant 0 : i32
    %c0_i32_1 = arith.constant 0 : i32
    return %arg0, %c0_i32, %c0_i32_0 : i32, i32, i32
  }
  func.func @transform_1(%arg0: i32) -> (i32, i32, i32) {
    %c0_i32 = arith.constant 0 : i32
    %c0_i32_0 = arith.constant 0 : i32
    %c0_i32_1 = arith.constant 0 : i32
    %c0_i32_2 = arith.constant 0 : i32
    return %c0_i32, %c0_i32_0, %c0_i32_1 : i32, i32, i32
  }
  func.func @transform_2(%arg0: i32) -> (i32, i32) {
    %c0_i32 = arith.constant 0 : i32
    %c0_i32_0 = arith.constant 0 : i32
    %c0_i32_1 = arith.constant 0 : i32
    return %c0_i32, %c0_i32_0 : i32, i32
  }
  func.func @transform_3(%arg0: i32) -> (i32, i32) {
    %c0_i32 = arith.constant 0 : i32
    %c0_i32_0 = arith.constant 0 : i32
    %c0_i32_1 = arith.constant 0 : i32
    return %c0_i32, %c0_i32_0 : i32, i32
  }
  func.func @transform_4(%arg0: i32) -> (i32, i32) {
    %c0_i32 = arith.constant 0 : i32
    %c0_i32_0 = arith.constant 0 : i32
    %c0_i32_1 = arith.constant 0 : i32
    return %c0_i32, %c0_i32_0 : i32, i32
  }
  func.func @transform_5(%arg0: i32) -> (i32, i32) {
    %c0_i32 = arith.constant 0 : i32
    %c0_i32_0 = arith.constant 0 : i32
    %c0_i32_1 = arith.constant 0 : i32
    return %c0_i32, %c0_i32_0 : i32, i32
  }
  func.func @transform_6(%arg0: i32) -> (i32, i32) {
    %c0_i32 = arith.constant 0 : i32
    %c0_i32_0 = arith.constant 0 : i32
    %c0_i32_1 = arith.constant 0 : i32
    return %c0_i32, %c0_i32_0 : i32, i32
  }
  func.func @transform_7(%arg0: i32) -> (i32, i32) {
    %c0_i32 = arith.constant 0 : i32
    %c0_i32_0 = arith.constant 0 : i32
    %c0_i32_1 = arith.constant 0 : i32
    return %c0_i32, %c0_i32_0 : i32, i32
  }
  func.func @transform_8(%arg0: i32) -> (i32, i32) {
    %c0_i32 = arith.constant 0 : i32
    %c0_i32_0 = arith.constant 0 : i32
    %c0_i32_1 = arith.constant 0 : i32
    return %c0_i32, %c0_i32_0 : i32, i32
  }
  func.func @transform_9(%arg0: i32) -> (i32, i32) {
    %c0_i32 = arith.constant 0 : i32
    %c0_i32_0 = arith.constant 0 : i32
    %c0_i32_1 = arith.constant 0 : i32
    return %c0_i32, %c0_i32_0 : i32, i32
  }
  func.func @transform_10(%arg0: i32) -> (i32, i32, i32) {
    %c0_i32 = arith.constant 0 : i32
    %c0_i32_0 = arith.constant 0 : i32
    %c0_i32_1 = arith.constant 0 : i32
    return %arg0, %c0_i32, %c0_i32_0 : i32, i32, i32
  }
}

</mosaic_0001>

<llo_original>
// kernel: nao_cell_forward.1
$region0: #{nao_cell_forward.1}
  #allocation0 [shape = 'u32[]', space=smem, size = 0x4, offset = 0x4, fixed_abs, tag = 'smem constant byte address 0x4 - core index']
  #allocation1 [shape = 'u32[144,128]{1,0:T(1,128)}', space=vmem, size = 0x12000, scoped, tag = 'internal scratch']
  #allocation2 [shape = 'f32[8,32]{1,0:T(8,128)}', space=vmem, size = 0x1000, scoped, tag = 'scratch operand']
  %s0 = inlined_call_operand.vmem [shape: f32[8,8,32], index: 0, kind: input, shape index: {}]
  %s1 = inlined_call_operand.vmem [shape: f32[1,8,32], index: 1, kind: input, shape index: {}]
  %s2 = inlined_call_operand.vmem [shape: f32[32,64], index: 2, kind: input, shape index: {}]
  %s3 = inlined_call_operand.vmem [shape: f32[32,64], index: 3, kind: input, shape index: {}]
  %s4 = inlined_call_operand.vmem [shape: f32[32,128], index: 4, kind: input, shape index: {}]
  %s5 = inlined_call_operand.vmem [shape: f32[32,128], index: 5, kind: input, shape index: {}]
  %s6 = inlined_call_operand.vmem [shape: f32[32,64], index: 6, kind: input, shape index: {}]
  %s7 = inlined_call_operand.vmem [shape: f32[32,64], index: 7, kind: input, shape index: {}]
  %s8 = inlined_call_operand.vmem [shape: f32[32,64], index: 8, kind: input, shape index: {}]
  %s9 = inlined_call_operand.vmem [shape: f32[32,64], index: 9, kind: input, shape index: {}]
  %s10 = inlined_call_operand.vmem [shape: f32[8,8,32], index: 10, kind: output, shape index: {}]
  %s11 = sld [smem:[#allocation0]]
  $region54: #{nao_cell_forward.1} parent=0
    _
  %s13 = ssub.s32 1, %s11
  %s14 = scalar_select 0, %s13, %s11
  // Predicated region
  $region2: #{nao_cell_forward.1} parent=0 // pred_check
    _
  $region3: #{nao_cell_forward.1} parent=0 // pred_check_branch
    %16 = sbr.rel (0) target = $region5
  $region4: #{nao_cell_forward.1} parent=0 // pred_region
    _
  $region5: #{nao_cell_forward.1} parent=0 // pred_fallthru
    _
  // Predicated region
  $region6: #{nao_cell_forward.1} parent=0 // pred_check
    _
  $region7: #{nao_cell_forward.1} parent=0 // pred_check_branch
    %18 = sbr.rel (0) target = $region9
  $region8: #{nao_cell_forward.1} parent=0 // pred_region
    _
  $region9: #{nao_cell_forward.1} parent=0 // pred_fallthru
    _
  // Predicated region
  $region10: #{nao_cell_forward.1} parent=0 // pred_check
    _
  $region11: #{nao_cell_forward.1} parent=0 // pred_check_branch
    %20 = sbr.rel (0) target = $region13
  $region12: #{nao_cell_forward.1} parent=0 // pred_region
    _
  $region13: #{nao_cell_forward.1} parent=0 // pred_fallthru
    _
  // Predicated region
  $region14: #{nao_cell_forward.1} parent=0 // pred_check
    _
  $region15: #{nao_cell_forward.1} parent=0 // pred_check_branch
    %22 = sbr.rel (0) target = $region17
  $region16: #{nao_cell_forward.1} parent=0 // pred_region
    _
  $region17: #{nao_cell_forward.1} parent=0 // pred_fallthru
    _
  // Predicated region
  $region18: #{nao_cell_forward.1} parent=0 // pred_check
    _
  $region19: #{nao_cell_forward.1} parent=0 // pred_check_branch
    %24 = sbr.rel (0) target = $region21
  $region20: #{nao_cell_forward.1} parent=0 // pred_region
    _
  $region21: #{nao_cell_forward.1} parent=0 // pred_fallthru
    _
  // Predicated region
  $region22: #{nao_cell_forward.1} parent=0 // pred_check
    _
  $region23: #{nao_cell_forward.1} parent=0 // pred_check_branch
    %26 = sbr.rel (0) target = $region25
  $region24: #{nao_cell_forward.1} parent=0 // pred_region
    _
  $region25: #{nao_cell_forward.1} parent=0 // pred_fallthru
    _
  // Predicated region
  $region26: #{nao_cell_forward.1} parent=0 // pred_check
    _
  $region27: #{nao_cell_forward.1} parent=0 // pred_check_branch
    %28 = sbr.rel (0) target = $region29
  $region28: #{nao_cell_forward.1} parent=0 // pred_region
    _
  $region29: #{nao_cell_forward.1} parent=0 // pred_fallthru
    _
  // Predicated region
  $region30: #{nao_cell_forward.1} parent=0 // pred_check
    _
  $region31: #{nao_cell_forward.1} parent=0 // pred_check_branch
    %30 = sbr.rel (0) target = $region33
  $region32: #{nao_cell_forward.1} parent=0 // pred_region
    _
  $region33: #{nao_cell_forward.1} parent=0 // pred_fallthru
    _
  // Predicated region
  $region34: #{nao_cell_forward.1} parent=0 // pred_check
    _
  $region35: #{nao_cell_forward.1} parent=0 // pred_check_branch
    %32 = sbr.rel (0) target = $region37
  $region36: #{nao_cell_forward.1} parent=0 // pred_region
    _
  $region37: #{nao_cell_forward.1} parent=0 // pred_fallthru
    _
  // Predicated region
  $region38: #{nao_cell_forward.1} parent=0 // pred_check
    _
  $region39: #{nao_cell_forward.1} parent=0 // pred_check_branch
    %34 = sbr.rel (0) target = $region41
  $region40: #{nao_cell_forward.1} parent=0 // pred_region
    _
  $region41: #{nao_cell_forward.1} parent=0 // pred_fallthru
    _
  %p35 = scmp.eq.s32.totalorder 0, 0
  // Predicated region
  $region42: #{nao_cell_forward.1} parent=0 // pred_check
    %p36 = pneg %p35
  $region43: #{nao_cell_forward.1} parent=0 // pred_check_branch
    %38 = sbr.rel (%p36) target = $region45
  $region44: #{nao_cell_forward.1} parent=0 // pred_region
    %v39 = vld [vmem:[%s1] sm:$0xff]
    %vm40 = vcmask 261120
    %41 = vst.msk [vmem:[#allocation2] sm:$0xff] %vm40, %v39
  $region45: #{nao_cell_forward.1} parent=0 // pred_fallthru
    _
  %v42 = vld [vmem:[#allocation2] sm:$0xff]
  %v43 = vld [vmem:[%s0] sm:$0xff]
  %v44 = vld [vmem:[%s2] sm:$0xff]
  %v45 = vld [vmem:[%s2 + $0x8] sm:$0xff]
  %v46 = vld [vmem:[%s2 + $0x10] sm:$0xff]
  %v47 = vld [vmem:[%s2 + $0x18] sm:$0xff]
  %v48 = vld [vmem:[%s3] sm:$0xff]
  %v49 = vld [vmem:[%s3 + $0x8] sm:$0xff]
  %v50 = vld [vmem:[%s3 + $0x10] sm:$0xff]
  %v51 = vld [vmem:[%s3 + $0x18] sm:$0xff]
  %vm52 = vcmask 261120
  %v54 = vsel %vm52, %v42, 0
  %56 = vmatprep.subr.mxu0 0.0
  %57 = vmatpush1.msra.mxu0 %v48
  %58 = vmatprep.subr.mxu0 0.0
  %59 = vmatpush1.msra.mxu0 %v49
  %60 = vmatprep.subr.mxu0 0.0
  %61 = vmatpush1.msra.mxu0 %v50
  %62 = vmatprep.subr.mxu0 0.0
  %63 = vmatpush1.msra.mxu0 %v51
  %64 = vmatprep.subr.mxu0 0.0
  %65 = vmatpush1.msra.mxu0 0.0
  %66 = vmatprep.subr.mxu0 0.0
  %67 = vmatpush1.msra.mxu0 0.0
  %68 = vmatprep.subr.mxu0 0.0
  %69 = vmatpush1.msra.mxu0 0.0
  %70 = vmatprep.subr.mxu0 0.0
  %71 = vmatpush1.msra.mxu0 0.0
  %72 = vmatprep.subr.mxu0 0.0
  %73 = vmatpush1.msra.mxu0 0.0
  %74 = vmatprep.subr.mxu0 0.0
  %75 = vmatpush1.msra.mxu0 0.0
  %76 = vmatprep.subr.mxu0 0.0
  %77 = vmatpush1.msra.mxu0 0.0
  %78 = vmatprep.subr.mxu0 0.0
  %79 = vmatpush1.msra.mxu0 0.0
  %80 = vmatprep.subr.mxu0 0.0
  %81 = vmatpush1.msra.mxu0 0.0
  %82 = vmatprep.subr.mxu0 0.0
  %83 = vmatpush1.msra.mxu0 0.0
  %84 = vmatprep.subr.mxu0 0.0
  %85 = vmatpush1.msra.mxu0 0.0
  %86 = vmatprep.subr.mxu0 0.0
  %87 = vmatpush1.msra.mxu0 0.0
  %88 = vmatprep.subr.mxu0 0.0
  %89 = vmatpush1.msra.mxu0 0.0
  %90 = vmatprep.subr.mxu0 0.0
  %91 = vmatpush1.msra.mxu0 0.0
  %92 = vmatprep.subr.mxu0 0.0
  %93 = vmatpush1.msra.mxu0 0.0
  %94 = vmatprep.subr.mxu0 0.0
  %95 = vmatpush1.msra.mxu0 0.0
  %96 = vmatprep.subr.mxu0 0.0
  %97 = vmatpush1.msra.mxu0 0.0
  %98 = vmatprep.subr.mxu0 0.0
  %99 = vmatpush1.msra.mxu0 0.0
  %100 = vmatprep.subr.mxu0 0.0
  %101 = vmatpush1.msra.mxu0 0.0
  %102 = vmatprep.subr.mxu0 0.0
  %103 = vmatpush1.msra.mxu0 0.0
  %104 = vmatprep.subr.mxu0 0.0
  %105 = vmatpush1.msra.mxu0 0.0
  %106 = vmatprep.subr.mxu0 0.0
  %107 = vmatpush1.msra.mxu0 0.0
  %108 = vmatprep.subr.mxu0 0.0
  %109 = vmatpush1.msra.mxu0 0.0
  %110 = vmatprep.subr.mxu0 0.0
  %111 = vmatpush1.msra.mxu0 0.0
  %112 = vmatprep.subr.mxu0 0.0
  %113 = vmatpush1.msra.mxu0 0.0
  %114 = vmatprep.subr.mxu0 0.0
  %115 = vmatpush1.msra.mxu0 0.0
  %116 = vmatprep.subr.mxu0 0.0
  %117 = vmatpush1.msra.mxu0 0.0
  %118 = vmatprep.subr.mxu0 0.0
  %119 = vmatpush1.msra.mxu0 0.0
  %120 = vmatprep.mubr.f32.mxu0 0.0
  %121 = vmatmul.mubr.f32.gmra.mrb[0].mxu0 %v54
  %v122 = vpop.f32.mrb[0].mxu0
  %v123 = vadd.f32 0.0, %v122
  %v124 = vpop.f32.mrb[0].mxu0
  %125 = vdwg.mxu0
  %v127 = vsel %vm52, %v43, 0
  %129 = vmatprep.subr.mxu0 0.0
  %130 = vmatpush1.msra.mxu0 %v44
  %131 = vmatprep.subr.mxu0 0.0
  %132 = vmatpush1.msra.mxu0 %v45
  %133 = vmatprep.subr.mxu0 0.0
  %134 = vmatpush1.msra.mxu0 %v46
  %135 = vmatprep.subr.mxu0 0.0
  %136 = vmatpush1.msra.mxu0 %v47
  %137 = vmatprep.subr.mxu0 0.0
  %138 = vmatpush1.msra.mxu0 0.0
  %139 = vmatprep.subr.mxu0 0.0
  %140 = vmatpush1.msra.mxu0 0.0
  %141 = vmatprep.subr.mxu0 0.0
  %142 = vmatpush1.msra.mxu0 0.0
  %143 = vmatprep.subr.mxu0 0.0
  %144 = vmatpush1.msra.mxu0 0.0
  %145 = vmatprep.subr.mxu0 0.0
  %146 = vmatpush1.msra.mxu0 0.0
  %147 = vmatprep.subr.mxu0 0.0
  %148 = vmatpush1.msra.mxu0 0.0
  %149 = vmatprep.subr.mxu0 0.0
  %150 = vmatpush1.msra.mxu0 0.0
  %151 = vmatprep.subr.mxu0 0.0
  %152 = vmatpush1.msra.mxu0 0.0
  %153 = vmatprep.subr.mxu0 0.0
  %154 = vmatpush1.msra.mxu0 0.0
  %155 = vmatprep.subr.mxu0 0.0
  %156 = vmatpush1.msra.mxu0 0.0
  %157 = vmatprep.subr.mxu0 0.0
  %158 = vmatpush1.msra.mxu0 0.0
  %159 = vmatprep.subr.mxu0 0.0
  %160 = vmatpush1.msra.mxu0 0.0
  %161 = vmatprep.subr.mxu0 0.0
  %162 = vmatpush1.msra.mxu0 0.0
  %163 = vmatprep.subr.mxu0 0.0
  %164 = vmatpush1.msra.mxu0 0.0
  %165 = vmatprep.subr.mxu0 0.0
  %166 = vmatpush1.msra.mxu0 0.0
  %167 = vmatprep.subr.mxu0 0.0
  %168 = vmatpush1.msra.mxu0 0.0
  %169 = vmatprep.subr.mxu0 0.0
  %170 = vmatpush1.msra.mxu0 0.0
  %171 = vmatprep.subr.mxu0 0.0
  %172 = vmatpush1.msra.mxu0 0.0
  %173 = vmatprep.subr.mxu0 0.0
  %174 = vmatpush1.msra.mxu0 0.0
  %175 = vmatprep.subr.mxu0 0.0
  %176 = vmatpush1.msra.mxu0 0.0
  %177 = vmatprep.subr.mxu0 0.0
  %178 = vmatpush1.msra.mxu0 0.0
  %179 = vmatprep.subr.mxu0 0.0
  %180 = vmatpush1.msra.mxu0 0.0
  %181 = vmatprep.subr.mxu0 0.0
  %182 = vmatpush1.msra.mxu0 0.0
  %183 = vmatprep.subr.mxu0 0.0
  %184 = vmatpush1.msra.mxu0 0.0
  %185 = vmatprep.subr.mxu0 0.0
  %186 = vmatpush1.msra.mxu0 0.0
  %187 = vmatprep.subr.mxu0 0.0
  %188 = vmatpush1.msra.mxu0 0.0
  %189 = vmatprep.subr.mxu0 0.0
  %190 = vmatpush1.msra.mxu0 0.0
  %191 = vmatprep.subr.mxu0 0.0
  %192 = vmatpush1.msra.mxu0 0.0
  %193 = vmatprep.mubr.f32.mxu0 0.0
  %194 = vmatmul.mubr.f32.gmra.mrb[0].mxu0 %v127
  %v195 = vpop.f32.mrb[0].mxu0
  %v196 = vadd.f32 %v123, %v195
  %v197 = vpop.f32.mrb[0].mxu0
  %198 = vdwg.mxu0
  %v199 = vxor.u32 %v196, 2147483648
  %v200 = vmul.f32 %v199, 1.442695
  %v201 = vpow.pop %v200
  %v202 = vadd.f32 %v201, 1.0
  %v203 = vrcp.pop %v202
  %v204 = vmul.f32 1.0, %v203
  %v205 = vtanh.pop %v196
  %206 = vrot.lane.b32.xlu0 %v42, 32
  %v207 = vpop.permute.xlu0 %206
  %v209 = vsub.f32 %v205, %v207
  %211 = vrot.lane.b32.xlu0 %v209, 96
  %v212 = vpop.permute.xlu0 %211
  %v214 = vmul.f32 %v204, %v212
  %v215 = vadd.f32 %v42, %v214
  %v216 = vld [vmem:[%s4] sm:$0xff]
  %v217 = vld [vmem:[%s4 + $0x8] sm:$0xff]
  %v218 = vld [vmem:[%s4 + $0x10] sm:$0xff]
  %v219 = vld [vmem:[%s4 + $0x18] sm:$0xff]
  %v221 = vsel %vm52, %v215, 0
  %223 = vmatprep.subr.mxu0 0.0
  %224 = vmatpush1.msra.mxu0 %v216
  %225 = vmatprep.subr.mxu0 0.0
  %226 = vmatpush1.msra.mxu0 %v217
  %227 = vmatprep.subr.mxu0 0.0
  %228 = vmatpush1.msra.mxu0 %v218
  %229 = vmatprep.subr.mxu0 0.0
  %230 = vmatpush1.msra.mxu0 %v219
  %231 = vmatprep.subr.mxu0 0.0
  %232 = vmatpush1.msra.mxu0 0.0
  %233 = vmatprep.subr.mxu0 0.0
  %234 = vmatpush1.msra.mxu0 0.0
  %235 = vmatprep.subr.mxu0 0.0
  %236 = vmatpush1.msra.mxu0 0.0
  %237 = vmatprep.subr.mxu0 0.0
  %238 = vmatpush1.msra.mxu0 0.0
  %239 = vmatprep.subr.mxu0 0.0
  %240 = vmatpush1.msra.mxu0 0.0
  %241 = vmatprep.subr.mxu0 0.0
  %242 = vmatpush1.msra.mxu0 0.0
  %243 = vmatprep.subr.mxu0 0.0
  %244 = vmatpush1.msra.mxu0 0.0
  %245 = vmatprep.subr.mxu0 0.0
  %246 = vmatpush1.msra.mxu0 0.0
  %247 = vmatprep.subr.mxu0 0.0
  %248 = vmatpush1.msra.mxu0 0.0
  %249 = vmatprep.subr.mxu0 0.0
  %250 = vmatpush1.msra.mxu0 0.0
  %251 = vmatprep.subr.mxu0 0.0
  %252 = vmatpush1.msra.mxu0 0.0
  %253 = vmatprep.subr.mxu0 0.0
  %254 = vmatpush1.msra.mxu0 0.0
  %255 = vmatprep.subr.mxu0 0.0
  %256 = vmatpush1.msra.mxu0 0.0
  %257 = vmatprep.subr.mxu0 0.0
  %258 = vmatpush1.msra.mxu0 0.0
  %259 = vmatprep.subr.mxu0 0.0
  %260 = vmatpush1.msra.mxu0 0.0
  %261 = vmatprep.subr.mxu0 0.0
  %262 = vmatpush1.msra.mxu0 0.0
  %263 = vmatprep.subr.mxu0 0.0
  %264 = vmatpush1.msra.mxu0 0.0
  %265 = vmatprep.subr.mxu0 0.0
  %266 = vmatpush1.msra.mxu0 0.0
  %267 = vmatprep.subr.mxu0 0.0
  %268 = vmatpush1.msra.mxu0 0.0
  %269 = vmatprep.subr.mxu0 0.0
  %270 = vmatpush1.msra.mxu0 0.0
  %271 = vmatprep.subr.mxu0 0.0
  %272 = vmatpush1.msra.mxu0 0.0
  %273 = vmatprep.subr.mxu0 0.0
  %274 = vmatpush1.msra.mxu0 0.0
  %275 = vmatprep.subr.mxu0 0.0
  %276 = vmatpush1.msra.mxu0 0.0
  %277 = vmatprep.subr.mxu0 0.0
  %278 = vmatpush1.msra.mxu0 0.0
  %279 = vmatprep.subr.mxu0 0.0
  %280 = vmatpush1.msra.mxu0 0.0
  %281 = vmatprep.subr.mxu0 0.0
  %282 = vmatpush1.msra.mxu0 0.0
  %283 = vmatprep.subr.mxu0 0.0
  %284 = vmatpush1.msra.mxu0 0.0
  %285 = vmatprep.subr.mxu0 0.0
  %286 = vmatpush1.msra.mxu0 0.0
  %287 = vmatprep.mubr.f32.mxu0 0.0
  %288 = vmatmul.mubr.f32.gmra.mrb[0].mxu0 %v221
  %v289 = vpop.f32.mrb[0].mxu0
  %v290 = vadd.f32 0.0, %v289
  %v291 = vpop.f32.mrb[0].mxu0
  %292 = vdwg.mxu0
  %v293 = vxor.u32 %v290, 2147483648
  %v294 = vmul.f32 %v293, 1.442695
  %v295 = vpow.pop %v294
  %v296 = vadd.f32 %v295, 1.0
  %v297 = vrcp.pop %v296
  %v298 = vmul.f32 1.0, %v297
  %v299 = vtanh.pop %v290
  %300 = vrot.lane.b32.xlu0 %v215, 32
  %v301 = vpop.permute.xlu0 %300
  %v303 = vsub.f32 %v299, %v301
  %305 = vrot.lane.b32.xlu0 %v303, 96
  %v306 = vpop.permute.xlu0 %305
  %v308 = vmul.f32 %v298, %v306
  %v309 = vadd.f32 %v215, %v308
  %v310 = vmax.f32 %v290, 0.0
  %311 = vrot.lane.b32.xlu0 %v215, 96
  %v312 = vpop.permute.xlu0 %311
  %v314 = vsub.f32 %v310, %v312
  %316 = vrot.lane.b32.xlu0 %v314, 96
  %v317 = vpop.permute.xlu0 %316
  %v319 = vmul.f32 %v298, %v317
  %321 = vrot.lane.b32.xlu0 %v319, 64
  %v322 = vpop.permute.xlu0 %321
  %v324 = vadd.f32 %v215, %v322
  %v325 = vadd.f32 %v309, %v324
  %v326 = vld [vmem:[%s5] sm:$0xff]
  %v327 = vld [vmem:[%s5 + $0x8] sm:$0xff]
  %v328 = vld [vmem:[%s5 + $0x10] sm:$0xff]
  %v329 = vld [vmem:[%s5 + $0x18] sm:$0xff]
  %v331 = vsel %vm52, %v309, 0
  %333 = vmatprep.subr.mxu0 0.0
  %334 = vmatpush1.msra.mxu0 %v326
  %335 = vmatprep.subr.mxu0 0.0
  %336 = vmatpush1.msra.mxu0 %v327
  %337 = vmatprep.subr.mxu0 0.0
  %338 = vmatpush1.msra.mxu0 %v328
  %339 = vmatprep.subr.mxu0 0.0
  %340 = vmatpush1.msra.mxu0 %v329
  %341 = vmatprep.subr.mxu0 0.0
  %342 = vmatpush1.msra.mxu0 0.0
  %343 = vmatprep.subr.mxu0 0.0
  %344 = vmatpush1.msra.mxu0 0.0
  %345 = vmatprep.subr.mxu0 0.0
  %346 = vmatpush1.msra.mxu0 0.0
  %347 = vmatprep.subr.mxu0 0.0
  %348 = vmatpush1.msra.mxu0 0.0
  %349 = vmatprep.subr.mxu0 0.0
  %350 = vmatpush1.msra.mxu0 0.0
  %351 = vmatprep.subr.mxu0 0.0
  %352 = vmatpush1.msra.mxu0 0.0
  %353 = vmatprep.subr.mxu0 0.0
  %354 = vmatpush1.msra.mxu0 0.0
  %355 = vmatprep.subr.mxu0 0.0
  %356 = vmatpush1.msra.mxu0 0.0
  %357 = vmatprep.subr.mxu0 0.0
  %358 = vmatpush1.msra.mxu0 0.0
  %359 = vmatprep.subr.mxu0 0.0
  %360 = vmatpush1.msra.mxu0 0.0
  %361 = vmatprep.subr.mxu0 0.0
  %362 = vmatpush1.msra.mxu0 0.0
  %363 = vmatprep.subr.mxu0 0.0
  %364 = vmatpush1.msra.mxu0 0.0
  %365 = vmatprep.subr.mxu0 0.0
  %366 = vmatpush1.msra.mxu0 0.0
  %367 = vmatprep.subr.mxu0 0.0
  %368 = vmatpush1.msra.mxu0 0.0
  %369 = vmatprep.subr.mxu0 0.0
  %370 = vmatpush1.msra.mxu0 0.0
  %371 = vmatprep.subr.mxu0 0.0
  %372 = vmatpush1.msra.mxu0 0.0
  %373 = vmatprep.subr.mxu0 0.0
  %374 = vmatpush1.msra.mxu0 0.0
  %375 = vmatprep.subr.mxu0 0.0
  %376 = vmatpush1.msra.mxu0 0.0
  %377 = vmatprep.subr.mxu0 0.0
  %378 = vmatpush1.msra.mxu0 0.0
  %379 = vmatprep.subr.mxu0 0.0
  %380 = vmatpush1.msra.mxu0 0.0
  %381 = vmatprep.subr.mxu0 0.0
  %382 = vmatpush1.msra.mxu0 0.0
  %383 = vmatprep.subr.mxu0 0.0
  %384 = vmatpush1.msra.mxu0 0.0
  %385 = vmatprep.subr.mxu0 0.0
  %386 = vmatpush1.msra.mxu0 0.0
  %387 = vmatprep.subr.mxu0 0.0
  %388 = vmatpush1.msra.mxu0 0.0
  %389 = vmatprep.subr.mxu0 0.0
  %390 = vmatpush1.msra.mxu0 0.0
  %391 = vmatprep.subr.mxu0 0.0
  %392 = vmatpush1.msra.mxu0 0.0
  %393 = vmatprep.subr.mxu0 0.0
  %394 = vmatpush1.msra.mxu0 0.0
  %395 = vmatprep.subr.mxu0 0.0
  %396 = vmatpush1.msra.mxu0 0.0
  %397 = vmatprep.mubr.f32.mxu0 0.0
  %398 = vmatmul.mubr.f32.gmra.mrb[0].mxu0 %v331
  %v399 = vpop.f32.mrb[0].mxu0
  %v400 = vadd.f32 0.0, %v399
  %v401 = vpop.f32.mrb[0].mxu0
  %402 = vdwg.mxu0
  %v403 = vxor.u32 %v400, 2147483648
  %v404 = vmul.f32 %v403, 1.442695
  %v405 = vpow.pop %v404
  %v406 = vadd.f32 %v405, 1.0
  %v407 = vrcp.pop %v406
  %v408 = vmul.f32 1.0, %v407
  %409 = vrot.lane.b32.xlu0 %v309, 32
  %v410 = vpop.permute.xlu0 %409
  %v412 = vsub.f32 %v408, %v410
  %414 = vrot.lane.b32.xlu0 %v412, 96
  %v415 = vpop.permute.xlu0 %414
  %v417 = vmul.f32 %v408, %v415
  %v418 = vadd.f32 %v309, %v417
  %v419 = vadd.f32 %v325, %v418
  %420 = vrot.lane.b32.xlu0 %v309, 96
  %v421 = vpop.permute.xlu0 %420
  %v423 = vsub.f32 %v400, %v421
  %425 = vrot.lane.b32.xlu0 %v423, 96
  %v426 = vpop.permute.xlu0 %425
  %v428 = vmul.f32 %v408, %v426
  %430 = vrot.lane.b32.xlu0 %v428, 64
  %v431 = vpop.permute.xlu0 %430
  %v433 = vadd.f32 %v309, %v431
  %v434 = vadd.f32 %v419, %v433
  %v435 = vld [vmem:[%s6] sm:$0xff]
  %v436 = vld [vmem:[%s6 + $0x8] sm:$0xff]
  %v437 = vld [vmem:[%s6 + $0x10] sm:$0xff]
  %v438 = vld [vmem:[%s6 + $0x18] sm:$0xff]
  %v440 = vsel %vm52, %v324, 0
  %442 = vmatprep.subr.mxu0 0.0
  %443 = vmatpush1.msra.mxu0 %v435
  %444 = vmatprep.subr.mxu0 0.0
  %445 = vmatpush1.msra.mxu0 %v436
  %446 = vmatprep.subr.mxu0 0.0
  %447 = vmatpush1.msra.mxu0 %v437
  %448 = vmatprep.subr.mxu0 0.0
  %449 = vmatpush1.msra.mxu0 %v438
  %450 = vmatprep.subr.mxu0 0.0
  %451 = vmatpush1.msra.mxu0 0.0
  %452 = vmatprep.subr.mxu0 0.0
  %453 = vmatpush1.msra.mxu0 0.0
  %454 = vmatprep.subr.mxu0 0.0
  %455 = vmatpush1.msra.mxu0 0.0
  %456 = vmatprep.subr.mxu0 0.0
  %457 = vmatpush1.msra.mxu0 0.0
  %458 = vmatprep.subr.mxu0 0.0
  %459 = vmatpush1.msra.mxu0 0.0
  %460 = vmatprep.subr.mxu0 0.0
  %461 = vmatpush1.msra.mxu0 0.0
  %462 = vmatprep.subr.mxu0 0.0
  %463 = vmatpush1.msra.mxu0 0.0
  %464 = vmatprep.subr.mxu0 0.0
  %465 = vmatpush1.msra.mxu0 0.0
  %466 = vmatprep.subr.mxu0 0.0
  %467 = vmatpush1.msra.mxu0 0.0
  %468 = vmatprep.subr.mxu0 0.0
  %469 = vmatpush1.msra.mxu0 0.0
  %470 = vmatprep.subr.mxu0 0.0
  %471 = vmatpush1.msra.mxu0 0.0
  %472 = vmatprep.subr.mxu0 0.0
  %473 = vmatpush1.msra.mxu0 0.0
  %474 = vmatprep.subr.mxu0 0.0
  %475 = vmatpush1.msra.mxu0 0.0
  %476 = vmatprep.subr.mxu0 0.0
  %477 = vmatpush1.msra.mxu0 0.0
  %478 = vmatprep.subr.mxu0 0.0
  %479 = vmatpush1.msra.mxu0 0.0
  %480 = vmatprep.subr.mxu0 0.0
  %481 = vmatpush1.msra.mxu0 0.0
  %482 = vmatprep.subr.mxu0 0.0
  %483 = vmatpush1.msra.mxu0 0.0
  %484 = vmatprep.subr.mxu0 0.0
  %485 = vmatpush1.msra.mxu0 0.0
  %486 = vmatprep.subr.mxu0 0.0
  %487 = vmatpush1.msra.mxu0 0.0
  %488 = vmatprep.subr.mxu0 0.0
  %489 = vmatpush1.msra.mxu0 0.0
  %490 = vmatprep.subr.mxu0 0.0
  %491 = vmatpush1.msra.mxu0 0.0
  %492 = vmatprep.subr.mxu0 0.0
  %493 = vmatpush1.msra.mxu0 0.0
  %494 = vmatprep.subr.mxu0 0.0
  %495 = vmatpush1.msra.mxu0 0.0
  %496 = vmatprep.subr.mxu0 0.0
  %497 = vmatpush1.msra.mxu0 0.0
  %498 = vmatprep.subr.mxu0 0.0
  %499 = vmatpush1.msra.mxu0 0.0
  %500 = vmatprep.subr.mxu0 0.0
  %501 = vmatpush1.msra.mxu0 0.0
  %502 = vmatprep.subr.mxu0 0.0
  %503 = vmatpush1.msra.mxu0 0.0
  %504 = vmatprep.subr.mxu0 0.0
  %505 = vmatpush1.msra.mxu0 0.0
  %506 = vmatprep.mubr.f32.mxu0 0.0
  %507 = vmatmul.mubr.f32.gmra.mrb[0].mxu0 %v440
  %v508 = vpop.f32.mrb[0].mxu0
  %v509 = vadd.f32 0.0, %v508
  %v510 = vpop.f32.mrb[0].mxu0
  %511 = vdwg.mxu0
  %v512 = vxor.u32 %v509, 2147483648
  %v513 = vmul.f32 %v512, 1.442695
  %v514 = vpow.pop %v513
  %v515 = vadd.f32 %v514, 1.0
  %v516 = vrcp.pop %v515
  %v517 = vmul.f32 1.0, %v516
  %v518 = vtanh.pop %v509
  %519 = vrot.lane.b32.xlu0 %v324, 32
  %v520 = vpop.permute.xlu0 %519
  %v522 = vsub.f32 %v518, %v520
  %524 = vrot.lane.b32.xlu0 %v522, 96
  %v525 = vpop.permute.xlu0 %524
  %v527 = vmul.f32 %v517, %v525
  %v528 = vadd.f32 %v324, %v527
  %v529 = vadd.f32 %v434, %v528
  %v530 = vld [vmem:[%s7] sm:$0xff]
  %v531 = vld [vmem:[%s7 + $0x8] sm:$0xff]
  %v532 = vld [vmem:[%s7 + $0x10] sm:$0xff]
  %v533 = vld [vmem:[%s7 + $0x18] sm:$0xff]
  %v535 = vsel %vm52, %v418, 0
  %537 = vmatprep.subr.mxu0 0.0
  %538 = vmatpush1.msra.mxu0 %v530
  %539 = vmatprep.subr.mxu0 0.0
  %540 = vmatpush1.msra.mxu0 %v531
  %541 = vmatprep.subr.mxu0 0.0
  %542 = vmatpush1.msra.mxu0 %v532
  %543 = vmatprep.subr.mxu0 0.0
  %544 = vmatpush1.msra.mxu0 %v533
  %545 = vmatprep.subr.mxu0 0.0
  %546 = vmatpush1.msra.mxu0 0.0
  %547 = vmatprep.subr.mxu0 0.0
  %548 = vmatpush1.msra.mxu0 0.0
  %549 = vmatprep.subr.mxu0 0.0
  %550 = vmatpush1.msra.mxu0 0.0
  %551 = vmatprep.subr.mxu0 0.0
  %552 = vmatpush1.msra.mxu0 0.0
  %553 = vmatprep.subr.mxu0 0.0
  %554 = vmatpush1.msra.mxu0 0.0
  %555 = vmatprep.subr.mxu0 0.0
  %556 = vmatpush1.msra.mxu0 0.0
  %557 = vmatprep.subr.mxu0 0.0
  %558 = vmatpush1.msra.mxu0 0.0
  %559 = vmatprep.subr.mxu0 0.0
  %560 = vmatpush1.msra.mxu0 0.0
  %561 = vmatprep.subr.mxu0 0.0
  %562 = vmatpush1.msra.mxu0 0.0
  %563 = vmatprep.subr.mxu0 0.0
  %564 = vmatpush1.msra.mxu0 0.0
  %565 = vmatprep.subr.mxu0 0.0
  %566 = vmatpush1.msra.mxu0 0.0
  %567 = vmatprep.subr.mxu0 0.0
  %568 = vmatpush1.msra.mxu0 0.0
  %569 = vmatprep.subr.mxu0 0.0
  %570 = vmatpush1.msra.mxu0 0.0
  %571 = vmatprep.subr.mxu0 0.0
  %572 = vmatpush1.msra.mxu0 0.0
  %573 = vmatprep.subr.mxu0 0.0
  %574 = vmatpush1.msra.mxu0 0.0
  %575 = vmatprep.subr.mxu0 0.0
  %576 = vmatpush1.msra.mxu0 0.0
  %577 = vmatprep.subr.mxu0 0.0
  %578 = vmatpush1.msra.mxu0 0.0
  %579 = vmatprep.subr.mxu0 0.0
  %580 = vmatpush1.msra.mxu0 0.0
  %581 = vmatprep.subr.mxu0 0.0
  %582 = vmatpush1.msra.mxu0 0.0
  %583 = vmatprep.subr.mxu0 0.0
  %584 = vmatpush1.msra.mxu0 0.0
  %585 = vmatprep.subr.mxu0 0.0
  %586 = vmatpush1.msra.mxu0 0.0
  %587 = vmatprep.subr.mxu0 0.0
  %588 = vmatpush1.msra.mxu0 0.0
  %589 = vmatprep.subr.mxu0 0.0
  %590 = vmatpush1.msra.mxu0 0.0
  %591 = vmatprep.subr.mxu0 0.0
  %592 = vmatpush1.msra.mxu0 0.0
  %593 = vmatprep.subr.mxu0 0.0
  %594 = vmatpush1.msra.mxu0 0.0
  %595 = vmatprep.subr.mxu0 0.0
  %596 = vmatpush1.msra.mxu0 0.0
  %597 = vmatprep.subr.mxu0 0.0
  %598 = vmatpush1.msra.mxu0 0.0
  %599 = vmatprep.subr.mxu0 0.0
  %600 = vmatpush1.msra.mxu0 0.0
  %601 = vmatprep.mubr.f32.mxu0 0.0
  %602 = vmatmul.mubr.f32.gmra.mrb[0].mxu0 %v535
  %v603 = vpop.f32.mrb[0].mxu0
  %v604 = vadd.f32 0.0, %v603
  %v605 = vpop.f32.mrb[0].mxu0
  %606 = vdwg.mxu0
  %v607 = vxor.u32 %v604, 2147483648
  %v608 = vmul.f32 %v607, 1.442695
  %v609 = vpow.pop %v608
  %v610 = vadd.f32 %v609, 1.0
  %v611 = vrcp.pop %v610
  %v612 = vmul.f32 1.0, %v611
  %v613 = vmax.f32 %v604, 0.0
  %614 = vrot.lane.b32.xlu0 %v418, 32
  %v615 = vpop.permute.xlu0 %614
  %v617 = vsub.f32 %v613, %v615
  %619 = vrot.lane.b32.xlu0 %v617, 96
  %v620 = vpop.permute.xlu0 %619
  %v622 = vmul.f32 %v612, %v620
  %v623 = vadd.f32 %v418, %v622
  %v624 = vadd.f32 %v529, %v623
  %v625 = vld [vmem:[%s8] sm:$0xff]
  %v626 = vld [vmem:[%s8 + $0x8] sm:$0xff]
  %v627 = vld [vmem:[%s8 + $0x10] sm:$0xff]
  %v628 = vld [vmem:[%s8 + $0x18] sm:$0xff]
  %v630 = vsel %vm52, %v433, 0
  %632 = vmatprep.subr.mxu0 0.0
  %633 = vmatpush1.msra.mxu0 %v625
  %634 = vmatprep.subr.mxu0 0.0
  %635 = vmatpush1.msra.mxu0 %v626
  %636 = vmatprep.subr.mxu0 0.0
  %637 = vmatpush1.msra.mxu0 %v627
  %638 = vmatprep.subr.mxu0 0.0
  %639 = vmatpush1.msra.mxu0 %v628
  %640 = vmatprep.subr.mxu0 0.0
  %641 = vmatpush1.msra.mxu0 0.0
  %642 = vmatprep.subr.mxu0 0.0
  %643 = vmatpush1.msra.mxu0 0.0
  %644 = vmatprep.subr.mxu0 0.0
  %645 = vmatpush1.msra.mxu0 0.0
  %646 = vmatprep.subr.mxu0 0.0
  %647 = vmatpush1.msra.mxu0 0.0
  %648 = vmatprep.subr.mxu0 0.0
  %649 = vmatpush1.msra.mxu0 0.0
  %650 = vmatprep.subr.mxu0 0.0
  %651 = vmatpush1.msra.mxu0 0.0
  %652 = vmatprep.subr.mxu0 0.0
  %653 = vmatpush1.msra.mxu0 0.0
  %654 = vmatprep.subr.mxu0 0.0
  %655 = vmatpush1.msra.mxu0 0.0
  %656 = vmatprep.subr.mxu0 0.0
  %657 = vmatpush1.msra.mxu0 0.0
  %658 = vmatprep.subr.mxu0 0.0
  %659 = vmatpush1.msra.mxu0 0.0
  %660 = vmatprep.subr.mxu0 0.0
  %661 = vmatpush1.msra.mxu0 0.0
  %662 = vmatprep.subr.mxu0 0.0
  %663 = vmatpush1.msra.mxu0 0.0
  %664 = vmatprep.subr.mxu0 0.0
  %665 = vmatpush1.msra.mxu0 0.0
  %666 = vmatprep.subr.mxu0 0.0
  %667 = vmatpush1.msra.mxu0 0.0
  %668 = vmatprep.subr.mxu0 0.0
  %669 = vmatpush1.msra.mxu0 0.0
  %670 = vmatprep.subr.mxu0 0.0
  %671 = vmatpush1.msra.mxu0 0.0
  %672 = vmatprep.subr.mxu0 0.0
  %673 = vmatpush1.msra.mxu0 0.0
  %674 = vmatprep.subr.mxu0 0.0
  %675 = vmatpush1.msra.mxu0 0.0
  %676 = vmatprep.subr.mxu0 0.0
  %677 = vmatpush1.msra.mxu0 0.0
  %678 = vmatprep.subr.mxu0 0.0
  %679 = vmatpush1.msra.mxu0 0.0
  %680 = vmatprep.subr.mxu0 0.0
  %681 = vmatpush1.msra.mxu0 0.0
  %682 = vmatprep.subr.mxu0 0.0
  %683 = vmatpush1.msra.mxu0 0.0
  %684 = vmatprep.subr.mxu0 0.0
  %685 = vmatpush1.msra.mxu0 0.0
  %686 = vmatprep.subr.mxu0 0.0
  %687 = vmatpush1.msra.mxu0 0.0
  %688 = vmatprep.subr.mxu0 0.0
  %689 = vmatpush1.msra.mxu0 0.0
  %690 = vmatprep.subr.mxu0 0.0
  %691 = vmatpush1.msra.mxu0 0.0
  %692 = vmatprep.subr.mxu0 0.0
  %693 = vmatpush1.msra.mxu0 0.0
  %694 = vmatprep.subr.mxu0 0.0
  %695 = vmatpush1.msra.mxu0 0.0
  %696 = vmatprep.mubr.f32.mxu0 0.0
  %697 = vmatmul.mubr.f32.gmra.mrb[0].mxu0 %v630
  %v698 = vpop.f32.mrb[0].mxu0
  %v699 = vadd.f32 0.0, %v698
  %v700 = vpop.f32.mrb[0].mxu0
  %701 = vdwg.mxu0
  %v702 = vxor.u32 %v699, 2147483648
  %v703 = vmul.f32 %v702, 1.442695
  %v704 = vpow.pop %v703
  %v705 = vadd.f32 %v704, 1.0
  %v706 = vrcp.pop %v705
  %v707 = vmul.f32 1.0, %v706
  %708 = vrot.lane.b32.xlu0 %v433, 32
  %v709 = vpop.permute.xlu0 %708
  %v711 = vsub.f32 %v707, %v709
  %713 = vrot.lane.b32.xlu0 %v711, 96
  %v714 = vpop.permute.xlu0 %713
  %v716 = vmul.f32 %v707, %v714
  %v717 = vadd.f32 %v433, %v716
  %v718 = vadd.f32 %v624, %v717
  %v719 = vld [vmem:[%s9] sm:$0xff]
  %v720 = vld [vmem:[%s9 + $0x8] sm:$0xff]
  %v721 = vld [vmem:[%s9 + $0x10] sm:$0xff]
  %v722 = vld [vmem:[%s9 + $0x18] sm:$0xff]
  %v724 = vsel %vm52, %v528, 0
  %726 = vmatprep.subr.mxu0 0.0
  %727 = vmatpush1.msra.mxu0 %v719
  %728 = vmatprep.subr.mxu0 0.0
  %729 = vmatpush1.msra.mxu0 %v720
  %730 = vmatprep.subr.mxu0 0.0
  %731 = vmatpush1.msra.mxu0 %v721
  %732 = vmatprep.subr.mxu0 0.0
  %733 = vmatpush1.msra.mxu0 %v722
  %734 = vmatprep.subr.mxu0 0.0
  %735 = vmatpush1.msra.mxu0 0.0
  %736 = vmatprep.subr.mxu0 0.0
  %737 = vmatpush1.msra.mxu0 0.0
  %738 = vmatprep.subr.mxu0 0.0
  %739 = vmatpush1.msra.mxu0 0.0
  %740 = vmatprep.subr.mxu0 0.0
  %741 = vmatpush1.msra.mxu0 0.0
  %742 = vmatprep.subr.mxu0 0.0
  %743 = vmatpush1.msra.mxu0 0.0
  %744 = vmatprep.subr.mxu0 0.0
  %745 = vmatpush1.msra.mxu0 0.0
  %746 = vmatprep.subr.mxu0 0.0
  %747 = vmatpush1.msra.mxu0 0.0
  %748 = vmatprep.subr.mxu0 0.0
  %749 = vmatpush1.msra.mxu0 0.0
  %750 = vmatprep.subr.mxu0 0.0
  %751 = vmatpush1.msra.mxu0 0.0
  %752 = vmatprep.subr.mxu0 0.0
  %753 = vmatpush1.msra.mxu0 0.0
  %754 = vmatprep.subr.mxu0 0.0
  %755 = vmatpush1.msra.mxu0 0.0
  %756 = vmatprep.subr.mxu0 0.0
  %757 = vmatpush1.msra.mxu0 0.0
  %758 = vmatprep.subr.mxu0 0.0
  %759 = vmatpush1.msra.mxu0 0.0
  %760 = vmatprep.subr.mxu0 0.0
  %761 = vmatpush1.msra.mxu0 0.0
  %762 = vmatprep.subr.mxu0 0.0
  %763 = vmatpush1.msra.mxu0 0.0
  %764 = vmatprep.subr.mxu0 0.0
  %765 = vmatpush1.msra.mxu0 0.0
  %766 = vmatprep.subr.mxu0 0.0
  %767 = vmatpush1.msra.mxu0 0.0
  %768 = vmatprep.subr.mxu0 0.0
  %769 = vmatpush1.msra.mxu0 0.0
  %770 = vmatprep.subr.mxu0 0.0
  %771 = vmatpush1.msra.mxu0 0.0
  %772 = vmatprep.subr.mxu0 0.0
  %773 = vmatpush1.msra.mxu0 0.0
  %774 = vmatprep.subr.mxu0 0.0
  %775 = vmatpush1.msra.mxu0 0.0
  %776 = vmatprep.subr.mxu0 0.0
  %777 = vmatpush1.msra.mxu0 0.0
  %778 = vmatprep.subr.mxu0 0.0
  %779 = vmatpush1.msra.mxu0 0.0
  %780 = vmatprep.subr.mxu0 0.0
  %781 = vmatpush1.msra.mxu0 0.0
  %782 = vmatprep.subr.mxu0 0.0
  %783 = vmatpush1.msra.mxu0 0.0
  %784 = vmatprep.subr.mxu0 0.0
  %785 = vmatpush1.msra.mxu0 0.0
  %786 = vmatprep.subr.mxu0 0.0
  %787 = vmatpush1.msra.mxu0 0.0
  %788 = vmatprep.subr.mxu0 0.0
  %789 = vmatpush1.msra.mxu0 0.0
  %790 = vmatprep.mubr.f32.mxu0 0.0
  %791 = vmatmul.mubr.f32.gmra.mrb[0].mxu0 %v724
  %v792 = vpop.f32.mrb[0].mxu0
  %v793 = vadd.f32 0.0, %v792
  %v794 = vpop.f32.mrb[0].mxu0
  %795 = vdwg.mxu0
  %v796 = vxor.u32 %v793, 2147483648
  %v797 = vmul.f32 %v796, 1.442695
  %v798 = vpow.pop %v797
  %v799 = vadd.f32 %v798, 1.0
  %v800 = vrcp.pop %v799
  %v801 = vmul.f32 1.0, %v800
  %802 = vrot.lane.b32.xlu0 %v528, 32
  %v803 = vpop.permute.xlu0 %802
  %v805 = vsub.f32 %v793, %v803
  %807 = vrot.lane.b32.xlu0 %v805, 96
  %v808 = vpop.permute.xlu0 %807
  %v810 = vmul.f32 %v801, %v808
  %v811 = vadd.f32 %v528, %v810
  %v812 = vadd.f32 %v718, %v811
  %v813 = vmul.f32 %v812, 0.125
  %814 = vst.msk [vmem:[%s10] sm:$0xff] %vm52, %v813
  %s815 = scalar_lea.vmem %s0, 8
  %v816 = vld [vmem:[%s815] sm:$0xff]
  %v817 = vld [vmem:[%s2] sm:$0xff]
  %v818 = vld [vmem:[%s2 + $0x8] sm:$0xff]
  %v819 = vld [vmem:[%s2 + $0x10] sm:$0xff]
  %v820 = vld [vmem:[%s2 + $0x18] sm:$0xff]
  %v821 = vld [vmem:[%s3] sm:$0xff]
  %v822 = vld [vmem:[%s3 + $0x8] sm:$0xff]
  %v823 = vld [vmem:[%s3 + $0x10] sm:$0xff]
  %v824 = vld [vmem:[%s3 + $0x18] sm:$0xff]
  %v826 = vsel %vm52, %v813, 0
  %828 = vmatprep.subr.mxu0 0.0
  %829 = vmatpush1.msra.mxu0 %v821
  %830 = vmatprep.subr.mxu0 0.0
  %831 = vmatpush1.msra.mxu0 %v822
  %832 = vmatprep.subr.mxu0 0.0
  %833 = vmatpush1.msra.mxu0 %v823
  %834 = vmatprep.subr.mxu0 0.0
  %835 = vmatpush1.msra.mxu0 %v824
  %836 = vmatprep.subr.mxu0 0.0
  %837 = vmatpush1.msra.mxu0 0.0
  %838 = vmatprep.subr.mxu0 0.0
  %839 = vmatpush1.msra.mxu0 0.0
  %840 = vmatprep.subr.mxu0 0.0
  %841 = vmatpush1.msra.mxu0 0.0
  %842 = vmatprep.subr.mxu0 0.0
  %843 = vmatpush1.msra.mxu0 0.0
  %844 = vmatprep.subr.mxu0 0.0
  %845 = vmatpush1.msra.mxu0 0.0
  %846 = vmatprep.subr.mxu0 0.0
  %847 = vmatpush1.msra.mxu0 0.0
  %848 = vmatprep.subr.mxu0 0.0
  %849 = vmatpush1.msra.mxu0 0.0
  %850 = vmatprep.subr.mxu0 0.0
  %851 = vmatpush1.msra.mxu0 0.0
  %852 = vmatprep.subr.mxu0 0.0
  %853 = vmatpush1.msra.mxu0 0.0
  %854 = vmatprep.subr.mxu0 0.0
  %855 = vmatpush1.msra.mxu0 0.0
  %856 = vmatprep.subr.mxu0 0.0
  %857 = vmatpush1.msra.mxu0 0.0
  %858 = vmatprep.subr.mxu0 0.0
  %859 = vmatpush1.msra.mxu0 0.0
  %860 = vmatprep.subr.mxu0 0.0
  %861 = vmatpush1.msra.mxu0 0.0
  %862 = vmatprep.subr.mxu0 0.0
  %863 = vmatpush1.msra.mxu0 0.0
  %864 = vmatprep.subr.mxu0 0.0
  %865 = vmatpush1.msra.mxu0 0.0
  %866 = vmatprep.subr.mxu0 0.0
  %867 = vmatpush1.msra.mxu0 0.0
  %868 = vmatprep.subr.mxu0 0.0
  %869 = vmatpush1.msra.mxu0 0.0
  %870 = vmatprep.subr.mxu0 0.0
  %871 = vmatpush1.msra.mxu0 0.0
  %872 = vmatprep.subr.mxu0 0.0
  %873 = vmatpush1.msra.mxu0 0.0
  %874 = vmatprep.subr.mxu0 0.0
  %875 = vmatpush1.msra.mxu0 0.0
  %876 = vmatprep.subr.mxu0 0.0
  %877 = vmatpush1.msra.mxu0 0.0
  %878 = vmatprep.subr.mxu0 0.0
  %879 = vmatpush1.msra.mxu0 0.0
  %880 = vmatprep.subr.mxu0 0.0
  %881 = vmatpush1.msra.mxu0 0.0
  %882 = vmatprep.subr.mxu0 0.0
  %883 = vmatpush1.msra.mxu0 0.0
  %884 = vmatprep.subr.mxu0 0.0
  %885 = vmatpush1.msra.mxu0 0.0
  %886 = vmatprep.subr.mxu0 0.0
  %887 = vmatpush1.msra.mxu0 0.0
  %888 = vmatprep.subr.mxu0 0.0
  %889 = vmatpush1.msra.mxu0 0.0
  %890 = vmatprep.subr.mxu0 0.0
  %891 = vmatpush1.msra.mxu0 0.0
  %892 = vmatprep.mubr.f32.mxu0 0.0
  %893 = vmatmul.mubr.f32.gmra.mrb[0].mxu0 %v826
  %v894 = vpop.f32.mrb[0].mxu0
  %v895 = vadd.f32 0.0, %v894
  %v896 = vpop.f32.mrb[0].mxu0
  %897 = vdwg.mxu0
  %v899 = vsel %vm52, %v816, 0
  %901 = vmatprep.subr.mxu0 0.0
  %902 = vmatpush1.msra.mxu0 %v817
  %903 = vmatprep.subr.mxu0 0.0
  %904 = vmatpush1.msra.mxu0 %v818
  %905 = vmatprep.subr.mxu0 0.0
  %906 = vmatpush1.msra.mxu0 %v819
  %907 = vmatprep.subr.mxu0 0.0
  %908 = vmatpush1.msra.mxu0 %v820
  %909 = vmatprep.subr.mxu0 0.0
  %910 = vmatpush1.msra.mxu0 0.0
  %911 = vmatprep.subr.mxu0 0.0
  %912 = vmatpush1.msra.mxu0 0.0
  %913 = vmatprep.subr.mxu0 0.0
  %914 = vmatpush1.msra.mxu0 0.0
  %915 = vmatprep.subr.mxu0 0.0
  %916 = vmatpush1.msra.mxu0 0.0
  %917 = vmatprep.subr.mxu0 0.0
  %918 = vmatpush1.msra.mxu0 0.0
  %919 = vmatprep.subr.mxu0 0.0
  %920 = vmatpush1.msra.mxu0 0.0
  %921 = vmatprep.subr.mxu0 0.0
  %922 = vmatpush1.msra.mxu0 0.0
  %923 = vmatprep.subr.mxu0 0.0
  %924 = vmatpush1.msra.mxu0 0.0
  %925 = vmatprep.subr.mxu0 0.0
  %926 = vmatpush1.msra.mxu0 0.0
  %927 = vmatprep.subr.mxu0 0.0
  %928 = vmatpush1.msra.mxu0 0.0
  %929 = vmatprep.subr.mxu0 0.0
  %930 = vmatpush1.msra.mxu0 0.0
  %931 = vmatprep.subr.mxu0 0.0
  %932 = vmatpush1.msra.mxu0 0.0
  %933 = vmatprep.subr.mxu0 0.0
  %934 = vmatpush1.msra.mxu0 0.0
  %935 = vmatprep.subr.mxu0 0.0
  %936 = vmatpush1.msra.mxu0 0.0
  %937 = vmatprep.subr.mxu0 0.0
  %938 = vmatpush1.msra.mxu0 0.0
  %939 = vmatprep.subr.mxu0 0.0
  %940 = vmatpush1.msra.mxu0 0.0
  %941 = vmatprep.subr.mxu0 0.0
  %942 = vmatpush1.msra.mxu0 0.0
  %943 = vmatprep.subr.mxu0 0.0
  %944 = vmatpush1.msra.mxu0 0.0
  %945 = vmatprep.subr.mxu0 0.0
  %946 = vmatpush1.msra.mxu0 0.0
  %947 = vmatprep.subr.mxu0 0.0
  %948 = vmatpush1.msra.mxu0 0.0
  %949 = vmatprep.subr.mxu0 0.0
  %950 = vmatpush1.msra.mxu0 0.0
  %951 = vmatprep.subr.mxu0 0.0
  %952 = vmatpush1.msra.mxu0 0.0
  %953 = vmatprep.subr.mxu0 0.0
  %954 = vmatpush1.msra.mxu0 0.0
  %955 = vmatprep.subr.mxu0 0.0
  %956 = vmatpush1.msra.mxu0 0.0
  %957 = vmatprep.subr.mxu0 0.0
  %958 = vmatpush1.msra.mxu0 0.0
  %959 = vmatprep.subr.mxu0 0.0
  %960 = vmatpush1.msra.mxu0 0.0
  %961 = vmatprep.subr.mxu0 0.0
  %962 = vmatpush1.msra.mxu0 0.0
  %963 = vmatprep.subr.mxu0 0.0
  %964 = vmatpush1.msra.mxu0 0.0
  %965 = vmatprep.mubr.f32.mxu0 0.0
  %966 = vmatmul.mubr.f32.gmra.mrb[0].mxu0 %v899
  %v967 = vpop.f32.mrb[0].mxu0
  %v968 = vadd.f32 %v895, %v967
  %v969 = vpop.f32.mrb[0].mxu0
  %970 = vdwg.mxu0
  %v971 = vxor.u32 %v968, 2147483648
  %v972 = vmul.f32 %v971, 1.442695
  %v973 = vpow.pop %v972
  %v974 = vadd.f32 %v973, 1.0
  %v975 = vrcp.pop %v974
  %v976 = vmul.f32 1.0, %v975
  %v977 = vtanh.pop %v968
  %978 = vrot.lane.b32.xlu0 %v813, 32
  %v979 = vpop.permute.xlu0 %978
  %v981 = vsub.f32 %v977, %v979
  %983 = vrot.lane.b32.xlu0 %v981, 96
  %v984 = vpop.permute.xlu0 %983
  %v986 = vmul.f32 %v976, %v984
  %v987 = vadd.f32 %v813, %v986
  %v988 = vld [vmem:[%s4] sm:$0xff]
  %v989 = vld [vmem:[%s4 + $0x8] sm:$0xff]
  %v990 = vld [vmem:[%s4 + $0x10] sm:$0xff]
  %v991 = vld [vmem:[%s4 + $0x18] sm:$0xff]
  %v993 = vsel %vm52, %v987, 0
  %995 = vmatprep.subr.mxu0 0.0
  %996 = vmatpush1.msra.mxu0 %v988
  %997 = vmatprep.subr.mxu0 0.0
  %998 = vmatpush1.msra.mxu0 %v989
  %999 = vmatprep.subr.mxu0 0.0
  %1000 = vmatpush1.msra.mxu0 %v990
  %1001 = vmatprep.subr.mxu0 0.0
  %1002 = vmatpush1.msra.mxu0 %v991
  %1003 = vmatprep.subr.mxu0 0.0
  %1004 = vmatpush1.msra.mxu0 0.0
  %1005 = vmatprep.subr.mxu0 0.0
  %1006 = vmatpush1.msra.mxu0 0.0
  %1007 = vmatprep.subr.mxu0 0.0
  %1008 = vmatpush1.msra.mxu0 0.0
  %1009 = vmatprep.subr.mxu0 0.0
  %1010 = vmatpush1.msra.mxu0 0.0
  %1011 = vmatprep.subr.mxu0 0.0
  %1012 = vmatpush1.msra.mxu0 0.0
  %1013 = vmatprep.subr.mxu0 0.0
  %1014 = vmatpush1.msra.mxu0 0.0
  %1015 = vmatprep.subr.mxu0 0.0
  %1016 = vmatpush1.msra.mxu0 0.0
  %1017 = vmatprep.subr.mxu0 0.0
  %1018 = vmatpush1.msra.mxu0 0.0
  %1019 = vmatprep.subr.mxu0 0.0
  %1020 = vmatpush1.msra.mxu0 0.0
  %1021 = vmatprep.subr.mxu0 0.0
  %1022 = vmatpush1.msra.mxu0 0.0
  %1023 = vmatprep.subr.mxu0 0.0
  %1024 = vmatpush1.msra.mxu0 0.0
  %1025 = vmatprep.subr.mxu0 0.0
  %1026 = vmatpush1.msra.mxu0 0.0
  %1027 = vmatprep.subr.mxu0 0.0
  %1028 = vmatpush1.msra.mxu0 0.0
  %1029 = vmatprep.subr.mxu0 0.0
  %1030 = vmatpush1.msra.mxu0 0.0
  %1031 = vmatprep.subr.mxu0 0.0
  %1032 = vmatpush1.msra.mxu0 0.0
  %1033 = vmatprep.subr.mxu0 0.0
  %1034 = vmatpush1.msra.mxu0 0.0
  %1035 = vmatprep.subr.mxu0 0.0
  %1036 = vmatpush1.msra.mxu0 0.0
  %1037 = vmatprep.subr.mxu0 0.0
  %1038 = vmatpush1.msra.mxu0 0.0
  %1039 = vmatprep.subr.mxu0 0.0
  %1040 = vmatpush1.msra.mxu0 0.0
  %1041 = vmatprep.subr.mxu0 0.0
  %1042 = vmatpush1.msra.mxu0 0.0
  %1043 = vmatprep.subr.mxu0 0.0
  %1044 = vmatpush1.msra.mxu0 0.0
  %1045 = vmatprep.subr.mxu0 0.0
  %1046 = vmatpush1.msra.mxu0 0.0
  %1047 = vmatprep.subr.mxu0 0.0
  %1048 = vmatpush1.msra.mxu0 0.0
  %1049 = vmatprep.subr.mxu0 0.0
  %1050 = vmatpush1.msra.mxu0 0.0
  %1051 = vmatprep.subr.mxu0 0.0
  %1052 = vmatpush1.msra.mxu0 0.0
  %1053 = vmatprep.subr.mxu0 0.0
  %1054 = vmatpush1.msra.mxu0 0.0
  %1055 = vmatprep.subr.mxu0 0.0
  %1056 = vmatpush1.msra.mxu0 0.0
  %1057 = vmatprep.subr.mxu0 0.0
  %1058 = vmatpush1.msra.mxu0 0.0
  %1059 = vmatprep.mubr.f32.mxu0 0.0
  %1060 = vmatmul.mubr.f32.gmra.mrb[0].mxu0 %v993
  %v1061 = vpop.f32.mrb[0].mxu0
  %v1062 = vadd.f32 0.0, %v1061
  %v1063 = vpop.f32.mrb[0].mxu0
  %1064 = vdwg.mxu0
  %v1065 = vxor.u32 %v1062, 2147483648
  %v1066 = vmul.f32 %v1065, 1.442695
  %v1067 = vpow.pop %v1066
  %v1068 = vadd.f32 %v1067, 1.0
  %v1069 = vrcp.pop %v1068
  %v1070 = vmul.f32 1.0, %v1069
  %v1071 = vtanh.pop %v1062
  %1072 = vrot.lane.b32.xlu0 %v987, 32
  %v1073 = vpop.permute.xlu0 %1072
  %v1075 = vsub.f32 %v1071, %v1073
  %1077 = vrot.lane.b32.xlu0 %v1075, 96
  %v1078 = vpop.permute.xlu0 %1077
  %v1080 = vmul.f32 %v1070, %v1078
  %v1081 = vadd.f32 %v987, %v1080
  %v1082 = vmax.f32 %v1062, 0.0
  %1083 = vrot.lane.b32.xlu0 %v987, 96
  %v1084 = vpop.permute.xlu0 %1083
  %v1086 = vsub.f32 %v1082, %v1084
  %1088 = vrot.lane.b32.xlu0 %v1086, 96
  %v1089 = vpop.permute.xlu0 %1088
  %v1091 = vmul.f32 %v1070, %v1089
  %1093 = vrot.lane.b32.xlu0 %v1091, 64
  %v1094 = vpop.permute.xlu0 %1093
  %v1096 = vadd.f32 %v987, %v1094
  %v1097 = vadd.f32 %v1081, %v1096
  %v1098 = vld [vmem:[%s5] sm:$0xff]
  %v1099 = vld [vmem:[%s5 + $0x8] sm:$0xff]
  %v1100 = vld [vmem:[%s5 + $0x10] sm:$0xff]
  %v1101 = vld [vmem:[%s5 + $0x18] sm:$0xff]
  %v1103 = vsel %vm52, %v1081, 0
  %1105 = vmatprep.subr.mxu0 0.0
  %1106 = vmatpush1.msra.mxu0 %v1098
  %1107 = vmatprep.subr.mxu0 0.0
  %1108 = vmatpush1.msra.mxu0 %v1099
  %1109 = vmatprep.subr.mxu0 0.0
  %1110 = vmatpush1.msra.mxu0 %v1100
  %1111 = vmatprep.subr.mxu0 0.0
  %1112 = vmatpush1.msra.mxu0 %v1101
  %1113 = vmatprep.subr.mxu0 0.0
  %1114 = vmatpush1.msra.mxu0 0.0
  %1115 = vmatprep.subr.mxu0 0.0
  %1116 = vmatpush1.msra.mxu0 0.0
  %1117 = vmatprep.subr.mxu0 0.0
  %1118 = vmatpush1.msra.mxu0 0.0
  %1119 = vmatprep.subr.mxu0 0.0
  %1120 = vmatpush1.msra.mxu0 0.0
  %1121 = vmatprep.subr.mxu0 0.0
  %1122 = vmatpush1.msra.mxu0 0.0
  %1123 = vmatprep.subr.mxu0 0.0
  %1124 = vmatpush1.msra.mxu0 0.0
  %1125 = vmatprep.subr.mxu0 0.0
  %1126 = vmatpush1.msra.mxu0 0.0
  %1127 = vmatprep.subr.mxu0 0.0
  %1128 = vmatpush1.msra.mxu0 0.0
  %1129 = vmatprep.subr.mxu0 0.0
  %1130 = vmatpush1.msra.mxu0 0.0
  %1131 = vmatprep.subr.mxu0 0.0
  %1132 = vmatpush1.msra.mxu0 0.0
  %1133 = vmatprep.subr.mxu0 0.0
  %1134 = vmatpush1.msra.mxu0 0.0
  %1135 = vmatprep.subr.mxu0 0.0
  %1136 = vmatpush1.msra.mxu0 0.0
  %1137 = vmatprep.subr.mxu0 0.0
  %1138 = vmatpush1.msra.mxu0 0.0
  %1139 = vmatprep.subr.mxu0 0.0
  %1140 = vmatpush1.msra.mxu0 0.0
  %1141 = vmatprep.subr.mxu0 0.0
  %1142 = vmatpush1.msra.mxu0 0.0
  %1143 = vmatprep.subr.mxu0 0.0
  %1144 = vmatpush1.msra.mxu0 0.0
  %1145 = vmatprep.subr.mxu0 0.0
  %1146 = vmatpush1.msra.mxu0 0.0
  %1147 = vmatprep.subr.mxu0 0.0
  %1148 = vmatpush1.msra.mxu0 0.0
  %1149 = vmatprep.subr.mxu0 0.0
  %1150 = vmatpush1.msra.mxu0 0.0
  %1151 = vmatprep.subr.mxu0 0.0
  %1152 = vmatpush1.msra.mxu0 0.0
  %1153 = vmatprep.subr.mxu0 0.0
  %1154 = vmatpush1.msra.mxu0 0.0
  %1155 = vmatprep.subr.mxu0 0.0
  %1156 = vmatpush1.msra.mxu0 0.0
  %1157 = vmatprep.subr.mxu0 0.0
  %1158 = vmatpush1.msra.mxu0 0.0
  %1159 = vmatprep.subr.mxu0 0.0
  %1160 = vmatpush1.msra.mxu0 0.0
  %1161 = vmatprep.subr.mxu0 0.0
  %1162 = vmatpush1.msra.mxu0 0.0
  %1163 = vmatprep.subr.mxu0 0.0
  %1164 = vmatpush1.msra.mxu0 0.0
  %1165 = vmatprep.subr.mxu0 0.0
  %1166 = vmatpush1.msra.mxu0 0.0
  %1167 = vmatprep.subr.mxu0 0.0
  %1168 = vmatpush1.msra.mxu0 0.0
  %1169 = vmatprep.mubr.f32.mxu0 0.0
  %1170 = vmatmul.mubr.f32.gmra.mrb[0].mxu0 %v1103
  %v1171 = vpop.f32.mrb[0].mxu0
  %v1172 = vadd.f32 0.0, %v1171
  %v1173 = vpop.f32.mrb[0].mxu0
  %1174 = vdwg.mxu0
  %v1175 = vxor.u32 %v1172, 2147483648
  %v1176 = vmul.f32 %v1175, 1.442695
  %v1177 = vpow.pop %v1176
  %v1178 = vadd.f32 %v1177, 1.0
  %v1179 = vrcp.pop %v1178
  %v1180 = vmul.f32 1.0, %v1179
  %1181 = vrot.lane.b32.xlu0 %v1081, 32
  %v1182 = vpop.permute.xlu0 %1181
  %v1184 = vsub.f32 %v1180, %v1182
  %1186 = vrot.lane.b32.xlu0 %v1184, 96
  %v1187 = vpop.permute.xlu0 %1186
  %v1189 = vmul.f32 %v1180, %v1187
  %v1190 = vadd.f32 %v1081, %v1189
  %v1191 = vadd.f32 %v1097, %v1190
  %1192 = vrot.lane.b32.xlu0 %v1081, 96
  %v1193 = vpop.permute.xlu0 %1192
  %v1195 = vsub.f32 %v1172, %v1193
  %1197 = vrot.lane.b32.xlu0 %v1195, 96
  %v1198 = vpop.permute.xlu0 %1197
  %v1200 = vmul.f32 %v1180, %v1198
  %1202 = vrot.lane.b32.xlu0 %v1200, 64
  %v1203 = vpop.permute.xlu0 %1202
  %v1205 = vadd.f32 %v1081, %v1203
  %v1206 = vadd.f32 %v1191, %v1205
  %v1207 = vld [vmem:[%s6] sm:$0xff]
  %v1208 = vld [vmem:[%s6 + $0x8] sm:$0xff]
  %v1209 = vld [vmem:[%s6 + $0x10] sm:$0xff]
  %v1210 = vld [vmem:[%s6 + $0x18] sm:$0xff]
  %v1212 = vsel %vm52, %v1096, 0
  %1214 = vmatprep.subr.mxu0 0.0
  %1215 = vmatpush1.msra.mxu0 %v1207
  %1216 = vmatprep.subr.mxu0 0.0
  %1217 = vmatpush1.msra.mxu0 %v1208
  %1218 = vmatprep.subr.mxu0 0.0
  %1219 = vmatpush1.msra.mxu0 %v1209
  %1220 = vmatprep.subr.mxu0 0.0
  %1221 = vmatpush1.msra.mxu0 %v1210
  %1222 = vmatprep.subr.mxu0 0.0
  %1223 = vmatpush1.msra.mxu0 0.0
  %1224 = vmatprep.subr.mxu0 0.0
  %1225 = vmatpush1.msra.mxu0 0.0
  %1226 = vmatprep.subr.mxu0 0.0
  %1227 = vmatpush1.msra.mxu0 0.0
  %1228 = vmatprep.subr.mxu0 0.0
  %1229 = vmatpush1.msra.mxu0 0.0
  %1230 = vmatprep.subr.mxu0 0.0
  %1231 = vmatpush1.msra.mxu0 0.0
  %1232 = vmatprep.subr.mxu0 0.0
  %1233 = vmatpush1.msra.mxu0 0.0
  %1234 = vmatprep.subr.mxu0 0.0
  %1235 = vmatpush1.msra.mxu0 0.0
  %1236 = vmatprep.subr.mxu0 0.0
  %1237 = vmatpush1.msra.mxu0 0.0
  %1238 = vmatprep.subr.mxu0 0.0
  %1239 = vmatpush1.msra.mxu0 0.0
  %1240 = vmatprep.subr.mxu0 0.0
  %1241 = vmatpush1.msra.mxu0 0.0
  %1242 = vmatprep.subr.mxu0 0.0
  %1243 = vmatpush1.msra.mxu0 0.0
  %1244 = vmatprep.subr.mxu0 0.0
  %1245 = vmatpush1.msra.mxu0 0.0
  %1246 = vmatprep.subr.mxu0 0.0
  %1247 = vmatpush1.msra.mxu0 0.0
  %1248 = vmatprep.subr.mxu0 0.0
  %1249 = vmatpush1.msra.mxu0 0.0
  %1250 = vmatprep.subr.mxu0 0.0
  %1251 = vmatpush1.msra.mxu0 0.0
  %1252 = vmatprep.subr.mxu0 0.0
  %1253 = vmatpush1.msra.mxu0 0.0
  %1254 = vmatprep.subr.mxu0 0.0
  %1255 = vmatpush1.msra.mxu0 0.0
  %1256 = vmatprep.subr.mxu0 0.0
  %1257 = vmatpush1.msra.mxu0 0.0
  %1258 = vmatprep.subr.mxu0 0.0
  %1259 = vmatpush1.msra.mxu0 0.0
  %1260 = vmatprep.subr.mxu0 0.0
  %1261 = vmatpush1.msra.mxu0 0.0
  %1262 = vmatprep.subr.mxu0 0.0
  %1263 = vmatpush1.msra.mxu0 0.0
  %1264 = vmatprep.subr.mxu0 0.0
  %1265 = vmatpush1.msra.mxu0 0.0
  %1266 = vmatprep.subr.mxu0 0.0
  %1267 = vmatpush1.msra.mxu0 0.0
  %1268 = vmatprep.subr.mxu0 0.0
  %1269 = vmatpush1.msra.mxu0 0.0
  %1270 = vmatprep.subr.mxu0 0.0
  %1271 = vmatpush1.msra.mxu0 0.0
  %1272 = vmatprep.subr.mxu0 0.0
  %1273 = vmatpush1.msra.mxu0 0.0
  %1274 = vmatprep.subr.mxu0 0.0
  %1275 = vmatpush1.msra.mxu0 0.0
  %1276 = vmatprep.subr.mxu0 0.0
  %1277 = vmatpush1.msra.mxu0 0.0
  %1278 = vmatprep.mubr.f32.mxu0 0.0
  %1279 = vmatmul.mubr.f32.gmra.mrb[0].mxu0 %v1212
  %v1280 = vpop.f32.mrb[0].mxu0
  %v1281 = vadd.f32 0.0, %v1280
  %v1282 = vpop.f32.mrb[0].mxu0
  %1283 = vdwg.mxu0
  %v1284 = vxor.u32 %v1281, 2147483648
  %v1285 = vmul.f32 %v1284, 1.442695
  %v1286 = vpow.pop %v1285
  %v1287 = vadd.f32 %v1286, 1.0
  %v1288 = vrcp.pop %v1287
  %v1289 = vmul.f32 1.0, %v1288
  %v1290 = vtanh.pop %v1281
  %1291 = vrot.lane.b32.xlu0 %v1096, 32
  %v1292 = vpop.permute.xlu0 %1291
  %v1294 = vsub.f32 %v1290, %v1292
  %1296 = vrot.lane.b32.xlu0 %v1294, 96
  %v1297 = vpop.permute.xlu0 %1296
  %v1299 = vmul.f32 %v1289, %v1297
  %v1300 = vadd.f32 %v1096, %v1299
  %v1301 = vadd.f32 %v1206, %v1300
  %v1302 = vld [vmem:[%s7] sm:$0xff]
  %v1303 = vld [vmem:[%s7 + $0x8] sm:$0xff]
  %v1304 = vld [vmem:[%s7 + $0x10] sm:$0xff]
  %v1305 = vld [vmem:[%s7 + $0x18] sm:$0xff]
  %v1307 = vsel %vm52, %v1190, 0
  %1309 = vmatprep.subr.mxu0 0.0
  %1310 = vmatpush1.msra.mxu0 %v1302
  %1311 = vmatprep.subr.mxu0 0.0
  %1312 = vmatpush1.msra.mxu0 %v1303
  %1313 = vmatprep.subr.mxu0 0.0
  %1314 = vmatpush1.msra.mxu0 %v1304
  %1315 = vmatprep.subr.mxu0 0.0
  %1316 = vmatpush1.msra.mxu0 %v1305
  %1317 = vmatprep.subr.mxu0 0.0
  %1318 = vmatpush1.msra.mxu0 0.0
  %1319 = vmatprep.subr.mxu0 0.0
  %1320 = vmatpush1.msra.mxu0 0.0
  %1321 = vmatprep.subr.mxu0 0.0
  %1322 = vmatpush1.msra.mxu0 0.0
  %1323 = vmatprep.subr.mxu0 0.0
  %1324 = vmatpush1.msra.mxu0 0.0
  %1325 = vmatprep.subr.mxu0 0.0
  %1326 = vmatpush1.msra.mxu0 0.0
  %1327 = vmatprep.subr.mxu0 0.0
  %1328 = vmatpush1.msra.mxu0 0.0
  %1329 = vmatprep.subr.mxu0 0.0
  %1330 = vmatpush1.msra.mxu0 0.0
  %1331 = vmatprep.subr.mxu0 0.0
  %1332 = vmatpush1.msra.mxu0 0.0
  %1333 = vmatprep.subr.mxu0 0.0
  %1334 = vmatpush1.msra.mxu0 0.0
  %1335 = vmatprep.subr.mxu0 0.0
  %1336 = vmatpush1.msra.mxu0 0.0
  %1337 = vmatprep.subr.mxu0 0.0
  %1338 = vmatpush1.msra.mxu0 0.0
  %1339 = vmatprep.subr.mxu0 0.0
  %1340 = vmatpush1.msra.mxu0 0.0
  %1341 = vmatprep.subr.mxu0 0.0
  %1342 = vmatpush1.msra.mxu0 0.0
  %1343 = vmatprep.subr.mxu0 0.0
  %1344 = vmatpush1.msra.mxu0 0.0
  %1345 = vmatprep.subr.mxu0 0.0
  %1346 = vmatpush1.msra.mxu0 0.0
  %1347 = vmatprep.subr.mxu0 0.0
  %1348 = vmatpush1.msra.mxu0 0.0
  %1349 = vmatprep.subr.mxu0 0.0
  %1350 = vmatpush1.msra.mxu0 0.0
  %1351 = vmatprep.subr.mxu0 0.0
  %1352 = vmatpush1.msra.mxu0 0.0
  %1353 = vmatprep.subr.mxu0 0.0
  %1354 = vmatpush1.msra.mxu0 0.0
  %1355 = vmatprep.subr.mxu0 0.0
  %1356 = vmatpush1.msra.mxu0 0.0
  %1357 = vmatprep.subr.mxu0 0.0
  %1358 = vmatpush1.msra.mxu0 0.0
  %1359 = vmatprep.subr.mxu0 0.0
  %1360 = vmatpush1.msra.mxu0 0.0
  %1361 = vmatprep.subr.mxu0 0.0
  %1362 = vmatpush1.msra.mxu0 0.0
  %1363 = vmatprep.subr.mxu0 0.0
  %1364 = vmatpush1.msra.mxu0 0.0
  %1365 = vmatprep.subr.mxu0 0.0
  %1366 = vmatpush1.msra.mxu0 0.0
  %1367 = vmatprep.subr.mxu0 0.0
  %1368 = vmatpush1.msra.mxu0 0.0
  %1369 = vmatprep.subr.mxu0 0.0
  %1370 = vmatpush1.msra.mxu0 0.0
  %1371 = vmatprep.subr.mxu0 0.0
  %1372 = vmatpush1.msra.mxu0 0.0
  %1373 = vmatprep.mubr.f32.mxu0 0.0
  %1374 = vmatmul.mubr.f32.gmra.mrb[0].mxu0 %v1307
  %v1375 = vpop.f32.mrb[0].mxu0
  %v1376 = vadd.f32 0.0, %v1375
  %v1377 = vpop.f32.mrb[0].mxu0
  %1378 = vdwg.mxu0
  %v1379 = vxor.u32 %v1376, 2147483648
  %v1380 = vmul.f32 %v1379, 1.442695
  %v1381 = vpow.pop %v1380
  %v1382 = vadd.f32 %v1381, 1.0
  %v1383 = vrcp.pop %v1382
  %v1384 = vmul.f32 1.0, %v1383
  %v1385 = vmax.f32 %v1376, 0.0
  %1386 = vrot.lane.b32.xlu0 %v1190, 32
  %v1387 = vpop.permute.xlu0 %1386
  %v1389 = vsub.f32 %v1385, %v1387
  %1391 = vrot.lane.b32.xlu0 %v1389, 96
  %v1392 = vpop.permute.xlu0 %1391
  %v1394 = vmul.f32 %v1384, %v1392
  %v1395 = vadd.f32 %v1190, %v1394
  %v1396 = vadd.f32 %v1301, %v1395
  %v1397 = vld [vmem:[%s8] sm:$0xff]
  %v1398 = vld [vmem:[%s8 + $0x8] sm:$0xff]
  %v1399 = vld [vmem:[%s8 + $0x10] sm:$0xff]
  %v1400 = vld [vmem:[%s8 + $0x18] sm:$0xff]
  %v1402 = vsel %vm52, %v1205, 0
  %1404 = vmatprep.subr.mxu0 0.0
  %1405 = vmatpush1.msra.mxu0 %v1397
  %1406 = vmatprep.subr.mxu0 0.0
  %1407 = vmatpush1.msra.mxu0 %v1398
  %1408 = vmatprep.subr.mxu0 0.0
  %1409 = vmatpush1.msra.mxu0 %v1399
  %1410 = vmatprep.subr.mxu0 0.0
  %1411 = vmatpush1.msra.mxu0 %v1400
  %1412 = vmatprep.subr.mxu0 0.0
  %1413 = vmatpush1.msra.mxu0 0.0
  %1414 = vmatprep.subr.mxu0 0.0
  %1415 = vmatpush1.msra.mxu0 0.0
  %1416 = vmatprep.subr.mxu0 0.0
  %1417 = vmatpush1.msra.mxu0 0.0
  %1418 = vmatprep.subr.mxu0 0.0
  %1419 = vmatpush1.msra.mxu0 0.0
  %1420 = vmatprep.subr.mxu0 0.0
  %1421 = vmatpush1.msra.mxu0 0.0
  %1422 = vmatprep.subr.mxu0 0.0
  %1423 = vmatpush1.msra.mxu0 0.0
  %1424 = vmatprep.subr.mxu0 0.0
  %1425 = vmatpush1.msra.mxu0 0.0
  %1426 = vmatprep.subr.mxu0 0.0
  %1427 = vmatpush1.msra.mxu0 0.0
  %1428 = vmatprep.subr.mxu0 0.0
  %1429 = vmatpush1.msra.mxu0 0.0
  %1430 = vmatprep.subr.mxu0 0.0
  %1431 = vmatpush1.msra.mxu0 0.0
  %1432 = vmatprep.subr.mxu0 0.0
  %1433 = vmatpush1.msra.mxu0 0.0
  %1434 = vmatprep.subr.mxu0 0.0
  %1435 = vmatpush1.msra.mxu0 0.0
  %1436 = vmatprep.subr.mxu0 0.0
  %1437 = vmatpush1.msra.mxu0 0.0
  %1438 = vmatprep.subr.mxu0 0.0
  %1439 = vmatpush1.msra.mxu0 0.0
  %1440 = vmatprep.subr.mxu0 0.0
  %1441 = vmatpush1.msra.mxu0 0.0
  %1442 = vmatprep.subr.mxu0 0.0
  %1443 = vmatpush1.msra.mxu0 0.0
  %1444 = vmatprep.subr.mxu0 0.0
  %1445 = vmatpush1.msra.mxu0 0.0
  %1446 = vmatprep.subr.mxu0 0.0
  %1447 = vmatpush1.msra.mxu0 0.0
  %1448 = vmatprep.subr.mxu0 0.0
  %1449 = vmatpush1.msra.mxu0 0.0
  %1450 = vmatprep.subr.mxu0 0.0
  %1451 = vmatpush1.msra.mxu0 0.0
  %1452 = vmatprep.subr.mxu0 0.0
  %1453 = vmatpush1.msra.mxu0 0.0
  %1454 = vmatprep.subr.mxu0 0.0
  %1455 = vmatpush1.msra.mxu0 0.0
  %1456 = vmatprep.subr.mxu0 0.0
  %1457 = vmatpush1.msra.mxu0 0.0
  %1458 = vmatprep.subr.mxu0 0.0
  %1459 = vmatpush1.msra.mxu0 0.0
  %1460 = vmatprep.subr.mxu0 0.0
  %1461 = vmatpush1.msra.mxu0 0.0
  %1462 = vmatprep.subr.mxu0 0.0
  %1463 = vmatpush1.msra.mxu0 0.0
  %1464 = vmatprep.subr.mxu0 0.0
  %1465 = vmatpush1.msra.mxu0 0.0
  %1466 = vmatprep.subr.mxu0 0.0
  %1467 = vmatpush1.msra.mxu0 0.0
  %1468 = vmatprep.mubr.f32.mxu0 0.0
  %1469 = vmatmul.mubr.f32.gmra.mrb[0].mxu0 %v1402
  %v1470 = vpop.f32.mrb[0].mxu0
  %v1471 = vadd.f32 0.0, %v1470
  %v1472 = vpop.f32.mrb[0].mxu0
  %1473 = vdwg.mxu0
  %v1474 = vxor.u32 %v1471, 2147483648
  %v1475 = vmul.f32 %v1474, 1.442695
  %v1476 = vpow.pop %v1475
  %v1477 = vadd.f32 %v1476, 1.0
  %v1478 = vrcp.pop %v1477
  %v1479 = vmul.f32 1.0, %v1478
  %1480 = vrot.lane.b32.xlu0 %v1205, 32
  %v1481 = vpop.permute.xlu0 %1480
  %v1483 = vsub.f32 %v1479, %v1481
  %1485 = vrot.lane.b32.xlu0 %v1483, 96
  %v1486 = vpop.permute.xlu0 %1485
  %v1488 = vmul.f32 %v1479, %v1486
  %v1489 = vadd.f32 %v1205, %v1488
  %v1490 = vadd.f32 %v1396, %v1489
  %v1491 = vld [vmem:[%s9] sm:$0xff]
  %v1492 = vld [vmem:[%s9 + $0x8] sm:$0xff]
  %v1493 = vld [vmem:[%s9 + $0x10] sm:$0xff]
  %v1494 = vld [vmem:[%s9 + $0x18] sm:$0xff]
  %v1496 = vsel %vm52, %v1300, 0
  %1498 = vmatprep.subr.mxu0 0.0
  %1499 = vmatpush1.msra.mxu0 %v1491
  %1500 = vmatprep.subr.mxu0 0.0
  %1501 = vmatpush1.msra.mxu0 %v1492
  %1502 = vmatprep.subr.mxu0 0.0
  %1503 = vmatpush1.msra.mxu0 %v1493
  %1504 = vmatprep.subr.mxu0 0.0
  %1505 = vmatpush1.msra.mxu0 %v1494
  %1506 = vmatprep.subr.mxu0 0.0
  %1507 = vmatpush1.msra.mxu0 0.0
  %1508 = vmatprep.subr.mxu0 0.0
  %1509 = vmatpush1.msra.mxu0 0.0
  %1510 = vmatprep.subr.mxu0 0.0
  %1511 = vmatpush1.msra.mxu0 0.0
  %1512 = vmatprep.subr.mxu0 0.0
  %1513 = vmatpush1.msra.mxu0 0.0
  %1514 = vmatprep.subr.mxu0 0.0
  %1515 = vmatpush1.msra.mxu0 0.0
  %1516 = vmatprep.subr.mxu0 0.0
  %1517 = vmatpush1.msra.mxu0 0.0
  %1518 = vmatprep.subr.mxu0 0.0
  %1519 = vmatpush1.msra.mxu0 0.0
  %1520 = vmatprep.subr.mxu0 0.0
  %1521 = vmatpush1.msra.mxu0 0.0
  %1522 = vmatprep.subr.mxu0 0.0
  %1523 = vmatpush1.msra.mxu0 0.0
  %1524 = vmatprep.subr.mxu0 0.0
  %1525 = vmatpush1.msra.mxu0 0.0
  %1526 = vmatprep.subr.mxu0 0.0
  %1527 = vmatpush1.msra.mxu0 0.0
  %1528 = vmatprep.subr.mxu0 0.0
  %1529 = vmatpush1.msra.mxu0 0.0
  %1530 = vmatprep.subr.mxu0 0.0
  %1531 = vmatpush1.msra.mxu0 0.0
  %1532 = vmatprep.subr.mxu0 0.0
  %1533 = vmatpush1.msra.mxu0 0.0
  %1534 = vmatprep.subr.mxu0 0.0
  %1535 = vmatpush1.msra.mxu0 0.0
  %1536 = vmatprep.subr.mxu0 0.0
  %1537 = vmatpush1.msra.mxu0 0.0
  %1538 = vmatprep.subr.mxu0 0.0
  %1539 = vmatpush1.msra.mxu0 0.0
  %1540 = vmatprep.subr.mxu0 0.0
  %1541 = vmatpush1.msra.mxu0 0.0
  %1542 = vmatprep.subr.mxu0 0.0
  %1543 = vmatpush1.msra.mxu0 0.0
  %1544 = vmatprep.subr.mxu0 0.0
  %1545 = vmatpush1.msra.mxu0 0.0
  %1546 = vmatprep.subr.mxu0 0.0
  %1547 = vmatpush1.msra.mxu0 0.0
  %1548 = vmatprep.subr.mxu0 0.0
  %1549 = vmatpush1.msra.mxu0 0.0
  %1550 = vmatprep.subr.mxu0 0.0
  %1551 = vmatpush1.msra.mxu0 0.0
  %1552 = vmatprep.subr.mxu0 0.0
  %1553 = vmatpush1.msra.mxu0 0.0
  %1554 = vmatprep.subr.mxu0 0.0
  %1555 = vmatpush1.msra.mxu0 0.0
  %1556 = vmatprep.subr.mxu0 0.0
  %1557 = vmatpush1.msra.mxu0 0.0
  %1558 = vmatprep.subr.mxu0 0.0
  %1559 = vmatpush1.msra.mxu0 0.0
  %1560 = vmatprep.subr.mxu0 0.0
  %1561 = vmatpush1.msra.mxu0 0.0
  %1562 = vmatprep.mubr.f32.mxu0 0.0
  %1563 = vmatmul.mubr.f32.gmra.mrb[0].mxu0 %v1496
  %v1564 = vpop.f32.mrb[0].mxu0
  %v1565 = vadd.f32 0.0, %v1564
  %v1566 = vpop.f32.mrb[0].mxu0
  %1567 = vdwg.mxu0
  %v1568 = vxor.u32 %v1565, 2147483648
  %v1569 = vmul.f32 %v1568, 1.442695
  %v1570 = vpow.pop %v1569
  %v1571 = vadd.f32 %v1570, 1.0
  %v1572 = vrcp.pop %v1571
  %v1573 = vmul.f32 1.0, %v1572
  %1574 = vrot.lane.b32.xlu0 %v1300, 32
  %v1575 = vpop.permute.xlu0 %1574
  %v1577 = vsub.f32 %v1565, %v1575
  %1579 = vrot.lane.b32.xlu0 %v1577, 96
  %v1580 = vpop.permute.xlu0 %1579
  %v1582 = vmul.f32 %v1573, %v1580
  %v1583 = vadd.f32 %v1300, %v1582
  %v1584 = vadd.f32 %v1490, %v1583
  %v1585 = vmul.f32 %v1584, 0.125
  %s1586 = scalar_lea.vmem %s10, 8
  %1587 = vst.msk [vmem:[%s1586] sm:$0xff] %vm52, %v1585
  %s1588 = scalar_lea.vmem %s0, 16
  %v1589 = vld [vmem:[%s1588] sm:$0xff]
  %v1590 = vld [vmem:[%s2] sm:$0xff]
  %v1591 = vld [vmem:[%s2 + $0x8] sm:$0xff]
  %v1592 = vld [vmem:[%s2 + $0x10] sm:$0xff]
  %v1593 = vld [vmem:[%s2 + $0x18] sm:$0xff]
  %v1594 = vld [vmem:[%s3] sm:$0xff]
  %v1595 = vld [vmem:[%s3 + $0x8] sm:$0xff]
  %v1596 = vld [vmem:[%s3 + $0x10] sm:$0xff]
  %v1597 = vld [vmem:[%s3 + $0x18] sm:$0xff]
  %v1599 = vsel %vm52, %v1585, 0
  %1601 = vmatprep.subr.mxu0 0.0
  %1602 = vmatpush1.msra.mxu0 %v1594
  %1603 = vmatprep.subr.mxu0 0.0
  %1604 = vmatpush1.msra.mxu0 %v1595
  %1605 = vmatprep.subr.mxu0 0.0
  %1606 = vmatpush1.msra.mxu0 %v1596
  %1607 = vmatprep.subr.mxu0 0.0
  %1608 = vmatpush1.msra.mxu0 %v1597
  %1609 = vmatprep.subr.mxu0 0.0
  %1610 = vmatpush1.msra.mxu0 0.0
  %1611 = vmatprep.subr.mxu0 0.0
  %1612 = vmatpush1.msra.mxu0 0.0
  %1613 = vmatprep.subr.mxu0 0.0
  %1614 = vmatpush1.msra.mxu0 0.0
  %1615 = vmatprep.subr.mxu0 0.0
  %1616 = vmatpush1.msra.mxu0 0.0
  %1617 = vmatprep.subr.mxu0 0.0
  %1618 = vmatpush1.msra.mxu0 0.0
  %1619 = vmatprep.subr.mxu0 0.0
  %1620 = vmatpush1.msra.mxu0 0.0
  %1621 = vmatprep.subr.mxu0 0.0
  %1622 = vmatpush1.msra.mxu0 0.0
  %1623 = vmatprep.subr.mxu0 0.0
  %1624 = vmatpush1.msra.mxu0 0.0
  %1625 = vmatprep.subr.mxu0 0.0
  %1626 = vmatpush1.msra.mxu0 0.0
  %1627 = vmatprep.subr.mxu0 0.0
  %1628 = vmatpush1.msra.mxu0 0.0
  %1629 = vmatprep.subr.mxu0 0.0
  %1630 = vmatpush1.msra.mxu0 0.0
  %1631 = vmatprep.subr.mxu0 0.0
  %1632 = vmatpush1.msra.mxu0 0.0
  %1633 = vmatprep.subr.mxu0 0.0
  %1634 = vmatpush1.msra.mxu0 0.0
  %1635 = vmatprep.subr.mxu0 0.0
  %1636 = vmatpush1.msra.mxu0 0.0
  %1637 = vmatprep.subr.mxu0 0.0
  %1638 = vmatpush1.msra.mxu0 0.0
  %1639 = vmatprep.subr.mxu0 0.0
  %1640 = vmatpush1.msra.mxu0 0.0
  %1641 = vmatprep.subr.mxu0 0.0
  %1642 = vmatpush1.msra.mxu0 0.0
  %1643 = vmatprep.subr.mxu0 0.0
  %1644 = vmatpush1.msra.mxu0 0.0
  %1645 = vmatprep.subr.mxu0 0.0
  %1646 = vmatpush1.msra.mxu0 0.0
  %1647 = vmatprep.subr.mxu0 0.0
  %1648 = vmatpush1.msra.mxu0 0.0
  %1649 = vmatprep.subr.mxu0 0.0
  %1650 = vmatpush1.msra.mxu0 0.0
  %1651 = vmatprep.subr.mxu0 0.0
  %1652 = vmatpush1.msra.mxu0 0.0
  %1653 = vmatprep.subr.mxu0 0.0
  %1654 = vmatpush1.msra.mxu0 0.0
  %1655 = vmatprep.subr.mxu0 0.0
  %1656 = vmatpush1.msra.mxu0 0.0
  %1657 = vmatprep.subr.mxu0 0.0
  %1658 = vmatpush1.msra.mxu0 0.0
  %1659 = vmatprep.subr.mxu0 0.0
  %1660 = vmatpush1.msra.mxu0 0.0
  %1661 = vmatprep.subr.mxu0 0.0
  %1662 = vmatpush1.msra.mxu0 0.0
  %1663 = vmatprep.subr.mxu0 0.0
  %1664 = vmatpush1.msra.mxu0 0.0
  %1665 = vmatprep.mubr.f32.mxu0 0.0
  %1666 = vmatmul.mubr.f32.gmra.mrb[0].mxu0 %v1599
  %v1667 = vpop.f32.mrb[0].mxu0
  %v1668 = vadd.f32 0.0, %v1667
  %v1669 = vpop.f32.mrb[0].mxu0
  %1670 = vdwg.mxu0
  %v1672 = vsel %vm52, %v1589, 0
  %1674 = vmatprep.subr.mxu0 0.0
  %1675 = vmatpush1.msra.mxu0 %v1590
  %1676 = vmatprep.subr.mxu0 0.0
  %1677 = vmatpush1.msra.mxu0 %v1591
  %1678 = vmatprep.subr.mxu0 0.0
  %1679 = vmatpush1.msra.mxu0 %v1592
  %1680 = vmatprep.subr.mxu0 0.0
  %1681 = vmatpush1.msra.mxu0 %v1593
  %1682 = vmatprep.subr.mxu0 0.0
  %1683 = vmatpush1.msra.mxu0 0.0
  %1684 = vmatprep.subr.mxu0 0.0
  %1685 = vmatpush1.msra.mxu0 0.0
  %1686 = vmatprep.subr.mxu0 0.0
  %1687 = vmatpush1.msra.mxu0 0.0
  %1688 = vmatprep.subr.mxu0 0.0
  %1689 = vmatpush1.msra.mxu0 0.0
  %1690 = vmatprep.subr.mxu0 0.0
  %1691 = vmatpush1.msra.mxu0 0.0
  %1692 = vmatprep.subr.mxu0 0.0
  %1693 = vmatpush1.msra.mxu0 0.0
  %1694 = vmatprep.subr.mxu0 0.0
  %1695 = vmatpush1.msra.mxu0 0.0
  %1696 = vmatprep.subr.mxu0 0.0
  %1697 = vmatpush1.msra.mxu0 0.0
  %1698 = vmatprep.subr.mxu0 0.0
  %1699 = vmatpush1.msra.mxu0 0.0
  %1700 = vmatprep.subr.mxu0 0.0
  %1701 = vmatpush1.msra.mxu0 0.0
  %1702 = vmatprep.subr.mxu0 0.0
  %1703 = vmatpush1.msra.mxu0 0.0
  %1704 = vmatprep.subr.mxu0 0.0
  %1705 = vmatpush1.msra.mxu0 0.0
  %1706 = vmatprep.subr.mxu0 0.0
  %1707 = vmatpush1.msra.mxu0 0.0
  %1708 = vmatprep.subr.mxu0 0.0
  %1709 = vmatpush1.msra.mxu0 0.0
  %1710 = vmatprep.subr.mxu0 0.0
  %1711 = vmatpush1.msra.mxu0 0.0
  %1712 = vmatprep.subr.mxu0 0.0
  %1713 = vmatpush1.msra.mxu0 0.0
  %1714 = vmatprep.subr.mxu0 0.0
  %1715 = vmatpush1.msra.mxu0 0.0
  %1716 = vmatprep.subr.mxu0 0.0
  %1717 = vmatpush1.msra.mxu0 0.0
  %1718 = vmatprep.subr.mxu0 0.0
  %1719 = vmatpush1.msra.mxu0 0.0
  %1720 = vmatprep.subr.mxu0 0.0
  %1721 = vmatpush1.msra.mxu0 0.0
  %1722 = vmatprep.subr.mxu0 0.0
  %1723 = vmatpush1.msra.mxu0 0.0
  %1724 = vmatprep.subr.mxu0 0.0
  %1725 = vmatpush1.msra.mxu0 0.0
  %1726 = vmatprep.subr.mxu0 0.0
  %1727 = vmatpush1.msra.mxu0 0.0
  %1728 = vmatprep.subr.mxu0 0.0
  %1729 = vmatpush1.msra.mxu0 0.0
  %1730 = vmatprep.subr.mxu0 0.0
  %1731 = vmatpush1.msra.mxu0 0.0
  %1732 = vmatprep.subr.mxu0 0.0
  %1733 = vmatpush1.msra.mxu0 0.0
  %1734 = vmatprep.subr.mxu0 0.0
  %1735 = vmatpush1.msra.mxu0 0.0
  %1736 = vmatprep.subr.mxu0 0.0
  %1737 = vmatpush1.msra.mxu0 0.0
  %1738 = vmatprep.mubr.f32.mxu0 0.0
  %1739 = vmatmul.mubr.f32.gmra.mrb[0].mxu0 %v1672
  %v1740 = vpop.f32.mrb[0].mxu0
  %v1741 = vadd.f32 %v1668, %v1740
  %v1742 = vpop.f32.mrb[0].mxu0
  %1743 = vdwg.mxu0
  %v1744 = vxor.u32 %v1741, 2147483648
  %v1745 = vmul.f32 %v1744, 1.442695
  %v1746 = vpow.pop %v1745
  %v1747 = vadd.f32 %v1746, 1.0
  %v1748 = vrcp.pop %v1747
  %v1749 = vmul.f32 1.0, %v1748
  %v1750 = vtanh.pop %v1741
  %1751 = vrot.lane.b32.xlu0 %v1585, 32
  %v1752 = vpop.permute.xlu0 %1751
  %v1754 = vsub.f32 %v1750, %v1752
  %1756 = vrot.lane.b32.xlu0 %v1754, 96
  %v1757 = vpop.permute.xlu0 %1756
  %v1759 = vmul.f32 %v1749, %v1757
  %v1760 = vadd.f32 %v1585, %v1759
  %v1761 = vld [vmem:[%s4] sm:$0xff]
  %v1762 = vld [vmem:[%s4 + $0x8] sm:$0xff]
  %v1763 = vld [vmem:[%s4 + $0x10] sm:$0xff]
  %v1764 = vld [vmem:[%s4 + $0x18] sm:$0xff]
  %v1766 = vsel %vm52, %v1760, 0
  %1768 = vmatprep.subr.mxu0 0.0
  %1769 = vmatpush1.msra.mxu0 %v1761
  %1770 = vmatprep.subr.mxu0 0.0
  %1771 = vmatpush1.msra.mxu0 %v1762
  %1772 = vmatprep.subr.mxu0 0.0
  %1773 = vmatpush1.msra.mxu0 %v1763
  %1774 = vmatprep.subr.mxu0 0.0
  %1775 = vmatpush1.msra.mxu0 %v1764
  %1776 = vmatprep.subr.mxu0 0.0
  %1777 = vmatpush1.msra.mxu0 0.0
  %1778 = vmatprep.subr.mxu0 0.0
  %1779 = vmatpush1.msra.mxu0 0.0
  %1780 = vmatprep.subr.mxu0 0.0
  %1781 = vmatpush1.msra.mxu0 0.0
  %1782 = vmatprep.subr.mxu0 0.0
  %1783 = vmatpush1.msra.mxu0 0.0
  %1784 = vmatprep.subr.mxu0 0.0
  %1785 = vmatpush1.msra.mxu0 0.0
  %1786 = vmatprep.subr.mxu0 0.0
  %1787 = vmatpush1.msra.mxu0 0.0
  %1788 = vmatprep.subr.mxu0 0.0
  %1789 = vmatpush1.msra.mxu0 0.0
  %1790 = vmatprep.subr.mxu0 0.0
  %1791 = vmatpush1.msra.mxu0 0.0
  %1792 = vmatprep.subr.mxu0 0.0
  %1793 = vmatpush1.msra.mxu0 0.0
  %1794 = vmatprep.subr.mxu0 0.0
  %1795 = vmatpush1.msra.mxu0 0.0
  %1796 = vmatprep.subr.mxu0 0.0
  %1797 = vmatpush1.msra.mxu0 0.0
  %1798 = vmatprep.subr.mxu0 0.0
  %1799 = vmatpush1.msra.mxu0 0.0
  %1800 = vmatprep.subr.mxu0 0.0
  %1801 = vmatpush1.msra.mxu0 0.0
  %1802 = vmatprep.subr.mxu0 0.0
  %1803 = vmatpush1.msra.mxu0 0.0
  %1804 = vmatprep.subr.mxu0 0.0
  %1805 = vmatpush1.msra.mxu0 0.0
  %1806 = vmatprep.subr.mxu0 0.0
  %1807 = vmatpush1.msra.mxu0 0.0
  %1808 = vmatprep.subr.mxu0 0.0
  %1809 = vmatpush1.msra.mxu0 0.0
  %1810 = vmatprep.subr.mxu0 0.0
  %1811 = vmatpush1.msra.mxu0 0.0
  %1812 = vmatprep.subr.mxu0 0.0
  %1813 = vmatpush1.msra.mxu0 0.0
  %1814 = vmatprep.subr.mxu0 0.0
  %1815 = vmatpush1.msra.mxu0 0.0
  %1816 = vmatprep.subr.mxu0 0.0
  %1817 = vmatpush1.msra.mxu0 0.0
  %1818 = vmatprep.subr.mxu0 0.0
  %1819 = vmatpush1.msra.mxu0 0.0
  %1820 = vmatprep.subr.mxu0 0.0
  %1821 = vmatpush1.msra.mxu0 0.0
  %1822 = vmatprep.subr.mxu0 0.0
  %1823 = vmatpush1.msra.mxu0 0.0
  %1824 = vmatprep.subr.mxu0 0.0
  %1825 = vmatpush1.msra.mxu0 0.0
  %1826 = vmatprep.subr.mxu0 0.0
  %1827 = vmatpush1.msra.mxu0 0.0
  %1828 = vmatprep.subr.mxu0 0.0
  %1829 = vmatpush1.msra.mxu0 0.0
  %1830 = vmatprep.subr.mxu0 0.0
  %1831 = vmatpush1.msra.mxu0 0.0
  %1832 = vmatprep.mubr.f32.mxu0 0.0
  %1833 = vmatmul.mubr.f32.gmra.mrb[0].mxu0 %v1766
  %v1834 = vpop.f32.mrb[0].mxu0
  %v1835 = vadd.f32 0.0, %v1834
  %v1836 = vpop.f32.mrb[0].mxu0
  %1837 = vdwg.mxu0
  %v1838 = vxor.u32 %v1835, 2147483648
  %v1839 = vmul.f32 %v1838, 1.442695
  %v1840 = vpow.pop %v1839
  %v1841 = vadd.f32 %v1840, 1.0
  %v1842 = vrcp.pop %v1841
  %v1843 = vmul.f32 1.0, %v1842
  %v1844 = vtanh.pop %v1835
  %1845 = vrot.lane.b32.xlu0 %v1760, 32
  %v1846 = vpop.permute.xlu0 %1845
  %v1848 = vsub.f32 %v1844, %v1846
  %1850 = vrot.lane.b32.xlu0 %v1848, 96
  %v1851 = vpop.permute.xlu0 %1850
  %v1853 = vmul.f32 %v1843, %v1851
  %v1854 = vadd.f32 %v1760, %v1853
  %v1855 = vmax.f32 %v1835, 0.0
  %1856 = vrot.lane.b32.xlu0 %v1760, 96
  %v1857 = vpop.permute.xlu0 %1856
  %v1859 = vsub.f32 %v1855, %v1857
  %1861 = vrot.lane.b32.xlu0 %v1859, 96
  %v1862 = vpop.permute.xlu0 %1861
  %v1864 = vmul.f32 %v1843, %v1862
  %1866 = vrot.lane.b32.xlu0 %v1864, 64
  %v1867 = vpop.permute.xlu0 %1866
  %v1869 = vadd.f32 %v1760, %v1867
  %v1870 = vadd.f32 %v1854, %v1869
  %v1871 = vld [vmem:[%s5] sm:$0xff]
  %v1872 = vld [vmem:[%s5 + $0x8] sm:$0xff]
  %v1873 = vld [vmem:[%s5 + $0x10] sm:$0xff]
  %v1874 = vld [vmem:[%s5 + $0x18] sm:$0xff]
  %v1876 = vsel %vm52, %v1854, 0
  %1878 = vmatprep.subr.mxu0 0.0
  %1879 = vmatpush1.msra.mxu0 %v1871
  %1880 = vmatprep.subr.mxu0 0.0
  %1881 = vmatpush1.msra.mxu0 %v1872
  %1882 = vmatprep.subr.mxu0 0.0
  %1883 = vmatpush1.msra.mxu0 %v1873
  %1884 = vmatprep.subr.mxu0 0.0
  %1885 = vmatpush1.msra.mxu0 %v1874
  %1886 = vmatprep.subr.mxu0 0.0
  %1887 = vmatpush1.msra.mxu0 0.0
  %1888 = vmatprep.subr.mxu0 0.0
  %1889 = vmatpush1.msra.mxu0 0.0
  %1890 = vmatprep.subr.mxu0 0.0
  %1891 = vmatpush1.msra.mxu0 0.0
  %1892 = vmatprep.subr.mxu0 0.0
  %1893 = vmatpush1.msra.mxu0 0.0
  %1894 = vmatprep.subr.mxu0 0.0
  %1895 = vmatpush1.msra.mxu0 0.0
  %1896 = vmatprep.subr.mxu0 0.0
  %1897 = vmatpush1.msra.mxu0 0.0
  %1898 = vmatprep.subr.mxu0 0.0
  %1899 = vmatpush1.msra.mxu0 0.0
  %1900 = vmatprep.subr.mxu0 0.0
  %1901 = vmatpush1.msra.mxu0 0.0
  %1902 = vmatprep.subr.mxu0 0.0
  %1903 = vmatpush1.msra.mxu0 0.0
  %1904 = vmatprep.subr.mxu0 0.0
  %1905 = vmatpush1.msra.mxu0 0.0
  %1906 = vmatprep.subr.mxu0 0.0
  %1907 = vmatpush1.msra.mxu0 0.0
  %1908 = vmatprep.subr.mxu0 0.0
  %1909 = vmatpush1.msra.mxu0 0.0
  %1910 = vmatprep.subr.mxu0 0.0
  %1911 = vmatpush1.msra.mxu0 0.0
  %1912 = vmatprep.subr.mxu0 0.0
  %1913 = vmatpush1.msra.mxu0 0.0
  %1914 = vmatprep.subr.mxu0 0.0
  %1915 = vmatpush1.msra.mxu0 0.0
  %1916 = vmatprep.subr.mxu0 0.0
  %1917 = vmatpush1.msra.mxu0 0.0
  %1918 = vmatprep.subr.mxu0 0.0
  %1919 = vmatpush1.msra.mxu0 0.0
  %1920 = vmatprep.subr.mxu0 0.0
  %1921 = vmatpush1.msra.mxu0 0.0
  %1922 = vmatprep.subr.mxu0 0.0
  %1923 = vmatpush1.msra.mxu0 0.0
  %1924 = vmatprep.subr.mxu0 0.0
  %1925 = vmatpush1.msra.mxu0 0.0
  %1926 = vmatprep.subr.mxu0 0.0
  %1927 = vmatpush1.msra.mxu0 0.0
  %1928 = vmatprep.subr.mxu0 0.0
  %1929 = vmatpush1.msra.mxu0 0.0
  %1930 = vmatprep.subr.mxu0 0.0
  %1931 = vmatpush1.msra.mxu0 0.0
  %1932 = vmatprep.subr.mxu0 0.0
  %1933 = vmatpush1.msra.mxu0 0.0
  %1934 = vmatprep.subr.mxu0 0.0
  %1935 = vmatpush1.msra.mxu0 0.0
  %1936 = vmatprep.subr.mxu0 0.0
  %1937 = vmatpush1.msra.mxu0 0.0
  %1938 = vmatprep.subr.mxu0 0.0
  %1939 = vmatpush1.msra.mxu0 0.0
  %1940 = vmatprep.subr.mxu0 0.0
  %1941 = vmatpush1.msra.mxu0 0.0
  %1942 = vmatprep.mubr.f32.mxu0 0.0
  %1943 = vmatmul.mubr.f32.gmra.mrb[0].mxu0 %v1876
  %v1944 = vpop.f32.mrb[0].mxu0
  %v1945 = vadd.f32 0.0, %v1944
  %v1946 = vpop.f32.mrb[0].mxu0
  %1947 = vdwg.mxu0
  %v1948 = vxor.u32 %v1945, 2147483648
  %v1949 = vmul.f32 %v1948, 1.442695
  %v1950 = vpow.pop %v1949
  %v1951 = vadd.f32 %v1950, 1.0
  %v1952 = vrcp.pop %v1951
  %v1953 = vmul.f32 1.0, %v1952
  %1954 = vrot.lane.b32.xlu0 %v1854, 32
  %v1955 = vpop.permute.xlu0 %1954
  %v1957 = vsub.f32 %v1953, %v1955
  %1959 = vrot.lane.b32.xlu0 %v1957, 96
  %v1960 = vpop.permute.xlu0 %1959
  %v1962 = vmul.f32 %v1953, %v1960
  %v1963 = vadd.f32 %v1854, %v1962
  %v1964 = vadd.f32 %v1870, %v1963
  %1965 = vrot.lane.b32.xlu0 %v1854, 96
  %v1966 = vpop.permute.xlu0 %1965
  %v1968 = vsub.f32 %v1945, %v1966
  %1970 = vrot.lane.b32.xlu0 %v1968, 96
  %v1971 = vpop.permute.xlu0 %1970
  %v1973 = vmul.f32 %v1953, %v1971
  %1975 = vrot.lane.b32.xlu0 %v1973, 64
  %v1976 = vpop.permute.xlu0 %1975
  %v1978 = vadd.f32 %v1854, %v1976
  %v1979 = vadd.f32 %v1964, %v1978
  %v1980 = vld [vmem:[%s6] sm:$0xff]
  %v1981 = vld [vmem:[%s6 + $0x8] sm:$0xff]
  %v1982 = vld [vmem:[%s6 + $0x10] sm:$0xff]
  %v1983 = vld [vmem:[%s6 + $0x18] sm:$0xff]
  %v1985 = vsel %vm52, %v1869, 0
  %1987 = vmatprep.subr.mxu0 0.0
  %1988 = vmatpush1.msra.mxu0 %v1980
  %1989 = vmatprep.subr.mxu0 0.0
  %1990 = vmatpush1.msra.mxu0 %v1981
  %1991 = vmatprep.subr.mxu0 0.0
  %1992 = vmatpush1.msra.mxu0 %v1982
  %1993 = vmatprep.subr.mxu0 0.0
  %1994 = vmatpush1.msra.mxu0 %v1983
  %1995 = vmatprep.subr.mxu0 0.0
  %1996 = vmatpush1.msra.mxu0 0.0
  %1997 = vmatprep.subr.mxu0 0.0
  %1998 = vmatpush1.msra.mxu0 0.0
  %1999 = vmatprep.subr.mxu0 0.0
  %2000 = vmatpush1.msra.mxu0 0.0
  %2001 = vmatprep.subr.mxu0 0.0
  %2002 = vmatpush1.msra.mxu0 0.0
  %2003 = vmatprep.subr.mxu0 0.0
  %2004 = vmatpush1.msra.mxu0 0.0
  %2005 = vmatprep.subr.mxu0 0.0
  %2006 = vmatpush1.msra.mxu0 0.0
  %2007 = vmatprep.subr.mxu0 0.0
  %2008 = vmatpush1.msra.mxu0 0.0
  %2009 = vmatprep.subr.mxu0 0.0
  %2010 = vmatpush1.msra.mxu0 0.0
  %2011 = vmatprep.subr.mxu0 0.0
  %2012 = vmatpush1.msra.mxu0 0.0
  %2013 = vmatprep.subr.mxu0 0.0
  %2014 = vmatpush1.msra.mxu0 0.0
  %2015 = vmatprep.subr.mxu0 0.0
  %2016 = vmatpush1.msra.mxu0 0.0
  %2017 = vmatprep.subr.mxu0 0.0
  %2018 = vmatpush1.msra.mxu0 0.0
  %2019 = vmatprep.subr.mxu0 0.0
  %2020 = vmatpush1.msra.mxu0 0.0
  %2021 = vmatprep.subr.mxu0 0.0
  %2022 = vmatpush1.msra.mxu0 0.0
  %2023 = vmatprep.subr.mxu0 0.0
  %2024 = vmatpush1.msra.mxu0 0.0
  %2025 = vmatprep.subr.mxu0 0.0
  %2026 = vmatpush1.msra.mxu0 0.0
  %2027 = vmatprep.subr.mxu0 0.0
  %2028 = vmatpush1.msra.mxu0 0.0
  %2029 = vmatprep.subr.mxu0 0.0
  %2030 = vmatpush1.msra.mxu0 0.0
  %2031 = vmatprep.subr.mxu0 0.0
  %2032 = vmatpush1.msra.mxu0 0.0
  %2033 = vmatprep.subr.mxu0 0.0
  %2034 = vmatpush1.msra.mxu0 0.0
  %2035 = vmatprep.subr.mxu0 0.0
  %2036 = vmatpush1.msra.mxu0 0.0
  %2037 = vmatprep.subr.mxu0 0.0
  %2038 = vmatpush1.msra.mxu0 0.0
  %2039 = vmatprep.subr.mxu0 0.0
  %2040 = vmatpush1.msra.mxu0 0.0
  %2041 = vmatprep.subr.mxu0 0.0
  %2042 = vmatpush1.msra.mxu0 0.0
  %2043 = vmatprep.subr.mxu0 0.0
  %2044 = vmatpush1.msra.mxu0 0.0
  %2045 = vmatprep.subr.mxu0 0.0
  %2046 = vmatpush1.msra.mxu0 0.0
  %2047 = vmatprep.subr.mxu0 0.0
  %2048 = vmatpush1.msra.mxu0 0.0
  %2049 = vmatprep.subr.mxu0 0.0
  %2050 = vmatpush1.msra.mxu0 0.0
  %2051 = vmatprep.mubr.f32.mxu0 0.0
  %2052 = vmatmul.mubr.f32.gmra.mrb[0].mxu0 %v1985
  %v2053 = vpop.f32.mrb[0].mxu0
  %v2054 = vadd.f32 0.0, %v2053
  %v2055 = vpop.f32.mrb[0].mxu0
  %2056 = vdwg.mxu0
  %v2057 = vxor.u32 %v2054, 2147483648
  %v2058 = vmul.f32 %v2057, 1.442695
  %v2059 = vpow.pop %v2058
  %v2060 = vadd.f32 %v2059, 1.0
  %v2061 = vrcp.pop %v2060
  %v2062 = vmul.f32 1.0, %v2061
  %v2063 = vtanh.pop %v2054
  %2064 = vrot.lane.b32.xlu0 %v1869, 32
  %v2065 = vpop.permute.xlu0 %2064
  %v2067 = vsub.f32 %v2063, %v2065
  %2069 = vrot.lane.b32.xlu0 %v2067, 96
  %v2070 = vpop.permute.xlu0 %2069
  %v2072 = vmul.f32 %v2062, %v2070
  %v2073 = vadd.f32 %v1869, %v2072
  %v2074 = vadd.f32 %v1979, %v2073
  %v2075 = vld [vmem:[%s7] sm:$0xff]
  %v2076 = vld [vmem:[%s7 + $0x8] sm:$0xff]
  %v2077 = vld [vmem:[%s7 + $0x10] sm:$0xff]
  %v2078 = vld [vmem:[%s7 + $0x18] sm:$0xff]
  %v2080 = vsel %vm52, %v1963, 0
  %2082 = vmatprep.subr.mxu0 0.0
  %2083 = vmatpush1.msra.mxu0 %v2075
  %2084 = vmatprep.subr.mxu0 0.0
  %2085 = vmatpush1.msra.mxu0 %v2076
  %2086 = vmatprep.subr.mxu0 0.0
  %2087 = vmatpush1.msra.mxu0 %v2077
  %2088 = vmatprep.subr.mxu0 0.0
  %2089 = vmatpush1.msra.mxu0 %v2078
  %2090 = vmatprep.subr.mxu0 0.0
  %2091 = vmatpush1.msra.mxu0 0.0
  %2092 = vmatprep.subr.mxu0 0.0
  %2093 = vmatpush1.msra.mxu0 0.0
  %2094 = vmatprep.subr.mxu0 0.0
  %2095 = vmatpush1.msra.mxu0 0.0
  %2096 = vmatprep.subr.mxu0 0.0
  %2097 = vmatpush1.msra.mxu0 0.0
  %2098 = vmatprep.subr.mxu0 0.0
  %2099 = vmatpush1.msra.mxu0 0.0
  %2100 = vmatprep.subr.mxu0 0.0
  %2101 = vmatpush1.msra.mxu0 0.0
  %2102 = vmatprep.subr.mxu0 0.0
  %2103 = vmatpush1.msra.mxu0 0.0
  %2104 = vmatprep.subr.mxu0 0.0
  %2105 = vmatpush1.msra.mxu0 0.0
  %2106 = vmatprep.subr.mxu0 0.0
  %2107 = vmatpush1.msra.mxu0 0.0
  %2108 = vmatprep.subr.mxu0 0.0
  %2109 = vmatpush1.msra.mxu0 0.0
  %2110 = vmatprep.subr.mxu0 0.0
  %2111 = vmatpush1.msra.mxu0 0.0
  %2112 = vmatprep.subr.mxu0 0.0
  %2113 = vmatpush1.msra.mxu0 0.0
  %2114 = vmatprep.subr.mxu0 0.0
  %2115 = vmatpush1.msra.mxu0 0.0
  %2116 = vmatprep.subr.mxu0 0.0
  %2117 = vmatpush1.msra.mxu0 0.0
  %2118 = vmatprep.subr.mxu0 0.0
  %2119 = vmatpush1.msra.mxu0 0.0
  %2120 = vmatprep.subr.mxu0 0.0
  %2121 = vmatpush1.msra.mxu0 0.0
  %2122 = vmatprep.subr.mxu0 0.0
  %2123 = vmatpush1.msra.mxu0 0.0
  %2124 = vmatprep.subr.mxu0 0.0
  %2125 = vmatpush1.msra.mxu0 0.0
  %2126 = vmatprep.subr.mxu0 0.0
  %2127 = vmatpush1.msra.mxu0 0.0
  %2128 = vmatprep.subr.mxu0 0.0
  %2129 = vmatpush1.msra.mxu0 0.0
  %2130 = vmatprep.subr.mxu0 0.0
  %2131 = vmatpush1.msra.mxu0 0.0
  %2132 = vmatprep.subr.mxu0 0.0
  %2133 = vmatpush1.msra.mxu0 0.0
  %2134 = vmatprep.subr.mxu0 0.0
  %2135 = vmatpush1.msra.mxu0 0.0
  %2136 = vmatprep.subr.mxu0 0.0
  %2137 = vmatpush1.msra.mxu0 0.0
  %2138 = vmatprep.subr.mxu0 0.0
  %2139 = vmatpush1.msra.mxu0 0.0
  %2140 = vmatprep.subr.mxu0 0.0
  %2141 = vmatpush1.msra.mxu0 0.0
  %2142 = vmatprep.subr.mxu0 0.0
  %2143 = vmatpush1.msra.mxu0 0.0
  %2144 = vmatprep.subr.mxu0 0.0
  %2145 = vmatpush1.msra.mxu0 0.0
  %2146 = vmatprep.mubr.f32.mxu0 0.0
  %2147 = vmatmul.mubr.f32.gmra.mrb[0].mxu0 %v2080
  %v2148 = vpop.f32.mrb[0].mxu0
  %v2149 = vadd.f32 0.0, %v2148
  %v2150 = vpop.f32.mrb[0].mxu0
  %2151 = vdwg.mxu0
  %v2152 = vxor.u32 %v2149, 2147483648
  %v2153 = vmul.f32 %v2152, 1.442695
  %v2154 = vpow.pop %v2153
  %v2155 = vadd.f32 %v2154, 1.0
  %v2156 = vrcp.pop %v2155
  %v2157 = vmul.f32 1.0, %v2156
  %v2158 = vmax.f32 %v2149, 0.0
  %2159 = vrot.lane.b32.xlu0 %v1963, 32
  %v2160 = vpop.permute.xlu0 %2159
  %v2162 = vsub.f32 %v2158, %v2160
  %2164 = vrot.lane.b32.xlu0 %v2162, 96
  %v2165 = vpop.permute.xlu0 %2164
  %v2167 = vmul.f32 %v2157, %v2165
  %v2168 = vadd.f32 %v1963, %v2167
  %v2169 = vadd.f32 %v2074, %v2168
  %v2170 = vld [vmem:[%s8] sm:$0xff]
  %v2171 = vld [vmem:[%s8 + $0x8] sm:$0xff]
  %v2172 = vld [vmem:[%s8 + $0x10] sm:$0xff]
  %v2173 = vld [vmem:[%s8 + $0x18] sm:$0xff]
  %v2175 = vsel %vm52, %v1978, 0
  %2177 = vmatprep.subr.mxu0 0.0
  %2178 = vmatpush1.msra.mxu0 %v2170
  %2179 = vmatprep.subr.mxu0 0.0
  %2180 = vmatpush1.msra.mxu0 %v2171
  %2181 = vmatprep.subr.mxu0 0.0
  %2182 = vmatpush1.msra.mxu0 %v2172
  %2183 = vmatprep.subr.mxu0 0.0
  %2184 = vmatpush1.msra.mxu0 %v2173
  %2185 = vmatprep.subr.mxu0 0.0
  %2186 = vmatpush1.msra.mxu0 0.0
  %2187 = vmatprep.subr.mxu0 0.0
  %2188 = vmatpush1.msra.mxu0 0.0
  %2189 = vmatprep.subr.mxu0 0.0
  %2190 = vmatpush1.msra.mxu0 0.0
  %2191 = vmatprep.subr.mxu0 0.0
  %2192 = vmatpush1.msra.mxu0 0.0
  %2193 = vmatprep.subr.mxu0 0.0
  %2194 = vmatpush1.msra.mxu0 0.0
  %2195 = vmatprep.subr.mxu0 0.0
  %2196 = vmatpush1.msra.mxu0 0.0
  %2197 = vmatprep.subr.mxu0 0.0
  %2198 = vmatpush1.msra.mxu0 0.0
  %2199 = vmatprep.subr.mxu0 0.0
  %2200 = vmatpush1.msra.mxu0 0.0
  %2201 = vmatprep.subr.mxu0 0.0
  %2202 = vmatpush1.msra.mxu0 0.0
  %2203 = vmatprep.subr.mxu0 0.0
  %2204 = vmatpush1.msra.mxu0 0.0
  %2205 = vmatprep.subr.mxu0 0.0
  %2206 = vmatpush1.msra.mxu0 0.0
  %2207 = vmatprep.subr.mxu0 0.0
  %2208 = vmatpush1.msra.mxu0 0.0
  %2209 = vmatprep.subr.mxu0 0.0
  %2210 = vmatpush1.msra.mxu0 0.0
  %2211 = vmatprep.subr.mxu0 0.0
  %2212 = vmatpush1.msra.mxu0 0.0
  %2213 = vmatprep.subr.mxu0 0.0
  %2214 = vmatpush1.msra.mxu0 0.0
  %2215 = vmatprep.subr.mxu0 0.0
  %2216 = vmatpush1.msra.mxu0 0.0
  %2217 = vmatprep.subr.mxu0 0.0
  %2218 = vmatpush1.msra.mxu0 0.0
  %2219 = vmatprep.subr.mxu0 0.0
  %2220 = vmatpush1.msra.mxu0 0.0
  %2221 = vmatprep.subr.mxu0 0.0
  %2222 = vmatpush1.msra.mxu0 0.0
  %2223 = vmatprep.subr.mxu0 0.0
  %2224 = vmatpush1.msra.mxu0 0.0
  %2225 = vmatprep.subr.mxu0 0.0
  %2226 = vmatpush1.msra.mxu0 0.0
  %2227 = vmatprep.subr.mxu0 0.0
  %2228 = vmatpush1.msra.mxu0 0.0
  %2229 = vmatprep.subr.mxu0 0.0
  %2230 = vmatpush1.msra.mxu0 0.0
  %2231 = vmatprep.subr.mxu0 0.0
  %2232 = vmatpush1.msra.mxu0 0.0
  %2233 = vmatprep.subr.mxu0 0.0
  %2234 = vmatpush1.msra.mxu0 0.0
  %2235 = vmatprep.subr.mxu0 0.0
  %2236 = vmatpush1.msra.mxu0 0.0
  %2237 = vmatprep.subr.mxu0 0.0
  %2238 = vmatpush1.msra.mxu0 0.0
  %2239 = vmatprep.subr.mxu0 0.0
  %2240 = vmatpush1.msra.mxu0 0.0
  %2241 = vmatprep.mubr.f32.mxu0 0.0
  %2242 = vmatmul.mubr.f32.gmra.mrb[0].mxu0 %v2175
  %v2243 = vpop.f32.mrb[0].mxu0
  %v2244 = vadd.f32 0.0, %v2243
  %v2245 = vpop.f32.mrb[0].mxu0
  %2246 = vdwg.mxu0
  %v2247 = vxor.u32 %v2244, 2147483648
  %v2248 = vmul.f32 %v2247, 1.442695
  %v2249 = vpow.pop %v2248
  %v2250 = vadd.f32 %v2249, 1.0
  %v2251 = vrcp.pop %v2250
  %v2252 = vmul.f32 1.0, %v2251
  %2253 = vrot.lane.b32.xlu0 %v1978, 32
  %v2254 = vpop.permute.xlu0 %2253
  %v2256 = vsub.f32 %v2252, %v2254
  %2258 = vrot.lane.b32.xlu0 %v2256, 96
  %v2259 = vpop.permute.xlu0 %2258
  %v2261 = vmul.f32 %v2252, %v2259
  %v2262 = vadd.f32 %v1978, %v2261
  %v2263 = vadd.f32 %v2169, %v2262
  %v2264 = vld [vmem:[%s9] sm:$0xff]
  %v2265 = vld [vmem:[%s9 + $0x8] sm:$0xff]
  %v2266 = vld [vmem:[%s9 + $0x10] sm:$0xff]
  %v2267 = vld [vmem:[%s9 + $0x18] sm:$0xff]
  %v2269 = vsel %vm52, %v2073, 0
  %2271 = vmatprep.subr.mxu0 0.0
  %2272 = vmatpush1.msra.mxu0 %v2264
  %2273 = vmatprep.subr.mxu0 0.0
  %2274 = vmatpush1.msra.mxu0 %v2265
  %2275 = vmatprep.subr.mxu0 0.0
  %2276 = vmatpush1.msra.mxu0 %v2266
  %2277 = vmatprep.subr.mxu0 0.0
  %2278 = vmatpush1.msra.mxu0 %v2267
  %2279 = vmatprep.subr.mxu0 0.0
  %2280 = vmatpush1.msra.mxu0 0.0
  %2281 = vmatprep.subr.mxu0 0.0
  %2282 = vmatpush1.msra.mxu0 0.0
  %2283 = vmatprep.subr.mxu0 0.0
  %2284 = vmatpush1.msra.mxu0 0.0
  %2285 = vmatprep.subr.mxu0 0.0
  %2286 = vmatpush1.msra.mxu0 0.0
  %2287 = vmatprep.subr.mxu0 0.0
  %2288 = vmatpush1.msra.mxu0 0.0
  %2289 = vmatprep.subr.mxu0 0.0
  %2290 = vmatpush1.msra.mxu0 0.0
  %2291 = vmatprep.subr.mxu0 0.0
  %2292 = vmatpush1.msra.mxu0 0.0
  %2293 = vmatprep.subr.mxu0 0.0
  %2294 = vmatpush1.msra.mxu0 0.0
  %2295 = vmatprep.subr.mxu0 0.0
  %2296 = vmatpush1.msra.mxu0 0.0
  %2297 = vmatprep.subr.mxu0 0.0
  %2298 = vmatpush1.msra.mxu0 0.0
  %2299 = vmatprep.subr.mxu0 0.0
  %2300 = vmatpush1.msra.mxu0 0.0
  %2301 = vmatprep.subr.mxu0 0.0
  %2302 = vmatpush1.msra.mxu0 0.0
  %2303 = vmatprep.subr.mxu0 0.0
  %2304 = vmatpush1.msra.mxu0 0.0
  %2305 = vmatprep.subr.mxu0 0.0
  %2306 = vmatpush1.msra.mxu0 0.0
  %2307 = vmatprep.subr.mxu0 0.0
  %2308 = vmatpush1.msra.mxu0 0.0
  %2309 = vmatprep.subr.mxu0 0.0
  %2310 = vmatpush1.msra.mxu0 0.0
  %2311 = vmatprep.subr.mxu0 0.0
  %2312 = vmatpush1.msra.mxu0 0.0
  %2313 = vmatprep.subr.mxu0 0.0
  %2314 = vmatpush1.msra.mxu0 0.0
  %2315 = vmatprep.subr.mxu0 0.0
  %2316 = vmatpush1.msra.mxu0 0.0
  %2317 = vmatprep.subr.mxu0 0.0
  %2318 = vmatpush1.msra.mxu0 0.0
  %2319 = vmatprep.subr.mxu0 0.0
  %2320 = vmatpush1.msra.mxu0 0.0
  %2321 = vmatprep.subr.mxu0 0.0
  %2322 = vmatpush1.msra.mxu0 0.0
  %2323 = vmatprep.subr.mxu0 0.0
  %2324 = vmatpush1.msra.mxu0 0.0
  %2325 = vmatprep.subr.mxu0 0.0
  %2326 = vmatpush1.msra.mxu0 0.0
  %2327 = vmatprep.subr.mxu0 0.0
  %2328 = vmatpush1.msra.mxu0 0.0
  %2329 = vmatprep.subr.mxu0 0.0
  %2330 = vmatpush1.msra.mxu0 0.0
  %2331 = vmatprep.subr.mxu0 0.0
  %2332 = vmatpush1.msra.mxu0 0.0
  %2333 = vmatprep.subr.mxu0 0.0
  %2334 = vmatpush1.msra.mxu0 0.0
  %2335 = vmatprep.mubr.f32.mxu0 0.0
  %2336 = vmatmul.mubr.f32.gmra.mrb[0].mxu0 %v2269
  %v2337 = vpop.f32.mrb[0].mxu0
  %v2338 = vadd.f32 0.0, %v2337
  %v2339 = vpop.f32.mrb[0].mxu0
  %2340 = vdwg.mxu0
  %v2341 = vxor.u32 %v2338, 2147483648
  %v2342 = vmul.f32 %v2341, 1.442695
  %v2343 = vpow.pop %v2342
  %v2344 = vadd.f32 %v2343, 1.0
  %v2345 = vrcp.pop %v2344
  %v2346 = vmul.f32 1.0, %v2345
  %2347 = vrot.lane.b32.xlu0 %v2073, 32
  %v2348 = vpop.permute.xlu0 %2347
  %v2350 = vsub.f32 %v2338, %v2348
  %2352 = vrot.lane.b32.xlu0 %v2350, 96
  %v2353 = vpop.permute.xlu0 %2352
  %v2355 = vmul.f32 %v2346, %v2353
  %v2356 = vadd.f32 %v2073, %v2355
  %v2357 = vadd.f32 %v2263, %v2356
  %v2358 = vmul.f32 %v2357, 0.125
  %s2359 = scalar_lea.vmem %s10, 16
  %2360 = vst.msk [vmem:[%s2359] sm:$0xff] %vm52, %v2358
  %s2361 = scalar_lea.vmem %s0, 24
  %v2362 = vld [vmem:[%s2361] sm:$0xff]
  %v2363 = vld [vmem:[%s2] sm:$0xff]
  %v2364 = vld [vmem:[%s2 + $0x8] sm:$0xff]
  %v2365 = vld [vmem:[%s2 + $0x10] sm:$0xff]
  %v2366 = vld [vmem:[%s2 + $0x18] sm:$0xff]
  %v2367 = vld [vmem:[%s3] sm:$0xff]
  %v2368 = vld [vmem:[%s3 + $0x8] sm:$0xff]
  %v2369 = vld [vmem:[%s3 + $0x10] sm:$0xff]
  %v2370 = vld [vmem:[%s3 + $0x18] sm:$0xff]
  %v2372 = vsel %vm52, %v2358, 0
  %2374 = vmatprep.subr.mxu0 0.0
  %2375 = vmatpush1.msra.mxu0 %v2367
  %2376 = vmatprep.subr.mxu0 0.0
  %2377 = vmatpush1.msra.mxu0 %v2368
  %2378 = vmatprep.subr.mxu0 0.0
  %2379 = vmatpush1.msra.mxu0 %v2369
  %2380 = vmatprep.subr.mxu0 0.0
  %2381 = vmatpush1.msra.mxu0 %v2370
  %2382 = vmatprep.subr.mxu0 0.0
  %2383 = vmatpush1.msra.mxu0 0.0
  %2384 = vmatprep.subr.mxu0 0.0
  %2385 = vmatpush1.msra.mxu0 0.0
  %2386 = vmatprep.subr.mxu0 0.0
  %2387 = vmatpush1.msra.mxu0 0.0
  %2388 = vmatprep.subr.mxu0 0.0
  %2389 = vmatpush1.msra.mxu0 0.0
  %2390 = vmatprep.subr.mxu0 0.0
  %2391 = vmatpush1.msra.mxu0 0.0
  %2392 = vmatprep.subr.mxu0 0.0
  %2393 = vmatpush1.msra.mxu0 0.0
  %2394 = vmatprep.subr.mxu0 0.0
  %2395 = vmatpush1.msra.mxu0 0.0
  %2396 = vmatprep.subr.mxu0 0.0
  %2397 = vmatpush1.msra.mxu0 0.0
  %2398 = vmatprep.subr.mxu0 0.0
  %2399 = vmatpush1.msra.mxu0 0.0
  %2400 = vmatprep.subr.mxu0 0.0
  %2401 = vmatpush1.msra.mxu0 0.0
  %2402 = vmatprep.subr.mxu0 0.0
  %2403 = vmatpush1.msra.mxu0 0.0
  %2404 = vmatprep.subr.mxu0 0.0
  %2405 = vmatpush1.msra.mxu0 0.0
  %2406 = vmatprep.subr.mxu0 0.0
  %2407 = vmatpush1.msra.mxu0 0.0
  %2408 = vmatprep.subr.mxu0 0.0
  %2409 = vmatpush1.msra.mxu0 0.0
  %2410 = vmatprep.subr.mxu0 0.0
  %2411 = vmatpush1.msra.mxu0 0.0
  %2412 = vmatprep.subr.mxu0 0.0
  %2413 = vmatpush1.msra.mxu0 0.0
  %2414 = vmatprep.subr.mxu0 0.0
  %2415 = vmatpush1.msra.mxu0 0.0
  %2416 = vmatprep.subr.mxu0 0.0
  %2417 = vmatpush1.msra.mxu0 0.0
  %2418 = vmatprep.subr.mxu0 0.0
  %2419 = vmatpush1.msra.mxu0 0.0
  %2420 = vmatprep.subr.mxu0 0.0
  %2421 = vmatpush1.msra.mxu0 0.0
  %2422 = vmatprep.subr.mxu0 0.0
  %2423 = vmatpush1.msra.mxu0 0.0
  %2424 = vmatprep.subr.mxu0 0.0
  %2425 = vmatpush1.msra.mxu0 0.0
  %2426 = vmatprep.subr.mxu0 0.0
  %2427 = vmatpush1.msra.mxu0 0.0
  %2428 = vmatprep.subr.mxu0 0.0
  %2429 = vmatpush1.msra.mxu0 0.0
  %2430 = vmatprep.subr.mxu0 0.0
  %2431 = vmatpush1.msra.mxu0 0.0
  %2432 = vmatprep.subr.mxu0 0.0
  %2433 = vmatpush1.msra.mxu0 0.0
  %2434 = vmatprep.subr.mxu0 0.0
  %2435 = vmatpush1.msra.mxu0 0.0
  %2436 = vmatprep.subr.mxu0 0.0
  %2437 = vmatpush1.msra.mxu0 0.0
  %2438 = vmatprep.mubr.f32.mxu0 0.0
  %2439 = vmatmul.mubr.f32.gmra.mrb[0].mxu0 %v2372
  %v2440 = vpop.f32.mrb[0].mxu0
  %v2441 = vadd.f32 0.0, %v2440
  %v2442 = vpop.f32.mrb[0].mxu0
  %2443 = vdwg.mxu0
  %v2445 = vsel %vm52, %v2362, 0
  %2447 = vmatprep.subr.mxu0 0.0
  %2448 = vmatpush1.msra.mxu0 %v2363
  %2449 = vmatprep.subr.mxu0 0.0
  %2450 = vmatpush1.msra.mxu0 %v2364
  %2451 = vmatprep.subr.mxu0 0.0
  %2452 = vmatpush1.msra.mxu0 %v2365
  %2453 = vmatprep.subr.mxu0 0.0
  %2454 = vmatpush1.msra.mxu0 %v2366
  %2455 = vmatprep.subr.mxu0 0.0
  %2456 = vmatpush1.msra.mxu0 0.0
  %2457 = vmatprep.subr.mxu0 0.0
  %2458 = vmatpush1.msra.mxu0 0.0
  %2459 = vmatprep.subr.mxu0 0.0
  %2460 = vmatpush1.msra.mxu0 0.0
  %2461 = vmatprep.subr.mxu0 0.0
  %2462 = vmatpush1.msra.mxu0 0.0
  %2463 = vmatprep.subr.mxu0 0.0
  %2464 = vmatpush1.msra.mxu0 0.0
  %2465 = vmatprep.subr.mxu0 0.0
  %2466 = vmatpush1.msra.mxu0 0.0
  %2467 = vmatprep.subr.mxu0 0.0
  %2468 = vmatpush1.msra.mxu0 0.0
  %2469 = vmatprep.subr.mxu0 0.0
  %2470 = vmatpush1.msra.mxu0 0.0
  %2471 = vmatprep.subr.mxu0 0.0
  %2472 = vmatpush1.msra.mxu0 0.0
  %2473 = vmatprep.subr.mxu0 0.0
  %2474 = vmatpush1.msra.mxu0 0.0
  %2475 = vmatprep.subr.mxu0 0.0
  %2476 = vmatpush1.msra.mxu0 0.0
  %2477 = vmatprep.subr.mxu0 0.0
  %2478 = vmatpush1.msra.mxu0 0.0
  %2479 = vmatprep.subr.mxu0 0.0
  %2480 = vmatpush1.msra.mxu0 0.0
  %2481 = vmatprep.subr.mxu0 0.0
  %2482 = vmatpush1.msra.mxu0 0.0
  %2483 = vmatprep.subr.mxu0 0.0
  %2484 = vmatpush1.msra.mxu0 0.0
  %2485 = vmatprep.subr.mxu0 0.0
  %2486 = vmatpush1.msra.mxu0 0.0
  %2487 = vmatprep.subr.mxu0 0.0
  %2488 = vmatpush1.msra.mxu0 0.0
  %2489 = vmatprep.subr.mxu0 0.0
  %2490 = vmatpush1.msra.mxu0 0.0
  %2491 = vmatprep.subr.mxu0 0.0
  %2492 = vmatpush1.msra.mxu0 0.0
  %2493 = vmatprep.subr.mxu0 0.0
  %2494 = vmatpush1.msra.mxu0 0.0
  %2495 = vmatprep.subr.mxu0 0.0
  %2496 = vmatpush1.msra.mxu0 0.0
  %2497 = vmatprep.subr.mxu0 0.0
  %2498 = vmatpush1.msra.mxu0 0.0
  %2499 = vmatprep.subr.mxu0 0.0
  %2500 = vmatpush1.msra.mxu0 0.0
  %2501 = vmatprep.subr.mxu0 0.0
  %2502 = vmatpush1.msra.mxu0 0.0
  %2503 = vmatprep.subr.mxu0 0.0
  %2504 = vmatpush1.msra.mxu0 0.0
  %2505 = vmatprep.subr.mxu0 0.0
  %2506 = vmatpush1.msra.mxu0 0.0
  %2507 = vmatprep.subr.mxu0 0.0
  %2508 = vmatpush1.msra.mxu0 0.0
  %2509 = vmatprep.subr.mxu0 0.0
  %2510 = vmatpush1.msra.mxu0 0.0
  %2511 = vmatprep.mubr.f32.mxu0 0.0
  %2512 = vmatmul.mubr.f32.gmra.mrb[0].mxu0 %v2445
  %v2513 = vpop.f32.mrb[0].mxu0
  %v2514 = vadd.f32 %v2441, %v2513
  %v2515 = vpop.f32.mrb[0].mxu0
  %2516 = vdwg.mxu0
  %v2517 = vxor.u32 %v2514, 2147483648
  %v2518 = vmul.f32 %v2517, 1.442695
  %v2519 = vpow.pop %v2518
  %v2520 = vadd.f32 %v2519, 1.0
  %v2521 = vrcp.pop %v2520
  %v2522 = vmul.f32 1.0, %v2521
  %v2523 = vtanh.pop %v2514
  %2524 = vrot.lane.b32.xlu0 %v2358, 32
  %v2525 = vpop.permute.xlu0 %2524
  %v2527 = vsub.f32 %v2523, %v2525
  %2529 = vrot.lane.b32.xlu0 %v2527, 96
  %v2530 = vpop.permute.xlu0 %2529
  %v2532 = vmul.f32 %v2522, %v2530
  %v2533 = vadd.f32 %v2358, %v2532
  %v2534 = vld [vmem:[%s4] sm:$0xff]
  %v2535 = vld [vmem:[%s4 + $0x8] sm:$0xff]
  %v2536 = vld [vmem:[%s4 + $0x10] sm:$0xff]
  %v2537 = vld [vmem:[%s4 + $0x18] sm:$0xff]
  %v2539 = vsel %vm52, %v2533, 0
  %2541 = vmatprep.subr.mxu0 0.0
  %2542 = vmatpush1.msra.mxu0 %v2534
  %2543 = vmatprep.subr.mxu0 0.0
  %2544 = vmatpush1.msra.mxu0 %v2535
  %2545 = vmatprep.subr.mxu0 0.0
  %2546 = vmatpush1.msra.mxu0 %v2536
  %2547 = vmatprep.subr.mxu0 0.0
  %2548 = vmatpush1.msra.mxu0 %v2537
  %2549 = vmatprep.subr.mxu0 0.0
  %2550 = vmatpush1.msra.mxu0 0.0
  %2551 = vmatprep.subr.mxu0 0.0
  %2552 = vmatpush1.msra.mxu0 0.0
  %2553 = vmatprep.subr.mxu0 0.0
  %2554 = vmatpush1.msra.mxu0 0.0
  %2555 = vmatprep.subr.mxu0 0.0
  %2556 = vmatpush1.msra.mxu0 0.0
  %2557 = vmatprep.subr.mxu0 0.0
  %2558 = vmatpush1.msra.mxu0 0.0
  %2559 = vmatprep.subr.mxu0 0.0
  %2560 = vmatpush1.msra.mxu0 0.0
  %2561 = vmatprep.subr.mxu0 0.0
  %2562 = vmatpush1.msra.mxu0 0.0
  %2563 = vmatprep.subr.mxu0 0.0
  %2564 = vmatpush1.msra.mxu0 0.0
  %2565 = vmatprep.subr.mxu0 0.0
  %2566 = vmatpush1.msra.mxu0 0.0
  %2567 = vmatprep.subr.mxu0 0.0
  %2568 = vmatpush1.msra.mxu0 0.0
  %2569 = vmatprep.subr.mxu0 0.0
  %2570 = vmatpush1.msra.mxu0 0.0
  %2571 = vmatprep.subr.mxu0 0.0
  %2572 = vmatpush1.msra.mxu0 0.0
  %2573 = vmatprep.subr.mxu0 0.0
  %2574 = vmatpush1.msra.mxu0 0.0
  %2575 = vmatprep.subr.mxu0 0.0
  %2576 = vmatpush1.msra.mxu0 0.0
  %2577 = vmatprep.subr.mxu0 0.0
  %2578 = vmatpush1.msra.mxu0 0.0
  %2579 = vmatprep.subr.mxu0 0.0
  %2580 = vmatpush1.msra.mxu0 0.0
  %2581 = vmatprep.subr.mxu0 0.0
  %2582 = vmatpush1.msra.mxu0 0.0
  %2583 = vmatprep.subr.mxu0 0.0
  %2584 = vmatpush1.msra.mxu0 0.0
  %2585 = vmatprep.subr.mxu0 0.0
  %2586 = vmatpush1.msra.mxu0 0.0
  %2587 = vmatprep.subr.mxu0 0.0
  %2588 = vmatpush1.msra.mxu0 0.0
  %2589 = vmatprep.subr.mxu0 0.0
  %2590 = vmatpush1.msra.mxu0 0.0
  %2591 = vmatprep.subr.mxu0 0.0
  %2592 = vmatpush1.msra.mxu0 0.0
  %2593 = vmatprep.subr.mxu0 0.0
  %2594 = vmatpush1.msra.mxu0 0.0
  %2595 = vmatprep.subr.mxu0 0.0
  %2596 = vmatpush1.msra.mxu0 0.0
  %2597 = vmatprep.subr.mxu0 0.0
  %2598 = vmatpush1.msra.mxu0 0.0
  %2599 = vmatprep.subr.mxu0 0.0
  %2600 = vmatpush1.msra.mxu0 0.0
  %2601 = vmatprep.subr.mxu0 0.0
  %2602 = vmatpush1.msra.mxu0 0.0
  %2603 = vmatprep.subr.mxu0 0.0
  %2604 = vmatpush1.msra.mxu0 0.0
  %2605 = vmatprep.mubr.f32.mxu0 0.0
  %2606 = vmatmul.mubr.f32.gmra.mrb[0].mxu0 %v2539
  %v2607 = vpop.f32.mrb[0].mxu0
  %v2608 = vadd.f32 0.0, %v2607
  %v2609 = vpop.f32.mrb[0].mxu0
  %2610 = vdwg.mxu0
  %v2611 = vxor.u32 %v2608, 2147483648
  %v2612 = vmul.f32 %v2611, 1.442695
  %v2613 = vpow.pop %v2612
  %v2614 = vadd.f32 %v2613, 1.0
  %v2615 = vrcp.pop %v2614
  %v2616 = vmul.f32 1.0, %v2615
  %v2617 = vtanh.pop %v2608
  %2618 = vrot.lane.b32.xlu0 %v2533, 32
  %v2619 = vpop.permute.xlu0 %2618
  %v2621 = vsub.f32 %v2617, %v2619
  %2623 = vrot.lane.b32.xlu0 %v2621, 96
  %v2624 = vpop.permute.xlu0 %2623
  %v2626 = vmul.f32 %v2616, %v2624
  %v2627 = vadd.f32 %v2533, %v2626
  %v2628 = vmax.f32 %v2608, 0.0
  %2629 = vrot.lane.b32.xlu0 %v2533, 96
  %v2630 = vpop.permute.xlu0 %2629
  %v2632 = vsub.f32 %v2628, %v2630
  %2634 = vrot.lane.b32.xlu0 %v2632, 96
  %v2635 = vpop.permute.xlu0 %2634
  %v2637 = vmul.f32 %v2616, %v2635
  %2639 = vrot.lane.b32.xlu0 %v2637, 64
  %v2640 = vpop.permute.xlu0 %2639
  %v2642 = vadd.f32 %v2533, %v2640
  %v2643 = vadd.f32 %v2627, %v2642
  %v2644 = vld [vmem:[%s5] sm:$0xff]
  %v2645 = vld [vmem:[%s5 + $0x8] sm:$0xff]
  %v2646 = vld [vmem:[%s5 + $0x10] sm:$0xff]
  %v2647 = vld [vmem:[%s5 + $0x18] sm:$0xff]
  %v2649 = vsel %vm52, %v2627, 0
  %2651 = vmatprep.subr.mxu0 0.0
  %2652 = vmatpush1.msra.mxu0 %v2644
  %2653 = vmatprep.subr.mxu0 0.0
  %2654 = vmatpush1.msra.mxu0 %v2645
  %2655 = vmatprep.subr.mxu0 0.0
  %2656 = vmatpush1.msra.mxu0 %v2646
  %2657 = vmatprep.subr.mxu0 0.0
  %2658 = vmatpush1.msra.mxu0 %v2647
  %2659 = vmatprep.subr.mxu0 0.0
  %2660 = vmatpush1.msra.mxu0 0.0
  %2661 = vmatprep.subr.mxu0 0.0
  %2662 = vmatpush1.msra.mxu0 0.0
  %2663 = vmatprep.subr.mxu0 0.0
  %2664 = vmatpush1.msra.mxu0 0.0
  %2665 = vmatprep.subr.mxu0 0.0
  %2666 = vmatpush1.msra.mxu0 0.0
  %2667 = vmatprep.subr.mxu0 0.0
  %2668 = vmatpush1.msra.mxu0 0.0
  %2669 = vmatprep.subr.mxu0 0.0
  %2670 = vmatpush1.msra.mxu0 0.0
  %2671 = vmatprep.subr.mxu0 0.0
  %2672 = vmatpush1.msra.mxu0 0.0
  %2673 = vmatprep.subr.mxu0 0.0
  %2674 = vmatpush1.msra.mxu0 0.0
  %2675 = vmatprep.subr.mxu0 0.0
  %2676 = vmatpush1.msra.mxu0 0.0
  %2677 = vmatprep.subr.mxu0 0.0
  %2678 = vmatpush1.msra.mxu0 0.0
  %2679 = vmatprep.subr.mxu0 0.0
  %2680 = vmatpush1.msra.mxu0 0.0
  %2681 = vmatprep.subr.mxu0 0.0
  %2682 = vmatpush1.msra.mxu0 0.0
  %2683 = vmatprep.subr.mxu0 0.0
  %2684 = vmatpush1.msra.mxu0 0.0
  %2685 = vmatprep.subr.mxu0 0.0
  %2686 = vmatpush1.msra.mxu0 0.0
  %2687 = vmatprep.subr.mxu0 0.0
  %2688 = vmatpush1.msra.mxu0 0.0
  %2689 = vmatprep.subr.mxu0 0.0
  %2690 = vmatpush1.msra.mxu0 0.0
  %2691 = vmatprep.subr.mxu0 0.0
  %2692 = vmatpush1.msra.mxu0 0.0
  %2693 = vmatprep.subr.mxu0 0.0
  %2694 = vmatpush1.msra.mxu0 0.0
  %2695 = vmatprep.subr.mxu0 0.0
  %2696 = vmatpush1.msra.mxu0 0.0
  %2697 = vmatprep.subr.mxu0 0.0
  %2698 = vmatpush1.msra.mxu0 0.0
  %2699 = vmatprep.subr.mxu0 0.0
  %2700 = vmatpush1.msra.mxu0 0.0
  %2701 = vmatprep.subr.mxu0 0.0
  %2702 = vmatpush1.msra.mxu0 0.0
  %2703 = vmatprep.subr.mxu0 0.0
  %2704 = vmatpush1.msra.mxu0 0.0
  %2705 = vmatprep.subr.mxu0 0.0
  %2706 = vmatpush1.msra.mxu0 0.0
  %2707 = vmatprep.subr.mxu0 0.0
  %2708 = vmatpush1.msra.mxu0 0.0
  %2709 = vmatprep.subr.mxu0 0.0
  %2710 = vmatpush1.msra.mxu0 0.0
  %2711 = vmatprep.subr.mxu0 0.0
  %2712 = vmatpush1.msra.mxu0 0.0
  %2713 = vmatprep.subr.mxu0 0.0
  %2714 = vmatpush1.msra.mxu0 0.0
  %2715 = vmatprep.mubr.f32.mxu0 0.0
  %2716 = vmatmul.mubr.f32.gmra.mrb[0].mxu0 %v2649
  %v2717 = vpop.f32.mrb[0].mxu0
  %v2718 = vadd.f32 0.0, %v2717
  %v2719 = vpop.f32.mrb[0].mxu0
  %2720 = vdwg.mxu0
  %v2721 = vxor.u32 %v2718, 2147483648
  %v2722 = vmul.f32 %v2721, 1.442695
  %v2723 = vpow.pop %v2722
  %v2724 = vadd.f32 %v2723, 1.0
  %v2725 = vrcp.pop %v2724
  %v2726 = vmul.f32 1.0, %v2725
  %2727 = vrot.lane.b32.xlu0 %v2627, 32
  %v2728 = vpop.permute.xlu0 %2727
  %v2730 = vsub.f32 %v2726, %v2728
  %2732 = vrot.lane.b32.xlu0 %v2730, 96
  %v2733 = vpop.permute.xlu0 %2732
  %v2735 = vmul.f32 %v2726, %v2733
  %v2736 = vadd.f32 %v2627, %v2735
  %v2737 = vadd.f32 %v2643, %v2736
  %2738 = vrot.lane.b32.xlu0 %v2627, 96
  %v2739 = vpop.permute.xlu0 %2738
  %v2741 = vsub.f32 %v2718, %v2739
  %2743 = vrot.lane.b32.xlu0 %v2741, 96
  %v2744 = vpop.permute.xlu0 %2743
  %v2746 = vmul.f32 %v2726, %v2744
  %2748 = vrot.lane.b32.xlu0 %v2746, 64
  %v2749 = vpop.permute.xlu0 %2748
  %v2751 = vadd.f32 %v2627, %v2749
  %v2752 = vadd.f32 %v2737, %v2751
  %v2753 = vld [vmem:[%s6] sm:$0xff]
  %v2754 = vld [vmem:[%s6 + $0x8] sm:$0xff]
  %v2755 = vld [vmem:[%s6 + $0x10] sm:$0xff]
  %v2756 = vld [vmem:[%s6 + $0x18] sm:$0xff]
  %v2758 = vsel %vm52, %v2642, 0
  %2760 = vmatprep.subr.mxu0 0.0
  %2761 = vmatpush1.msra.mxu0 %v2753
  %2762 = vmatprep.subr.mxu0 0.0
  %2763 = vmatpush1.msra.mxu0 %v2754
  %2764 = vmatprep.subr.mxu0 0.0
  %2765 = vmatpush1.msra.mxu0 %v2755
  %2766 = vmatprep.subr.mxu0 0.0
  %2767 = vmatpush1.msra.mxu0 %v2756
  %2768 = vmatprep.subr.mxu0 0.0
  %2769 = vmatpush1.msra.mxu0 0.0
  %2770 = vmatprep.subr.mxu0 0.0
  %2771 = vmatpush1.msra.mxu0 0.0
  %2772 = vmatprep.subr.mxu0 0.0
  %2773 = vmatpush1.msra.mxu0 0.0
  %2774 = vmatprep.subr.mxu0 0.0
  %2775 = vmatpush1.msra.mxu0 0.0
  %2776 = vmatprep.subr.mxu0 0.0
  %2777 = vmatpush1.msra.mxu0 0.0
  %2778 = vmatprep.subr.mxu0 0.0
  %2779 = vmatpush1.msra.mxu0 0.0
  %2780 = vmatprep.subr.mxu0 0.0
  %2781 = vmatpush1.msra.mxu0 0.0
  %2782 = vmatprep.subr.mxu0 0.0
  %2783 = vmatpush1.msra.mxu0 0.0
  %2784 = vmatprep.subr.mxu0 0.0
  %2785 = vmatpush1.msra.mxu0 0.0
  %2786 = vmatprep.subr.mxu0 0.0
  %2787 = vmatpush1.msra.mxu0 0.0
  %2788 = vmatprep.subr.mxu0 0.0
  %2789 = vmatpush1.msra.mxu0 0.0
  %2790 = vmatprep.subr.mxu0 0.0
  %2791 = vmatpush1.msra.mxu0 0.0
  %2792 = vmatprep.subr.mxu0 0.0
  %2793 = vmatpush1.msra.mxu0 0.0
  %2794 = vmatprep.subr.mxu0 0.0
  %2795 = vmatpush1.msra.mxu0 0.0
  %2796 = vmatprep.subr.mxu0 0.0
  %2797 = vmatpush1.msra.mxu0 0.0
  %2798 = vmatprep.subr.mxu0 0.0
  %2799 = vmatpush1.msra.mxu0 0.0
  %2800 = vmatprep.subr.mxu0 0.0
  %2801 = vmatpush1.msra.mxu0 0.0
  %2802 = vmatprep.subr.mxu0 0.0
  %2803 = vmatpush1.msra.mxu0 0.0
  %2804 = vmatprep.subr.mxu0 0.0
  %2805 = vmatpush1.msra.mxu0 0.0
  %2806 = vmatprep.subr.mxu0 0.0
  %2807 = vmatpush1.msra.mxu0 0.0
  %2808 = vmatprep.subr.mxu0 0.0
  %2809 = vmatpush1.msra.mxu0 0.0
  %2810 = vmatprep.subr.mxu0 0.0
  %2811 = vmatpush1.msra.mxu0 0.0
  %2812 = vmatprep.subr.mxu0 0.0
  %2813 = vmatpush1.msra.mxu0 0.0
  %2814 = vmatprep.subr.mxu0 0.0
  %2815 = vmatpush1.msra.mxu0 0.0
  %2816 = vmatprep.subr.mxu0 0.0
  %2817 = vmatpush1.msra.mxu0 0.0
  %2818 = vmatprep.subr.mxu0 0.0
  %2819 = vmatpush1.msra.mxu0 0.0
  %2820 = vmatprep.subr.mxu0 0.0
  %2821 = vmatpush1.msra.mxu0 0.0
  %2822 = vmatprep.subr.mxu0 0.0
  %2823 = vmatpush1.msra.mxu0 0.0
  %2824 = vmatprep.mubr.f32.mxu0 0.0
  %2825 = vmatmul.mubr.f32.gmra.mrb[0].mxu0 %v2758
  %v2826 = vpop.f32.mrb[0].mxu0
  %v2827 = vadd.f32 0.0, %v2826
  %v2828 = vpop.f32.mrb[0].mxu0
  %2829 = vdwg.mxu0
  %v2830 = vxor.u32 %v2827, 2147483648
  %v2831 = vmul.f32 %v2830, 1.442695
  %v2832 = vpow.pop %v2831
  %v2833 = vadd.f32 %v2832, 1.0
  %v2834 = vrcp.pop %v2833
  %v2835 = vmul.f32 1.0, %v2834
  %v2836 = vtanh.pop %v2827
  %2837 = vrot.lane.b32.xlu0 %v2642, 32
  %v2838 = vpop.permute.xlu0 %2837
  %v2840 = vsub.f32 %v2836, %v2838
  %2842 = vrot.lane.b32.xlu0 %v2840, 96
  %v2843 = vpop.permute.xlu0 %2842
  %v2845 = vmul.f32 %v2835, %v2843
  %v2846 = vadd.f32 %v2642, %v2845
  %v2847 = vadd.f32 %v2752, %v2846
  %v2848 = vld [vmem:[%s7] sm:$0xff]
  %v2849 = vld [vmem:[%s7 + $0x8] sm:$0xff]
  %v2850 = vld [vmem:[%s7 + $0x10] sm:$0xff]
  %v2851 = vld [vmem:[%s7 + $0x18] sm:$0xff]
  %v2853 = vsel %vm52, %v2736, 0
  %2855 = vmatprep.subr.mxu0 0.0
  %2856 = vmatpush1.msra.mxu0 %v2848
  %2857 = vmatprep.subr.mxu0 0.0
  %2858 = vmatpush1.msra.mxu0 %v2849
  %2859 = vmatprep.subr.mxu0 0.0
  %2860 = vmatpush1.msra.mxu0 %v2850
  %2861 = vmatprep.subr.mxu0 0.0
  %2862 = vmatpush1.msra.mxu0 %v2851
  %2863 = vmatprep.subr.mxu0 0.0
  %2864 = vmatpush1.msra.mxu0 0.0
  %2865 = vmatprep.subr.mxu0 0.0
  %2866 = vmatpush1.msra.mxu0 0.0
  %2867 = vmatprep.subr.mxu0 0.0
  %2868 = vmatpush1.msra.mxu0 0.0
  %2869 = vmatprep.subr.mxu0 0.0
  %2870 = vmatpush1.msra.mxu0 0.0
  %2871 = vmatprep.subr.mxu0 0.0
  %2872 = vmatpush1.msra.mxu0 0.0
  %2873 = vmatprep.subr.mxu0 0.0
  %2874 = vmatpush1.msra.mxu0 0.0
  %2875 = vmatprep.subr.mxu0 0.0
  %2876 = vmatpush1.msra.mxu0 0.0
  %2877 = vmatprep.subr.mxu0 0.0
  %2878 = vmatpush1.msra.mxu0 0.0
  %2879 = vmatprep.subr.mxu0 0.0
  %2880 = vmatpush1.msra.mxu0 0.0
  %2881 = vmatprep.subr.mxu0 0.0
  %2882 = vmatpush1.msra.mxu0 0.0
  %2883 = vmatprep.subr.mxu0 0.0
  %2884 = vmatpush1.msra.mxu0 0.0
  %2885 = vmatprep.subr.mxu0 0.0
  %2886 = vmatpush1.msra.mxu0 0.0
  %2887 = vmatprep.subr.mxu0 0.0
  %2888 = vmatpush1.msra.mxu0 0.0
  %2889 = vmatprep.subr.mxu0 0.0
  %2890 = vmatpush1.msra.mxu0 0.0
  %2891 = vmatprep.subr.mxu0 0.0
  %2892 = vmatpush1.msra.mxu0 0.0
  %2893 = vmatprep.subr.mxu0 0.0
  %2894 = vmatpush1.msra.mxu0 0.0
  %2895 = vmatprep.subr.mxu0 0.0
  %2896 = vmatpush1.msra.mxu0 0.0
  %2897 = vmatprep.subr.mxu0 0.0
  %2898 = vmatpush1.msra.mxu0 0.0
  %2899 = vmatprep.subr.mxu0 0.0
  %2900 = vmatpush1.msra.mxu0 0.0
  %2901 = vmatprep.subr.mxu0 0.0
  %2902 = vmatpush1.msra.mxu0 0.0
  %2903 = vmatprep.subr.mxu0 0.0
  %2904 = vmatpush1.msra.mxu0 0.0
  %2905 = vmatprep.subr.mxu0 0.0
  %2906 = vmatpush1.msra.mxu0 0.0
  %2907 = vmatprep.subr.mxu0 0.0
  %2908 = vmatpush1.msra.mxu0 0.0
  %2909 = vmatprep.subr.mxu0 0.0
  %2910 = vmatpush1.msra.mxu0 0.0
  %2911 = vmatprep.subr.mxu0 0.0
  %2912 = vmatpush1.msra.mxu0 0.0
  %2913 = vmatprep.subr.mxu0 0.0
  %2914 = vmatpush1.msra.mxu0 0.0
  %2915 = vmatprep.subr.mxu0 0.0
  %2916 = vmatpush1.msra.mxu0 0.0
  %2917 = vmatprep.subr.mxu0 0.0
  %2918 = vmatpush1.msra.mxu0 0.0
  %2919 = vmatprep.mubr.f32.mxu0 0.0
  %2920 = vmatmul.mubr.f32.gmra.mrb[0].mxu0 %v2853
  %v2921 = vpop.f32.mrb[0].mxu0
  %v2922 = vadd.f32 0.0, %v2921
  %v2923 = vpop.f32.mrb[0].mxu0
  %2924 = vdwg.mxu0
  %v2925 = vxor.u32 %v2922, 2147483648
  %v2926 = vmul.f32 %v2925, 1.442695
  %v2927 = vpow.pop %v2926
  %v2928 = vadd.f32 %v2927, 1.0
  %v2929 = vrcp.pop %v2928
  %v2930 = vmul.f32 1.0, %v2929
  %v2931 = vmax.f32 %v2922, 0.0
  %2932 = vrot.lane.b32.xlu0 %v2736, 32
  %v2933 = vpop.permute.xlu0 %2932
  %v2935 = vsub.f32 %v2931, %v2933
  %2937 = vrot.lane.b32.xlu0 %v2935, 96
  %v2938 = vpop.permute.xlu0 %2937
  %v2940 = vmul.f32 %v2930, %v2938
  %v2941 = vadd.f32 %v2736, %v2940
  %v2942 = vadd.f32 %v2847, %v2941
  %v2943 = vld [vmem:[%s8] sm:$0xff]
  %v2944 = vld [vmem:[%s8 + $0x8] sm:$0xff]
  %v2945 = vld [vmem:[%s8 + $0x10] sm:$0xff]
  %v2946 = vld [vmem:[%s8 + $0x18] sm:$0xff]
  %v2948 = vsel %vm52, %v2751, 0
  %2950 = vmatprep.subr.mxu0 0.0
  %2951 = vmatpush1.msra.mxu0 %v2943
  %2952 = vmatprep.subr.mxu0 0.0
  %2953 = vmatpush1.msra.mxu0 %v2944
  %2954 = vmatprep.subr.mxu0 0.0
  %2955 = vmatpush1.msra.mxu0 %v2945
  %2956 = vmatprep.subr.mxu0 0.0
  %2957 = vmatpush1.msra.mxu0 %v2946
  %2958 = vmatprep.subr.mxu0 0.0
  %2959 = vmatpush1.msra.mxu0 0.0
  %2960 = vmatprep.subr.mxu0 0.0
  %2961 = vmatpush1.msra.mxu0 0.0
  %2962 = vmatprep.subr.mxu0 0.0
  %2963 = vmatpush1.msra.mxu0 0.0
  %2964 = vmatprep.subr.mxu0 0.0
  %2965 = vmatpush1.msra.mxu0 0.0
  %2966 = vmatprep.subr.mxu0 0.0
  %2967 = vmatpush1.msra.mxu0 0.0
  %2968 = vmatprep.subr.mxu0 0.0
  %2969 = vmatpush1.msra.mxu0 0.0
  %2970 = vmatprep.subr.mxu0 0.0
  %2971 = vmatpush1.msra.mxu0 0.0
  %2972 = vmatprep.subr.mxu0 0.0
  %2973 = vmatpush1.msra.mxu0 0.0
  %2974 = vmatprep.subr.mxu0 0.0
  %2975 = vmatpush1.msra.mxu0 0.0
  %2976 = vmatprep.subr.mxu0 0.0
  %2977 = vmatpush1.msra.mxu0 0.0
  %2978 = vmatprep.subr.mxu0 0.0
  %2979 = vmatpush1.msra.mxu0 0.0
  %2980 = vmatprep.subr.mxu0 0.0
  %2981 = vmatpush1.msra.mxu0 0.0
  %2982 = vmatprep.subr.mxu0 0.0
  %2983 = vmatpush1.msra.mxu0 0.0
  %2984 = vmatprep.subr.mxu0 0.0
  %2985 = vmatpush1.msra.mxu0 0.0
  %2986 = vmatprep.subr.mxu0 0.0
  %2987 = vmatpush1.msra.mxu0 0.0
  %2988 = vmatprep.subr.mxu0 0.0
  %2989 = vmatpush1.msra.mxu0 0.0
  %2990 = vmatprep.subr.mxu0 0.0
  %2991 = vmatpush1.msra.mxu0 0.0
  %2992 = vmatprep.subr.mxu0 0.0
  %2993 = vmatpush1.msra.mxu0 0.0
  %2994 = vmatprep.subr.mxu0 0.0
  %2995 = vmatpush1.msra.mxu0 0.0
  %2996 = vmatprep.subr.mxu0 0.0
  %2997 = vmatpush1.msra.mxu0 0.0
  %2998 = vmatprep.subr.mxu0 0.0
  %2999 = vmatpush1.msra.mxu0 0.0
  %3000 = vmatprep.subr.mxu0 0.0
  %3001 = vmatpush1.msra.mxu0 0.0
  %3002 = vmatprep.subr.mxu0 0.0
  %3003 = vmatpush1.msra.mxu0 0.0
  %3004 = vmatprep.subr.mxu0 0.0
  %3005 = vmatpush1.msra.mxu0 0.0
  %3006 = vmatprep.subr.mxu0 0.0
  %3007 = vmatpush1.msra.mxu0 0.0
  %3008 = vmatprep.subr.mxu0 0.0
  %3009 = vmatpush1.msra.mxu0 0.0
  %3010 = vmatprep.subr.mxu0 0.0
  %3011 = vmatpush1.msra.mxu0 0.0
  %3012 = vmatprep.subr.mxu0 0.0
  %3013 = vmatpush1.msra.mxu0 0.0
  %3014 = vmatprep.mubr.f32.mxu0 0.0
  %3015 = vmatmul.mubr.f32.gmra.mrb[0].mxu0 %v2948
  %v3016 = vpop.f32.mrb[0].mxu0
  %v3017 = vadd.f32 0.0, %v3016
  %v3018 = vpop.f32.mrb[0].mxu0
  %3019 = vdwg.mxu0
  %v3020 = vxor.u32 %v3017, 2147483648
  %v3021 = vmul.f32 %v3020, 1.442695
  %v3022 = vpow.pop %v3021
  %v3023 = vadd.f32 %v3022, 1.0
  %v3024 = vrcp.pop %v3023
  %v3025 = vmul.f32 1.0, %v3024
  %3026 = vrot.lane.b32.xlu0 %v2751, 32
  %v3027 = vpop.permute.xlu0 %3026
  %v3029 = vsub.f32 %v3025, %v3027
  %3031 = vrot.lane.b32.xlu0 %v3029, 96
  %v3032 = vpop.permute.xlu0 %3031
  %v3034 = vmul.f32 %v3025, %v3032
  %v3035 = vadd.f32 %v2751, %v3034
  %v3036 = vadd.f32 %v2942, %v3035
  %v3037 = vld [vmem:[%s9] sm:$0xff]
  %v3038 = vld [vmem:[%s9 + $0x8] sm:$0xff]
  %v3039 = vld [vmem:[%s9 + $0x10] sm:$0xff]
  %v3040 = vld [vmem:[%s9 + $0x18] sm:$0xff]
  %v3042 = vsel %vm52, %v2846, 0
  %3044 = vmatprep.subr.mxu0 0.0
  %3045 = vmatpush1.msra.mxu0 %v3037
  %3046 = vmatprep.subr.mxu0 0.0
  %3047 = vmatpush1.msra.mxu0 %v3038
  %3048 = vmatprep.subr.mxu0 0.0
  %3049 = vmatpush1.msra.mxu0 %v3039
  %3050 = vmatprep.subr.mxu0 0.0
  %3051 = vmatpush1.msra.mxu0 %v3040
  %3052 = vmatprep.subr.mxu0 0.0
  %3053 = vmatpush1.msra.mxu0 0.0
  %3054 = vmatprep.subr.mxu0 0.0
  %3055 = vmatpush1.msra.mxu0 0.0
  %3056 = vmatprep.subr.mxu0 0.0
  %3057 = vmatpush1.msra.mxu0 0.0
  %3058 = vmatprep.subr.mxu0 0.0
  %3059 = vmatpush1.msra.mxu0 0.0
  %3060 = vmatprep.subr.mxu0 0.0
  %3061 = vmatpush1.msra.mxu0 0.0
  %3062 = vmatprep.subr.mxu0 0.0
  %3063 = vmatpush1.msra.mxu0 0.0
  %3064 = vmatprep.subr.mxu0 0.0
  %3065 = vmatpush1.msra.mxu0 0.0
  %3066 = vmatprep.subr.mxu0 0.0
  %3067 = vmatpush1.msra.mxu0 0.0
  %3068 = vmatprep.subr.mxu0 0.0
  %3069 = vmatpush1.msra.mxu0 0.0
  %3070 = vmatprep.subr.mxu0 0.0
  %3071 = vmatpush1.msra.mxu0 0.0
  %3072 = vmatprep.subr.mxu0 0.0
  %3073 = vmatpush1.msra.mxu0 0.0
  %3074 = vmatprep.subr.mxu0 0.0
  %3075 = vmatpush1.msra.mxu0 0.0
  %3076 = vmatprep.subr.mxu0 0.0
  %3077 = vmatpush1.msra.mxu0 0.0
  %3078 = vmatprep.subr.mxu0 0.0
  %3079 = vmatpush1.msra.mxu0 0.0
  %3080 = vmatprep.subr.mxu0 0.0
  %3081 = vmatpush1.msra.mxu0 0.0
  %3082 = vmatprep.subr.mxu0 0.0
  %3083 = vmatpush1.msra.mxu0 0.0
  %3084 = vmatprep.subr.mxu0 0.0
  %3085 = vmatpush1.msra.mxu0 0.0
  %3086 = vmatprep.subr.mxu0 0.0
  %3087 = vmatpush1.msra.mxu0 0.0
  %3088 = vmatprep.subr.mxu0 0.0
  %3089 = vmatpush1.msra.mxu0 0.0
  %3090 = vmatprep.subr.mxu0 0.0
  %3091 = vmatpush1.msra.mxu0 0.0
  %3092 = vmatprep.subr.mxu0 0.0
  %3093 = vmatpush1.msra.mxu0 0.0
  %3094 = vmatprep.subr.mxu0 0.0
  %3095 = vmatpush1.msra.mxu0 0.0
  %3096 = vmatprep.subr.mxu0 0.0
  %3097 = vmatpush1.msra.mxu0 0.0
  %3098 = vmatprep.subr.mxu0 0.0
  %3099 = vmatpush1.msra.mxu0 0.0
  %3100 = vmatprep.subr.mxu0 0.0
  %3101 = vmatpush1.msra.mxu0 0.0
  %3102 = vmatprep.subr.mxu0 0.0
  %3103 = vmatpush1.msra.mxu0 0.0
  %3104 = vmatprep.subr.mxu0 0.0
  %3105 = vmatpush1.msra.mxu0 0.0
  %3106 = vmatprep.subr.mxu0 0.0
  %3107 = vmatpush1.msra.mxu0 0.0
  %3108 = vmatprep.mubr.f32.mxu0 0.0
  %3109 = vmatmul.mubr.f32.gmra.mrb[0].mxu0 %v3042
  %v3110 = vpop.f32.mrb[0].mxu0
  %v3111 = vadd.f32 0.0, %v3110
  %v3112 = vpop.f32.mrb[0].mxu0
  %3113 = vdwg.mxu0
  %v3114 = vxor.u32 %v3111, 2147483648
  %v3115 = vmul.f32 %v3114, 1.442695
  %v3116 = vpow.pop %v3115
  %v3117 = vadd.f32 %v3116, 1.0
  %v3118 = vrcp.pop %v3117
  %v3119 = vmul.f32 1.0, %v3118
  %3120 = vrot.lane.b32.xlu0 %v2846, 32
  %v3121 = vpop.permute.xlu0 %3120
  %v3123 = vsub.f32 %v3111, %v3121
  %3125 = vrot.lane.b32.xlu0 %v3123, 96
  %v3126 = vpop.permute.xlu0 %3125
  %v3128 = vmul.f32 %v3119, %v3126
  %v3129 = vadd.f32 %v2846, %v3128
  %v3130 = vadd.f32 %v3036, %v3129
  %v3131 = vmul.f32 %v3130, 0.125
  %s3132 = scalar_lea.vmem %s10, 24
  %3133 = vst.msk [vmem:[%s3132] sm:$0xff] %vm52, %v3131
  %s3134 = scalar_lea.vmem %s0, 32
  %v3135 = vld [vmem:[%s3134] sm:$0xff]
  %v3136 = vld [vmem:[%s2] sm:$0xff]
  %v3137 = vld [vmem:[%s2 + $0x8] sm:$0xff]
  %v3138 = vld [vmem:[%s2 + $0x10] sm:$0xff]
  %v3139 = vld [vmem:[%s2 + $0x18] sm:$0xff]
  %v3140 = vld [vmem:[%s3] sm:$0xff]
  %v3141 = vld [vmem:[%s3 + $0x8] sm:$0xff]
  %v3142 = vld [vmem:[%s3 + $0x10] sm:$0xff]
  %v3143 = vld [vmem:[%s3 + $0x18] sm:$0xff]
  %v3145 = vsel %vm52, %v3131, 0
  %3147 = vmatprep.subr.mxu0 0.0
  %3148 = vmatpush1.msra.mxu0 %v3140
  %3149 = vmatprep.subr.mxu0 0.0
  %3150 = vmatpush1.msra.mxu0 %v3141
  %3151 = vmatprep.subr.mxu0 0.0
  %3152 = vmatpush1.msra.mxu0 %v3142
  %3153 = vmatprep.subr.mxu0 0.0
  %3154 = vmatpush1.msra.mxu0 %v3143
  %3155 = vmatprep.subr.mxu0 0.0
  %3156 = vmatpush1.msra.mxu0 0.0
  %3157 = vmatprep.subr.mxu0 0.0
  %3158 = vmatpush1.msra.mxu0 0.0
  %3159 = vmatprep.subr.mxu0 0.0
  %3160 = vmatpush1.msra.mxu0 0.0
  %3161 = vmatprep.subr.mxu0 0.0
  %3162 = vmatpush1.msra.mxu0 0.0
  %3163 = vmatprep.subr.mxu0 0.0
  %3164 = vmatpush1.msra.mxu0 0.0
  %3165 = vmatprep.subr.mxu0 0.0
  %3166 = vmatpush1.msra.mxu0 0.0
  %3167 = vmatprep.subr.mxu0 0.0
  %3168 = vmatpush1.msra.mxu0 0.0
  %3169 = vmatprep.subr.mxu0 0.0
  %3170 = vmatpush1.msra.mxu0 0.0
  %3171 = vmatprep.subr.mxu0 0.0
  %3172 = vmatpush1.msra.mxu0 0.0
  %3173 = vmatprep.subr.mxu0 0.0
  %3174 = vmatpush1.msra.mxu0 0.0
  %3175 = vmatprep.subr.mxu0 0.0
  %3176 = vmatpush1.msra.mxu0 0.0
  %3177 = vmatprep.subr.mxu0 0.0
  %3178 = vmatpush1.msra.mxu0 0.0
  %3179 = vmatprep.subr.mxu0 0.0
  %3180 = vmatpush1.msra.mxu0 0.0
  %3181 = vmatprep.subr.mxu0 0.0
  %3182 = vmatpush1.msra.mxu0 0.0
  %3183 = vmatprep.subr.mxu0 0.0
  %3184 = vmatpush1.msra.mxu0 0.0
  %3185 = vmatprep.subr.mxu0 0.0
  %3186 = vmatpush1.msra.mxu0 0.0
  %3187 = vmatprep.subr.mxu0 0.0
  %3188 = vmatpush1.msra.mxu0 0.0
  %3189 = vmatprep.subr.mxu0 0.0
  %3190 = vmatpush1.msra.mxu0 0.0
  %3191 = vmatprep.subr.mxu0 0.0
  %3192 = vmatpush1.msra.mxu0 0.0
  %3193 = vmatprep.subr.mxu0 0.0
  %3194 = vmatpush1.msra.mxu0 0.0
  %3195 = vmatprep.subr.mxu0 0.0
  %3196 = vmatpush1.msra.mxu0 0.0
  %3197 = vmatprep.subr.mxu0 0.0
  %3198 = vmatpush1.msra.mxu0 0.0
  %3199 = vmatprep.subr.mxu0 0.0
  %3200 = vmatpush1.msra.mxu0 0.0
  %3201 = vmatprep.subr.mxu0 0.0
  %3202 = vmatpush1.msra.mxu0 0.0
  %3203 = vmatprep.subr.mxu0 0.0
  %3204 = vmatpush1.msra.mxu0 0.0
  %3205 = vmatprep.subr.mxu0 0.0
  %3206 = vmatpush1.msra.mxu0 0.0
  %3207 = vmatprep.subr.mxu0 0.0
  %3208 = vmatpush1.msra.mxu0 0.0
  %3209 = vmatprep.subr.mxu0 0.0
  %3210 = vmatpush1.msra.mxu0 0.0
  %3211 = vmatprep.mubr.f32.mxu0 0.0
  %3212 = vmatmul.mubr.f32.gmra.mrb[0].mxu0 %v3145
  %v3213 = vpop.f32.mrb[0].mxu0
  %v3214 = vadd.f32 0.0, %v3213
  %v3215 = vpop.f32.mrb[0].mxu0
  %3216 = vdwg.mxu0
  %v3218 = vsel %vm52, %v3135, 0
  %3220 = vmatprep.subr.mxu0 0.0
  %3221 = vmatpush1.msra.mxu0 %v3136
  %3222 = vmatprep.subr.mxu0 0.0
  %3223 = vmatpush1.msra.mxu0 %v3137
  %3224 = vmatprep.subr.mxu0 0.0
  %3225 = vmatpush1.msra.mxu0 %v3138
  %3226 = vmatprep.subr.mxu0 0.0
  %3227 = vmatpush1.msra.mxu0 %v3139
  %3228 = vmatprep.subr.mxu0 0.0
  %3229 = vmatpush1.msra.mxu0 0.0
  %3230 = vmatprep.subr.mxu0 0.0
  %3231 = vmatpush1.msra.mxu0 0.0
  %3232 = vmatprep.subr.mxu0 0.0
  %3233 = vmatpush1.msra.mxu0 0.0
  %3234 = vmatprep.subr.mxu0 0.0
  %3235 = vmatpush1.msra.mxu0 0.0
  %3236 = vmatprep.subr.mxu0 0.0
  %3237 = vmatpush1.msra.mxu0 0.0
  %3238 = vmatprep.subr.mxu0 0.0
  %3239 = vmatpush1.msra.mxu0 0.0
  %3240 = vmatprep.subr.mxu0 0.0
  %3241 = vmatpush1.msra.mxu0 0.0
  %3242 = vmatprep.subr.mxu0 0.0
  %3243 = vmatpush1.msra.mxu0 0.0
  %3244 = vmatprep.subr.mxu0 0.0
  %3245 = vmatpush1.msra.mxu0 0.0
  %3246 = vmatprep.subr.mxu0 0.0
  %3247 = vmatpush1.msra.mxu0 0.0
  %3248 = vmatprep.subr.mxu0 0.0
  %3249 = vmatpush1.msra.mxu0 0.0
  %3250 = vmatprep.subr.mxu0 0.0
  %3251 = vmatpush1.msra.mxu0 0.0
  %3252 = vmatprep.subr.mxu0 0.0
  %3253 = vmatpush1.msra.mxu0 0.0
  %3254 = vmatprep.subr.mxu0 0.0
  %3255 = vmatpush1.msra.mxu0 0.0
  %3256 = vmatprep.subr.mxu0 0.0
  %3257 = vmatpush1.msra.mxu0 0.0
  %3258 = vmatprep.subr.mxu0 0.0
  %3259 = vmatpush1.msra.mxu0 0.0
  %3260 = vmatprep.subr.mxu0 0.0
  %3261 = vmatpush1.msra.mxu0 0.0
  %3262 = vmatprep.subr.mxu0 0.0
  %3263 = vmatpush1.msra.mxu0 0.0
  %3264 = vmatprep.subr.mxu0 0.0
  %3265 = vmatpush1.msra.mxu0 0.0
  %3266 = vmatprep.subr.mxu0 0.0
  %3267 = vmatpush1.msra.mxu0 0.0
  %3268 = vmatprep.subr.mxu0 0.0
  %3269 = vmatpush1.msra.mxu0 0.0
  %3270 = vmatprep.subr.mxu0 0.0
  %3271 = vmatpush1.msra.mxu0 0.0
  %3272 = vmatprep.subr.mxu0 0.0
  %3273 = vmatpush1.msra.mxu0 0.0
  %3274 = vmatprep.subr.mxu0 0.0
  %3275 = vmatpush1.msra.mxu0 0.0
  %3276 = vmatprep.subr.mxu0 0.0
  %3277 = vmatpush1.msra.mxu0 0.0
  %3278 = vmatprep.subr.mxu0 0.0
  %3279 = vmatpush1.msra.mxu0 0.0
  %3280 = vmatprep.subr.mxu0 0.0
  %3281 = vmatpush1.msra.mxu0 0.0
  %3282 = vmatprep.subr.mxu0 0.0
  %3283 = vmatpush1.msra.mxu0 0.0
  %3284 = vmatprep.mubr.f32.mxu0 0.0
  %3285 = vmatmul.mubr.f32.gmra.mrb[0].mxu0 %v3218
  %v3286 = vpop.f32.mrb[0].mxu0
  %v3287 = vadd.f32 %v3214, %v3286
  %v3288 = vpop.f32.mrb[0].mxu0
  %3289 = vdwg.mxu0
  %v3290 = vxor.u32 %v3287, 2147483648
  %v3291 = vmul.f32 %v3290, 1.442695
  %v3292 = vpow.pop %v3291
  %v3293 = vadd.f32 %v3292, 1.0
  %v3294 = vrcp.pop %v3293
  %v3295 = vmul.f32 1.0, %v3294
  %v3296 = vtanh.pop %v3287
  %3297 = vrot.lane.b32.xlu0 %v3131, 32
  %v3298 = vpop.permute.xlu0 %3297
  %v3300 = vsub.f32 %v3296, %v3298
  %3302 = vrot.lane.b32.xlu0 %v3300, 96
  %v3303 = vpop.permute.xlu0 %3302
  %v3305 = vmul.f32 %v3295, %v3303
  %v3306 = vadd.f32 %v3131, %v3305
  %v3307 = vld [vmem:[%s4] sm:$0xff]
  %v3308 = vld [vmem:[%s4 + $0x8] sm:$0xff]
  %v3309 = vld [vmem:[%s4 + $0x10] sm:$0xff]
  %v3310 = vld [vmem:[%s4 + $0x18] sm:$0xff]
  %v3312 = vsel %vm52, %v3306, 0
  %3314 = vmatprep.subr.mxu0 0.0
  %3315 = vmatpush1.msra.mxu0 %v3307
  %3316 = vmatprep.subr.mxu0 0.0
  %3317 = vmatpush1.msra.mxu0 %v3308
  %3318 = vmatprep.subr.mxu0 0.0
  %3319 = vmatpush1.msra.mxu0 %v3309
  %3320 = vmatprep.subr.mxu0 0.0
  %3321 = vmatpush1.msra.mxu0 %v3310
  %3322 = vmatprep.subr.mxu0 0.0
  %3323 = vmatpush1.msra.mxu0 0.0
  %3324 = vmatprep.subr.mxu0 0.0
  %3325 = vmatpush1.msra.mxu0 0.0
  %3326 = vmatprep.subr.mxu0 0.0
  %3327 = vmatpush1.msra.mxu0 0.0
  %3328 = vmatprep.subr.mxu0 0.0
  %3329 = vmatpush1.msra.mxu0 0.0
  %3330 = vmatprep.subr.mxu0 0.0
  %3331 = vmatpush1.msra.mxu0 0.0
  %3332 = vmatprep.subr.mxu0 0.0
  %3333 = vmatpush1.msra.mxu0 0.0
  %3334 = vmatprep.subr.mxu0 0.0
  %3335 = vmatpush1.msra.mxu0 0.0
  %3336 = vmatprep.subr.mxu0 0.0
  %3337 = vmatpush1.msra.mxu0 0.0
  %3338 = vmatprep.subr.mxu0 0.0
  %3339 = vmatpush1.msra.mxu0 0.0
  %3340 = vmatprep.subr.mxu0 0.0
  %3341 = vmatpush1.msra.mxu0 0.0
  %3342 = vmatprep.subr.mxu0 0.0
  %3343 = vmatpush1.msra.mxu0 0.0
  %3344 = vmatprep.subr.mxu0 0.0
  %3345 = vmatpush1.msra.mxu0 0.0
  %3346 = vmatprep.subr.mxu0 0.0
  %3347 = vmatpush1.msra.mxu0 0.0
  %3348 = vmatprep.subr.mxu0 0.0
  %3349 = vmatpush1.msra.mxu0 0.0
  %3350 = vmatprep.subr.mxu0 0.0
  %3351 = vmatpush1.msra.mxu0 0.0
  %3352 = vmatprep.subr.mxu0 0.0
  %3353 = vmatpush1.msra.mxu0 0.0
  %3354 = vmatprep.subr.mxu0 0.0
  %3355 = vmatpush1.msra.mxu0 0.0
  %3356 = vmatprep.subr.mxu0 0.0
  %3357 = vmatpush1.msra.mxu0 0.0
  %3358 = vmatprep.subr.mxu0 0.0
  %3359 = vmatpush1.msra.mxu0 0.0
  %3360 = vmatprep.subr.mxu0 0.0
  %3361 = vmatpush1.msra.mxu0 0.0
  %3362 = vmatprep.subr.mxu0 0.0
  %3363 = vmatpush1.msra.mxu0 0.0
  %3364 = vmatprep.subr.mxu0 0.0
  %3365 = vmatpush1.msra.mxu0 0.0
  %3366 = vmatprep.subr.mxu0 0.0
  %3367 = vmatpush1.msra.mxu0 0.0
  %3368 = vmatprep.subr.mxu0 0.0
  %3369 = vmatpush1.msra.mxu0 0.0
  %3370 = vmatprep.subr.mxu0 0.0
  %3371 = vmatpush1.msra.mxu0 0.0
  %3372 = vmatprep.subr.mxu0 0.0
  %3373 = vmatpush1.msra.mxu0 0.0
  %3374 = vmatprep.subr.mxu0 0.0
  %3375 = vmatpush1.msra.mxu0 0.0
  %3376 = vmatprep.subr.mxu0 0.0
  %3377 = vmatpush1.msra.mxu0 0.0
  %3378 = vmatprep.mubr.f32.mxu0 0.0
  %3379 = vmatmul.mubr.f32.gmra.mrb[0].mxu0 %v3312
  %v3380 = vpop.f32.mrb[0].mxu0
  %v3381 = vadd.f32 0.0, %v3380
  %v3382 = vpop.f32.mrb[0].mxu0
  %3383 = vdwg.mxu0
  %v3384 = vxor.u32 %v3381, 2147483648
  %v3385 = vmul.f32 %v3384, 1.442695
  %v3386 = vpow.pop %v3385
  %v3387 = vadd.f32 %v3386, 1.0
  %v3388 = vrcp.pop %v3387
  %v3389 = vmul.f32 1.0, %v3388
  %v3390 = vtanh.pop %v3381
  %3391 = vrot.lane.b32.xlu0 %v3306, 32
  %v3392 = vpop.permute.xlu0 %3391
  %v3394 = vsub.f32 %v3390, %v3392
  %3396 = vrot.lane.b32.xlu0 %v3394, 96
  %v3397 = vpop.permute.xlu0 %3396
  %v3399 = vmul.f32 %v3389, %v3397
  %v3400 = vadd.f32 %v3306, %v3399
  %v3401 = vmax.f32 %v3381, 0.0
  %3402 = vrot.lane.b32.xlu0 %v3306, 96
  %v3403 = vpop.permute.xlu0 %3402
  %v3405 = vsub.f32 %v3401, %v3403
  %3407 = vrot.lane.b32.xlu0 %v3405, 96
  %v3408 = vpop.permute.xlu0 %3407
  %v3410 = vmul.f32 %v3389, %v3408
  %3412 = vrot.lane.b32.xlu0 %v3410, 64
  %v3413 = vpop.permute.xlu0 %3412
  %v3415 = vadd.f32 %v3306, %v3413
  %v3416 = vadd.f32 %v3400, %v3415
  %v3417 = vld [vmem:[%s5] sm:$0xff]
  %v3418 = vld [vmem:[%s5 + $0x8] sm:$0xff]
  %v3419 = vld [vmem:[%s5 + $0x10] sm:$0xff]
  %v3420 = vld [vmem:[%s5 + $0x18] sm:$0xff]
  %v3422 = vsel %vm52, %v3400, 0
  %3424 = vmatprep.subr.mxu0 0.0
  %3425 = vmatpush1.msra.mxu0 %v3417
  %3426 = vmatprep.subr.mxu0 0.0
  %3427 = vmatpush1.msra.mxu0 %v3418
  %3428 = vmatprep.subr.mxu0 0.0
  %3429 = vmatpush1.msra.mxu0 %v3419
  %3430 = vmatprep.subr.mxu0 0.0
  %3431 = vmatpush1.msra.mxu0 %v3420
  %3432 = vmatprep.subr.mxu0 0.0
  %3433 = vmatpush1.msra.mxu0 0.0
  %3434 = vmatprep.subr.mxu0 0.0
  %3435 = vmatpush1.msra.mxu0 0.0
  %3436 = vmatprep.subr.mxu0 0.0
  %3437 = vmatpush1.msra.mxu0 0.0
  %3438 = vmatprep.subr.mxu0 0.0
  %3439 = vmatpush1.msra.mxu0 0.0
  %3440 = vmatprep.subr.mxu0 0.0
  %3441 = vmatpush1.msra.mxu0 0.0
  %3442 = vmatprep.subr.mxu0 0.0
  %3443 = vmatpush1.msra.mxu0 0.0
  %3444 = vmatprep.subr.mxu0 0.0
  %3445 = vmatpush1.msra.mxu0 0.0
  %3446 = vmatprep.subr.mxu0 0.0
  %3447 = vmatpush1.msra.mxu0 0.0
  %3448 = vmatprep.subr.mxu0 0.0
  %3449 = vmatpush1.msra.mxu0 0.0
  %3450 = vmatprep.subr.mxu0 0.0
  %3451 = vmatpush1.msra.mxu0 0.0
  %3452 = vmatprep.subr.mxu0 0.0
  %3453 = vmatpush1.msra.mxu0 0.0
  %3454 = vmatprep.subr.mxu0 0.0
  %3455 = vmatpush1.msra.mxu0 0.0
  %3456 = vmatprep.subr.mxu0 0.0
  %3457 = vmatpush1.msra.mxu0 0.0
  %3458 = vmatprep.subr.mxu0 0.0
  %3459 = vmatpush1.msra.mxu0 0.0
  %3460 = vmatprep.subr.mxu0 0.0
  %3461 = vmatpush1.msra.mxu0 0.0
  %3462 = vmatprep.subr.mxu0 0.0
  %3463 = vmatpush1.msra.mxu0 0.0
  %3464 = vmatprep.subr.mxu0 0.0
  %3465 = vmatpush1.msra.mxu0 0.0
  %3466 = vmatprep.subr.mxu0 0.0
  %3467 = vmatpush1.msra.mxu0 0.0
  %3468 = vmatprep.subr.mxu0 0.0
  %3469 = vmatpush1.msra.mxu0 0.0
  %3470 = vmatprep.subr.mxu0 0.0
  %3471 = vmatpush1.msra.mxu0 0.0
  %3472 = vmatprep.subr.mxu0 0.0
  %3473 = vmatpush1.msra.mxu0 0.0
  %3474 = vmatprep.subr.mxu0 0.0
  %3475 = vmatpush1.msra.mxu0 0.0
  %3476 = vmatprep.subr.mxu0 0.0
  %3477 = vmatpush1.msra.mxu0 0.0
  %3478 = vmatprep.subr.mxu0 0.0
  %3479 = vmatpush1.msra.mxu0 0.0
  %3480 = vmatprep.subr.mxu0 0.0
  %3481 = vmatpush1.msra.mxu0 0.0
  %3482 = vmatprep.subr.mxu0 0.0
  %3483 = vmatpush1.msra.mxu0 0.0
  %3484 = vmatprep.subr.mxu0 0.0
  %3485 = vmatpush1.msra.mxu0 0.0
  %3486 = vmatprep.subr.mxu0 0.0
  %3487 = vmatpush1.msra.mxu0 0.0
  %3488 = vmatprep.mubr.f32.mxu0 0.0
  %3489 = vmatmul.mubr.f32.gmra.mrb[0].mxu0 %v3422
  %v3490 = vpop.f32.mrb[0].mxu0
  %v3491 = vadd.f32 0.0, %v3490
  %v3492 = vpop.f32.mrb[0].mxu0
  %3493 = vdwg.mxu0
  %v3494 = vxor.u32 %v3491, 2147483648
  %v3495 = vmul.f32 %v3494, 1.442695
  %v3496 = vpow.pop %v3495
  %v3497 = vadd.f32 %v3496, 1.0
  %v3498 = vrcp.pop %v3497
  %v3499 = vmul.f32 1.0, %v3498
  %3500 = vrot.lane.b32.xlu0 %v3400, 32
  %v3501 = vpop.permute.xlu0 %3500
  %v3503 = vsub.f32 %v3499, %v3501
  %3505 = vrot.lane.b32.xlu0 %v3503, 96
  %v3506 = vpop.permute.xlu0 %3505
  %v3508 = vmul.f32 %v3499, %v3506
  %v3509 = vadd.f32 %v3400, %v3508
  %v3510 = vadd.f32 %v3416, %v3509
  %3511 = vrot.lane.b32.xlu0 %v3400, 96
  %v3512 = vpop.permute.xlu0 %3511
  %v3514 = vsub.f32 %v3491, %v3512
  %3516 = vrot.lane.b32.xlu0 %v3514, 96
  %v3517 = vpop.permute.xlu0 %3516
  %v3519 = vmul.f32 %v3499, %v3517
  %3521 = vrot.lane.b32.xlu0 %v3519, 64
  %v3522 = vpop.permute.xlu0 %3521
  %v3524 = vadd.f32 %v3400, %v3522
  %v3525 = vadd.f32 %v3510, %v3524
  %v3526 = vld [vmem:[%s6] sm:$0xff]
  %v3527 = vld [vmem:[%s6 + $0x8] sm:$0xff]
  %v3528 = vld [vmem:[%s6 + $0x10] sm:$0xff]
  %v3529 = vld [vmem:[%s6 + $0x18] sm:$0xff]
  %v3531 = vsel %vm52, %v3415, 0
  %3533 = vmatprep.subr.mxu0 0.0
  %3534 = vmatpush1.msra.mxu0 %v3526
  %3535 = vmatprep.subr.mxu0 0.0
  %3536 = vmatpush1.msra.mxu0 %v3527
  %3537 = vmatprep.subr.mxu0 0.0
  %3538 = vmatpush1.msra.mxu0 %v3528
  %3539 = vmatprep.subr.mxu0 0.0
  %3540 = vmatpush1.msra.mxu0 %v3529
  %3541 = vmatprep.subr.mxu0 0.0
  %3542 = vmatpush1.msra.mxu0 0.0
  %3543 = vmatprep.subr.mxu0 0.0
  %3544 = vmatpush1.msra.mxu0 0.0
  %3545 = vmatprep.subr.mxu0 0.0
  %3546 = vmatpush1.msra.mxu0 0.0
  %3547 = vmatprep.subr.mxu0 0.0
  %3548 = vmatpush1.msra.mxu0 0.0
  %3549 = vmatprep.subr.mxu0 0.0
  %3550 = vmatpush1.msra.mxu0 0.0
  %3551 = vmatprep.subr.mxu0 0.0
  %3552 = vmatpush1.msra.mxu0 0.0
  %3553 = vmatprep.subr.mxu0 0.0
  %3554 = vmatpush1.msra.mxu0 0.0
  %3555 = vmatprep.subr.mxu0 0.0
  %3556 = vmatpush1.msra.mxu0 0.0
  %3557 = vmatprep.subr.mxu0 0.0
  %3558 = vmatpush1.msra.mxu0 0.0
  %3559 = vmatprep.subr.mxu0 0.0
  %3560 = vmatpush1.msra.mxu0 0.0
  %3561 = vmatprep.subr.mxu0 0.0
  %3562 = vmatpush1.msra.mxu0 0.0
  %3563 = vmatprep.subr.mxu0 0.0
  %3564 = vmatpush1.msra.mxu0 0.0
  %3565 = vmatprep.subr.mxu0 0.0
  %3566 = vmatpush1.msra.mxu0 0.0
  %3567 = vmatprep.subr.mxu0 0.0
  %3568 = vmatpush1.msra.mxu0 0.0
  %3569 = vmatprep.subr.mxu0 0.0
  %3570 = vmatpush1.msra.mxu0 0.0
  %3571 = vmatprep.subr.mxu0 0.0
  %3572 = vmatpush1.msra.mxu0 0.0
  %3573 = vmatprep.subr.mxu0 0.0
  %3574 = vmatpush1.msra.mxu0 0.0
  %3575 = vmatprep.subr.mxu0 0.0
  %3576 = vmatpush1.msra.mxu0 0.0
  %3577 = vmatprep.subr.mxu0 0.0
  %3578 = vmatpush1.msra.mxu0 0.0
  %3579 = vmatprep.subr.mxu0 0.0
  %3580 = vmatpush1.msra.mxu0 0.0
  %3581 = vmatprep.subr.mxu0 0.0
  %3582 = vmatpush1.msra.mxu0 0.0
  %3583 = vmatprep.subr.mxu0 0.0
  %3584 = vmatpush1.msra.mxu0 0.0
  %3585 = vmatprep.subr.mxu0 0.0
  %3586 = vmatpush1.msra.mxu0 0.0
  %3587 = vmatprep.subr.mxu0 0.0
  %3588 = vmatpush1.msra.mxu0 0.0
  %3589 = vmatprep.subr.mxu0 0.0
  %3590 = vmatpush1.msra.mxu0 0.0
  %3591 = vmatprep.subr.mxu0 0.0
  %3592 = vmatpush1.msra.mxu0 0.0
  %3593 = vmatprep.subr.mxu0 0.0
  %3594 = vmatpush1.msra.mxu0 0.0
  %3595 = vmatprep.subr.mxu0 0.0
  %3596 = vmatpush1.msra.mxu0 0.0
  %3597 = vmatprep.mubr.f32.mxu0 0.0
  %3598 = vmatmul.mubr.f32.gmra.mrb[0].mxu0 %v3531
  %v3599 = vpop.f32.mrb[0].mxu0
  %v3600 = vadd.f32 0.0, %v3599
  %v3601 = vpop.f32.mrb[0].mxu0
  %3602 = vdwg.mxu0
  %v3603 = vxor.u32 %v3600, 2147483648
  %v3604 = vmul.f32 %v3603, 1.442695
  %v3605 = vpow.pop %v3604
  %v3606 = vadd.f32 %v3605, 1.0
  %v3607 = vrcp.pop %v3606
  %v3608 = vmul.f32 1.0, %v3607
  %v3609 = vtanh.pop %v3600
  %3610 = vrot.lane.b32.xlu0 %v3415, 32
  %v3611 = vpop.permute.xlu0 %3610
  %v3613 = vsub.f32 %v3609, %v3611
  %3615 = vrot.lane.b32.xlu0 %v3613, 96
  %v3616 = vpop.permute.xlu0 %3615
  %v3618 = vmul.f32 %v3608, %v3616
  %v3619 = vadd.f32 %v3415, %v3618
  %v3620 = vadd.f32 %v3525, %v3619
  %v3621 = vld [vmem:[%s7] sm:$0xff]
  %v3622 = vld [vmem:[%s7 + $0x8] sm:$0xff]
  %v3623 = vld [vmem:[%s7 + $0x10] sm:$0xff]
  %v3624 = vld [vmem:[%s7 + $0x18] sm:$0xff]
  %v3626 = vsel %vm52, %v3509, 0
  %3628 = vmatprep.subr.mxu0 0.0
  %3629 = vmatpush1.msra.mxu0 %v3621
  %3630 = vmatprep.subr.mxu0 0.0
  %3631 = vmatpush1.msra.mxu0 %v3622
  %3632 = vmatprep.subr.mxu0 0.0
  %3633 = vmatpush1.msra.mxu0 %v3623
  %3634 = vmatprep.subr.mxu0 0.0
  %3635 = vmatpush1.msra.mxu0 %v3624
  %3636 = vmatprep.subr.mxu0 0.0
  %3637 = vmatpush1.msra.mxu0 0.0
  %3638 = vmatprep.subr.mxu0 0.0
  %3639 = vmatpush1.msra.mxu0 0.0
  %3640 = vmatprep.subr.mxu0 0.0
  %3641 = vmatpush1.msra.mxu0 0.0
  %3642 = vmatprep.subr.mxu0 0.0
  %3643 = vmatpush1.msra.mxu0 0.0
  %3644 = vmatprep.subr.mxu0 0.0
  %3645 = vmatpush1.msra.mxu0 0.0
  %3646 = vmatprep.subr.mxu0 0.0
  %3647 = vmatpush1.msra.mxu0 0.0
  %3648 = vmatprep.subr.mxu0 0.0
  %3649 = vmatpush1.msra.mxu0 0.0
  %3650 = vmatprep.subr.mxu0 0.0
  %3651 = vmatpush1.msra.mxu0 0.0
  %3652 = vmatprep.subr.mxu0 0.0
  %3653 = vmatpush1.msra.mxu0 0.0
  %3654 = vmatprep.subr.mxu0 0.0
  %3655 = vmatpush1.msra.mxu0 0.0
  %3656 = vmatprep.subr.mxu0 0.0
  %3657 = vmatpush1.msra.mxu0 0.0
  %3658 = vmatprep.subr.mxu0 0.0
  %3659 = vmatpush1.msra.mxu0 0.0
  %3660 = vmatprep.subr.mxu0 0.0
  %3661 = vmatpush1.msra.mxu0 0.0
  %3662 = vmatprep.subr.mxu0 0.0
  %3663 = vmatpush1.msra.mxu0 0.0
  %3664 = vmatprep.subr.mxu0 0.0
  %3665 = vmatpush1.msra.mxu0 0.0
  %3666 = vmatprep.subr.mxu0 0.0
  %3667 = vmatpush1.msra.mxu0 0.0
  %3668 = vmatprep.subr.mxu0 0.0
  %3669 = vmatpush1.msra.mxu0 0.0
  %3670 = vmatprep.subr.mxu0 0.0
  %3671 = vmatpush1.msra.mxu0 0.0
  %3672 = vmatprep.subr.mxu0 0.0
  %3673 = vmatpush1.msra.mxu0 0.0
  %3674 = vmatprep.subr.mxu0 0.0
  %3675 = vmatpush1.msra.mxu0 0.0
  %3676 = vmatprep.subr.mxu0 0.0
  %3677 = vmatpush1.msra.mxu0 0.0
  %3678 = vmatprep.subr.mxu0 0.0
  %3679 = vmatpush1.msra.mxu0 0.0
  %3680 = vmatprep.subr.mxu0 0.0
  %3681 = vmatpush1.msra.mxu0 0.0
  %3682 = vmatprep.subr.mxu0 0.0
  %3683 = vmatpush1.msra.mxu0 0.0
  %3684 = vmatprep.subr.mxu0 0.0
  %3685 = vmatpush1.msra.mxu0 0.0
  %3686 = vmatprep.subr.mxu0 0.0
  %3687 = vmatpush1.msra.mxu0 0.0
  %3688 = vmatprep.subr.mxu0 0.0
  %3689 = vmatpush1.msra.mxu0 0.0
  %3690 = vmatprep.subr.mxu0 0.0
  %3691 = vmatpush1.msra.mxu0 0.0
  %3692 = vmatprep.mubr.f32.mxu0 0.0
  %3693 = vmatmul.mubr.f32.gmra.mrb[0].mxu0 %v3626
  %v3694 = vpop.f32.mrb[0].mxu0
  %v3695 = vadd.f32 0.0, %v3694
  %v3696 = vpop.f32.mrb[0].mxu0
  %3697 = vdwg.mxu0
  %v3698 = vxor.u32 %v3695, 2147483648
  %v3699 = vmul.f32 %v3698, 1.442695
  %v3700 = vpow.pop %v3699
  %v3701 = vadd.f32 %v3700, 1.0
  %v3702 = vrcp.pop %v3701
  %v3703 = vmul.f32 1.0, %v3702
  %v3704 = vmax.f32 %v3695, 0.0
  %3705 = vrot.lane.b32.xlu0 %v3509, 32
  %v3706 = vpop.permute.xlu0 %3705
  %v3708 = vsub.f32 %v3704, %v3706
  %3710 = vrot.lane.b32.xlu0 %v3708, 96
  %v3711 = vpop.permute.xlu0 %3710
  %v3713 = vmul.f32 %v3703, %v3711
  %v3714 = vadd.f32 %v3509, %v3713
  %v3715 = vadd.f32 %v3620, %v3714
  %v3716 = vld [vmem:[%s8] sm:$0xff]
  %v3717 = vld [vmem:[%s8 + $0x8] sm:$0xff]
  %v3718 = vld [vmem:[%s8 + $0x10] sm:$0xff]
  %v3719 = vld [vmem:[%s8 + $0x18] sm:$0xff]
  %v3721 = vsel %vm52, %v3524, 0
  %3723 = vmatprep.subr.mxu0 0.0
  %3724 = vmatpush1.msra.mxu0 %v3716
  %3725 = vmatprep.subr.mxu0 0.0
  %3726 = vmatpush1.msra.mxu0 %v3717
  %3727 = vmatprep.subr.mxu0 0.0
  %3728 = vmatpush1.msra.mxu0 %v3718
  %3729 = vmatprep.subr.mxu0 0.0
  %3730 = vmatpush1.msra.mxu0 %v3719
  %3731 = vmatprep.subr.mxu0 0.0
  %3732 = vmatpush1.msra.mxu0 0.0
  %3733 = vmatprep.subr.mxu0 0.0
  %3734 = vmatpush1.msra.mxu0 0.0
  %3735 = vmatprep.subr.mxu0 0.0
  %3736 = vmatpush1.msra.mxu0 0.0
  %3737 = vmatprep.subr.mxu0 0.0
  %3738 = vmatpush1.msra.mxu0 0.0
  %3739 = vmatprep.subr.mxu0 0.0
  %3740 = vmatpush1.msra.mxu0 0.0
  %3741 = vmatprep.subr.mxu0 0.0
  %3742 = vmatpush1.msra.mxu0 0.0
  %3743 = vmatprep.subr.mxu0 0.0
  %3744 = vmatpush1.msra.mxu0 0.0
  %3745 = vmatprep.subr.mxu0 0.0
  %3746 = vmatpush1.msra.mxu0 0.0
  %3747 = vmatprep.subr.mxu0 0.0
  %3748 = vmatpush1.msra.mxu0 0.0
  %3749 = vmatprep.subr.mxu0 0.0
  %3750 = vmatpush1.msra.mxu0 0.0
  %3751 = vmatprep.subr.mxu0 0.0
  %3752 = vmatpush1.msra.mxu0 0.0
  %3753 = vmatprep.subr.mxu0 0.0
  %3754 = vmatpush1.msra.mxu0 0.0
  %3755 = vmatprep.subr.mxu0 0.0
  %3756 = vmatpush1.msra.mxu0 0.0
  %3757 = vmatprep.subr.mxu0 0.0
  %3758 = vmatpush1.msra.mxu0 0.0
  %3759 = vmatprep.subr.mxu0 0.0
  %3760 = vmatpush1.msra.mxu0 0.0
  %3761 = vmatprep.subr.mxu0 0.0
  %3762 = vmatpush1.msra.mxu0 0.0
  %3763 = vmatprep.subr.mxu0 0.0
  %3764 = vmatpush1.msra.mxu0 0.0
  %3765 = vmatprep.subr.mxu0 0.0
  %3766 = vmatpush1.msra.mxu0 0.0
  %3767 = vmatprep.subr.mxu0 0.0
  %3768 = vmatpush1.msra.mxu0 0.0
  %3769 = vmatprep.subr.mxu0 0.0
  %3770 = vmatpush1.msra.mxu0 0.0
  %3771 = vmatprep.subr.mxu0 0.0
  %3772 = vmatpush1.msra.mxu0 0.0
  %3773 = vmatprep.subr.mxu0 0.0
  %3774 = vmatpush1.msra.mxu0 0.0
  %3775 = vmatprep.subr.mxu0 0.0
  %3776 = vmatpush1.msra.mxu0 0.0
  %3777 = vmatprep.subr.mxu0 0.0
  %3778 = vmatpush1.msra.mxu0 0.0
  %3779 = vmatprep.subr.mxu0 0.0
  %3780 = vmatpush1.msra.mxu0 0.0
  %3781 = vmatprep.subr.mxu0 0.0
  %3782 = vmatpush1.msra.mxu0 0.0
  %3783 = vmatprep.subr.mxu0 0.0
  %3784 = vmatpush1.msra.mxu0 0.0
  %3785 = vmatprep.subr.mxu0 0.0
  %3786 = vmatpush1.msra.mxu0 0.0
  %3787 = vmatprep.mubr.f32.mxu0 0.0
  %3788 = vmatmul.mubr.f32.gmra.mrb[0].mxu0 %v3721
  %v3789 = vpop.f32.mrb[0].mxu0
  %v3790 = vadd.f32 0.0, %v3789
  %v3791 = vpop.f32.mrb[0].mxu0
  %3792 = vdwg.mxu0
  %v3793 = vxor.u32 %v3790, 2147483648
  %v3794 = vmul.f32 %v3793, 1.442695
  %v3795 = vpow.pop %v3794
  %v3796 = vadd.f32 %v3795, 1.0
  %v3797 = vrcp.pop %v3796
  %v3798 = vmul.f32 1.0, %v3797
  %3799 = vrot.lane.b32.xlu0 %v3524, 32
  %v3800 = vpop.permute.xlu0 %3799
  %v3802 = vsub.f32 %v3798, %v3800
  %3804 = vrot.lane.b32.xlu0 %v3802, 96
  %v3805 = vpop.permute.xlu0 %3804
  %v3807 = vmul.f32 %v3798, %v3805
  %v3808 = vadd.f32 %v3524, %v3807
  %v3809 = vadd.f32 %v3715, %v3808
  %v3810 = vld [vmem:[%s9] sm:$0xff]
  %v3811 = vld [vmem:[%s9 + $0x8] sm:$0xff]
  %v3812 = vld [vmem:[%s9 + $0x10] sm:$0xff]
  %v3813 = vld [vmem:[%s9 + $0x18] sm:$0xff]
  %v3815 = vsel %vm52, %v3619, 0
  %3817 = vmatprep.subr.mxu0 0.0
  %3818 = vmatpush1.msra.mxu0 %v3810
  %3819 = vmatprep.subr.mxu0 0.0
  %3820 = vmatpush1.msra.mxu0 %v3811
  %3821 = vmatprep.subr.mxu0 0.0
  %3822 = vmatpush1.msra.mxu0 %v3812
  %3823 = vmatprep.subr.mxu0 0.0
  %3824 = vmatpush1.msra.mxu0 %v3813
  %3825 = vmatprep.subr.mxu0 0.0
  %3826 = vmatpush1.msra.mxu0 0.0
  %3827 = vmatprep.subr.mxu0 0.0
  %3828 = vmatpush1.msra.mxu0 0.0
  %3829 = vmatprep.subr.mxu0 0.0
  %3830 = vmatpush1.msra.mxu0 0.0
  %3831 = vmatprep.subr.mxu0 0.0
  %3832 = vmatpush1.msra.mxu0 0.0
  %3833 = vmatprep.subr.mxu0 0.0
  %3834 = vmatpush1.msra.mxu0 0.0
  %3835 = vmatprep.subr.mxu0 0.0
  %3836 = vmatpush1.msra.mxu0 0.0
  %3837 = vmatprep.subr.mxu0 0.0
  %3838 = vmatpush1.msra.mxu0 0.0
  %3839 = vmatprep.subr.mxu0 0.0
  %3840 = vmatpush1.msra.mxu0 0.0
  %3841 = vmatprep.subr.mxu0 0.0
  %3842 = vmatpush1.msra.mxu0 0.0
  %3843 = vmatprep.subr.mxu0 0.0
  %3844 = vmatpush1.msra.mxu0 0.0
  %3845 = vmatprep.subr.mxu0 0.0
  %3846 = vmatpush1.msra.mxu0 0.0
  %3847 = vmatprep.subr.mxu0 0.0
  %3848 = vmatpush1.msra.mxu0 0.0
  %3849 = vmatprep.subr.mxu0 0.0
  %3850 = vmatpush1.msra.mxu0 0.0
  %3851 = vmatprep.subr.mxu0 0.0
  %3852 = vmatpush1.msra.mxu0 0.0
  %3853 = vmatprep.subr.mxu0 0.0
  %3854 = vmatpush1.msra.mxu0 0.0
  %3855 = vmatprep.subr.mxu0 0.0
  %3856 = vmatpush1.msra.mxu0 0.0
  %3857 = vmatprep.subr.mxu0 0.0
  %3858 = vmatpush1.msra.mxu0 0.0
  %3859 = vmatprep.subr.mxu0 0.0
  %3860 = vmatpush1.msra.mxu0 0.0
  %3861 = vmatprep.subr.mxu0 0.0
  %3862 = vmatpush1.msra.mxu0 0.0
  %3863 = vmatprep.subr.mxu0 0.0
  %3864 = vmatpush1.msra.mxu0 0.0
  %3865 = vmatprep.subr.mxu0 0.0
  %3866 = vmatpush1.msra.mxu0 0.0
  %3867 = vmatprep.subr.mxu0 0.0
  %3868 = vmatpush1.msra.mxu0 0.0
  %3869 = vmatprep.subr.mxu0 0.0
  %3870 = vmatpush1.msra.mxu0 0.0
  %3871 = vmatprep.subr.mxu0 0.0
  %3872 = vmatpush1.msra.mxu0 0.0
  %3873 = vmatprep.subr.mxu0 0.0
  %3874 = vmatpush1.msra.mxu0 0.0
  %3875 = vmatprep.subr.mxu0 0.0
  %3876 = vmatpush1.msra.mxu0 0.0
  %3877 = vmatprep.subr.mxu0 0.0
  %3878 = vmatpush1.msra.mxu0 0.0
  %3879 = vmatprep.subr.mxu0 0.0
  %3880 = vmatpush1.msra.mxu0 0.0
  %3881 = vmatprep.mubr.f32.mxu0 0.0
  %3882 = vmatmul.mubr.f32.gmra.mrb[0].mxu0 %v3815
  %v3883 = vpop.f32.mrb[0].mxu0
  %v3884 = vadd.f32 0.0, %v3883
  %v3885 = vpop.f32.mrb[0].mxu0
  %3886 = vdwg.mxu0
  %v3887 = vxor.u32 %v3884, 2147483648
  %v3888 = vmul.f32 %v3887, 1.442695
  %v3889 = vpow.pop %v3888
  %v3890 = vadd.f32 %v3889, 1.0
  %v3891 = vrcp.pop %v3890
  %v3892 = vmul.f32 1.0, %v3891
  %3893 = vrot.lane.b32.xlu0 %v3619, 32
  %v3894 = vpop.permute.xlu0 %3893
  %v3896 = vsub.f32 %v3884, %v3894
  %3898 = vrot.lane.b32.xlu0 %v3896, 96
  %v3899 = vpop.permute.xlu0 %3898
  %v3901 = vmul.f32 %v3892, %v3899
  %v3902 = vadd.f32 %v3619, %v3901
  %v3903 = vadd.f32 %v3809, %v3902
  %v3904 = vmul.f32 %v3903, 0.125
  %s3905 = scalar_lea.vmem %s10, 32
  %3906 = vst.msk [vmem:[%s3905] sm:$0xff] %vm52, %v3904
  %s3907 = scalar_lea.vmem %s0, 40
  %v3908 = vld [vmem:[%s3907] sm:$0xff]
  %v3909 = vld [vmem:[%s2] sm:$0xff]
  %v3910 = vld [vmem:[%s2 + $0x8] sm:$0xff]
  %v3911 = vld [vmem:[%s2 + $0x10] sm:$0xff]
  %v3912 = vld [vmem:[%s2 + $0x18] sm:$0xff]
  %v3913 = vld [vmem:[%s3] sm:$0xff]
  %v3914 = vld [vmem:[%s3 + $0x8] sm:$0xff]
  %v3915 = vld [vmem:[%s3 + $0x10] sm:$0xff]
  %v3916 = vld [vmem:[%s3 + $0x18] sm:$0xff]
  %v3918 = vsel %vm52, %v3904, 0
  %3920 = vmatprep.subr.mxu0 0.0
  %3921 = vmatpush1.msra.mxu0 %v3913
  %3922 = vmatprep.subr.mxu0 0.0
  %3923 = vmatpush1.msra.mxu0 %v3914
  %3924 = vmatprep.subr.mxu0 0.0
  %3925 = vmatpush1.msra.mxu0 %v3915
  %3926 = vmatprep.subr.mxu0 0.0
  %3927 = vmatpush1.msra.mxu0 %v3916
  %3928 = vmatprep.subr.mxu0 0.0
  %3929 = vmatpush1.msra.mxu0 0.0
  %3930 = vmatprep.subr.mxu0 0.0
  %3931 = vmatpush1.msra.mxu0 0.0
  %3932 = vmatprep.subr.mxu0 0.0
  %3933 = vmatpush1.msra.mxu0 0.0
  %3934 = vmatprep.subr.mxu0 0.0
  %3935 = vmatpush1.msra.mxu0 0.0
  %3936 = vmatprep.subr.mxu0 0.0
  %3937 = vmatpush1.msra.mxu0 0.0
  %3938 = vmatprep.subr.mxu0 0.0
  %3939 = vmatpush1.msra.mxu0 0.0
  %3940 = vmatprep.subr.mxu0 0.0
  %3941 = vmatpush1.msra.mxu0 0.0
  %3942 = vmatprep.subr.mxu0 0.0
  %3943 = vmatpush1.msra.mxu0 0.0
  %3944 = vmatprep.subr.mxu0 0.0
  %3945 = vmatpush1.msra.mxu0 0.0
  %3946 = vmatprep.subr.mxu0 0.0
  %3947 = vmatpush1.msra.mxu0 0.0
  %3948 = vmatprep.subr.mxu0 0.0
  %3949 = vmatpush1.msra.mxu0 0.0
  %3950 = vmatprep.subr.mxu0 0.0
  %3951 = vmatpush1.msra.mxu0 0.0
  %3952 = vmatprep.subr.mxu0 0.0
  %3953 = vmatpush1.msra.mxu0 0.0
  %3954 = vmatprep.subr.mxu0 0.0
  %3955 = vmatpush1.msra.mxu0 0.0
  %3956 = vmatprep.subr.mxu0 0.0
  %3957 = vmatpush1.msra.mxu0 0.0
  %3958 = vmatprep.subr.mxu0 0.0
  %3959 = vmatpush1.msra.mxu0 0.0
  %3960 = vmatprep.subr.mxu0 0.0
  %3961 = vmatpush1.msra.mxu0 0.0
  %3962 = vmatprep.subr.mxu0 0.0
  %3963 = vmatpush1.msra.mxu0 0.0
  %3964 = vmatprep.subr.mxu0 0.0
  %3965 = vmatpush1.msra.mxu0 0.0
  %3966 = vmatprep.subr.mxu0 0.0
  %3967 = vmatpush1.msra.mxu0 0.0
  %3968 = vmatprep.subr.mxu0 0.0
  %3969 = vmatpush1.msra.mxu0 0.0
  %3970 = vmatprep.subr.mxu0 0.0
  %3971 = vmatpush1.msra.mxu0 0.0
  %3972 = vmatprep.subr.mxu0 0.0
  %3973 = vmatpush1.msra.mxu0 0.0
  %3974 = vmatprep.subr.mxu0 0.0
  %3975 = vmatpush1.msra.mxu0 0.0
  %3976 = vmatprep.subr.mxu0 0.0
  %3977 = vmatpush1.msra.mxu0 0.0
  %3978 = vmatprep.subr.mxu0 0.0
  %3979 = vmatpush1.msra.mxu0 0.0
  %3980 = vmatprep.subr.mxu0 0.0
  %3981 = vmatpush1.msra.mxu0 0.0
  %3982 = vmatprep.subr.mxu0 0.0
  %3983 = vmatpush1.msra.mxu0 0.0
  %3984 = vmatprep.mubr.f32.mxu0 0.0
  %3985 = vmatmul.mubr.f32.gmra.mrb[0].mxu0 %v3918
  %v3986 = vpop.f32.mrb[0].mxu0
  %v3987 = vadd.f32 0.0, %v3986
  %v3988 = vpop.f32.mrb[0].mxu0
  %3989 = vdwg.mxu0
  %v3991 = vsel %vm52, %v3908, 0
  %3993 = vmatprep.subr.mxu0 0.0
  %3994 = vmatpush1.msra.mxu0 %v3909
  %3995 = vmatprep.subr.mxu0 0.0
  %3996 = vmatpush1.msra.mxu0 %v3910
  %3997 = vmatprep.subr.mxu0 0.0
  %3998 = vmatpush1.msra.mxu0 %v3911
  %3999 = vmatprep.subr.mxu0 0.0
  %4000 = vmatpush1.msra.mxu0 %v3912
  %4001 = vmatprep.subr.mxu0 0.0
  %4002 = vmatpush1.msra.mxu0 0.0
  %4003 = vmatprep.subr.mxu0 0.0
  %4004 = vmatpush1.msra.mxu0 0.0
  %4005 = vmatprep.subr.mxu0 0.0
  %4006 = vmatpush1.msra.mxu0 0.0
  %4007 = vmatprep.subr.mxu0 0.0
  %4008 = vmatpush1.msra.mxu0 0.0
  %4009 = vmatprep.subr.mxu0 0.0
  %4010 = vmatpush1.msra.mxu0 0.0
  %4011 = vmatprep.subr.mxu0 0.0
  %4012 = vmatpush1.msra.mxu0 0.0
  %4013 = vmatprep.subr.mxu0 0.0
  %4014 = vmatpush1.msra.mxu0 0.0
  %4015 = vmatprep.subr.mxu0 0.0
  %4016 = vmatpush1.msra.mxu0 0.0
  %4017 = vmatprep.subr.mxu0 0.0
  %4018 = vmatpush1.msra.mxu0 0.0
  %4019 = vmatprep.subr.mxu0 0.0
  %4020 = vmatpush1.msra.mxu0 0.0
  %4021 = vmatprep.subr.mxu0 0.0
  %4022 = vmatpush1.msra.mxu0 0.0
  %4023 = vmatprep.subr.mxu0 0.0
  %4024 = vmatpush1.msra.mxu0 0.0
  %4025 = vmatprep.subr.mxu0 0.0
  %4026 = vmatpush1.msra.mxu0 0.0
  %4027 = vmatprep.subr.mxu0 0.0
  %4028 = vmatpush1.msra.mxu0 0.0
  %4029 = vmatprep.subr.mxu0 0.0
  %4030 = vmatpush1.msra.mxu0 0.0
  %4031 = vmatprep.subr.mxu0 0.0
  %4032 = vmatpush1.msra.mxu0 0.0
  %4033 = vmatprep.subr.mxu0 0.0
  %4034 = vmatpush1.msra.mxu0 0.0
  %4035 = vmatprep.subr.mxu0 0.0
  %4036 = vmatpush1.msra.mxu0 0.0
  %4037 = vmatprep.subr.mxu0 0.0
  %4038 = vmatpush1.msra.mxu0 0.0
  %4039 = vmatprep.subr.mxu0 0.0
  %4040 = vmatpush1.msra.mxu0 0.0
  %4041 = vmatprep.subr.mxu0 0.0
  %4042 = vmatpush1.msra.mxu0 0.0
  %4043 = vmatprep.subr.mxu0 0.0
  %4044 = vmatpush1.msra.mxu0 0.0
  %4045 = vmatprep.subr.mxu0 0.0
  %4046 = vmatpush1.msra.mxu0 0.0
  %4047 = vmatprep.subr.mxu0 0.0
  %4048 = vmatpush1.msra.mxu0 0.0
  %4049 = vmatprep.subr.mxu0 0.0
  %4050 = vmatpush1.msra.mxu0 0.0
  %4051 = vmatprep.subr.mxu0 0.0
  %4052 = vmatpush1.msra.mxu0 0.0
  %4053 = vmatprep.subr.mxu0 0.0
  %4054 = vmatpush1.msra.mxu0 0.0
  %4055 = vmatprep.subr.mxu0 0.0
  %4056 = vmatpush1.msra.mxu0 0.0
  %4057 = vmatprep.mubr.f32.mxu0 0.0
  %4058 = vmatmul.mubr.f32.gmra.mrb[0].mxu0 %v3991
  %v4059 = vpop.f32.mrb[0].mxu0
  %v4060 = vadd.f32 %v3987, %v4059
  %v4061 = vpop.f32.mrb[0].mxu0
  %4062 = vdwg.mxu0
  %v4063 = vxor.u32 %v4060, 2147483648
  %v4064 = vmul.f32 %v4063, 1.442695
  %v4065 = vpow.pop %v4064
  %v4066 = vadd.f32 %v4065, 1.0
  %v4067 = vrcp.pop %v4066
  %v4068 = vmul.f32 1.0, %v4067
  %v4069 = vtanh.pop %v4060
  %4070 = vrot.lane.b32.xlu0 %v3904, 32
  %v4071 = vpop.permute.xlu0 %4070
  %v4073 = vsub.f32 %v4069, %v4071
  %4075 = vrot.lane.b32.xlu0 %v4073, 96
  %v4076 = vpop.permute.xlu0 %4075
  %v4078 = vmul.f32 %v4068, %v4076
  %v4079 = vadd.f32 %v3904, %v4078
  %v4080 = vld [vmem:[%s4] sm:$0xff]
  %v4081 = vld [vmem:[%s4 + $0x8] sm:$0xff]
  %v4082 = vld [vmem:[%s4 + $0x10] sm:$0xff]
  %v4083 = vld [vmem:[%s4 + $0x18] sm:$0xff]
  %v4085 = vsel %vm52, %v4079, 0
  %4087 = vmatprep.subr.mxu0 0.0
  %4088 = vmatpush1.msra.mxu0 %v4080
  %4089 = vmatprep.subr.mxu0 0.0
  %4090 = vmatpush1.msra.mxu0 %v4081
  %4091 = vmatprep.subr.mxu0 0.0
  %4092 = vmatpush1.msra.mxu0 %v4082
  %4093 = vmatprep.subr.mxu0 0.0
  %4094 = vmatpush1.msra.mxu0 %v4083
  %4095 = vmatprep.subr.mxu0 0.0
  %4096 = vmatpush1.msra.mxu0 0.0
  %4097 = vmatprep.subr.mxu0 0.0
  %4098 = vmatpush1.msra.mxu0 0.0
  %4099 = vmatprep.subr.mxu0 0.0
  %4100 = vmatpush1.msra.mxu0 0.0
  %4101 = vmatprep.subr.mxu0 0.0
  %4102 = vmatpush1.msra.mxu0 0.0
  %4103 = vmatprep.subr.mxu0 0.0
  %4104 = vmatpush1.msra.mxu0 0.0
  %4105 = vmatprep.subr.mxu0 0.0
  %4106 = vmatpush1.msra.mxu0 0.0
  %4107 = vmatprep.subr.mxu0 0.0
  %4108 = vmatpush1.msra.mxu0 0.0
  %4109 = vmatprep.subr.mxu0 0.0
  %4110 = vmatpush1.msra.mxu0 0.0
  %4111 = vmatprep.subr.mxu0 0.0
  %4112 = vmatpush1.msra.mxu0 0.0
  %4113 = vmatprep.subr.mxu0 0.0
  %4114 = vmatpush1.msra.mxu0 0.0
  %4115 = vmatprep.subr.mxu0 0.0
  %4116 = vmatpush1.msra.mxu0 0.0
  %4117 = vmatprep.subr.mxu0 0.0
  %4118 = vmatpush1.msra.mxu0 0.0
  %4119 = vmatprep.subr.mxu0 0.0
  %4120 = vmatpush1.msra.mxu0 0.0
  %4121 = vmatprep.subr.mxu0 0.0
  %4122 = vmatpush1.msra.mxu0 0.0
  %4123 = vmatprep.subr.mxu0 0.0
  %4124 = vmatpush1.msra.mxu0 0.0
  %4125 = vmatprep.subr.mxu0 0.0
  %4126 = vmatpush1.msra.mxu0 0.0
  %4127 = vmatprep.subr.mxu0 0.0
  %4128 = vmatpush1.msra.mxu0 0.0
  %4129 = vmatprep.subr.mxu0 0.0
  %4130 = vmatpush1.msra.mxu0 0.0
  %4131 = vmatprep.subr.mxu0 0.0
  %4132 = vmatpush1.msra.mxu0 0.0
  %4133 = vmatprep.subr.mxu0 0.0
  %4134 = vmatpush1.msra.mxu0 0.0
  %4135 = vmatprep.subr.mxu0 0.0
  %4136 = vmatpush1.msra.mxu0 0.0
  %4137 = vmatprep.subr.mxu0 0.0
  %4138 = vmatpush1.msra.mxu0 0.0
  %4139 = vmatprep.subr.mxu0 0.0
  %4140 = vmatpush1.msra.mxu0 0.0
  %4141 = vmatprep.subr.mxu0 0.0
  %4142 = vmatpush1.msra.mxu0 0.0
  %4143 = vmatprep.subr.mxu0 0.0
  %4144 = vmatpush1.msra.mxu0 0.0
  %4145 = vmatprep.subr.mxu0 0.0
  %4146 = vmatpush1.msra.mxu0 0.0
  %4147 = vmatprep.subr.mxu0 0.0
  %4148 = vmatpush1.msra.mxu0 0.0
  %4149 = vmatprep.subr.mxu0 0.0
  %4150 = vmatpush1.msra.mxu0 0.0
  %4151 = vmatprep.mubr.f32.mxu0 0.0
  %4152 = vmatmul.mubr.f32.gmra.mrb[0].mxu0 %v4085
  %v4153 = vpop.f32.mrb[0].mxu0
  %v4154 = vadd.f32 0.0, %v4153
  %v4155 = vpop.f32.mrb[0].mxu0
  %4156 = vdwg.mxu0
  %v4157 = vxor.u32 %v4154, 2147483648
  %v4158 = vmul.f32 %v4157, 1.442695
  %v4159 = vpow.pop %v4158
  %v4160 = vadd.f32 %v4159, 1.0
  %v4161 = vrcp.pop %v4160
  %v4162 = vmul.f32 1.0, %v4161
  %v4163 = vtanh.pop %v4154
  %4164 = vrot.lane.b32.xlu0 %v4079, 32
  %v4165 = vpop.permute.xlu0 %4164
  %v4167 = vsub.f32 %v4163, %v4165
  %4169 = vrot.lane.b32.xlu0 %v4167, 96
  %v4170 = vpop.permute.xlu0 %4169
  %v4172 = vmul.f32 %v4162, %v4170
  %v4173 = vadd.f32 %v4079, %v4172
  %v4174 = vmax.f32 %v4154, 0.0
  %4175 = vrot.lane.b32.xlu0 %v4079, 96
  %v4176 = vpop.permute.xlu0 %4175
  %v4178 = vsub.f32 %v4174, %v4176
  %4180 = vrot.lane.b32.xlu0 %v4178, 96
  %v4181 = vpop.permute.xlu0 %4180
  %v4183 = vmul.f32 %v4162, %v4181
  %4185 = vrot.lane.b32.xlu0 %v4183, 64
  %v4186 = vpop.permute.xlu0 %4185
  %v4188 = vadd.f32 %v4079, %v4186
  %v4189 = vadd.f32 %v4173, %v4188
  %v4190 = vld [vmem:[%s5] sm:$0xff]
  %v4191 = vld [vmem:[%s5 + $0x8] sm:$0xff]
  %v4192 = vld [vmem:[%s5 + $0x10] sm:$0xff]
  %v4193 = vld [vmem:[%s5 + $0x18] sm:$0xff]
  %v4195 = vsel %vm52, %v4173, 0
  %4197 = vmatprep.subr.mxu0 0.0
  %4198 = vmatpush1.msra.mxu0 %v4190
  %4199 = vmatprep.subr.mxu0 0.0
  %4200 = vmatpush1.msra.mxu0 %v4191
  %4201 = vmatprep.subr.mxu0 0.0
  %4202 = vmatpush1.msra.mxu0 %v4192
  %4203 = vmatprep.subr.mxu0 0.0
  %4204 = vmatpush1.msra.mxu0 %v4193
  %4205 = vmatprep.subr.mxu0 0.0
  %4206 = vmatpush1.msra.mxu0 0.0
  %4207 = vmatprep.subr.mxu0 0.0
  %4208 = vmatpush1.msra.mxu0 0.0
  %4209 = vmatprep.subr.mxu0 0.0
  %4210 = vmatpush1.msra.mxu0 0.0
  %4211 = vmatprep.subr.mxu0 0.0
  %4212 = vmatpush1.msra.mxu0 0.0
  %4213 = vmatprep.subr.mxu0 0.0
  %4214 = vmatpush1.msra.mxu0 0.0
  %4215 = vmatprep.subr.mxu0 0.0
  %4216 = vmatpush1.msra.mxu0 0.0
  %4217 = vmatprep.subr.mxu0 0.0
  %4218 = vmatpush1.msra.mxu0 0.0
  %4219 = vmatprep.subr.mxu0 0.0
  %4220 = vmatpush1.msra.mxu0 0.0
  %4221 = vmatprep.subr.mxu0 0.0
  %4222 = vmatpush1.msra.mxu0 0.0
  %4223 = vmatprep.subr.mxu0 0.0
  %4224 = vmatpush1.msra.mxu0 0.0
  %4225 = vmatprep.subr.mxu0 0.0
  %4226 = vmatpush1.msra.mxu0 0.0
  %4227 = vmatprep.subr.mxu0 0.0
  %4228 = vmatpush1.msra.mxu0 0.0
  %4229 = vmatprep.subr.mxu0 0.0
  %4230 = vmatpush1.msra.mxu0 0.0
  %4231 = vmatprep.subr.mxu0 0.0
  %4232 = vmatpush1.msra.mxu0 0.0
  %4233 = vmatprep.subr.mxu0 0.0
  %4234 = vmatpush1.msra.mxu0 0.0
  %4235 = vmatprep.subr.mxu0 0.0
  %4236 = vmatpush1.msra.mxu0 0.0
  %4237 = vmatprep.subr.mxu0 0.0
  %4238 = vmatpush1.msra.mxu0 0.0
  %4239 = vmatprep.subr.mxu0 0.0
  %4240 = vmatpush1.msra.mxu0 0.0
  %4241 = vmatprep.subr.mxu0 0.0
  %4242 = vmatpush1.msra.mxu0 0.0
  %4243 = vmatprep.subr.mxu0 0.0
  %4244 = vmatpush1.msra.mxu0 0.0
  %4245 = vmatprep.subr.mxu0 0.0
  %4246 = vmatpush1.msra.mxu0 0.0
  %4247 = vmatprep.subr.mxu0 0.0
  %4248 = vmatpush1.msra.mxu0 0.0
  %4249 = vmatprep.subr.mxu0 0.0
  %4250 = vmatpush1.msra.mxu0 0.0
  %4251 = vmatprep.subr.mxu0 0.0
  %4252 = vmatpush1.msra.mxu0 0.0
  %4253 = vmatprep.subr.mxu0 0.0
  %4254 = vmatpush1.msra.mxu0 0.0
  %4255 = vmatprep.subr.mxu0 0.0
  %4256 = vmatpush1.msra.mxu0 0.0
  %4257 = vmatprep.subr.mxu0 0.0
  %4258 = vmatpush1.msra.mxu0 0.0
  %4259 = vmatprep.subr.mxu0 0.0
  %4260 = vmatpush1.msra.mxu0 0.0
  %4261 = vmatprep.mubr.f32.mxu0 0.0
  %4262 = vmatmul.mubr.f32.gmra.mrb[0].mxu0 %v4195
  %v4263 = vpop.f32.mrb[0].mxu0
  %v4264 = vadd.f32 0.0, %v4263
  %v4265 = vpop.f32.mrb[0].mxu0
  %4266 = vdwg.mxu0
  %v4267 = vxor.u32 %v4264, 2147483648
  %v4268 = vmul.f32 %v4267, 1.442695
  %v4269 = vpow.pop %v4268
  %v4270 = vadd.f32 %v4269, 1.0
  %v4271 = vrcp.pop %v4270
  %v4272 = vmul.f32 1.0, %v4271
  %4273 = vrot.lane.b32.xlu0 %v4173, 32
  %v4274 = vpop.permute.xlu0 %4273
  %v4276 = vsub.f32 %v4272, %v4274
  %4278 = vrot.lane.b32.xlu0 %v4276, 96
  %v4279 = vpop.permute.xlu0 %4278
  %v4281 = vmul.f32 %v4272, %v4279
  %v4282 = vadd.f32 %v4173, %v4281
  %v4283 = vadd.f32 %v4189, %v4282
  %4284 = vrot.lane.b32.xlu0 %v4173, 96
  %v4285 = vpop.permute.xlu0 %4284
  %v4287 = vsub.f32 %v4264, %v4285
  %4289 = vrot.lane.b32.xlu0 %v4287, 96
  %v4290 = vpop.permute.xlu0 %4289
  %v4292 = vmul.f32 %v4272, %v4290
  %4294 = vrot.lane.b32.xlu0 %v4292, 64
  %v4295 = vpop.permute.xlu0 %4294
  %v4297 = vadd.f32 %v4173, %v4295
  %v4298 = vadd.f32 %v4283, %v4297
  %v4299 = vld [vmem:[%s6] sm:$0xff]
  %v4300 = vld [vmem:[%s6 + $0x8] sm:$0xff]
  %v4301 = vld [vmem:[%s6 + $0x10] sm:$0xff]
  %v4302 = vld [vmem:[%s6 + $0x18] sm:$0xff]
  %v4304 = vsel %vm52, %v4188, 0
  %4306 = vmatprep.subr.mxu0 0.0
  %4307 = vmatpush1.msra.mxu0 %v4299
  %4308 = vmatprep.subr.mxu0 0.0
  %4309 = vmatpush1.msra.mxu0 %v4300
  %4310 = vmatprep.subr.mxu0 0.0
  %4311 = vmatpush1.msra.mxu0 %v4301
  %4312 = vmatprep.subr.mxu0 0.0
  %4313 = vmatpush1.msra.mxu0 %v4302
  %4314 = vmatprep.subr.mxu0 0.0
  %4315 = vmatpush1.msra.mxu0 0.0
  %4316 = vmatprep.subr.mxu0 0.0
  %4317 = vmatpush1.msra.mxu0 0.0
  %4318 = vmatprep.subr.mxu0 0.0
  %4319 = vmatpush1.msra.mxu0 0.0
  %4320 = vmatprep.subr.mxu0 0.0
  %4321 = vmatpush1.msra.mxu0 0.0
  %4322 = vmatprep.subr.mxu0 0.0
  %4323 = vmatpush1.msra.mxu0 0.0
  %4324 = vmatprep.subr.mxu0 0.0
  %4325 = vmatpush1.msra.mxu0 0.0
  %4326 = vmatprep.subr.mxu0 0.0
  %4327 = vmatpush1.msra.mxu0 0.0
  %4328 = vmatprep.subr.mxu0 0.0
  %4329 = vmatpush1.msra.mxu0 0.0
  %4330 = vmatprep.subr.mxu0 0.0
  %4331 = vmatpush1.msra.mxu0 0.0
  %4332 = vmatprep.subr.mxu0 0.0
  %4333 = vmatpush1.msra.mxu0 0.0
  %4334 = vmatprep.subr.mxu0 0.0
  %4335 = vmatpush1.msra.mxu0 0.0
  %4336 = vmatprep.subr.mxu0 0.0
  %4337 = vmatpush1.msra.mxu0 0.0
  %4338 = vmatprep.subr.mxu0 0.0
  %4339 = vmatpush1.msra.mxu0 0.0
  %4340 = vmatprep.subr.mxu0 0.0
  %4341 = vmatpush1.msra.mxu0 0.0
  %4342 = vmatprep.subr.mxu0 0.0
  %4343 = vmatpush1.msra.mxu0 0.0
  %4344 = vmatprep.subr.mxu0 0.0
  %4345 = vmatpush1.msra.mxu0 0.0
  %4346 = vmatprep.subr.mxu0 0.0
  %4347 = vmatpush1.msra.mxu0 0.0
  %4348 = vmatprep.subr.mxu0 0.0
  %4349 = vmatpush1.msra.mxu0 0.0
  %4350 = vmatprep.subr.mxu0 0.0
  %4351 = vmatpush1.msra.mxu0 0.0
  %4352 = vmatprep.subr.mxu0 0.0
  %4353 = vmatpush1.msra.mxu0 0.0
  %4354 = vmatprep.subr.mxu0 0.0
  %4355 = vmatpush1.msra.mxu0 0.0
  %4356 = vmatprep.subr.mxu0 0.0
  %4357 = vmatpush1.msra.mxu0 0.0
  %4358 = vmatprep.subr.mxu0 0.0
  %4359 = vmatpush1.msra.mxu0 0.0
  %4360 = vmatprep.subr.mxu0 0.0
  %4361 = vmatpush1.msra.mxu0 0.0
  %4362 = vmatprep.subr.mxu0 0.0
  %4363 = vmatpush1.msra.mxu0 0.0
  %4364 = vmatprep.subr.mxu0 0.0
  %4365 = vmatpush1.msra.mxu0 0.0
  %4366 = vmatprep.subr.mxu0 0.0
  %4367 = vmatpush1.msra.mxu0 0.0
  %4368 = vmatprep.subr.mxu0 0.0
  %4369 = vmatpush1.msra.mxu0 0.0
  %4370 = vmatprep.mubr.f32.mxu0 0.0
  %4371 = vmatmul.mubr.f32.gmra.mrb[0].mxu0 %v4304
  %v4372 = vpop.f32.mrb[0].mxu0
  %v4373 = vadd.f32 0.0, %v4372
  %v4374 = vpop.f32.mrb[0].mxu0
  %4375 = vdwg.mxu0
  %v4376 = vxor.u32 %v4373, 2147483648
  %v4377 = vmul.f32 %v4376, 1.442695
  %v4378 = vpow.pop %v4377
  %v4379 = vadd.f32 %v4378, 1.0
  %v4380 = vrcp.pop %v4379
  %v4381 = vmul.f32 1.0, %v4380
  %v4382 = vtanh.pop %v4373
  %4383 = vrot.lane.b32.xlu0 %v4188, 32
  %v4384 = vpop.permute.xlu0 %4383
  %v4386 = vsub.f32 %v4382, %v4384
  %4388 = vrot.lane.b32.xlu0 %v4386, 96
  %v4389 = vpop.permute.xlu0 %4388
  %v4391 = vmul.f32 %v4381, %v4389
  %v4392 = vadd.f32 %v4188, %v4391
  %v4393 = vadd.f32 %v4298, %v4392
  %v4394 = vld [vmem:[%s7] sm:$0xff]
  %v4395 = vld [vmem:[%s7 + $0x8] sm:$0xff]
  %v4396 = vld [vmem:[%s7 + $0x10] sm:$0xff]
  %v4397 = vld [vmem:[%s7 + $0x18] sm:$0xff]
  %v4399 = vsel %vm52, %v4282, 0
  %4401 = vmatprep.subr.mxu0 0.0
  %4402 = vmatpush1.msra.mxu0 %v4394
  %4403 = vmatprep.subr.mxu0 0.0
  %4404 = vmatpush1.msra.mxu0 %v4395
  %4405 = vmatprep.subr.mxu0 0.0
  %4406 = vmatpush1.msra.mxu0 %v4396
  %4407 = vmatprep.subr.mxu0 0.0
  %4408 = vmatpush1.msra.mxu0 %v4397
  %4409 = vmatprep.subr.mxu0 0.0
  %4410 = vmatpush1.msra.mxu0 0.0
  %4411 = vmatprep.subr.mxu0 0.0
  %4412 = vmatpush1.msra.mxu0 0.0
  %4413 = vmatprep.subr.mxu0 0.0
  %4414 = vmatpush1.msra.mxu0 0.0
  %4415 = vmatprep.subr.mxu0 0.0
  %4416 = vmatpush1.msra.mxu0 0.0
  %4417 = vmatprep.subr.mxu0 0.0
  %4418 = vmatpush1.msra.mxu0 0.0
  %4419 = vmatprep.subr.mxu0 0.0
  %4420 = vmatpush1.msra.mxu0 0.0
  %4421 = vmatprep.subr.mxu0 0.0
  %4422 = vmatpush1.msra.mxu0 0.0
  %4423 = vmatprep.subr.mxu0 0.0
  %4424 = vmatpush1.msra.mxu0 0.0
  %4425 = vmatprep.subr.mxu0 0.0
  %4426 = vmatpush1.msra.mxu0 0.0
  %4427 = vmatprep.subr.mxu0 0.0
  %4428 = vmatpush1.msra.mxu0 0.0
  %4429 = vmatprep.subr.mxu0 0.0
  %4430 = vmatpush1.msra.mxu0 0.0
  %4431 = vmatprep.subr.mxu0 0.0
  %4432 = vmatpush1.msra.mxu0 0.0
  %4433 = vmatprep.subr.mxu0 0.0
  %4434 = vmatpush1.msra.mxu0 0.0
  %4435 = vmatprep.subr.mxu0 0.0
  %4436 = vmatpush1.msra.mxu0 0.0
  %4437 = vmatprep.subr.mxu0 0.0
  %4438 = vmatpush1.msra.mxu0 0.0
  %4439 = vmatprep.subr.mxu0 0.0
  %4440 = vmatpush1.msra.mxu0 0.0
  %4441 = vmatprep.subr.mxu0 0.0
  %4442 = vmatpush1.msra.mxu0 0.0
  %4443 = vmatprep.subr.mxu0 0.0
  %4444 = vmatpush1.msra.mxu0 0.0
  %4445 = vmatprep.subr.mxu0 0.0
  %4446 = vmatpush1.msra.mxu0 0.0
  %4447 = vmatprep.subr.mxu0 0.0
  %4448 = vmatpush1.msra.mxu0 0.0
  %4449 = vmatprep.subr.mxu0 0.0
  %4450 = vmatpush1.msra.mxu0 0.0
  %4451 = vmatprep.subr.mxu0 0.0
  %4452 = vmatpush1.msra.mxu0 0.0
  %4453 = vmatprep.subr.mxu0 0.0
  %4454 = vmatpush1.msra.mxu0 0.0
  %4455 = vmatprep.subr.mxu0 0.0
  %4456 = vmatpush1.msra.mxu0 0.0
  %4457 = vmatprep.subr.mxu0 0.0
  %4458 = vmatpush1.msra.mxu0 0.0
  %4459 = vmatprep.subr.mxu0 0.0
  %4460 = vmatpush1.msra.mxu0 0.0
  %4461 = vmatprep.subr.mxu0 0.0
  %4462 = vmatpush1.msra.mxu0 0.0
  %4463 = vmatprep.subr.mxu0 0.0
  %4464 = vmatpush1.msra.mxu0 0.0
  %4465 = vmatprep.mubr.f32.mxu0 0.0
  %4466 = vmatmul.mubr.f32.gmra.mrb[0].mxu0 %v4399
  %v4467 = vpop.f32.mrb[0].mxu0
  %v4468 = vadd.f32 0.0, %v4467
  %v4469 = vpop.f32.mrb[0].mxu0
  %4470 = vdwg.mxu0
  %v4471 = vxor.u32 %v4468, 2147483648
  %v4472 = vmul.f32 %v4471, 1.442695
  %v4473 = vpow.pop %v4472
  %v4474 = vadd.f32 %v4473, 1.0
  %v4475 = vrcp.pop %v4474
  %v4476 = vmul.f32 1.0, %v4475
  %v4477 = vmax.f32 %v4468, 0.0
  %4478 = vrot.lane.b32.xlu0 %v4282, 32
  %v4479 = vpop.permute.xlu0 %4478
  %v4481 = vsub.f32 %v4477, %v4479
  %4483 = vrot.lane.b32.xlu0 %v4481, 96
  %v4484 = vpop.permute.xlu0 %4483
  %v4486 = vmul.f32 %v4476, %v4484
  %v4487 = vadd.f32 %v4282, %v4486
  %v4488 = vadd.f32 %v4393, %v4487
  %v4489 = vld [vmem:[%s8] sm:$0xff]
  %v4490 = vld [vmem:[%s8 + $0x8] sm:$0xff]
  %v4491 = vld [vmem:[%s8 + $0x10] sm:$0xff]
  %v4492 = vld [vmem:[%s8 + $0x18] sm:$0xff]
  %v4494 = vsel %vm52, %v4297, 0
  %4496 = vmatprep.subr.mxu0 0.0
  %4497 = vmatpush1.msra.mxu0 %v4489
  %4498 = vmatprep.subr.mxu0 0.0
  %4499 = vmatpush1.msra.mxu0 %v4490
  %4500 = vmatprep.subr.mxu0 0.0
  %4501 = vmatpush1.msra.mxu0 %v4491
  %4502 = vmatprep.subr.mxu0 0.0
  %4503 = vmatpush1.msra.mxu0 %v4492
  %4504 = vmatprep.subr.mxu0 0.0
  %4505 = vmatpush1.msra.mxu0 0.0
  %4506 = vmatprep.subr.mxu0 0.0
  %4507 = vmatpush1.msra.mxu0 0.0
  %4508 = vmatprep.subr.mxu0 0.0
  %4509 = vmatpush1.msra.mxu0 0.0
  %4510 = vmatprep.subr.mxu0 0.0
  %4511 = vmatpush1.msra.mxu0 0.0
  %4512 = vmatprep.subr.mxu0 0.0
  %4513 = vmatpush1.msra.mxu0 0.0
  %4514 = vmatprep.subr.mxu0 0.0
  %4515 = vmatpush1.msra.mxu0 0.0
  %4516 = vmatprep.subr.mxu0 0.0
  %4517 = vmatpush1.msra.mxu0 0.0
  %4518 = vmatprep.subr.mxu0 0.0
  %4519 = vmatpush1.msra.mxu0 0.0
  %4520 = vmatprep.subr.mxu0 0.0
  %4521 = vmatpush1.msra.mxu0 0.0
  %4522 = vmatprep.subr.mxu0 0.0
  %4523 = vmatpush1.msra.mxu0 0.0
  %4524 = vmatprep.subr.mxu0 0.0
  %4525 = vmatpush1.msra.mxu0 0.0
  %4526 = vmatprep.subr.mxu0 0.0
  %4527 = vmatpush1.msra.mxu0 0.0
  %4528 = vmatprep.subr.mxu0 0.0
  %4529 = vmatpush1.msra.mxu0 0.0
  %4530 = vmatprep.subr.mxu0 0.0
  %4531 = vmatpush1.msra.mxu0 0.0
  %4532 = vmatprep.subr.mxu0 0.0
  %4533 = vmatpush1.msra.mxu0 0.0
  %4534 = vmatprep.subr.mxu0 0.0
  %4535 = vmatpush1.msra.mxu0 0.0
  %4536 = vmatprep.subr.mxu0 0.0
  %4537 = vmatpush1.msra.mxu0 0.0
  %4538 = vmatprep.subr.mxu0 0.0
  %4539 = vmatpush1.msra.mxu0 0.0
  %4540 = vmatprep.subr.mxu0 0.0
  %4541 = vmatpush1.msra.mxu0 0.0
  %4542 = vmatprep.subr.mxu0 0.0
  %4543 = vmatpush1.msra.mxu0 0.0
  %4544 = vmatprep.subr.mxu0 0.0
  %4545 = vmatpush1.msra.mxu0 0.0
  %4546 = vmatprep.subr.mxu0 0.0
  %4547 = vmatpush1.msra.mxu0 0.0
  %4548 = vmatprep.subr.mxu0 0.0
  %4549 = vmatpush1.msra.mxu0 0.0
  %4550 = vmatprep.subr.mxu0 0.0
  %4551 = vmatpush1.msra.mxu0 0.0
  %4552 = vmatprep.subr.mxu0 0.0
  %4553 = vmatpush1.msra.mxu0 0.0
  %4554 = vmatprep.subr.mxu0 0.0
  %4555 = vmatpush1.msra.mxu0 0.0
  %4556 = vmatprep.subr.mxu0 0.0
  %4557 = vmatpush1.msra.mxu0 0.0
  %4558 = vmatprep.subr.mxu0 0.0
  %4559 = vmatpush1.msra.mxu0 0.0
  %4560 = vmatprep.mubr.f32.mxu0 0.0
  %4561 = vmatmul.mubr.f32.gmra.mrb[0].mxu0 %v4494
  %v4562 = vpop.f32.mrb[0].mxu0
  %v4563 = vadd.f32 0.0, %v4562
  %v4564 = vpop.f32.mrb[0].mxu0
  %4565 = vdwg.mxu0
  %v4566 = vxor.u32 %v4563, 2147483648
  %v4567 = vmul.f32 %v4566, 1.442695
  %v4568 = vpow.pop %v4567
  %v4569 = vadd.f32 %v4568, 1.0
  %v4570 = vrcp.pop %v4569
  %v4571 = vmul.f32 1.0, %v4570
  %4572 = vrot.lane.b32.xlu0 %v4297, 32
  %v4573 = vpop.permute.xlu0 %4572
  %v4575 = vsub.f32 %v4571, %v4573
  %4577 = vrot.lane.b32.xlu0 %v4575, 96
  %v4578 = vpop.permute.xlu0 %4577
  %v4580 = vmul.f32 %v4571, %v4578
  %v4581 = vadd.f32 %v4297, %v4580
  %v4582 = vadd.f32 %v4488, %v4581
  %v4583 = vld [vmem:[%s9] sm:$0xff]
  %v4584 = vld [vmem:[%s9 + $0x8] sm:$0xff]
  %v4585 = vld [vmem:[%s9 + $0x10] sm:$0xff]
  %v4586 = vld [vmem:[%s9 + $0x18] sm:$0xff]
  %v4588 = vsel %vm52, %v4392, 0
  %4590 = vmatprep.subr.mxu0 0.0
  %4591 = vmatpush1.msra.mxu0 %v4583
  %4592 = vmatprep.subr.mxu0 0.0
  %4593 = vmatpush1.msra.mxu0 %v4584
  %4594 = vmatprep.subr.mxu0 0.0
  %4595 = vmatpush1.msra.mxu0 %v4585
  %4596 = vmatprep.subr.mxu0 0.0
  %4597 = vmatpush1.msra.mxu0 %v4586
  %4598 = vmatprep.subr.mxu0 0.0
  %4599 = vmatpush1.msra.mxu0 0.0
  %4600 = vmatprep.subr.mxu0 0.0
  %4601 = vmatpush1.msra.mxu0 0.0
  %4602 = vmatprep.subr.mxu0 0.0
  %4603 = vmatpush1.msra.mxu0 0.0
  %4604 = vmatprep.subr.mxu0 0.0
  %4605 = vmatpush1.msra.mxu0 0.0
  %4606 = vmatprep.subr.mxu0 0.0
  %4607 = vmatpush1.msra.mxu0 0.0
  %4608 = vmatprep.subr.mxu0 0.0
  %4609 = vmatpush1.msra.mxu0 0.0
  %4610 = vmatprep.subr.mxu0 0.0
  %4611 = vmatpush1.msra.mxu0 0.0
  %4612 = vmatprep.subr.mxu0 0.0
  %4613 = vmatpush1.msra.mxu0 0.0
  %4614 = vmatprep.subr.mxu0 0.0
  %4615 = vmatpush1.msra.mxu0 0.0
  %4616 = vmatprep.subr.mxu0 0.0
  %4617 = vmatpush1.msra.mxu0 0.0
  %4618 = vmatprep.subr.mxu0 0.0
  %4619 = vmatpush1.msra.mxu0 0.0
  %4620 = vmatprep.subr.mxu0 0.0
  %4621 = vmatpush1.msra.mxu0 0.0
  %4622 = vmatprep.subr.mxu0 0.0
  %4623 = vmatpush1.msra.mxu0 0.0
  %4624 = vmatprep.subr.mxu0 0.0
  %4625 = vmatpush1.msra.mxu0 0.0
  %4626 = vmatprep.subr.mxu0 0.0
  %4627 = vmatpush1.msra.mxu0 0.0
  %4628 = vmatprep.subr.mxu0 0.0
  %4629 = vmatpush1.msra.mxu0 0.0
  %4630 = vmatprep.subr.mxu0 0.0
  %4631 = vmatpush1.msra.mxu0 0.0
  %4632 = vmatprep.subr.mxu0 0.0
  %4633 = vmatpush1.msra.mxu0 0.0
  %4634 = vmatprep.subr.mxu0 0.0
  %4635 = vmatpush1.msra.mxu0 0.0
  %4636 = vmatprep.subr.mxu0 0.0
  %4637 = vmatpush1.msra.mxu0 0.0
  %4638 = vmatprep.subr.mxu0 0.0
  %4639 = vmatpush1.msra.mxu0 0.0
  %4640 = vmatprep.subr.mxu0 0.0
  %4641 = vmatpush1.msra.mxu0 0.0
  %4642 = vmatprep.subr.mxu0 0.0
  %4643 = vmatpush1.msra.mxu0 0.0
  %4644 = vmatprep.subr.mxu0 0.0
  %4645 = vmatpush1.msra.mxu0 0.0
  %4646 = vmatprep.subr.mxu0 0.0
  %4647 = vmatpush1.msra.mxu0 0.0
  %4648 = vmatprep.subr.mxu0 0.0
  %4649 = vmatpush1.msra.mxu0 0.0
  %4650 = vmatprep.subr.mxu0 0.0
  %4651 = vmatpush1.msra.mxu0 0.0
  %4652 = vmatprep.subr.mxu0 0.0
  %4653 = vmatpush1.msra.mxu0 0.0
  %4654 = vmatprep.mubr.f32.mxu0 0.0
  %4655 = vmatmul.mubr.f32.gmra.mrb[0].mxu0 %v4588
  %v4656 = vpop.f32.mrb[0].mxu0
  %v4657 = vadd.f32 0.0, %v4656
  %v4658 = vpop.f32.mrb[0].mxu0
  %4659 = vdwg.mxu0
  %v4660 = vxor.u32 %v4657, 2147483648
  %v4661 = vmul.f32 %v4660, 1.442695
  %v4662 = vpow.pop %v4661
  %v4663 = vadd.f32 %v4662, 1.0
  %v4664 = vrcp.pop %v4663
  %v4665 = vmul.f32 1.0, %v4664
  %4666 = vrot.lane.b32.xlu0 %v4392, 32
  %v4667 = vpop.permute.xlu0 %4666
  %v4669 = vsub.f32 %v4657, %v4667
  %4671 = vrot.lane.b32.xlu0 %v4669, 96
  %v4672 = vpop.permute.xlu0 %4671
  %v4674 = vmul.f32 %v4665, %v4672
  %v4675 = vadd.f32 %v4392, %v4674
  %v4676 = vadd.f32 %v4582, %v4675
  %v4677 = vmul.f32 %v4676, 0.125
  %s4678 = scalar_lea.vmem %s10, 40
  %4679 = vst.msk [vmem:[%s4678] sm:$0xff] %vm52, %v4677
  %s4680 = scalar_lea.vmem %s0, 48
  %v4681 = vld [vmem:[%s4680] sm:$0xff]
  %v4682 = vld [vmem:[%s2] sm:$0xff]
  %v4683 = vld [vmem:[%s2 + $0x8] sm:$0xff]
  %v4684 = vld [vmem:[%s2 + $0x10] sm:$0xff]
  %v4685 = vld [vmem:[%s2 + $0x18] sm:$0xff]
  %v4686 = vld [vmem:[%s3] sm:$0xff]
  %v4687 = vld [vmem:[%s3 + $0x8] sm:$0xff]
  %v4688 = vld [vmem:[%s3 + $0x10] sm:$0xff]
  %v4689 = vld [vmem:[%s3 + $0x18] sm:$0xff]
  %v4691 = vsel %vm52, %v4677, 0
  %4693 = vmatprep.subr.mxu0 0.0
  %4694 = vmatpush1.msra.mxu0 %v4686
  %4695 = vmatprep.subr.mxu0 0.0
  %4696 = vmatpush1.msra.mxu0 %v4687
  %4697 = vmatprep.subr.mxu0 0.0
  %4698 = vmatpush1.msra.mxu0 %v4688
  %4699 = vmatprep.subr.mxu0 0.0
  %4700 = vmatpush1.msra.mxu0 %v4689
  %4701 = vmatprep.subr.mxu0 0.0
  %4702 = vmatpush1.msra.mxu0 0.0
  %4703 = vmatprep.subr.mxu0 0.0
  %4704 = vmatpush1.msra.mxu0 0.0
  %4705 = vmatprep.subr.mxu0 0.0
  %4706 = vmatpush1.msra.mxu0 0.0
  %4707 = vmatprep.subr.mxu0 0.0
  %4708 = vmatpush1.msra.mxu0 0.0
  %4709 = vmatprep.subr.mxu0 0.0
  %4710 = vmatpush1.msra.mxu0 0.0
  %4711 = vmatprep.subr.mxu0 0.0
  %4712 = vmatpush1.msra.mxu0 0.0
  %4713 = vmatprep.subr.mxu0 0.0
  %4714 = vmatpush1.msra.mxu0 0.0
  %4715 = vmatprep.subr.mxu0 0.0
  %4716 = vmatpush1.msra.mxu0 0.0
  %4717 = vmatprep.subr.mxu0 0.0
  %4718 = vmatpush1.msra.mxu0 0.0
  %4719 = vmatprep.subr.mxu0 0.0
  %4720 = vmatpush1.msra.mxu0 0.0
  %4721 = vmatprep.subr.mxu0 0.0
  %4722 = vmatpush1.msra.mxu0 0.0
  %4723 = vmatprep.subr.mxu0 0.0
  %4724 = vmatpush1.msra.mxu0 0.0
  %4725 = vmatprep.subr.mxu0 0.0
  %4726 = vmatpush1.msra.mxu0 0.0
  %4727 = vmatprep.subr.mxu0 0.0
  %4728 = vmatpush1.msra.mxu0 0.0
  %4729 = vmatprep.subr.mxu0 0.0
  %4730 = vmatpush1.msra.mxu0 0.0
  %4731 = vmatprep.subr.mxu0 0.0
  %4732 = vmatpush1.msra.mxu0 0.0
  %4733 = vmatprep.subr.mxu0 0.0
  %4734 = vmatpush1.msra.mxu0 0.0
  %4735 = vmatprep.subr.mxu0 0.0
  %4736 = vmatpush1.msra.mxu0 0.0
  %4737 = vmatprep.subr.mxu0 0.0
  %4738 = vmatpush1.msra.mxu0 0.0
  %4739 = vmatprep.subr.mxu0 0.0
  %4740 = vmatpush1.msra.mxu0 0.0
  %4741 = vmatprep.subr.mxu0 0.0
  %4742 = vmatpush1.msra.mxu0 0.0
  %4743 = vmatprep.subr.mxu0 0.0
  %4744 = vmatpush1.msra.mxu0 0.0
  %4745 = vmatprep.subr.mxu0 0.0
  %4746 = vmatpush1.msra.mxu0 0.0
  %4747 = vmatprep.subr.mxu0 0.0
  %4748 = vmatpush1.msra.mxu0 0.0
  %4749 = vmatprep.subr.mxu0 0.0
  %4750 = vmatpush1.msra.mxu0 0.0
  %4751 = vmatprep.subr.mxu0 0.0
  %4752 = vmatpush1.msra.mxu0 0.0
  %4753 = vmatprep.subr.mxu0 0.0
  %4754 = vmatpush1.msra.mxu0 0.0
  %4755 = vmatprep.subr.mxu0 0.0
  %4756 = vmatpush1.msra.mxu0 0.0
  %4757 = vmatprep.mubr.f32.mxu0 0.0
  %4758 = vmatmul.mubr.f32.gmra.mrb[0].mxu0 %v4691
  %v4759 = vpop.f32.mrb[0].mxu0
  %v4760 = vadd.f32 0.0, %v4759
  %v4761 = vpop.f32.mrb[0].mxu0
  %4762 = vdwg.mxu0
  %v4764 = vsel %vm52, %v4681, 0
  %4766 = vmatprep.subr.mxu0 0.0
  %4767 = vmatpush1.msra.mxu0 %v4682
  %4768 = vmatprep.subr.mxu0 0.0
  %4769 = vmatpush1.msra.mxu0 %v4683
  %4770 = vmatprep.subr.mxu0 0.0
  %4771 = vmatpush1.msra.mxu0 %v4684
  %4772 = vmatprep.subr.mxu0 0.0
  %4773 = vmatpush1.msra.mxu0 %v4685
  %4774 = vmatprep.subr.mxu0 0.0
  %4775 = vmatpush1.msra.mxu0 0.0
  %4776 = vmatprep.subr.mxu0 0.0
  %4777 = vmatpush1.msra.mxu0 0.0
  %4778 = vmatprep.subr.mxu0 0.0
  %4779 = vmatpush1.msra.mxu0 0.0
  %4780 = vmatprep.subr.mxu0 0.0
  %4781 = vmatpush1.msra.mxu0 0.0
  %4782 = vmatprep.subr.mxu0 0.0
  %4783 = vmatpush1.msra.mxu0 0.0
  %4784 = vmatprep.subr.mxu0 0.0
  %4785 = vmatpush1.msra.mxu0 0.0
  %4786 = vmatprep.subr.mxu0 0.0
  %4787 = vmatpush1.msra.mxu0 0.0
  %4788 = vmatprep.subr.mxu0 0.0
  %4789 = vmatpush1.msra.mxu0 0.0
  %4790 = vmatprep.subr.mxu0 0.0
  %4791 = vmatpush1.msra.mxu0 0.0
  %4792 = vmatprep.subr.mxu0 0.0
  %4793 = vmatpush1.msra.mxu0 0.0
  %4794 = vmatprep.subr.mxu0 0.0
  %4795 = vmatpush1.msra.mxu0 0.0
  %4796 = vmatprep.subr.mxu0 0.0
  %4797 = vmatpush1.msra.mxu0 0.0
  %4798 = vmatprep.subr.mxu0 0.0
  %4799 = vmatpush1.msra.mxu0 0.0
  %4800 = vmatprep.subr.mxu0 0.0
  %4801 = vmatpush1.msra.mxu0 0.0
  %4802 = vmatprep.subr.mxu0 0.0
  %4803 = vmatpush1.msra.mxu0 0.0
  %4804 = vmatprep.subr.mxu0 0.0
  %4805 = vmatpush1.msra.mxu0 0.0
  %4806 = vmatprep.subr.mxu0 0.0
  %4807 = vmatpush1.msra.mxu0 0.0
  %4808 = vmatprep.subr.mxu0 0.0
  %4809 = vmatpush1.msra.mxu0 0.0
  %4810 = vmatprep.subr.mxu0 0.0
  %4811 = vmatpush1.msra.mxu0 0.0
  %4812 = vmatprep.subr.mxu0 0.0
  %4813 = vmatpush1.msra.mxu0 0.0
  %4814 = vmatprep.subr.mxu0 0.0
  %4815 = vmatpush1.msra.mxu0 0.0
  %4816 = vmatprep.subr.mxu0 0.0
  %4817 = vmatpush1.msra.mxu0 0.0
  %4818 = vmatprep.subr.mxu0 0.0
  %4819 = vmatpush1.msra.mxu0 0.0
  %4820 = vmatprep.subr.mxu0 0.0
  %4821 = vmatpush1.msra.mxu0 0.0
  %4822 = vmatprep.subr.mxu0 0.0
  %4823 = vmatpush1.msra.mxu0 0.0
  %4824 = vmatprep.subr.mxu0 0.0
  %4825 = vmatpush1.msra.mxu0 0.0
  %4826 = vmatprep.subr.mxu0 0.0
  %4827 = vmatpush1.msra.mxu0 0.0
  %4828 = vmatprep.subr.mxu0 0.0
  %4829 = vmatpush1.msra.mxu0 0.0
  %4830 = vmatprep.mubr.f32.mxu0 0.0
  %4831 = vmatmul.mubr.f32.gmra.mrb[0].mxu0 %v4764
  %v4832 = vpop.f32.mrb[0].mxu0
  %v4833 = vadd.f32 %v4760, %v4832
  %v4834 = vpop.f32.mrb[0].mxu0
  %4835 = vdwg.mxu0
  %v4836 = vxor.u32 %v4833, 2147483648
  %v4837 = vmul.f32 %v4836, 1.442695
  %v4838 = vpow.pop %v4837
  %v4839 = vadd.f32 %v4838, 1.0
  %v4840 = vrcp.pop %v4839
  %v4841 = vmul.f32 1.0, %v4840
  %v4842 = vtanh.pop %v4833
  %4843 = vrot.lane.b32.xlu0 %v4677, 32
  %v4844 = vpop.permute.xlu0 %4843
  %v4846 = vsub.f32 %v4842, %v4844
  %4848 = vrot.lane.b32.xlu0 %v4846, 96
  %v4849 = vpop.permute.xlu0 %4848
  %v4851 = vmul.f32 %v4841, %v4849
  %v4852 = vadd.f32 %v4677, %v4851
  %v4853 = vld [vmem:[%s4] sm:$0xff]
  %v4854 = vld [vmem:[%s4 + $0x8] sm:$0xff]
  %v4855 = vld [vmem:[%s4 + $0x10] sm:$0xff]
  %v4856 = vld [vmem:[%s4 + $0x18] sm:$0xff]
  %v4858 = vsel %vm52, %v4852, 0
  %4860 = vmatprep.subr.mxu0 0.0
  %4861 = vmatpush1.msra.mxu0 %v4853
  %4862 = vmatprep.subr.mxu0 0.0
  %4863 = vmatpush1.msra.mxu0 %v4854
  %4864 = vmatprep.subr.mxu0 0.0
  %4865 = vmatpush1.msra.mxu0 %v4855
  %4866 = vmatprep.subr.mxu0 0.0
  %4867 = vmatpush1.msra.mxu0 %v4856
  %4868 = vmatprep.subr.mxu0 0.0
  %4869 = vmatpush1.msra.mxu0 0.0
  %4870 = vmatprep.subr.mxu0 0.0
  %4871 = vmatpush1.msra.mxu0 0.0
  %4872 = vmatprep.subr.mxu0 0.0
  %4873 = vmatpush1.msra.mxu0 0.0
  %4874 = vmatprep.subr.mxu0 0.0
  %4875 = vmatpush1.msra.mxu0 0.0
  %4876 = vmatprep.subr.mxu0 0.0
  %4877 = vmatpush1.msra.mxu0 0.0
  %4878 = vmatprep.subr.mxu0 0.0
  %4879 = vmatpush1.msra.mxu0 0.0
  %4880 = vmatprep.subr.mxu0 0.0
  %4881 = vmatpush1.msra.mxu0 0.0
  %4882 = vmatprep.subr.mxu0 0.0
  %4883 = vmatpush1.msra.mxu0 0.0
  %4884 = vmatprep.subr.mxu0 0.0
  %4885 = vmatpush1.msra.mxu0 0.0
  %4886 = vmatprep.subr.mxu0 0.0
  %4887 = vmatpush1.msra.mxu0 0.0
  %4888 = vmatprep.subr.mxu0 0.0
  %4889 = vmatpush1.msra.mxu0 0.0
  %4890 = vmatprep.subr.mxu0 0.0
  %4891 = vmatpush1.msra.mxu0 0.0
  %4892 = vmatprep.subr.mxu0 0.0
  %4893 = vmatpush1.msra.mxu0 0.0
  %4894 = vmatprep.subr.mxu0 0.0
  %4895 = vmatpush1.msra.mxu0 0.0
  %4896 = vmatprep.subr.mxu0 0.0
  %4897 = vmatpush1.msra.mxu0 0.0
  %4898 = vmatprep.subr.mxu0 0.0
  %4899 = vmatpush1.msra.mxu0 0.0
  %4900 = vmatprep.subr.mxu0 0.0
  %4901 = vmatpush1.msra.mxu0 0.0
  %4902 = vmatprep.subr.mxu0 0.0
  %4903 = vmatpush1.msra.mxu0 0.0
  %4904 = vmatprep.subr.mxu0 0.0
  %4905 = vmatpush1.msra.mxu0 0.0
  %4906 = vmatprep.subr.mxu0 0.0
  %4907 = vmatpush1.msra.mxu0 0.0
  %4908 = vmatprep.subr.mxu0 0.0
  %4909 = vmatpush1.msra.mxu0 0.0
  %4910 = vmatprep.subr.mxu0 0.0
  %4911 = vmatpush1.msra.mxu0 0.0
  %4912 = vmatprep.subr.mxu0 0.0
  %4913 = vmatpush1.msra.mxu0 0.0
  %4914 = vmatprep.subr.mxu0 0.0
  %4915 = vmatpush1.msra.mxu0 0.0
  %4916 = vmatprep.subr.mxu0 0.0
  %4917 = vmatpush1.msra.mxu0 0.0
  %4918 = vmatprep.subr.mxu0 0.0
  %4919 = vmatpush1.msra.mxu0 0.0
  %4920 = vmatprep.subr.mxu0 0.0
  %4921 = vmatpush1.msra.mxu0 0.0
  %4922 = vmatprep.subr.mxu0 0.0
  %4923 = vmatpush1.msra.mxu0 0.0
  %4924 = vmatprep.mubr.f32.mxu0 0.0
  %4925 = vmatmul.mubr.f32.gmra.mrb[0].mxu0 %v4858
  %v4926 = vpop.f32.mrb[0].mxu0
  %v4927 = vadd.f32 0.0, %v4926
  %v4928 = vpop.f32.mrb[0].mxu0
  %4929 = vdwg.mxu0
  %v4930 = vxor.u32 %v4927, 2147483648
  %v4931 = vmul.f32 %v4930, 1.442695
  %v4932 = vpow.pop %v4931
  %v4933 = vadd.f32 %v4932, 1.0
  %v4934 = vrcp.pop %v4933
  %v4935 = vmul.f32 1.0, %v4934
  %v4936 = vtanh.pop %v4927
  %4937 = vrot.lane.b32.xlu0 %v4852, 32
  %v4938 = vpop.permute.xlu0 %4937
  %v4940 = vsub.f32 %v4936, %v4938
  %4942 = vrot.lane.b32.xlu0 %v4940, 96
  %v4943 = vpop.permute.xlu0 %4942
  %v4945 = vmul.f32 %v4935, %v4943
  %v4946 = vadd.f32 %v4852, %v4945
  %v4947 = vmax.f32 %v4927, 0.0
  %4948 = vrot.lane.b32.xlu0 %v4852, 96
  %v4949 = vpop.permute.xlu0 %4948
  %v4951 = vsub.f32 %v4947, %v4949
  %4953 = vrot.lane.b32.xlu0 %v4951, 96
  %v4954 = vpop.permute.xlu0 %4953
  %v4956 = vmul.f32 %v4935, %v4954
  %4958 = vrot.lane.b32.xlu0 %v4956, 64
  %v4959 = vpop.permute.xlu0 %4958
  %v4961 = vadd.f32 %v4852, %v4959
  %v4962 = vadd.f32 %v4946, %v4961
  %v4963 = vld [vmem:[%s5] sm:$0xff]
  %v4964 = vld [vmem:[%s5 + $0x8] sm:$0xff]
  %v4965 = vld [vmem:[%s5 + $0x10] sm:$0xff]
  %v4966 = vld [vmem:[%s5 + $0x18] sm:$0xff]
  %v4968 = vsel %vm52, %v4946, 0
  %4970 = vmatprep.subr.mxu0 0.0
  %4971 = vmatpush1.msra.mxu0 %v4963
  %4972 = vmatprep.subr.mxu0 0.0
  %4973 = vmatpush1.msra.mxu0 %v4964
  %4974 = vmatprep.subr.mxu0 0.0
  %4975 = vmatpush1.msra.mxu0 %v4965
  %4976 = vmatprep.subr.mxu0 0.0
  %4977 = vmatpush1.msra.mxu0 %v4966
  %4978 = vmatprep.subr.mxu0 0.0
  %4979 = vmatpush1.msra.mxu0 0.0
  %4980 = vmatprep.subr.mxu0 0.0
  %4981 = vmatpush1.msra.mxu0 0.0
  %4982 = vmatprep.subr.mxu0 0.0
  %4983 = vmatpush1.msra.mxu0 0.0
  %4984 = vmatprep.subr.mxu0 0.0
  %4985 = vmatpush1.msra.mxu0 0.0
  %4986 = vmatprep.subr.mxu0 0.0
  %4987 = vmatpush1.msra.mxu0 0.0
  %4988 = vmatprep.subr.mxu0 0.0
  %4989 = vmatpush1.msra.mxu0 0.0
  %4990 = vmatprep.subr.mxu0 0.0
  %4991 = vmatpush1.msra.mxu0 0.0
  %4992 = vmatprep.subr.mxu0 0.0
  %4993 = vmatpush1.msra.mxu0 0.0
  %4994 = vmatprep.subr.mxu0 0.0
  %4995 = vmatpush1.msra.mxu0 0.0
  %4996 = vmatprep.subr.mxu0 0.0
  %4997 = vmatpush1.msra.mxu0 0.0
  %4998 = vmatprep.subr.mxu0 0.0
  %4999 = vmatpush1.msra.mxu0 0.0
  %5000 = vmatprep.subr.mxu0 0.0
  %5001 = vmatpush1.msra.mxu0 0.0
  %5002 = vmatprep.subr.mxu0 0.0
  %5003 = vmatpush1.msra.mxu0 0.0
  %5004 = vmatprep.subr.mxu0 0.0
  %5005 = vmatpush1.msra.mxu0 0.0
  %5006 = vmatprep.subr.mxu0 0.0
  %5007 = vmatpush1.msra.mxu0 0.0
  %5008 = vmatprep.subr.mxu0 0.0
  %5009 = vmatpush1.msra.mxu0 0.0
  %5010 = vmatprep.subr.mxu0 0.0
  %5011 = vmatpush1.msra.mxu0 0.0
  %5012 = vmatprep.subr.mxu0 0.0
  %5013 = vmatpush1.msra.mxu0 0.0
  %5014 = vmatprep.subr.mxu0 0.0
  %5015 = vmatpush1.msra.mxu0 0.0
  %5016 = vmatprep.subr.mxu0 0.0
  %5017 = vmatpush1.msra.mxu0 0.0
  %5018 = vmatprep.subr.mxu0 0.0
  %5019 = vmatpush1.msra.mxu0 0.0
  %5020 = vmatprep.subr.mxu0 0.0
  %5021 = vmatpush1.msra.mxu0 0.0
  %5022 = vmatprep.subr.mxu0 0.0
  %5023 = vmatpush1.msra.mxu0 0.0
  %5024 = vmatprep.subr.mxu0 0.0
  %5025 = vmatpush1.msra.mxu0 0.0
  %5026 = vmatprep.subr.mxu0 0.0
  %5027 = vmatpush1.msra.mxu0 0.0
  %5028 = vmatprep.subr.mxu0 0.0
  %5029 = vmatpush1.msra.mxu0 0.0
  %5030 = vmatprep.subr.mxu0 0.0
  %5031 = vmatpush1.msra.mxu0 0.0
  %5032 = vmatprep.subr.mxu0 0.0
  %5033 = vmatpush1.msra.mxu0 0.0
  %5034 = vmatprep.mubr.f32.mxu0 0.0
  %5035 = vmatmul.mubr.f32.gmra.mrb[0].mxu0 %v4968
  %v5036 = vpop.f32.mrb[0].mxu0
  %v5037 = vadd.f32 0.0, %v5036
  %v5038 = vpop.f32.mrb[0].mxu0
  %5039 = vdwg.mxu0
  %v5040 = vxor.u32 %v5037, 2147483648
  %v5041 = vmul.f32 %v5040, 1.442695
  %v5042 = vpow.pop %v5041
  %v5043 = vadd.f32 %v5042, 1.0
  %v5044 = vrcp.pop %v5043
  %v5045 = vmul.f32 1.0, %v5044
  %5046 = vrot.lane.b32.xlu0 %v4946, 32
  %v5047 = vpop.permute.xlu0 %5046
  %v5049 = vsub.f32 %v5045, %v5047
  %5051 = vrot.lane.b32.xlu0 %v5049, 96
  %v5052 = vpop.permute.xlu0 %5051
  %v5054 = vmul.f32 %v5045, %v5052
  %v5055 = vadd.f32 %v4946, %v5054
  %v5056 = vadd.f32 %v4962, %v5055
  %5057 = vrot.lane.b32.xlu0 %v4946, 96
  %v5058 = vpop.permute.xlu0 %5057
  %v5060 = vsub.f32 %v5037, %v5058
  %5062 = vrot.lane.b32.xlu0 %v5060, 96
  %v5063 = vpop.permute.xlu0 %5062
  %v5065 = vmul.f32 %v5045, %v5063
  %5067 = vrot.lane.b32.xlu0 %v5065, 64
  %v5068 = vpop.permute.xlu0 %5067
  %v5070 = vadd.f32 %v4946, %v5068
  %v5071 = vadd.f32 %v5056, %v5070
  %v5072 = vld [vmem:[%s6] sm:$0xff]
  %v5073 = vld [vmem:[%s6 + $0x8] sm:$0xff]
  %v5074 = vld [vmem:[%s6 + $0x10] sm:$0xff]
  %v5075 = vld [vmem:[%s6 + $0x18] sm:$0xff]
  %v5077 = vsel %vm52, %v4961, 0
  %5079 = vmatprep.subr.mxu0 0.0
  %5080 = vmatpush1.msra.mxu0 %v5072
  %5081 = vmatprep.subr.mxu0 0.0
  %5082 = vmatpush1.msra.mxu0 %v5073
  %5083 = vmatprep.subr.mxu0 0.0
  %5084 = vmatpush1.msra.mxu0 %v5074
  %5085 = vmatprep.subr.mxu0 0.0
  %5086 = vmatpush1.msra.mxu0 %v5075
  %5087 = vmatprep.subr.mxu0 0.0
  %5088 = vmatpush1.msra.mxu0 0.0
  %5089 = vmatprep.subr.mxu0 0.0
  %5090 = vmatpush1.msra.mxu0 0.0
  %5091 = vmatprep.subr.mxu0 0.0
  %5092 = vmatpush1.msra.mxu0 0.0
  %5093 = vmatprep.subr.mxu0 0.0
  %5094 = vmatpush1.msra.mxu0 0.0
  %5095 = vmatprep.subr.mxu0 0.0
  %5096 = vmatpush1.msra.mxu0 0.0
  %5097 = vmatprep.subr.mxu0 0.0
  %5098 = vmatpush1.msra.mxu0 0.0
  %5099 = vmatprep.subr.mxu0 0.0
  %5100 = vmatpush1.msra.mxu0 0.0
  %5101 = vmatprep.subr.mxu0 0.0
  %5102 = vmatpush1.msra.mxu0 0.0
  %5103 = vmatprep.subr.mxu0 0.0
  %5104 = vmatpush1.msra.mxu0 0.0
  %5105 = vmatprep.subr.mxu0 0.0
  %5106 = vmatpush1.msra.mxu0 0.0
  %5107 = vmatprep.subr.mxu0 0.0
  %5108 = vmatpush1.msra.mxu0 0.0
  %5109 = vmatprep.subr.mxu0 0.0
  %5110 = vmatpush1.msra.mxu0 0.0
  %5111 = vmatprep.subr.mxu0 0.0
  %5112 = vmatpush1.msra.mxu0 0.0
  %5113 = vmatprep.subr.mxu0 0.0
  %5114 = vmatpush1.msra.mxu0 0.0
  %5115 = vmatprep.subr.mxu0 0.0
  %5116 = vmatpush1.msra.mxu0 0.0
  %5117 = vmatprep.subr.mxu0 0.0
  %5118 = vmatpush1.msra.mxu0 0.0
  %5119 = vmatprep.subr.mxu0 0.0
  %5120 = vmatpush1.msra.mxu0 0.0
  %5121 = vmatprep.subr.mxu0 0.0
  %5122 = vmatpush1.msra.mxu0 0.0
  %5123 = vmatprep.subr.mxu0 0.0
  %5124 = vmatpush1.msra.mxu0 0.0
  %5125 = vmatprep.subr.mxu0 0.0
  %5126 = vmatpush1.msra.mxu0 0.0
  %5127 = vmatprep.subr.mxu0 0.0
  %5128 = vmatpush1.msra.mxu0 0.0
  %5129 = vmatprep.subr.mxu0 0.0
  %5130 = vmatpush1.msra.mxu0 0.0
  %5131 = vmatprep.subr.mxu0 0.0
  %5132 = vmatpush1.msra.mxu0 0.0
  %5133 = vmatprep.subr.mxu0 0.0
  %5134 = vmatpush1.msra.mxu0 0.0
  %5135 = vmatprep.subr.mxu0 0.0
  %5136 = vmatpush1.msra.mxu0 0.0
  %5137 = vmatprep.subr.mxu0 0.0
  %5138 = vmatpush1.msra.mxu0 0.0
  %5139 = vmatprep.subr.mxu0 0.0
  %5140 = vmatpush1.msra.mxu0 0.0
  %5141 = vmatprep.subr.mxu0 0.0
  %5142 = vmatpush1.msra.mxu0 0.0
  %5143 = vmatprep.mubr.f32.mxu0 0.0
  %5144 = vmatmul.mubr.f32.gmra.mrb[0].mxu0 %v5077
  %v5145 = vpop.f32.mrb[0].mxu0
  %v5146 = vadd.f32 0.0, %v5145
  %v5147 = vpop.f32.mrb[0].mxu0
  %5148 = vdwg.mxu0
  %v5149 = vxor.u32 %v5146, 2147483648
  %v5150 = vmul.f32 %v5149, 1.442695
  %v5151 = vpow.pop %v5150
  %v5152 = vadd.f32 %v5151, 1.0
  %v5153 = vrcp.pop %v5152
  %v5154 = vmul.f32 1.0, %v5153
  %v5155 = vtanh.pop %v5146
  %5156 = vrot.lane.b32.xlu0 %v4961, 32
  %v5157 = vpop.permute.xlu0 %5156
  %v5159 = vsub.f32 %v5155, %v5157
  %5161 = vrot.lane.b32.xlu0 %v5159, 96
  %v5162 = vpop.permute.xlu0 %5161
  %v5164 = vmul.f32 %v5154, %v5162
  %v5165 = vadd.f32 %v4961, %v5164
  %v5166 = vadd.f32 %v5071, %v5165
  %v5167 = vld [vmem:[%s7] sm:$0xff]
  %v5168 = vld [vmem:[%s7 + $0x8] sm:$0xff]
  %v5169 = vld [vmem:[%s7 + $0x10] sm:$0xff]
  %v5170 = vld [vmem:[%s7 + $0x18] sm:$0xff]
  %v5172 = vsel %vm52, %v5055, 0
  %5174 = vmatprep.subr.mxu0 0.0
  %5175 = vmatpush1.msra.mxu0 %v5167
  %5176 = vmatprep.subr.mxu0 0.0
  %5177 = vmatpush1.msra.mxu0 %v5168
  %5178 = vmatprep.subr.mxu0 0.0
  %5179 = vmatpush1.msra.mxu0 %v5169
  %5180 = vmatprep.subr.mxu0 0.0
  %5181 = vmatpush1.msra.mxu0 %v5170
  %5182 = vmatprep.subr.mxu0 0.0
  %5183 = vmatpush1.msra.mxu0 0.0
  %5184 = vmatprep.subr.mxu0 0.0
  %5185 = vmatpush1.msra.mxu0 0.0
  %5186 = vmatprep.subr.mxu0 0.0
  %5187 = vmatpush1.msra.mxu0 0.0
  %5188 = vmatprep.subr.mxu0 0.0
  %5189 = vmatpush1.msra.mxu0 0.0
  %5190 = vmatprep.subr.mxu0 0.0
  %5191 = vmatpush1.msra.mxu0 0.0
  %5192 = vmatprep.subr.mxu0 0.0
  %5193 = vmatpush1.msra.mxu0 0.0
  %5194 = vmatprep.subr.mxu0 0.0
  %5195 = vmatpush1.msra.mxu0 0.0
  %5196 = vmatprep.subr.mxu0 0.0
  %5197 = vmatpush1.msra.mxu0 0.0
  %5198 = vmatprep.subr.mxu0 0.0
  %5199 = vmatpush1.msra.mxu0 0.0
  %5200 = vmatprep.subr.mxu0 0.0
  %5201 = vmatpush1.msra.mxu0 0.0
  %5202 = vmatprep.subr.mxu0 0.0
  %5203 = vmatpush1.msra.mxu0 0.0
  %5204 = vmatprep.subr.mxu0 0.0
  %5205 = vmatpush1.msra.mxu0 0.0
  %5206 = vmatprep.subr.mxu0 0.0
  %5207 = vmatpush1.msra.mxu0 0.0
  %5208 = vmatprep.subr.mxu0 0.0
  %5209 = vmatpush1.msra.mxu0 0.0
  %5210 = vmatprep.subr.mxu0 0.0
  %5211 = vmatpush1.msra.mxu0 0.0
  %5212 = vmatprep.subr.mxu0 0.0
  %5213 = vmatpush1.msra.mxu0 0.0
  %5214 = vmatprep.subr.mxu0 0.0
  %5215 = vmatpush1.msra.mxu0 0.0
  %5216 = vmatprep.subr.mxu0 0.0
  %5217 = vmatpush1.msra.mxu0 0.0
  %5218 = vmatprep.subr.mxu0 0.0
  %5219 = vmatpush1.msra.mxu0 0.0
  %5220 = vmatprep.subr.mxu0 0.0
  %5221 = vmatpush1.msra.mxu0 0.0
  %5222 = vmatprep.subr.mxu0 0.0
  %5223 = vmatpush1.msra.mxu0 0.0
  %5224 = vmatprep.subr.mxu0 0.0
  %5225 = vmatpush1.msra.mxu0 0.0
  %5226 = vmatprep.subr.mxu0 0.0
  %5227 = vmatpush1.msra.mxu0 0.0
  %5228 = vmatprep.subr.mxu0 0.0
  %5229 = vmatpush1.msra.mxu0 0.0
  %5230 = vmatprep.subr.mxu0 0.0
  %5231 = vmatpush1.msra.mxu0 0.0
  %5232 = vmatprep.subr.mxu0 0.0
  %5233 = vmatpush1.msra.mxu0 0.0
  %5234 = vmatprep.subr.mxu0 0.0
  %5235 = vmatpush1.msra.mxu0 0.0
  %5236 = vmatprep.subr.mxu0 0.0
  %5237 = vmatpush1.msra.mxu0 0.0
  %5238 = vmatprep.mubr.f32.mxu0 0.0
  %5239 = vmatmul.mubr.f32.gmra.mrb[0].mxu0 %v5172
  %v5240 = vpop.f32.mrb[0].mxu0
  %v5241 = vadd.f32 0.0, %v5240
  %v5242 = vpop.f32.mrb[0].mxu0
  %5243 = vdwg.mxu0
  %v5244 = vxor.u32 %v5241, 2147483648
  %v5245 = vmul.f32 %v5244, 1.442695
  %v5246 = vpow.pop %v5245
  %v5247 = vadd.f32 %v5246, 1.0
  %v5248 = vrcp.pop %v5247
  %v5249 = vmul.f32 1.0, %v5248
  %v5250 = vmax.f32 %v5241, 0.0
  %5251 = vrot.lane.b32.xlu0 %v5055, 32
  %v5252 = vpop.permute.xlu0 %5251
  %v5254 = vsub.f32 %v5250, %v5252
  %5256 = vrot.lane.b32.xlu0 %v5254, 96
  %v5257 = vpop.permute.xlu0 %5256
  %v5259 = vmul.f32 %v5249, %v5257
  %v5260 = vadd.f32 %v5055, %v5259
  %v5261 = vadd.f32 %v5166, %v5260
  %v5262 = vld [vmem:[%s8] sm:$0xff]
  %v5263 = vld [vmem:[%s8 + $0x8] sm:$0xff]
  %v5264 = vld [vmem:[%s8 + $0x10] sm:$0xff]
  %v5265 = vld [vmem:[%s8 + $0x18] sm:$0xff]
  %v5267 = vsel %vm52, %v5070, 0
  %5269 = vmatprep.subr.mxu0 0.0
  %5270 = vmatpush1.msra.mxu0 %v5262
  %5271 = vmatprep.subr.mxu0 0.0
  %5272 = vmatpush1.msra.mxu0 %v5263
  %5273 = vmatprep.subr.mxu0 0.0
  %5274 = vmatpush1.msra.mxu0 %v5264
  %5275 = vmatprep.subr.mxu0 0.0
  %5276 = vmatpush1.msra.mxu0 %v5265
  %5277 = vmatprep.subr.mxu0 0.0
  %5278 = vmatpush1.msra.mxu0 0.0
  %5279 = vmatprep.subr.mxu0 0.0
  %5280 = vmatpush1.msra.mxu0 0.0
  %5281 = vmatprep.subr.mxu0 0.0
  %5282 = vmatpush1.msra.mxu0 0.0
  %5283 = vmatprep.subr.mxu0 0.0
  %5284 = vmatpush1.msra.mxu0 0.0
  %5285 = vmatprep.subr.mxu0 0.0
  %5286 = vmatpush1.msra.mxu0 0.0
  %5287 = vmatprep.subr.mxu0 0.0
  %5288 = vmatpush1.msra.mxu0 0.0
  %5289 = vmatprep.subr.mxu0 0.0
  %5290 = vmatpush1.msra.mxu0 0.0
  %5291 = vmatprep.subr.mxu0 0.0
  %5292 = vmatpush1.msra.mxu0 0.0
  %5293 = vmatprep.subr.mxu0 0.0
  %5294 = vmatpush1.msra.mxu0 0.0
  %5295 = vmatprep.subr.mxu0 0.0
  %5296 = vmatpush1.msra.mxu0 0.0
  %5297 = vmatprep.subr.mxu0 0.0
  %5298 = vmatpush1.msra.mxu0 0.0
  %5299 = vmatprep.subr.mxu0 0.0
  %5300 = vmatpush1.msra.mxu0 0.0
  %5301 = vmatprep.subr.mxu0 0.0
  %5302 = vmatpush1.msra.mxu0 0.0
  %5303 = vmatprep.subr.mxu0 0.0
  %5304 = vmatpush1.msra.mxu0 0.0
  %5305 = vmatprep.subr.mxu0 0.0
  %5306 = vmatpush1.msra.mxu0 0.0
  %5307 = vmatprep.subr.mxu0 0.0
  %5308 = vmatpush1.msra.mxu0 0.0
  %5309 = vmatprep.subr.mxu0 0.0
  %5310 = vmatpush1.msra.mxu0 0.0
  %5311 = vmatprep.subr.mxu0 0.0
  %5312 = vmatpush1.msra.mxu0 0.0
  %5313 = vmatprep.subr.mxu0 0.0
  %5314 = vmatpush1.msra.mxu0 0.0
  %5315 = vmatprep.subr.mxu0 0.0
  %5316 = vmatpush1.msra.mxu0 0.0
  %5317 = vmatprep.subr.mxu0 0.0
  %5318 = vmatpush1.msra.mxu0 0.0
  %5319 = vmatprep.subr.mxu0 0.0
  %5320 = vmatpush1.msra.mxu0 0.0
  %5321 = vmatprep.subr.mxu0 0.0
  %5322 = vmatpush1.msra.mxu0 0.0
  %5323 = vmatprep.subr.mxu0 0.0
  %5324 = vmatpush1.msra.mxu0 0.0
  %5325 = vmatprep.subr.mxu0 0.0
  %5326 = vmatpush1.msra.mxu0 0.0
  %5327 = vmatprep.subr.mxu0 0.0
  %5328 = vmatpush1.msra.mxu0 0.0
  %5329 = vmatprep.subr.mxu0 0.0
  %5330 = vmatpush1.msra.mxu0 0.0
  %5331 = vmatprep.subr.mxu0 0.0
  %5332 = vmatpush1.msra.mxu0 0.0
  %5333 = vmatprep.mubr.f32.mxu0 0.0
  %5334 = vmatmul.mubr.f32.gmra.mrb[0].mxu0 %v5267
  %v5335 = vpop.f32.mrb[0].mxu0
  %v5336 = vadd.f32 0.0, %v5335
  %v5337 = vpop.f32.mrb[0].mxu0
  %5338 = vdwg.mxu0
  %v5339 = vxor.u32 %v5336, 2147483648
  %v5340 = vmul.f32 %v5339, 1.442695
  %v5341 = vpow.pop %v5340
  %v5342 = vadd.f32 %v5341, 1.0
  %v5343 = vrcp.pop %v5342
  %v5344 = vmul.f32 1.0, %v5343
  %5345 = vrot.lane.b32.xlu0 %v5070, 32
  %v5346 = vpop.permute.xlu0 %5345
  %v5348 = vsub.f32 %v5344, %v5346
  %5350 = vrot.lane.b32.xlu0 %v5348, 96
  %v5351 = vpop.permute.xlu0 %5350
  %v5353 = vmul.f32 %v5344, %v5351
  %v5354 = vadd.f32 %v5070, %v5353
  %v5355 = vadd.f32 %v5261, %v5354
  %v5356 = vld [vmem:[%s9] sm:$0xff]
  %v5357 = vld [vmem:[%s9 + $0x8] sm:$0xff]
  %v5358 = vld [vmem:[%s9 + $0x10] sm:$0xff]
  %v5359 = vld [vmem:[%s9 + $0x18] sm:$0xff]
  %v5361 = vsel %vm52, %v5165, 0
  %5363 = vmatprep.subr.mxu0 0.0
  %5364 = vmatpush1.msra.mxu0 %v5356
  %5365 = vmatprep.subr.mxu0 0.0
  %5366 = vmatpush1.msra.mxu0 %v5357
  %5367 = vmatprep.subr.mxu0 0.0
  %5368 = vmatpush1.msra.mxu0 %v5358
  %5369 = vmatprep.subr.mxu0 0.0
  %5370 = vmatpush1.msra.mxu0 %v5359
  %5371 = vmatprep.subr.mxu0 0.0
  %5372 = vmatpush1.msra.mxu0 0.0
  %5373 = vmatprep.subr.mxu0 0.0
  %5374 = vmatpush1.msra.mxu0 0.0
  %5375 = vmatprep.subr.mxu0 0.0
  %5376 = vmatpush1.msra.mxu0 0.0
  %5377 = vmatprep.subr.mxu0 0.0
  %5378 = vmatpush1.msra.mxu0 0.0
  %5379 = vmatprep.subr.mxu0 0.0
  %5380 = vmatpush1.msra.mxu0 0.0
  %5381 = vmatprep.subr.mxu0 0.0
  %5382 = vmatpush1.msra.mxu0 0.0
  %5383 = vmatprep.subr.mxu0 0.0
  %5384 = vmatpush1.msra.mxu0 0.0
  %5385 = vmatprep.subr.mxu0 0.0
  %5386 = vmatpush1.msra.mxu0 0.0
  %5387 = vmatprep.subr.mxu0 0.0
  %5388 = vmatpush1.msra.mxu0 0.0
  %5389 = vmatprep.subr.mxu0 0.0
  %5390 = vmatpush1.msra.mxu0 0.0
  %5391 = vmatprep.subr.mxu0 0.0
  %5392 = vmatpush1.msra.mxu0 0.0
  %5393 = vmatprep.subr.mxu0 0.0
  %5394 = vmatpush1.msra.mxu0 0.0
  %5395 = vmatprep.subr.mxu0 0.0
  %5396 = vmatpush1.msra.mxu0 0.0
  %5397 = vmatprep.subr.mxu0 0.0
  %5398 = vmatpush1.msra.mxu0 0.0
  %5399 = vmatprep.subr.mxu0 0.0
  %5400 = vmatpush1.msra.mxu0 0.0
  %5401 = vmatprep.subr.mxu0 0.0
  %5402 = vmatpush1.msra.mxu0 0.0
  %5403 = vmatprep.subr.mxu0 0.0
  %5404 = vmatpush1.msra.mxu0 0.0
  %5405 = vmatprep.subr.mxu0 0.0
  %5406 = vmatpush1.msra.mxu0 0.0
  %5407 = vmatprep.subr.mxu0 0.0
  %5408 = vmatpush1.msra.mxu0 0.0
  %5409 = vmatprep.subr.mxu0 0.0
  %5410 = vmatpush1.msra.mxu0 0.0
  %5411 = vmatprep.subr.mxu0 0.0
  %5412 = vmatpush1.msra.mxu0 0.0
  %5413 = vmatprep.subr.mxu0 0.0
  %5414 = vmatpush1.msra.mxu0 0.0
  %5415 = vmatprep.subr.mxu0 0.0
  %5416 = vmatpush1.msra.mxu0 0.0
  %5417 = vmatprep.subr.mxu0 0.0
  %5418 = vmatpush1.msra.mxu0 0.0
  %5419 = vmatprep.subr.mxu0 0.0
  %5420 = vmatpush1.msra.mxu0 0.0
  %5421 = vmatprep.subr.mxu0 0.0
  %5422 = vmatpush1.msra.mxu0 0.0
  %5423 = vmatprep.subr.mxu0 0.0
  %5424 = vmatpush1.msra.mxu0 0.0
  %5425 = vmatprep.subr.mxu0 0.0
  %5426 = vmatpush1.msra.mxu0 0.0
  %5427 = vmatprep.mubr.f32.mxu0 0.0
  %5428 = vmatmul.mubr.f32.gmra.mrb[0].mxu0 %v5361
  %v5429 = vpop.f32.mrb[0].mxu0
  %v5430 = vadd.f32 0.0, %v5429
  %v5431 = vpop.f32.mrb[0].mxu0
  %5432 = vdwg.mxu0
  %v5433 = vxor.u32 %v5430, 2147483648
  %v5434 = vmul.f32 %v5433, 1.442695
  %v5435 = vpow.pop %v5434
  %v5436 = vadd.f32 %v5435, 1.0
  %v5437 = vrcp.pop %v5436
  %v5438 = vmul.f32 1.0, %v5437
  %5439 = vrot.lane.b32.xlu0 %v5165, 32
  %v5440 = vpop.permute.xlu0 %5439
  %v5442 = vsub.f32 %v5430, %v5440
  %5444 = vrot.lane.b32.xlu0 %v5442, 96
  %v5445 = vpop.permute.xlu0 %5444
  %v5447 = vmul.f32 %v5438, %v5445
  %v5448 = vadd.f32 %v5165, %v5447
  %v5449 = vadd.f32 %v5355, %v5448
  %v5450 = vmul.f32 %v5449, 0.125
  %s5451 = scalar_lea.vmem %s10, 48
  %5452 = vst.msk [vmem:[%s5451] sm:$0xff] %vm52, %v5450
  %s5453 = scalar_lea.vmem %s0, 56
  %v5454 = vld [vmem:[%s5453] sm:$0xff]
  %v5455 = vld [vmem:[%s2] sm:$0xff]
  %v5456 = vld [vmem:[%s2 + $0x8] sm:$0xff]
  %v5457 = vld [vmem:[%s2 + $0x10] sm:$0xff]
  %v5458 = vld [vmem:[%s2 + $0x18] sm:$0xff]
  %v5459 = vld [vmem:[%s3] sm:$0xff]
  %v5460 = vld [vmem:[%s3 + $0x8] sm:$0xff]
  %v5461 = vld [vmem:[%s3 + $0x10] sm:$0xff]
  %v5462 = vld [vmem:[%s3 + $0x18] sm:$0xff]
  %v5464 = vsel %vm52, %v5450, 0
  %5466 = vmatprep.subr.mxu0 0.0
  %5467 = vmatpush1.msra.mxu0 %v5459
  %5468 = vmatprep.subr.mxu0 0.0
  %5469 = vmatpush1.msra.mxu0 %v5460
  %5470 = vmatprep.subr.mxu0 0.0
  %5471 = vmatpush1.msra.mxu0 %v5461
  %5472 = vmatprep.subr.mxu0 0.0
  %5473 = vmatpush1.msra.mxu0 %v5462
  %5474 = vmatprep.subr.mxu0 0.0
  %5475 = vmatpush1.msra.mxu0 0.0
  %5476 = vmatprep.subr.mxu0 0.0
  %5477 = vmatpush1.msra.mxu0 0.0
  %5478 = vmatprep.subr.mxu0 0.0
  %5479 = vmatpush1.msra.mxu0 0.0
  %5480 = vmatprep.subr.mxu0 0.0
  %5481 = vmatpush1.msra.mxu0 0.0
  %5482 = vmatprep.subr.mxu0 0.0
  %5483 = vmatpush1.msra.mxu0 0.0
  %5484 = vmatprep.subr.mxu0 0.0
  %5485 = vmatpush1.msra.mxu0 0.0
  %5486 = vmatprep.subr.mxu0 0.0
  %5487 = vmatpush1.msra.mxu0 0.0
  %5488 = vmatprep.subr.mxu0 0.0
  %5489 = vmatpush1.msra.mxu0 0.0
  %5490 = vmatprep.subr.mxu0 0.0
  %5491 = vmatpush1.msra.mxu0 0.0
  %5492 = vmatprep.subr.mxu0 0.0
  %5493 = vmatpush1.msra.mxu0 0.0
  %5494 = vmatprep.subr.mxu0 0.0
  %5495 = vmatpush1.msra.mxu0 0.0
  %5496 = vmatprep.subr.mxu0 0.0
  %5497 = vmatpush1.msra.mxu0 0.0
  %5498 = vmatprep.subr.mxu0 0.0
  %5499 = vmatpush1.msra.mxu0 0.0
  %5500 = vmatprep.subr.mxu0 0.0
  %5501 = vmatpush1.msra.mxu0 0.0
  %5502 = vmatprep.subr.mxu0 0.0
  %5503 = vmatpush1.msra.mxu0 0.0
  %5504 = vmatprep.subr.mxu0 0.0
  %5505 = vmatpush1.msra.mxu0 0.0
  %5506 = vmatprep.subr.mxu0 0.0
  %5507 = vmatpush1.msra.mxu0 0.0
  %5508 = vmatprep.subr.mxu0 0.0
  %5509 = vmatpush1.msra.mxu0 0.0
  %5510 = vmatprep.subr.mxu0 0.0
  %5511 = vmatpush1.msra.mxu0 0.0
  %5512 = vmatprep.subr.mxu0 0.0
  %5513 = vmatpush1.msra.mxu0 0.0
  %5514 = vmatprep.subr.mxu0 0.0
  %5515 = vmatpush1.msra.mxu0 0.0
  %5516 = vmatprep.subr.mxu0 0.0
  %5517 = vmatpush1.msra.mxu0 0.0
  %5518 = vmatprep.subr.mxu0 0.0
  %5519 = vmatpush1.msra.mxu0 0.0
  %5520 = vmatprep.subr.mxu0 0.0
  %5521 = vmatpush1.msra.mxu0 0.0
  %5522 = vmatprep.subr.mxu0 0.0
  %5523 = vmatpush1.msra.mxu0 0.0
  %5524 = vmatprep.subr.mxu0 0.0
  %5525 = vmatpush1.msra.mxu0 0.0
  %5526 = vmatprep.subr.mxu0 0.0
  %5527 = vmatpush1.msra.mxu0 0.0
  %5528 = vmatprep.subr.mxu0 0.0
  %5529 = vmatpush1.msra.mxu0 0.0
  %5530 = vmatprep.mubr.f32.mxu0 0.0
  %5531 = vmatmul.mubr.f32.gmra.mrb[0].mxu0 %v5464
  %v5532 = vpop.f32.mrb[0].mxu0
  %v5533 = vadd.f32 0.0, %v5532
  %v5534 = vpop.f32.mrb[0].mxu0
  %5535 = vdwg.mxu0
  %v5537 = vsel %vm52, %v5454, 0
  %5539 = vmatprep.subr.mxu0 0.0
  %5540 = vmatpush1.msra.mxu0 %v5455
  %5541 = vmatprep.subr.mxu0 0.0
  %5542 = vmatpush1.msra.mxu0 %v5456
  %5543 = vmatprep.subr.mxu0 0.0
  %5544 = vmatpush1.msra.mxu0 %v5457
  %5545 = vmatprep.subr.mxu0 0.0
  %5546 = vmatpush1.msra.mxu0 %v5458
  %5547 = vmatprep.subr.mxu0 0.0
  %5548 = vmatpush1.msra.mxu0 0.0
  %5549 = vmatprep.subr.mxu0 0.0
  %5550 = vmatpush1.msra.mxu0 0.0
  %5551 = vmatprep.subr.mxu0 0.0
  %5552 = vmatpush1.msra.mxu0 0.0
  %5553 = vmatprep.subr.mxu0 0.0
  %5554 = vmatpush1.msra.mxu0 0.0
  %5555 = vmatprep.subr.mxu0 0.0
  %5556 = vmatpush1.msra.mxu0 0.0
  %5557 = vmatprep.subr.mxu0 0.0
  %5558 = vmatpush1.msra.mxu0 0.0
  %5559 = vmatprep.subr.mxu0 0.0
  %5560 = vmatpush1.msra.mxu0 0.0
  %5561 = vmatprep.subr.mxu0 0.0
  %5562 = vmatpush1.msra.mxu0 0.0
  %5563 = vmatprep.subr.mxu0 0.0
  %5564 = vmatpush1.msra.mxu0 0.0
  %5565 = vmatprep.subr.mxu0 0.0
  %5566 = vmatpush1.msra.mxu0 0.0
  %5567 = vmatprep.subr.mxu0 0.0
  %5568 = vmatpush1.msra.mxu0 0.0
  %5569 = vmatprep.subr.mxu0 0.0
  %5570 = vmatpush1.msra.mxu0 0.0
  %5571 = vmatprep.subr.mxu0 0.0
  %5572 = vmatpush1.msra.mxu0 0.0
  %5573 = vmatprep.subr.mxu0 0.0
  %5574 = vmatpush1.msra.mxu0 0.0
  %5575 = vmatprep.subr.mxu0 0.0
  %5576 = vmatpush1.msra.mxu0 0.0
  %5577 = vmatprep.subr.mxu0 0.0
  %5578 = vmatpush1.msra.mxu0 0.0
  %5579 = vmatprep.subr.mxu0 0.0
  %5580 = vmatpush1.msra.mxu0 0.0
  %5581 = vmatprep.subr.mxu0 0.0
  %5582 = vmatpush1.msra.mxu0 0.0
  %5583 = vmatprep.subr.mxu0 0.0
  %5584 = vmatpush1.msra.mxu0 0.0
  %5585 = vmatprep.subr.mxu0 0.0
  %5586 = vmatpush1.msra.mxu0 0.0
  %5587 = vmatprep.subr.mxu0 0.0
  %5588 = vmatpush1.msra.mxu0 0.0
  %5589 = vmatprep.subr.mxu0 0.0
  %5590 = vmatpush1.msra.mxu0 0.0
  %5591 = vmatprep.subr.mxu0 0.0
  %5592 = vmatpush1.msra.mxu0 0.0
  %5593 = vmatprep.subr.mxu0 0.0
  %5594 = vmatpush1.msra.mxu0 0.0
  %5595 = vmatprep.subr.mxu0 0.0
  %5596 = vmatpush1.msra.mxu0 0.0
  %5597 = vmatprep.subr.mxu0 0.0
  %5598 = vmatpush1.msra.mxu0 0.0
  %5599 = vmatprep.subr.mxu0 0.0
  %5600 = vmatpush1.msra.mxu0 0.0
  %5601 = vmatprep.subr.mxu0 0.0
  %5602 = vmatpush1.msra.mxu0 0.0
  %5603 = vmatprep.mubr.f32.mxu0 0.0
  %5604 = vmatmul.mubr.f32.gmra.mrb[0].mxu0 %v5537
  %v5605 = vpop.f32.mrb[0].mxu0
  %v5606 = vadd.f32 %v5533, %v5605
  %v5607 = vpop.f32.mrb[0].mxu0
  %5608 = vdwg.mxu0
  %v5609 = vxor.u32 %v5606, 2147483648
  %v5610 = vmul.f32 %v5609, 1.442695
  %v5611 = vpow.pop %v5610
  %v5612 = vadd.f32 %v5611, 1.0
  %v5613 = vrcp.pop %v5612
  %v5614 = vmul.f32 1.0, %v5613
  %v5615 = vtanh.pop %v5606
  %5616 = vrot.lane.b32.xlu0 %v5450, 32
  %v5617 = vpop.permute.xlu0 %5616
  %v5619 = vsub.f32 %v5615, %v5617
  %5621 = vrot.lane.b32.xlu0 %v5619, 96
  %v5622 = vpop.permute.xlu0 %5621
  %v5624 = vmul.f32 %v5614, %v5622
  %v5625 = vadd.f32 %v5450, %v5624
  %v5626 = vld [vmem:[%s4] sm:$0xff]
  %v5627 = vld [vmem:[%s4 + $0x8] sm:$0xff]
  %v5628 = vld [vmem:[%s4 + $0x10] sm:$0xff]
  %v5629 = vld [vmem:[%s4 + $0x18] sm:$0xff]
  %v5631 = vsel %vm52, %v5625, 0
  %5633 = vmatprep.subr.mxu0 0.0
  %5634 = vmatpush1.msra.mxu0 %v5626
  %5635 = vmatprep.subr.mxu0 0.0
  %5636 = vmatpush1.msra.mxu0 %v5627
  %5637 = vmatprep.subr.mxu0 0.0
  %5638 = vmatpush1.msra.mxu0 %v5628
  %5639 = vmatprep.subr.mxu0 0.0
  %5640 = vmatpush1.msra.mxu0 %v5629
  %5641 = vmatprep.subr.mxu0 0.0
  %5642 = vmatpush1.msra.mxu0 0.0
  %5643 = vmatprep.subr.mxu0 0.0
  %5644 = vmatpush1.msra.mxu0 0.0
  %5645 = vmatprep.subr.mxu0 0.0
  %5646 = vmatpush1.msra.mxu0 0.0
  %5647 = vmatprep.subr.mxu0 0.0
  %5648 = vmatpush1.msra.mxu0 0.0
  %5649 = vmatprep.subr.mxu0 0.0
  %5650 = vmatpush1.msra.mxu0 0.0
  %5651 = vmatprep.subr.mxu0 0.0
  %5652 = vmatpush1.msra.mxu0 0.0
  %5653 = vmatprep.subr.mxu0 0.0
  %5654 = vmatpush1.msra.mxu0 0.0
  %5655 = vmatprep.subr.mxu0 0.0
  %5656 = vmatpush1.msra.mxu0 0.0
  %5657 = vmatprep.subr.mxu0 0.0
  %5658 = vmatpush1.msra.mxu0 0.0
  %5659 = vmatprep.subr.mxu0 0.0
  %5660 = vmatpush1.msra.mxu0 0.0
  %5661 = vmatprep.subr.mxu0 0.0
  %5662 = vmatpush1.msra.mxu0 0.0
  %5663 = vmatprep.subr.mxu0 0.0
  %5664 = vmatpush1.msra.mxu0 0.0
  %5665 = vmatprep.subr.mxu0 0.0
  %5666 = vmatpush1.msra.mxu0 0.0
  %5667 = vmatprep.subr.mxu0 0.0
  %5668 = vmatpush1.msra.mxu0 0.0
  %5669 = vmatprep.subr.mxu0 0.0
  %5670 = vmatpush1.msra.mxu0 0.0
  %5671 = vmatprep.subr.mxu0 0.0
  %5672 = vmatpush1.msra.mxu0 0.0
  %5673 = vmatprep.subr.mxu0 0.0
  %5674 = vmatpush1.msra.mxu0 0.0
  %5675 = vmatprep.subr.mxu0 0.0
  %5676 = vmatpush1.msra.mxu0 0.0
  %5677 = vmatprep.subr.mxu0 0.0
  %5678 = vmatpush1.msra.mxu0 0.0
  %5679 = vmatprep.subr.mxu0 0.0
  %5680 = vmatpush1.msra.mxu0 0.0
  %5681 = vmatprep.subr.mxu0 0.0
  %5682 = vmatpush1.msra.mxu0 0.0
  %5683 = vmatprep.subr.mxu0 0.0
  %5684 = vmatpush1.msra.mxu0 0.0
  %5685 = vmatprep.subr.mxu0 0.0
  %5686 = vmatpush1.msra.mxu0 0.0
  %5687 = vmatprep.subr.mxu0 0.0
  %5688 = vmatpush1.msra.mxu0 0.0
  %5689 = vmatprep.subr.mxu0 0.0
  %5690 = vmatpush1.msra.mxu0 0.0
  %5691 = vmatprep.subr.mxu0 0.0
  %5692 = vmatpush1.msra.mxu0 0.0
  %5693 = vmatprep.subr.mxu0 0.0
  %5694 = vmatpush1.msra.mxu0 0.0
  %5695 = vmatprep.subr.mxu0 0.0
  %5696 = vmatpush1.msra.mxu0 0.0
  %5697 = vmatprep.mubr.f32.mxu0 0.0
  %5698 = vmatmul.mubr.f32.gmra.mrb[0].mxu0 %v5631
  %v5699 = vpop.f32.mrb[0].mxu0
  %v5700 = vadd.f32 0.0, %v5699
  %v5701 = vpop.f32.mrb[0].mxu0
  %5702 = vdwg.mxu0
  %v5703 = vxor.u32 %v5700, 2147483648
  %v5704 = vmul.f32 %v5703, 1.442695
  %v5705 = vpow.pop %v5704
  %v5706 = vadd.f32 %v5705, 1.0
  %v5707 = vrcp.pop %v5706
  %v5708 = vmul.f32 1.0, %v5707
  %v5709 = vtanh.pop %v5700
  %5710 = vrot.lane.b32.xlu0 %v5625, 32
  %v5711 = vpop.permute.xlu0 %5710
  %v5713 = vsub.f32 %v5709, %v5711
  %5715 = vrot.lane.b32.xlu0 %v5713, 96
  %v5716 = vpop.permute.xlu0 %5715
  %v5718 = vmul.f32 %v5708, %v5716
  %v5719 = vadd.f32 %v5625, %v5718
  %v5720 = vmax.f32 %v5700, 0.0
  %5721 = vrot.lane.b32.xlu0 %v5625, 96
  %v5722 = vpop.permute.xlu0 %5721
  %v5724 = vsub.f32 %v5720, %v5722
  %5726 = vrot.lane.b32.xlu0 %v5724, 96
  %v5727 = vpop.permute.xlu0 %5726
  %v5729 = vmul.f32 %v5708, %v5727
  %5731 = vrot.lane.b32.xlu0 %v5729, 64
  %v5732 = vpop.permute.xlu0 %5731
  %v5734 = vadd.f32 %v5625, %v5732
  %v5735 = vadd.f32 %v5719, %v5734
  %v5736 = vld [vmem:[%s5] sm:$0xff]
  %v5737 = vld [vmem:[%s5 + $0x8] sm:$0xff]
  %v5738 = vld [vmem:[%s5 + $0x10] sm:$0xff]
  %v5739 = vld [vmem:[%s5 + $0x18] sm:$0xff]
  %v5741 = vsel %vm52, %v5719, 0
  %5743 = vmatprep.subr.mxu0 0.0
  %5744 = vmatpush1.msra.mxu0 %v5736
  %5745 = vmatprep.subr.mxu0 0.0
  %5746 = vmatpush1.msra.mxu0 %v5737
  %5747 = vmatprep.subr.mxu0 0.0
  %5748 = vmatpush1.msra.mxu0 %v5738
  %5749 = vmatprep.subr.mxu0 0.0
  %5750 = vmatpush1.msra.mxu0 %v5739
  %5751 = vmatprep.subr.mxu0 0.0
  %5752 = vmatpush1.msra.mxu0 0.0
  %5753 = vmatprep.subr.mxu0 0.0
  %5754 = vmatpush1.msra.mxu0 0.0
  %5755 = vmatprep.subr.mxu0 0.0
  %5756 = vmatpush1.msra.mxu0 0.0
  %5757 = vmatprep.subr.mxu0 0.0
  %5758 = vmatpush1.msra.mxu0 0.0
  %5759 = vmatprep.subr.mxu0 0.0
  %5760 = vmatpush1.msra.mxu0 0.0
  %5761 = vmatprep.subr.mxu0 0.0
  %5762 = vmatpush1.msra.mxu0 0.0
  %5763 = vmatprep.subr.mxu0 0.0
  %5764 = vmatpush1.msra.mxu0 0.0
  %5765 = vmatprep.subr.mxu0 0.0
  %5766 = vmatpush1.msra.mxu0 0.0
  %5767 = vmatprep.subr.mxu0 0.0
  %5768 = vmatpush1.msra.mxu0 0.0
  %5769 = vmatprep.subr.mxu0 0.0
  %5770 = vmatpush1.msra.mxu0 0.0
  %5771 = vmatprep.subr.mxu0 0.0
  %5772 = vmatpush1.msra.mxu0 0.0
  %5773 = vmatprep.subr.mxu0 0.0
  %5774 = vmatpush1.msra.mxu0 0.0
  %5775 = vmatprep.subr.mxu0 0.0
  %5776 = vmatpush1.msra.mxu0 0.0
  %5777 = vmatprep.subr.mxu0 0.0
  %5778 = vmatpush1.msra.mxu0 0.0
  %5779 = vmatprep.subr.mxu0 0.0
  %5780 = vmatpush1.msra.mxu0 0.0
  %5781 = vmatprep.subr.mxu0 0.0
  %5782 = vmatpush1.msra.mxu0 0.0
  %5783 = vmatprep.subr.mxu0 0.0
  %5784 = vmatpush1.msra.mxu0 0.0
  %5785 = vmatprep.subr.mxu0 0.0
  %5786 = vmatpush1.msra.mxu0 0.0
  %5787 = vmatprep.subr.mxu0 0.0
  %5788 = vmatpush1.msra.mxu0 0.0
  %5789 = vmatprep.subr.mxu0 0.0
  %5790 = vmatpush1.msra.mxu0 0.0
  %5791 = vmatprep.subr.mxu0 0.0
  %5792 = vmatpush1.msra.mxu0 0.0
  %5793 = vmatprep.subr.mxu0 0.0
  %5794 = vmatpush1.msra.mxu0 0.0
  %5795 = vmatprep.subr.mxu0 0.0
  %5796 = vmatpush1.msra.mxu0 0.0
  %5797 = vmatprep.subr.mxu0 0.0
  %5798 = vmatpush1.msra.mxu0 0.0
  %5799 = vmatprep.subr.mxu0 0.0
  %5800 = vmatpush1.msra.mxu0 0.0
  %5801 = vmatprep.subr.mxu0 0.0
  %5802 = vmatpush1.msra.mxu0 0.0
  %5803 = vmatprep.subr.mxu0 0.0
  %5804 = vmatpush1.msra.mxu0 0.0
  %5805 = vmatprep.subr.mxu0 0.0
  %5806 = vmatpush1.msra.mxu0 0.0
  %5807 = vmatprep.mubr.f32.mxu0 0.0
  %5808 = vmatmul.mubr.f32.gmra.mrb[0].mxu0 %v5741
  %v5809 = vpop.f32.mrb[0].mxu0
  %v5810 = vadd.f32 0.0, %v5809
  %v5811 = vpop.f32.mrb[0].mxu0
  %5812 = vdwg.mxu0
  %v5813 = vxor.u32 %v5810, 2147483648
  %v5814 = vmul.f32 %v5813, 1.442695
  %v5815 = vpow.pop %v5814
  %v5816 = vadd.f32 %v5815, 1.0
  %v5817 = vrcp.pop %v5816
  %v5818 = vmul.f32 1.0, %v5817
  %5819 = vrot.lane.b32.xlu0 %v5719, 32
  %v5820 = vpop.permute.xlu0 %5819
  %v5822 = vsub.f32 %v5818, %v5820
  %5824 = vrot.lane.b32.xlu0 %v5822, 96
  %v5825 = vpop.permute.xlu0 %5824
  %v5827 = vmul.f32 %v5818, %v5825
  %v5828 = vadd.f32 %v5719, %v5827
  %v5829 = vadd.f32 %v5735, %v5828
  %5830 = vrot.lane.b32.xlu0 %v5719, 96
  %v5831 = vpop.permute.xlu0 %5830
  %v5833 = vsub.f32 %v5810, %v5831
  %5835 = vrot.lane.b32.xlu0 %v5833, 96
  %v5836 = vpop.permute.xlu0 %5835
  %v5838 = vmul.f32 %v5818, %v5836
  %5840 = vrot.lane.b32.xlu0 %v5838, 64
  %v5841 = vpop.permute.xlu0 %5840
  %v5843 = vadd.f32 %v5719, %v5841
  %v5844 = vadd.f32 %v5829, %v5843
  %v5845 = vld [vmem:[%s6] sm:$0xff]
  %v5846 = vld [vmem:[%s6 + $0x8] sm:$0xff]
  %v5847 = vld [vmem:[%s6 + $0x10] sm:$0xff]
  %v5848 = vld [vmem:[%s6 + $0x18] sm:$0xff]
  %v5850 = vsel %vm52, %v5734, 0
  %5852 = vmatprep.subr.mxu0 0.0
  %5853 = vmatpush1.msra.mxu0 %v5845
  %5854 = vmatprep.subr.mxu0 0.0
  %5855 = vmatpush1.msra.mxu0 %v5846
  %5856 = vmatprep.subr.mxu0 0.0
  %5857 = vmatpush1.msra.mxu0 %v5847
  %5858 = vmatprep.subr.mxu0 0.0
  %5859 = vmatpush1.msra.mxu0 %v5848
  %5860 = vmatprep.subr.mxu0 0.0
  %5861 = vmatpush1.msra.mxu0 0.0
  %5862 = vmatprep.subr.mxu0 0.0
  %5863 = vmatpush1.msra.mxu0 0.0
  %5864 = vmatprep.subr.mxu0 0.0
  %5865 = vmatpush1.msra.mxu0 0.0
  %5866 = vmatprep.subr.mxu0 0.0
  %5867 = vmatpush1.msra.mxu0 0.0
  %5868 = vmatprep.subr.mxu0 0.0
  %5869 = vmatpush1.msra.mxu0 0.0
  %5870 = vmatprep.subr.mxu0 0.0
  %5871 = vmatpush1.msra.mxu0 0.0
  %5872 = vmatprep.subr.mxu0 0.0
  %5873 = vmatpush1.msra.mxu0 0.0
  %5874 = vmatprep.subr.mxu0 0.0
  %5875 = vmatpush1.msra.mxu0 0.0
  %5876 = vmatprep.subr.mxu0 0.0
  %5877 = vmatpush1.msra.mxu0 0.0
  %5878 = vmatprep.subr.mxu0 0.0
  %5879 = vmatpush1.msra.mxu0 0.0
  %5880 = vmatprep.subr.mxu0 0.0
  %5881 = vmatpush1.msra.mxu0 0.0
  %5882 = vmatprep.subr.mxu0 0.0
  %5883 = vmatpush1.msra.mxu0 0.0
  %5884 = vmatprep.subr.mxu0 0.0
  %5885 = vmatpush1.msra.mxu0 0.0
  %5886 = vmatprep.subr.mxu0 0.0
  %5887 = vmatpush1.msra.mxu0 0.0
  %5888 = vmatprep.subr.mxu0 0.0
  %5889 = vmatpush1.msra.mxu0 0.0
  %5890 = vmatprep.subr.mxu0 0.0
  %5891 = vmatpush1.msra.mxu0 0.0
  %5892 = vmatprep.subr.mxu0 0.0
  %5893 = vmatpush1.msra.mxu0 0.0
  %5894 = vmatprep.subr.mxu0 0.0
  %5895 = vmatpush1.msra.mxu0 0.0
  %5896 = vmatprep.subr.mxu0 0.0
  %5897 = vmatpush1.msra.mxu0 0.0
  %5898 = vmatprep.subr.mxu0 0.0
  %5899 = vmatpush1.msra.mxu0 0.0
  %5900 = vmatprep.subr.mxu0 0.0
  %5901 = vmatpush1.msra.mxu0 0.0
  %5902 = vmatprep.subr.mxu0 0.0
  %5903 = vmatpush1.msra.mxu0 0.0
  %5904 = vmatprep.subr.mxu0 0.0
  %5905 = vmatpush1.msra.mxu0 0.0
  %5906 = vmatprep.subr.mxu0 0.0
  %5907 = vmatpush1.msra.mxu0 0.0
  %5908 = vmatprep.subr.mxu0 0.0
  %5909 = vmatpush1.msra.mxu0 0.0
  %5910 = vmatprep.subr.mxu0 0.0
  %5911 = vmatpush1.msra.mxu0 0.0
  %5912 = vmatprep.subr.mxu0 0.0
  %5913 = vmatpush1.msra.mxu0 0.0
  %5914 = vmatprep.subr.mxu0 0.0
  %5915 = vmatpush1.msra.mxu0 0.0
  %5916 = vmatprep.mubr.f32.mxu0 0.0
  %5917 = vmatmul.mubr.f32.gmra.mrb[0].mxu0 %v5850
  %v5918 = vpop.f32.mrb[0].mxu0
  %v5919 = vadd.f32 0.0, %v5918
  %v5920 = vpop.f32.mrb[0].mxu0
  %5921 = vdwg.mxu0
  %v5922 = vxor.u32 %v5919, 2147483648
  %v5923 = vmul.f32 %v5922, 1.442695
  %v5924 = vpow.pop %v5923
  %v5925 = vadd.f32 %v5924, 1.0
  %v5926 = vrcp.pop %v5925
  %v5927 = vmul.f32 1.0, %v5926
  %v5928 = vtanh.pop %v5919
  %5929 = vrot.lane.b32.xlu0 %v5734, 32
  %v5930 = vpop.permute.xlu0 %5929
  %v5932 = vsub.f32 %v5928, %v5930
  %5934 = vrot.lane.b32.xlu0 %v5932, 96
  %v5935 = vpop.permute.xlu0 %5934
  %v5937 = vmul.f32 %v5927, %v5935
  %v5938 = vadd.f32 %v5734, %v5937
  %v5939 = vadd.f32 %v5844, %v5938
  %v5940 = vld [vmem:[%s7] sm:$0xff]
  %v5941 = vld [vmem:[%s7 + $0x8] sm:$0xff]
  %v5942 = vld [vmem:[%s7 + $0x10] sm:$0xff]
  %v5943 = vld [vmem:[%s7 + $0x18] sm:$0xff]
  %v5945 = vsel %vm52, %v5828, 0
  %5947 = vmatprep.subr.mxu0 0.0
  %5948 = vmatpush1.msra.mxu0 %v5940
  %5949 = vmatprep.subr.mxu0 0.0
  %5950 = vmatpush1.msra.mxu0 %v5941
  %5951 = vmatprep.subr.mxu0 0.0
  %5952 = vmatpush1.msra.mxu0 %v5942
  %5953 = vmatprep.subr.mxu0 0.0
  %5954 = vmatpush1.msra.mxu0 %v5943
  %5955 = vmatprep.subr.mxu0 0.0
  %5956 = vmatpush1.msra.mxu0 0.0
  %5957 = vmatprep.subr.mxu0 0.0
  %5958 = vmatpush1.msra.mxu0 0.0
  %5959 = vmatprep.subr.mxu0 0.0
  %5960 = vmatpush1.msra.mxu0 0.0
  %5961 = vmatprep.subr.mxu0 0.0
  %5962 = vmatpush1.msra.mxu0 0.0
  %5963 = vmatprep.subr.mxu0 0.0
  %5964 = vmatpush1.msra.mxu0 0.0
  %5965 = vmatprep.subr.mxu0 0.0
  %5966 = vmatpush1.msra.mxu0 0.0
  %5967 = vmatprep.subr.mxu0 0.0
  %5968 = vmatpush1.msra.mxu0 0.0
  %5969 = vmatprep.subr.mxu0 0.0
  %5970 = vmatpush1.msra.mxu0 0.0
  %5971 = vmatprep.subr.mxu0 0.0
  %5972 = vmatpush1.msra.mxu0 0.0
  %5973 = vmatprep.subr.mxu0 0.0
  %5974 = vmatpush1.msra.mxu0 0.0
  %5975 = vmatprep.subr.mxu0 0.0
  %5976 = vmatpush1.msra.mxu0 0.0
  %5977 = vmatprep.subr.mxu0 0.0
  %5978 = vmatpush1.msra.mxu0 0.0
  %5979 = vmatprep.subr.mxu0 0.0
  %5980 = vmatpush1.msra.mxu0 0.0
  %5981 = vmatprep.subr.mxu0 0.0
  %5982 = vmatpush1.msra.mxu0 0.0
  %5983 = vmatprep.subr.mxu0 0.0
  %5984 = vmatpush1.msra.mxu0 0.0
  %5985 = vmatprep.subr.mxu0 0.0
  %5986 = vmatpush1.msra.mxu0 0.0
  %5987 = vmatprep.subr.mxu0 0.0
  %5988 = vmatpush1.msra.mxu0 0.0
  %5989 = vmatprep.subr.mxu0 0.0
  %5990 = vmatpush1.msra.mxu0 0.0
  %5991 = vmatprep.subr.mxu0 0.0
  %5992 = vmatpush1.msra.mxu0 0.0
  %5993 = vmatprep.subr.mxu0 0.0
  %5994 = vmatpush1.msra.mxu0 0.0
  %5995 = vmatprep.subr.mxu0 0.0
  %5996 = vmatpush1.msra.mxu0 0.0
  %5997 = vmatprep.subr.mxu0 0.0
  %5998 = vmatpush1.msra.mxu0 0.0
  %5999 = vmatprep.subr.mxu0 0.0
  %6000 = vmatpush1.msra.mxu0 0.0
  %6001 = vmatprep.subr.mxu0 0.0
  %6002 = vmatpush1.msra.mxu0 0.0
  %6003 = vmatprep.subr.mxu0 0.0
  %6004 = vmatpush1.msra.mxu0 0.0
  %6005 = vmatprep.subr.mxu0 0.0
  %6006 = vmatpush1.msra.mxu0 0.0
  %6007 = vmatprep.subr.mxu0 0.0
  %6008 = vmatpush1.msra.mxu0 0.0
  %6009 = vmatprep.subr.mxu0 0.0
  %6010 = vmatpush1.msra.mxu0 0.0
  %6011 = vmatprep.mubr.f32.mxu0 0.0
  %6012 = vmatmul.mubr.f32.gmra.mrb[0].mxu0 %v5945
  %v6013 = vpop.f32.mrb[0].mxu0
  %v6014 = vadd.f32 0.0, %v6013
  %v6015 = vpop.f32.mrb[0].mxu0
  %6016 = vdwg.mxu0
  %v6017 = vxor.u32 %v6014, 2147483648
  %v6018 = vmul.f32 %v6017, 1.442695
  %v6019 = vpow.pop %v6018
  %v6020 = vadd.f32 %v6019, 1.0
  %v6021 = vrcp.pop %v6020
  %v6022 = vmul.f32 1.0, %v6021
  %v6023 = vmax.f32 %v6014, 0.0
  %6024 = vrot.lane.b32.xlu0 %v5828, 32
  %v6025 = vpop.permute.xlu0 %6024
  %v6027 = vsub.f32 %v6023, %v6025
  %6029 = vrot.lane.b32.xlu0 %v6027, 96
  %v6030 = vpop.permute.xlu0 %6029
  %v6032 = vmul.f32 %v6022, %v6030
  %v6033 = vadd.f32 %v5828, %v6032
  %v6034 = vadd.f32 %v5939, %v6033
  %v6035 = vld [vmem:[%s8] sm:$0xff]
  %v6036 = vld [vmem:[%s8 + $0x8] sm:$0xff]
  %v6037 = vld [vmem:[%s8 + $0x10] sm:$0xff]
  %v6038 = vld [vmem:[%s8 + $0x18] sm:$0xff]
  %v6040 = vsel %vm52, %v5843, 0
  %6042 = vmatprep.subr.mxu0 0.0
  %6043 = vmatpush1.msra.mxu0 %v6035
  %6044 = vmatprep.subr.mxu0 0.0
  %6045 = vmatpush1.msra.mxu0 %v6036
  %6046 = vmatprep.subr.mxu0 0.0
  %6047 = vmatpush1.msra.mxu0 %v6037
  %6048 = vmatprep.subr.mxu0 0.0
  %6049 = vmatpush1.msra.mxu0 %v6038
  %6050 = vmatprep.subr.mxu0 0.0
  %6051 = vmatpush1.msra.mxu0 0.0
  %6052 = vmatprep.subr.mxu0 0.0
  %6053 = vmatpush1.msra.mxu0 0.0
  %6054 = vmatprep.subr.mxu0 0.0
  %6055 = vmatpush1.msra.mxu0 0.0
  %6056 = vmatprep.subr.mxu0 0.0
  %6057 = vmatpush1.msra.mxu0 0.0
  %6058 = vmatprep.subr.mxu0 0.0
  %6059 = vmatpush1.msra.mxu0 0.0
  %6060 = vmatprep.subr.mxu0 0.0
  %6061 = vmatpush1.msra.mxu0 0.0
  %6062 = vmatprep.subr.mxu0 0.0
  %6063 = vmatpush1.msra.mxu0 0.0
  %6064 = vmatprep.subr.mxu0 0.0
  %6065 = vmatpush1.msra.mxu0 0.0
  %6066 = vmatprep.subr.mxu0 0.0
  %6067 = vmatpush1.msra.mxu0 0.0
  %6068 = vmatprep.subr.mxu0 0.0
  %6069 = vmatpush1.msra.mxu0 0.0
  %6070 = vmatprep.subr.mxu0 0.0
  %6071 = vmatpush1.msra.mxu0 0.0
  %6072 = vmatprep.subr.mxu0 0.0
  %6073 = vmatpush1.msra.mxu0 0.0
  %6074 = vmatprep.subr.mxu0 0.0
  %6075 = vmatpush1.msra.mxu0 0.0
  %6076 = vmatprep.subr.mxu0 0.0
  %6077 = vmatpush1.msra.mxu0 0.0
  %6078 = vmatprep.subr.mxu0 0.0
  %6079 = vmatpush1.msra.mxu0 0.0
  %6080 = vmatprep.subr.mxu0 0.0
  %6081 = vmatpush1.msra.mxu0 0.0
  %6082 = vmatprep.subr.mxu0 0.0
  %6083 = vmatpush1.msra.mxu0 0.0
  %6084 = vmatprep.subr.mxu0 0.0
  %6085 = vmatpush1.msra.mxu0 0.0
  %6086 = vmatprep.subr.mxu0 0.0
  %6087 = vmatpush1.msra.mxu0 0.0
  %6088 = vmatprep.subr.mxu0 0.0
  %6089 = vmatpush1.msra.mxu0 0.0
  %6090 = vmatprep.subr.mxu0 0.0
  %6091 = vmatpush1.msra.mxu0 0.0
  %6092 = vmatprep.subr.mxu0 0.0
  %6093 = vmatpush1.msra.mxu0 0.0
  %6094 = vmatprep.subr.mxu0 0.0
  %6095 = vmatpush1.msra.mxu0 0.0
  %6096 = vmatprep.subr.mxu0 0.0
  %6097 = vmatpush1.msra.mxu0 0.0
  %6098 = vmatprep.subr.mxu0 0.0
  %6099 = vmatpush1.msra.mxu0 0.0
  %6100 = vmatprep.subr.mxu0 0.0
  %6101 = vmatpush1.msra.mxu0 0.0
  %6102 = vmatprep.subr.mxu0 0.0
  %6103 = vmatpush1.msra.mxu0 0.0
  %6104 = vmatprep.subr.mxu0 0.0
  %6105 = vmatpush1.msra.mxu0 0.0
  %6106 = vmatprep.mubr.f32.mxu0 0.0
  %6107 = vmatmul.mubr.f32.gmra.mrb[0].mxu0 %v6040
  %v6108 = vpop.f32.mrb[0].mxu0
  %v6109 = vadd.f32 0.0, %v6108
  %v6110 = vpop.f32.mrb[0].mxu0
  %6111 = vdwg.mxu0
  %v6112 = vxor.u32 %v6109, 2147483648
  %v6113 = vmul.f32 %v6112, 1.442695
  %v6114 = vpow.pop %v6113
  %v6115 = vadd.f32 %v6114, 1.0
  %v6116 = vrcp.pop %v6115
  %v6117 = vmul.f32 1.0, %v6116
  %6118 = vrot.lane.b32.xlu0 %v5843, 32
  %v6119 = vpop.permute.xlu0 %6118
  %v6121 = vsub.f32 %v6117, %v6119
  %6123 = vrot.lane.b32.xlu0 %v6121, 96
  %v6124 = vpop.permute.xlu0 %6123
  %v6126 = vmul.f32 %v6117, %v6124
  %v6127 = vadd.f32 %v5843, %v6126
  %v6128 = vadd.f32 %v6034, %v6127
  %v6129 = vld [vmem:[%s9] sm:$0xff]
  %v6130 = vld [vmem:[%s9 + $0x8] sm:$0xff]
  %v6131 = vld [vmem:[%s9 + $0x10] sm:$0xff]
  %v6132 = vld [vmem:[%s9 + $0x18] sm:$0xff]
  %v6134 = vsel %vm52, %v5938, 0
  %6136 = vmatprep.subr.mxu0 0.0
  %6137 = vmatpush1.msra.mxu0 %v6129
  %6138 = vmatprep.subr.mxu0 0.0
  %6139 = vmatpush1.msra.mxu0 %v6130
  %6140 = vmatprep.subr.mxu0 0.0
  %6141 = vmatpush1.msra.mxu0 %v6131
  %6142 = vmatprep.subr.mxu0 0.0
  %6143 = vmatpush1.msra.mxu0 %v6132
  %6144 = vmatprep.subr.mxu0 0.0
  %6145 = vmatpush1.msra.mxu0 0.0
  %6146 = vmatprep.subr.mxu0 0.0
  %6147 = vmatpush1.msra.mxu0 0.0
  %6148 = vmatprep.subr.mxu0 0.0
  %6149 = vmatpush1.msra.mxu0 0.0
  %6150 = vmatprep.subr.mxu0 0.0
  %6151 = vmatpush1.msra.mxu0 0.0
  %6152 = vmatprep.subr.mxu0 0.0
  %6153 = vmatpush1.msra.mxu0 0.0
  %6154 = vmatprep.subr.mxu0 0.0
  %6155 = vmatpush1.msra.mxu0 0.0
  %6156 = vmatprep.subr.mxu0 0.0
  %6157 = vmatpush1.msra.mxu0 0.0
  %6158 = vmatprep.subr.mxu0 0.0
  %6159 = vmatpush1.msra.mxu0 0.0
  %6160 = vmatprep.subr.mxu0 0.0
  %6161 = vmatpush1.msra.mxu0 0.0
  %6162 = vmatprep.subr.mxu0 0.0
  %6163 = vmatpush1.msra.mxu0 0.0
  %6164 = vmatprep.subr.mxu0 0.0
  %6165 = vmatpush1.msra.mxu0 0.0
  %6166 = vmatprep.subr.mxu0 0.0
  %6167 = vmatpush1.msra.mxu0 0.0
  %6168 = vmatprep.subr.mxu0 0.0
  %6169 = vmatpush1.msra.mxu0 0.0
  %6170 = vmatprep.subr.mxu0 0.0
  %6171 = vmatpush1.msra.mxu0 0.0
  %6172 = vmatprep.subr.mxu0 0.0
  %6173 = vmatpush1.msra.mxu0 0.0
  %6174 = vmatprep.subr.mxu0 0.0
  %6175 = vmatpush1.msra.mxu0 0.0
  %6176 = vmatprep.subr.mxu0 0.0
  %6177 = vmatpush1.msra.mxu0 0.0
  %6178 = vmatprep.subr.mxu0 0.0
  %6179 = vmatpush1.msra.mxu0 0.0
  %6180 = vmatprep.subr.mxu0 0.0
  %6181 = vmatpush1.msra.mxu0 0.0
  %6182 = vmatprep.subr.mxu0 0.0
  %6183 = vmatpush1.msra.mxu0 0.0
  %6184 = vmatprep.subr.mxu0 0.0
  %6185 = vmatpush1.msra.mxu0 0.0
  %6186 = vmatprep.subr.mxu0 0.0
  %6187 = vmatpush1.msra.mxu0 0.0
  %6188 = vmatprep.subr.mxu0 0.0
  %6189 = vmatpush1.msra.mxu0 0.0
  %6190 = vmatprep.subr.mxu0 0.0
  %6191 = vmatpush1.msra.mxu0 0.0
  %6192 = vmatprep.subr.mxu0 0.0
  %6193 = vmatpush1.msra.mxu0 0.0
  %6194 = vmatprep.subr.mxu0 0.0
  %6195 = vmatpush1.msra.mxu0 0.0
  %6196 = vmatprep.subr.mxu0 0.0
  %6197 = vmatpush1.msra.mxu0 0.0
  %6198 = vmatprep.subr.mxu0 0.0
  %6199 = vmatpush1.msra.mxu0 0.0
  %6200 = vmatprep.mubr.f32.mxu0 0.0
  %6201 = vmatmul.mubr.f32.gmra.mrb[0].mxu0 %v6134
  %v6202 = vpop.f32.mrb[0].mxu0
  %v6203 = vadd.f32 0.0, %v6202
  %v6204 = vpop.f32.mrb[0].mxu0
  %6205 = vdwg.mxu0
  %v6206 = vxor.u32 %v6203, 2147483648
  %v6207 = vmul.f32 %v6206, 1.442695
  %v6208 = vpow.pop %v6207
  %v6209 = vadd.f32 %v6208, 1.0
  %v6210 = vrcp.pop %v6209
  %v6211 = vmul.f32 1.0, %v6210
  %6212 = vrot.lane.b32.xlu0 %v5938, 32
  %v6213 = vpop.permute.xlu0 %6212
  %v6215 = vsub.f32 %v6203, %v6213
  %6217 = vrot.lane.b32.xlu0 %v6215, 96
  %v6218 = vpop.permute.xlu0 %6217
  %v6220 = vmul.f32 %v6211, %v6218
  %v6221 = vadd.f32 %v5938, %v6220
  %v6222 = vadd.f32 %v6128, %v6221
  %v6223 = vmul.f32 %v6222, 0.125
  %s6224 = scalar_lea.vmem %s10, 56
  %6225 = vst.msk [vmem:[%s6224] sm:$0xff] %vm52, %v6223
  %6226 = vst.msk [vmem:[#allocation2] sm:$0xff] %vm52, %v6223
  // Predicated region
  $region46: #{nao_cell_forward.1} parent=0 // pred_check
    _
  $region47: #{nao_cell_forward.1} parent=0 // pred_check_branch
    %6228 = sbr.rel (0) target = $region49
  $region48: #{nao_cell_forward.1} parent=0 // pred_region
    _
  $region49: #{nao_cell_forward.1} parent=0 // pred_fallthru
    _
  // Predicated region
  $region50: #{nao_cell_forward.1} parent=0 // pred_check
    _
  $region51: #{nao_cell_forward.1} parent=0 // pred_check_branch
    %6230 = sbr.rel (0) target = $region53
  $region52: #{nao_cell_forward.1} parent=0 // pred_region
    _
  $region53: #{nao_cell_forward.1} parent=0 // pred_fallthru
    _

</llo_original>
